<compile_context>
chip_gen: v7x
topology: tpu7x:2x2x1
jax: 0.10.0
libtpu: 0.0.40
codegen_flags: <defaults>
</compile_context>

<pallas_src>
import functools

import jax
import jax.numpy as jnp
from jax.experimental import pallas as pl
from jax.experimental.pallas import tpu as pltpu

# ----------------------------- model sizes ---------------------------------
C_IN = 3          # RGB input
C_STEM = 32       # stem conv output channels
C_EXP = 128       # MBConv expanded channels
C_SE = 8          # squeeze-excite reduced channels
C_PROJ = 64       # MBConv projected channels
C_HEAD = 1792     # EfficientNet-b4 head features (= efficient_net._fc.in_features)
NUM_CLASSES = 18  # replaced FC head: Linear(1792, 18)
K_STEM_PAD = 32   # stem im2col contraction dim padded 27 -> 32
FC_PAD = 128      # FC output lanes padded 18 -> 128 (lane-dense store)

VMEM_LIMIT = 32 * 1024 * 1024


# ------------------------------ small helpers -------------------------------
def _round_up(x, m):
    return ((x + m - 1) // m) * m


def _pick_tile(total, cap, align=1):
    """Largest divisor of `total` that is <= cap and a multiple of `align`
    (falls back to `total`)."""
    t = (min(total, cap) // align) * align
    while t >= align:
        if total % t == 0:
            return t
        t -= align
    return total


# ------------------------- Pallas kernel bodies -----------------------------
def _stem_expand_kernel(p_ref, ws_ref, bs_ref, we_ref, be_ref, o_ref):
    """Fused stem conv (as matmul) + swish + MBConv expand 1x1 + swish."""
    h = jnp.dot(p_ref[...], ws_ref[...],
                preferred_element_type=jnp.float32) + bs_ref[...]
    h = h * jax.nn.sigmoid(h)                                  # swish, f32
    y = jnp.dot(h.astype(jnp.bfloat16), we_ref[...],
                preferred_element_type=jnp.float32) + be_ref[...]
    y = y * jax.nn.sigmoid(y)                                  # swish, f32
    o_ref[...] = y.astype(o_ref.dtype)


def _dwconv_se_kernel(fp_hbm, w_ref, b_ref, w1_ref, b1_ref, w2_ref, b2_ref,
                      o_ref, g_ref, strip, sem, psum,
                      *, tile_h, wo, c, inv_hw):
    """Depthwise 3x3 + swish on a halo row-strip DMA'd from HBM, with fused
    squeeze-excite pooling (accumulated across H tiles) and gate emission."""
    n = pl.program_id(0)
    ht = pl.program_id(1)
    h0 = pl.multiple_of(ht * tile_h, tile_h)

    @pl.when(ht == 0)
    def _():
        psum[...] = jnp.zeros_like(psum)

    # Manual halo-strip DMA: (tile_h + 2, wo + 2, c) rows of the padded feature map.
    cp = pltpu.make_async_copy(fp_hbm.at[n, pl.ds(h0, tile_h + 2)], strip, sem)
    cp.start()
    cp.wait()

    # Unrolled 9-tap FMA chain (VPU), reading shifted windows straight from scratch.
    acc = strip[0:tile_h, 0:wo, :] * w_ref[0]
    for k in range(1, 9):
        kh, kw = k // 3, k % 3
        acc = acc + strip[kh:kh + tile_h, kw:kw + wo, :] * w_ref[k]
    acc = acc + b_ref[...]
    acc = acc * jax.nn.sigmoid(acc)                            # swish
    o_ref[0] = acc.astype(o_ref.dtype)

    # Squeeze-excite: accumulate channel sums; compute gate at the last H tile.
    psum[...] += jnp.sum(acc, axis=(0, 1))[None, :]            # (1, c)

    @pl.when(ht == pl.num_programs(1) - 1)
    def _():
        pooled = psum[...] * inv_hw                            # (1, c)
        s = jnp.dot(pooled, w1_ref[...],
                    preferred_element_type=jnp.float32) + b1_ref[...]
        s = s * jax.nn.sigmoid(s)                              # swish
        g = jax.nn.sigmoid(
            jnp.dot(s, w2_ref[...], preferred_element_type=jnp.float32) + b2_ref[...])
        g_ref[...] = g[None].astype(g_ref.dtype)               # (1, 1, c)


def _head_kernel(x_ref, g_ref, wc_ref, bc_ref, wf_ref, bf_ref, o_ref, psum_ref,
                 *, inv_hw):
    """SE gate * features, combined (proj o head) 1x1 + swish, tiled global-average
    pooling accumulation, and (at the last tile) Linear(1792->18 padded)+sigmoid."""
    t = pl.program_id(1)

    @pl.when(t == 0)
    def _():
        psum_ref[...] = jnp.zeros_like(psum_ref)

    xg = x_ref[0] * g_ref[0]                                   # (tile_hw, C_EXP), f32
    h = jnp.dot(xg.astype(jnp.bfloat16), wc_ref[...],
                preferred_element_type=jnp.float32) + bc_ref[...]
    h = h * jax.nn.sigmoid(h)                                  # swish
    psum_ref[...] += jnp.sum(h, axis=0, keepdims=True)         # (1, C_HEAD)

    @pl.when(t == pl.num_programs(1) - 1)
    def _():
        pooled = psum_ref[...] * inv_hw                        # (1, C_HEAD)
        # Dropout(p=0.5) is identity at inference.
        logits = jnp.dot(pooled.astype(jnp.bfloat16), wf_ref[...],
                         preferred_element_type=jnp.float32) + bf_ref[...]
        o_ref[...] = jax.nn.sigmoid(logits)[None].astype(o_ref.dtype)


# --------------------------- pallas_call wrappers ---------------------------
def stem_expand(patches_bf16, ws, bs, we, be, tile_m=512):
    """Fused: swish(patches @ stem_w + b) @ exp_w + b -> swish ; output (M, C_EXP)."""
    M, K = patches_bf16.shape
    tile_m = min(tile_m, _round_up(M, 8))
    Mp = _round_up(M, tile_m)
    if Mp != M:
        patches_bf16 = jnp.pad(patches_bf16, ((0, Mp - M), (0, 0)))
    out = pl.pallas_call(
        _stem_expand_kernel,
        out_shape=jax.ShapeDtypeStruct((Mp, C_EXP), jnp.float32),
        grid=(Mp // tile_m,),
        in_specs=[
            pl.BlockSpec((tile_m, K), lambda i: (i, 0)),
            pl.BlockSpec((K, C_STEM), lambda i: (0, 0)),
            pl.BlockSpec((1, C_STEM), lambda i: (0, 0)),
            pl.BlockSpec((C_STEM, C_EXP), lambda i: (0, 0)),
            pl.BlockSpec((1, C_EXP), lambda i: (0, 0)),
        ],
        out_specs=pl.BlockSpec((tile_m, C_EXP), lambda i: (i, 0)),
        compiler_params=pltpu.CompilerParams(
            dimension_semantics=("parallel",),
            vmem_limit_bytes=VMEM_LIMIT),
    )(patches_bf16, ws, bs, we, be)
    return out[:M]


def dwconv3x3_se(fp, dw_w, dw_b, se_w1, se_b1, se_w2, se_b2, *, n, ho, wo):
    """Depthwise 3x3 + swish + SE gate. `fp` is the zero-padded feature map
    (n, ho+2, wo+2, C_EXP) kept in HBM (pl.ANY); row strips are DMA'd manually."""
    c = C_EXP
    tile_h = _pick_tile(ho, 8)
    kernel = functools.partial(_dwconv_se_kernel, tile_h=tile_h, wo=wo, c=c,
                               inv_hw=1.0 / float(ho * wo))
    return pl.pallas_call(
        kernel,
        out_shape=(jax.ShapeDtypeStruct((n, ho, wo, c), jnp.float32),
                   jax.ShapeDtypeStruct((n, 1, c), jnp.float32)),
        grid=(n, ho // tile_h),
        in_specs=[
            pl.BlockSpec(memory_space=pl.ANY),                    # padded feature map (HBM)
            pl.BlockSpec((9, c), lambda i, j: (0, 0)),
            pl.BlockSpec((1, c), lambda i, j: (0, 0)),
            pl.BlockSpec((c, C_SE), lambda i, j: (0, 0)),
            pl.BlockSpec((1, C_SE), lambda i, j: (0, 0)),
            pl.BlockSpec((C_SE, c), lambda i, j: (0, 0)),
            pl.BlockSpec((1, c), lambda i, j: (0, 0)),
        ],
        out_specs=(pl.BlockSpec((1, tile_h, wo, c), lambda i, j: (i, j, 0, 0)),
                   pl.BlockSpec((1, 1, c), lambda i, j: (i, 0, 0))),
        scratch_shapes=[
            pltpu.VMEM((tile_h + 2, wo + 2, c), jnp.float32),     # halo strip
            pltpu.SemaphoreType.DMA(()),
            pltpu.VMEM((1, c), jnp.float32),                      # SE pooled sum
        ],
        compiler_params=pltpu.CompilerParams(
            dimension_semantics=("parallel", "arbitrary"),
            vmem_limit_bytes=VMEM_LIMIT),
    )(fp, dw_w, dw_b, se_w1, se_b1, se_w2, se_b2)


def head_fused(feat_seq, gate, comb_w, comb_b, fc_w, fc_b, tile_hw_cap=512):
    """Gate * feat, combined proj/head 1x1 + swish, tiled pooling accumulation,
    FC + sigmoid at the last tile.  feat_seq: (N, HW, C_EXP)."""
    n, hw, c = feat_seq.shape
    tile_hw = _pick_tile(hw, tile_hw_cap, align=8)
    kernel = functools.partial(_head_kernel, inv_hw=1.0 / float(hw))
    return pl.pallas_call(
        kernel,
        out_shape=jax.ShapeDtypeStruct((n, 1, FC_PAD), jnp.float32),
        grid=(n, hw // tile_hw),
        in_specs=[
            pl.BlockSpec((1, tile_hw, c), lambda i, j: (i, j, 0)),
            pl.BlockSpec((1, 1, c), lambda i, j: (i, 0, 0)),
            pl.BlockSpec((c, C_HEAD), lambda i, j: (0, 0)),
            pl.BlockSpec((1, C_HEAD), lambda i, j: (0, 0)),
            pl.BlockSpec((C_HEAD, FC_PAD), lambda i, j: (0, 0)),
            pl.BlockSpec((1, FC_PAD), lambda i, j: (0, 0)),
        ],
        out_specs=pl.BlockSpec((1, 1, FC_PAD), lambda i, j: (i, 0, 0)),
        scratch_shapes=[pltpu.VMEM((1, C_HEAD), jnp.float32)],
        compiler_params=pltpu.CompilerParams(
            dimension_semantics=("parallel", "arbitrary"),
            vmem_limit_bytes=VMEM_LIMIT),
    )(feat_seq, gate, comb_w, comb_b, fc_w, fc_b)


# ------------------------------- parameters ---------------------------------
def init_params(key):
    ks = jax.random.split(key, 12)
    s = 0.05
    return {
        "stem_w": jax.random.normal(ks[0], (3 * 3 * C_IN, C_STEM), jnp.float32) * s,
        "stem_b": jax.random.normal(ks[1], (C_STEM,), jnp.float32) * s,
        "exp_w": jax.random.normal(ks[2], (C_STEM, C_EXP), jnp.float32) * s,
        "exp_b": jax.random.normal(ks[3], (C_EXP,), jnp.float32) * s,
        "dw_w": jax.random.normal(ks[4], (9, C_EXP), jnp.float32) * s,
        "dw_b": jax.random.normal(ks[5], (C_EXP,), jnp.float32) * s,
        "se_w1": jax.random.normal(ks[6], (C_EXP, C_SE), jnp.float32) * s,
        "se_b1": jnp.zeros((C_SE,), jnp.float32),
        "se_w2": jax.random.normal(ks[7], (C_SE, C_EXP), jnp.float32) * s,
        "se_b2": jnp.zeros((C_EXP,), jnp.float32),
        "proj_w": jax.random.normal(ks[8], (C_EXP, C_PROJ), jnp.float32) * s,
        "proj_b": jax.random.normal(ks[9], (C_PROJ,), jnp.float32) * s,
        "head_w": jax.random.normal(ks[10], (C_PROJ, C_HEAD), jnp.float32) * s,
        "head_b": jnp.zeros((C_HEAD,), jnp.float32),
        "fc_w": jax.random.normal(ks[11], (C_HEAD, NUM_CLASSES), jnp.float32) * s,
        "fc_b": jnp.zeros((NUM_CLASSES,), jnp.float32),
    }


# ------------------------------- forward ------------------------------------
@jax.jit
def cnn_model_forward(x_nchw, p):
    N, _, H, W = x_nchw.shape
    Ho, Wo = H // 2, W // 2                       # stem stride 2
    HW = Ho * Wo
    x = jnp.transpose(x_nchw, (0, 2, 3, 1))       # NCHW -> NHWC (glue)

    # --- stem im2col (glue), K padded 27 -> 32, bf16 matmul operands
    xp = jnp.pad(x, ((0, 0), (1, 1), (1, 1), (0, 0)))
    patches = jnp.stack(
        [xp[:, kh:kh + 2 * Ho:2, kw:kw + 2 * Wo:2, :]
         for kh in range(3) for kw in range(3)], axis=3)       # (N,Ho,Wo,9,Cin)
    patches = patches.reshape(N * HW, 9 * C_IN)
    patches = jnp.pad(patches, ((0, 0), (0, K_STEM_PAD - 9 * C_IN))).astype(jnp.bfloat16)
    stem_w = jnp.pad(p["stem_w"], ((0, K_STEM_PAD - 9 * C_IN), (0, 0))).astype(jnp.bfloat16)
    exp_w = p["exp_w"].astype(jnp.bfloat16)

    # --- fused stem conv + swish + expand 1x1 + swish (Pallas)
    feat = stem_expand(patches, stem_w, p["stem_b"].reshape(1, -1),
                       exp_w, p["exp_b"].reshape(1, -1))                     # (N*HW, 128)

    # --- depthwise 3x3 + swish + SE pooled gate (halo-strip DMA kernel)
    fp = jnp.pad(feat.reshape(N, Ho, Wo, C_EXP), ((0, 0), (1, 1), (1, 1), (0, 0)))
    dw_out, gate = dwconv3x3_se(fp, p["dw_w"], p["dw_b"].reshape(1, -1),
                                p["se_w1"], p["se_b1"].reshape(1, -1),
                                p["se_w2"], p["se_b2"].reshape(1, -1),
                                n=N, ho=Ho, wo=Wo)
    # dw_out: (N, Ho, Wo, 128) f32 ; gate: (N, 1, 128) f32

    # --- fold projection 1x1 (no activation) into the head 1x1 (glue algebra)
    comb_w = (p["proj_w"] @ p["head_w"]).astype(jnp.bfloat16)                # (128, 1792)
    comb_b = (p["proj_b"] @ p["head_w"] + p["head_b"]).reshape(1, -1)        # (1, 1792)
    fc_w = jnp.pad(p["fc_w"], ((0, 0), (0, FC_PAD - NUM_CLASSES))).astype(jnp.bfloat16)
    fc_b = jnp.pad(p["fc_b"], (0, FC_PAD - NUM_CLASSES)).reshape(1, -1)

    # --- fused head: SE gate * feat, (proj o head) 1x1 + swish, tiled global avg pool,
    #     Linear(1792->18)+sigmoid at the last tile (Dropout identity at inference)
    out = head_fused(dw_out.reshape(N, HW, C_EXP), gate, comb_w, comb_b, fc_w, fc_b)
    return out[:, 0, :NUM_CLASSES]                                           # (N, 18)


if __name__ == "__main__":
    key = jax.random.PRNGKey(0)
    x = jax.random.normal(key, (2, 3, 32, 32), jnp.float32)   # NCHW like PyTorch
    params = init_params(jax.random.PRNGKey(1))

    out = cnn_model_forward(x, params)
    out = jax.block_until_ready(out)

    assert out.shape == (2, NUM_CLASSES)
    assert bool(jnp.all(jnp.isfinite(out)))
    assert bool(jnp.all((out > 0.0) & (out < 1.0)))   # sigmoid output range
    print("KERNEL_OK")
</pallas_src>

<mosaic_0001>
module attributes {stable_mosaic.version = 11 : i64} {
  func.func @_stem_expand_kernel(%arg0: i32, %arg1: memref<512x32xbf16, #tpu.memory_space<vmem>>, %arg2: memref<32x32xbf16, #tpu.memory_space<vmem>>, %arg3: memref<1x32xf32, #tpu.memory_space<vmem>>, %arg4: memref<32x128xbf16, #tpu.memory_space<vmem>>, %arg5: memref<1x128xf32, #tpu.memory_space<vmem>>, %arg6: memref<512x128xf32, #tpu.memory_space<vmem>>) attributes {dimension_semantics = [#tpu.dimension_semantics<parallel>], iteration_bounds = array<i64: 1>, scalar_prefetch = 0 : i64, scratch_operands = 0 : i64, tpu.core_type = #tpu.core_type<tc>, window_params = [{transform_indices = @transform_0, window_bounds = array<i64: 512, 32>}, {pipeline_mode = #tpu.pipeline_mode<synchronous>, transform_indices = @transform_1, window_bounds = array<i64: 32, 32>}, {pipeline_mode = #tpu.pipeline_mode<synchronous>, transform_indices = @transform_2, window_bounds = array<i64: 1, 32>}, {pipeline_mode = #tpu.pipeline_mode<synchronous>, transform_indices = @transform_3, window_bounds = array<i64: 32, 128>}, {pipeline_mode = #tpu.pipeline_mode<synchronous>, transform_indices = @transform_4, window_bounds = array<i64: 1, 128>}, {transform_indices = @transform_5, window_bounds = array<i64: 512, 128>}]} {
    %c0 = arith.constant 0 : index
    %c0_0 = arith.constant 0 : index
    %0 = vector.load %arg1[%c0, %c0_0] : memref<512x32xbf16, #tpu.memory_space<vmem>>, vector<512x32xbf16>
    %c0_1 = arith.constant 0 : index
    %c0_2 = arith.constant 0 : index
    %1 = vector.load %arg2[%c0_1, %c0_2] : memref<32x32xbf16, #tpu.memory_space<vmem>>, vector<32x32xbf16>
    %cst = arith.constant dense<0.000000e+00> : vector<512x32xf32>
    %2 = tpu.matmul %0, %1, %cst {dimension_numbers = #tpu.dot_dimension_numbers<[1], [0], [0], [1], [0, 0, 1, 1], [], []>} : vector<512x32xbf16>, vector<32x32xbf16>, vector<512x32xf32> -> vector<512x32xf32>
    %c0_3 = arith.constant 0 : index
    %c0_4 = arith.constant 0 : index
    %3 = vector.load %arg3[%c0_3, %c0_4] : memref<1x32xf32, #tpu.memory_space<vmem>>, vector<1x32xf32>
    %4 = vector.broadcast %3 : vector<1x32xf32> to vector<512x32xf32>
    %5 = arith.addf %2, %4 : vector<512x32xf32>
    %6 = arith.negf %5 : vector<512x32xf32>
    %7 = math.exp %6 : vector<512x32xf32>
    %cst_5 = arith.constant 1.000000e+00 : f32
    %8 = vector.broadcast %cst_5 : f32 to vector<512x32xf32>
    %9 = arith.addf %8, %7 : vector<512x32xf32>
    %10 = arith.divf %8, %9 : vector<512x32xf32>
    %11 = arith.mulf %5, %10 : vector<512x32xf32>
    %12 = arith.truncf %11 : vector<512x32xf32> to vector<512x32xbf16>
    %c0_6 = arith.constant 0 : index
    %c0_7 = arith.constant 0 : index
    %13 = vector.load %arg4[%c0_6, %c0_7] : memref<32x128xbf16, #tpu.memory_space<vmem>>, vector<32x128xbf16>
    %cst_8 = arith.constant dense<0.000000e+00> : vector<512x128xf32>
    %14 = tpu.matmul %12, %13, %cst_8 {dimension_numbers = #tpu.dot_dimension_numbers<[1], [0], [0], [1], [0, 0, 1, 1], [], []>} : vector<512x32xbf16>, vector<32x128xbf16>, vector<512x128xf32> -> vector<512x128xf32>
    %c0_9 = arith.constant 0 : index
    %c0_10 = arith.constant 0 : index
    %15 = vector.load %arg5[%c0_9, %c0_10] : memref<1x128xf32, #tpu.memory_space<vmem>>, vector<1x128xf32>
    %16 = vector.broadcast %15 : vector<1x128xf32> to vector<512x128xf32>
    %17 = arith.addf %14, %16 : vector<512x128xf32>
    %18 = arith.negf %17 : vector<512x128xf32>
    %19 = math.exp %18 : vector<512x128xf32>
    %cst_11 = arith.constant 1.000000e+00 : f32
    %20 = vector.broadcast %cst_11 : f32 to vector<512x128xf32>
    %21 = arith.addf %20, %19 : vector<512x128xf32>
    %22 = arith.divf %20, %21 : vector<512x128xf32>
    %23 = arith.mulf %17, %22 : vector<512x128xf32>
    %c0_12 = arith.constant 0 : index
    %c0_13 = arith.constant 0 : index
    %24 = vector.load %arg6[%c0_12, %c0_13] : memref<512x128xf32, #tpu.memory_space<vmem>>, vector<512x128xf32>
    tpu.vector_store %arg6[%c0_12, %c0_13], %23 {strides = array<i32>} : memref<512x128xf32, #tpu.memory_space<vmem>>, vector<512x128xf32>,
    return
  }
  func.func @transform_0(%arg0: i32) -> (i32, i32) {
    %c0_i32 = arith.constant 0 : i32
    %c0_i32_0 = arith.constant 0 : i32
    return %arg0, %c0_i32 : i32, i32
  }
  func.func @transform_1(%arg0: i32) -> (i32, i32) {
    %c0_i32 = arith.constant 0 : i32
    %c0_i32_0 = arith.constant 0 : i32
    %c0_i32_1 = arith.constant 0 : i32
    return %c0_i32, %c0_i32_0 : i32, i32
  }
  func.func @transform_2(%arg0: i32) -> (i32, i32) {
    %c0_i32 = arith.constant 0 : i32
    %c0_i32_0 = arith.constant 0 : i32
    %c0_i32_1 = arith.constant 0 : i32
    return %c0_i32, %c0_i32_0 : i32, i32
  }
  func.func @transform_3(%arg0: i32) -> (i32, i32) {
    %c0_i32 = arith.constant 0 : i32
    %c0_i32_0 = arith.constant 0 : i32
    %c0_i32_1 = arith.constant 0 : i32
    return %c0_i32, %c0_i32_0 : i32, i32
  }
  func.func @transform_4(%arg0: i32) -> (i32, i32) {
    %c0_i32 = arith.constant 0 : i32
    %c0_i32_0 = arith.constant 0 : i32
    %c0_i32_1 = arith.constant 0 : i32
    return %c0_i32, %c0_i32_0 : i32, i32
  }
  func.func @transform_5(%arg0: i32) -> (i32, i32) {
    %c0_i32 = arith.constant 0 : i32
    %c0_i32_0 = arith.constant 0 : i32
    return %arg0, %c0_i32 : i32, i32
  }
}

module attributes {stable_mosaic.version = 11 : i64} {
  func.func @_dwconv_se_kernel(%arg0: i32, %arg1: i32, %arg2: memref<2x18x18x128xf32, #tpu.memory_space<any>>, %arg3: memref<9x128xf32, #tpu.memory_space<vmem>>, %arg4: memref<1x128xf32, #tpu.memory_space<vmem>>, %arg5: memref<128x8xf32, #tpu.memory_space<vmem>>, %arg6: memref<1x8xf32, #tpu.memory_space<vmem>>, %arg7: memref<8x128xf32, #tpu.memory_space<vmem>>, %arg8: memref<1x128xf32, #tpu.memory_space<vmem>>, %arg9: memref<1x8x16x128xf32, #tpu.memory_space<vmem>>, %arg10: memref<1x1x128xf32, #tpu.memory_space<vmem>>, %arg11: memref<10x18x128xf32, #tpu.memory_space<vmem>>, %arg12: memref<!tpu.dma_semaphore, #tpu.memory_space<semaphore_mem>>, %arg13: memref<1x128xf32, #tpu.memory_space<vmem>>) attributes {dimension_semantics = [#tpu.dimension_semantics<parallel>, #tpu.dimension_semantics<arbitrary>], iteration_bounds = array<i64: 2, 2>, scalar_prefetch = 0 : i64, scratch_operands = 3 : i64, tpu.core_type = #tpu.core_type<tc>, window_params = [{}, {pipeline_mode = #tpu.pipeline_mode<synchronous>, transform_indices = @transform_1, window_bounds = array<i64: 9, 128>}, {pipeline_mode = #tpu.pipeline_mode<synchronous>, transform_indices = @transform_2, window_bounds = array<i64: 1, 128>}, {pipeline_mode = #tpu.pipeline_mode<synchronous>, transform_indices = @transform_3, window_bounds = array<i64: 128, 8>}, {pipeline_mode = #tpu.pipeline_mode<synchronous>, transform_indices = @transform_4, window_bounds = array<i64: 1, 8>}, {pipeline_mode = #tpu.pipeline_mode<synchronous>, transform_indices = @transform_5, window_bounds = array<i64: 8, 128>}, {pipeline_mode = #tpu.pipeline_mode<synchronous>, transform_indices = @transform_6, window_bounds = array<i64: 1, 128>}, {transform_indices = @transform_7, window_bounds = array<i64: 1, 8, 16, 128>}, {transform_indices = @transform_8, window_bounds = array<i64: 1, 1, 128>}]} {
    %c8_i32 = arith.constant 8 : i32
    %0 = arith.muli %arg1, %c8_i32 : i32
    %1 = tpu.assume_multiple %0, 8 : i32
    %c0_i32 = arith.constant 0 : i32
    %2 = arith.cmpi eq, %arg1, %c0_i32 : i32
    %3 = arith.extui %2 : i1 to i32
    %c0_i32_0 = arith.constant 0 : i32
    %4 = arith.cmpi ne, %3, %c0_i32_0 : i32
    scf.if %4 {
      %cst_53 = arith.constant 0.000000e+00 : f32
      %92 = vector.broadcast %cst_53 : f32 to vector<1x128xf32>
      %c0_54 = arith.constant 0 : index
      %c0_55 = arith.constant 0 : index
      %93 = vector.load %arg13[%c0_54, %c0_55] : memref<1x128xf32, #tpu.memory_space<vmem>>, vector<1x128xf32>
      tpu.vector_store %arg13[%c0_54, %c0_55], %92 {strides = array<i32>} : memref<1x128xf32, #tpu.memory_space<vmem>>, vector<1x128xf32>,
    } else {
    }
    %c0_i32_1 = arith.constant 0 : i32
    %c0_i32_2 = arith.constant 0 : i32
    %5 = tpu.memref_slice %arg2[%arg0, %1, %c0_i32_1, %c0_i32_2] : memref<2x18x18x128xf32, #tpu.memory_space<any>> -> memref<1x10x18x128xf32, #tpu.memory_space<any>>
    %6 = tpu.memref_squeeze %5 : memref<1x10x18x128xf32, #tpu.memory_space<any>> -> memref<10x18x128xf32, #tpu.memory_space<any>>
    tpu.enqueue_dma source(%6 : memref<10x18x128xf32, #tpu.memory_space<any>>) target(%arg11 : memref<10x18x128xf32, #tpu.memory_space<vmem>>) target_semaphore(%arg12 : memref<!tpu.dma_semaphore, #tpu.memory_space<semaphore_mem>>)
    %c0_i32_3 = arith.constant 0 : i32
    %c0_i32_4 = arith.constant 0 : i32
    %7 = tpu.memref_slice %arg2[%arg0, %1, %c0_i32_3, %c0_i32_4] : memref<2x18x18x128xf32, #tpu.memory_space<any>> -> memref<1x10x18x128xf32, #tpu.memory_space<any>>
    %8 = tpu.memref_squeeze %7 : memref<1x10x18x128xf32, #tpu.memory_space<any>> -> memref<10x18x128xf32, #tpu.memory_space<any>>
    tpu.wait_dma2 semaphore(%arg12 : memref<!tpu.dma_semaphore, #tpu.memory_space<semaphore_mem>>) src(%8 : memref<10x18x128xf32, #tpu.memory_space<any>>) dst(%arg11 : memref<10x18x128xf32, #tpu.memory_space<vmem>>)
    %c0 = arith.constant 0 : index
    %c0_5 = arith.constant 0 : index
    %c0_6 = arith.constant 0 : index
    %9 = vector.load %arg11[%c0, %c0_5, %c0_6] : memref<10x18x128xf32, #tpu.memory_space<vmem>>, vector<8x16x128xf32>
    %c0_7 = arith.constant 0 : index
    %c0_8 = arith.constant 0 : index
    %10 = vector.load %arg3[%c0_7, %c0_8] : memref<9x128xf32, #tpu.memory_space<vmem>>, vector<1x128xf32>
    %11 = vector.shape_cast %10 : vector<1x128xf32> to vector<128xf32>
    %12 = vector.shape_cast %11 : vector<128xf32> to vector<1x1x128xf32>
    %13 = vector.broadcast %12 : vector<1x1x128xf32> to vector<8x16x128xf32>
    %14 = arith.mulf %9, %13 : vector<8x16x128xf32>
    %c0_9 = arith.constant 0 : index
    %c1 = arith.constant 1 : index
    %c0_10 = arith.constant 0 : index
    %15 = vector.load %arg11[%c0_9, %c1, %c0_10] : memref<10x18x128xf32, #tpu.memory_space<vmem>>, vector<8x16x128xf32>
    %c1_11 = arith.constant 1 : index
    %c0_12 = arith.constant 0 : index
    %16 = vector.load %arg3[%c1_11, %c0_12] : memref<9x128xf32, #tpu.memory_space<vmem>>, vector<1x128xf32>
    %17 = vector.shape_cast %16 : vector<1x128xf32> to vector<128xf32>
    %18 = vector.shape_cast %17 : vector<128xf32> to vector<1x1x128xf32>
    %19 = vector.broadcast %18 : vector<1x1x128xf32> to vector<8x16x128xf32>
    %20 = arith.mulf %15, %19 : vector<8x16x128xf32>
    %21 = arith.addf %14, %20 : vector<8x16x128xf32>
    %c0_13 = arith.constant 0 : index
    %c2 = arith.constant 2 : index
    %c0_14 = arith.constant 0 : index
    %22 = vector.load %arg11[%c0_13, %c2, %c0_14] : memref<10x18x128xf32, #tpu.memory_space<vmem>>, vector<8x16x128xf32>
    %c2_15 = arith.constant 2 : index
    %c0_16 = arith.constant 0 : index
    %23 = vector.load %arg3[%c2_15, %c0_16] : memref<9x128xf32, #tpu.memory_space<vmem>>, vector<1x128xf32>
    %24 = vector.shape_cast %23 : vector<1x128xf32> to vector<128xf32>
    %25 = vector.shape_cast %24 : vector<128xf32> to vector<1x1x128xf32>
    %26 = vector.broadcast %25 : vector<1x1x128xf32> to vector<8x16x128xf32>
    %27 = arith.mulf %22, %26 : vector<8x16x128xf32>
    %28 = arith.addf %21, %27 : vector<8x16x128xf32>
    %c1_17 = arith.constant 1 : index
    %c0_18 = arith.constant 0 : index
    %c0_19 = arith.constant 0 : index
    %29 = vector.load %arg11[%c1_17, %c0_18, %c0_19] : memref<10x18x128xf32, #tpu.memory_space<vmem>>, vector<8x16x128xf32>
    %c3 = arith.constant 3 : index
    %c0_20 = arith.constant 0 : index
    %30 = vector.load %arg3[%c3, %c0_20] : memref<9x128xf32, #tpu.memory_space<vmem>>, vector<1x128xf32>
    %31 = vector.shape_cast %30 : vector<1x128xf32> to vector<128xf32>
    %32 = vector.shape_cast %31 : vector<128xf32> to vector<1x1x128xf32>
    %33 = vector.broadcast %32 : vector<1x1x128xf32> to vector<8x16x128xf32>
    %34 = arith.mulf %29, %33 : vector<8x16x128xf32>
    %35 = arith.addf %28, %34 : vector<8x16x128xf32>
    %c1_21 = arith.constant 1 : index
    %c1_22 = arith.constant 1 : index
    %c0_23 = arith.constant 0 : index
    %36 = vector.load %arg11[%c1_21, %c1_22, %c0_23] : memref<10x18x128xf32, #tpu.memory_space<vmem>>, vector<8x16x128xf32>
    %c4 = arith.constant 4 : index
    %c0_24 = arith.constant 0 : index
    %37 = vector.load %arg3[%c4, %c0_24] : memref<9x128xf32, #tpu.memory_space<vmem>>, vector<1x128xf32>
    %38 = vector.shape_cast %37 : vector<1x128xf32> to vector<128xf32>
    %39 = vector.shape_cast %38 : vector<128xf32> to vector<1x1x128xf32>
    %40 = vector.broadcast %39 : vector<1x1x128xf32> to vector<8x16x128xf32>
    %41 = arith.mulf %36, %40 : vector<8x16x128xf32>
    %42 = arith.addf %35, %41 : vector<8x16x128xf32>
    %c1_25 = arith.constant 1 : index
    %c2_26 = arith.constant 2 : index
    %c0_27 = arith.constant 0 : index
    %43 = vector.load %arg11[%c1_25, %c2_26, %c0_27] : memref<10x18x128xf32, #tpu.memory_space<vmem>>, vector<8x16x128xf32>
    %c5 = arith.constant 5 : index
    %c0_28 = arith.constant 0 : index
    %44 = vector.load %arg3[%c5, %c0_28] : memref<9x128xf32, #tpu.memory_space<vmem>>, vector<1x128xf32>
    %45 = vector.shape_cast %44 : vector<1x128xf32> to vector<128xf32>
    %46 = vector.shape_cast %45 : vector<128xf32> to vector<1x1x128xf32>
    %47 = vector.broadcast %46 : vector<1x1x128xf32> to vector<8x16x128xf32>
    %48 = arith.mulf %43, %47 : vector<8x16x128xf32>
    %49 = arith.addf %42, %48 : vector<8x16x128xf32>
    %c2_29 = arith.constant 2 : index
    %c0_30 = arith.constant 0 : index
    %c0_31 = arith.constant 0 : index
    %50 = vector.load %arg11[%c2_29, %c0_30, %c0_31] : memref<10x18x128xf32, #tpu.memory_space<vmem>>, vector<8x16x128xf32>
    %c6 = arith.constant 6 : index
    %c0_32 = arith.constant 0 : index
    %51 = vector.load %arg3[%c6, %c0_32] : memref<9x128xf32, #tpu.memory_space<vmem>>, vector<1x128xf32>
    %52 = vector.shape_cast %51 : vector<1x128xf32> to vector<128xf32>
    %53 = vector.shape_cast %52 : vector<128xf32> to vector<1x1x128xf32>
    %54 = vector.broadcast %53 : vector<1x1x128xf32> to vector<8x16x128xf32>
    %55 = arith.mulf %50, %54 : vector<8x16x128xf32>
    %56 = arith.addf %49, %55 : vector<8x16x128xf32>
    %c2_33 = arith.constant 2 : index
    %c1_34 = arith.constant 1 : index
    %c0_35 = arith.constant 0 : index
    %57 = vector.load %arg11[%c2_33, %c1_34, %c0_35] : memref<10x18x128xf32, #tpu.memory_space<vmem>>, vector<8x16x128xf32>
    %c7 = arith.constant 7 : index
    %c0_36 = arith.constant 0 : index
    %58 = vector.load %arg3[%c7, %c0_36] : memref<9x128xf32, #tpu.memory_space<vmem>>, vector<1x128xf32>
    %59 = vector.shape_cast %58 : vector<1x128xf32> to vector<128xf32>
    %60 = vector.shape_cast %59 : vector<128xf32> to vector<1x1x128xf32>
    %61 = vector.broadcast %60 : vector<1x1x128xf32> to vector<8x16x128xf32>
    %62 = arith.mulf %57, %61 : vector<8x16x128xf32>
    %63 = arith.addf %56, %62 : vector<8x16x128xf32>
    %c2_37 = arith.constant 2 : index
    %c2_38 = arith.constant 2 : index
    %c0_39 = arith.constant 0 : index
    %64 = vector.load %arg11[%c2_37, %c2_38, %c0_39] : memref<10x18x128xf32, #tpu.memory_space<vmem>>, vector<8x16x128xf32>
    %c8 = arith.constant 8 : index
    %c0_40 = arith.constant 0 : index
    %65 = vector.load %arg3[%c8, %c0_40] : memref<9x128xf32, #tpu.memory_space<vmem>>, vector<1x128xf32>
    %66 = vector.shape_cast %65 : vector<1x128xf32> to vector<128xf32>
    %67 = vector.shape_cast %66 : vector<128xf32> to vector<1x1x128xf32>
    %68 = vector.broadcast %67 : vector<1x1x128xf32> to vector<8x16x128xf32>
    %69 = arith.mulf %64, %68 : vector<8x16x128xf32>
    %70 = arith.addf %63, %69 : vector<8x16x128xf32>
    %c0_41 = arith.constant 0 : index
    %c0_42 = arith.constant 0 : index
    %71 = vector.load %arg4[%c0_41, %c0_42] : memref<1x128xf32, #tpu.memory_space<vmem>>, vector<1x128xf32>
    %72 = vector.shape_cast %71 : vector<1x128xf32> to vector<1x1x128xf32>
    %73 = vector.broadcast %72 : vector<1x1x128xf32> to vector<8x16x128xf32>
    %74 = arith.addf %70, %73 : vector<8x16x128xf32>
    %75 = arith.negf %74 : vector<8x16x128xf32>
    %76 = math.exp %75 : vector<8x16x128xf32>
    %cst = arith.constant 1.000000e+00 : f32
    %77 = vector.broadcast %cst : f32 to vector<8x16x128xf32>
    %78 = arith.addf %77, %76 : vector<8x16x128xf32>
    %79 = arith.divf %77, %78 : vector<8x16x128xf32>
    %80 = arith.mulf %74, %79 : vector<8x16x128xf32>
    %c0_43 = arith.constant 0 : index
    %c0_44 = arith.constant 0 : index
    %c0_45 = arith.constant 0 : index
    %c0_46 = arith.constant 0 : index
    %81 = vector.load %arg9[%c0_43, %c0_44, %c0_45, %c0_46] : memref<1x8x16x128xf32, #tpu.memory_space<vmem>>, vector<1x8x16x128xf32>
    %82 = vector.shape_cast %81 : vector<1x8x16x128xf32> to vector<8x16x128xf32>
    %83 = vector.shape_cast %80 : vector<8x16x128xf32> to vector<1x8x16x128xf32>
    tpu.vector_store %arg9[%c0_43, %c0_44, %c0_45, %c0_46], %83 {strides = array<i32>} : memref<1x8x16x128xf32, #tpu.memory_space<vmem>>, vector<1x8x16x128xf32>,
    %c0_47 = arith.constant 0 : index
    %c0_48 = arith.constant 0 : index
    %84 = vector.load %arg13[%c0_47, %c0_48] : memref<1x128xf32, #tpu.memory_space<vmem>>, vector<1x128xf32>
    %cst_49 = arith.constant dense<0.000000e+00> : vector<128xf32>
    %85 = vector.multi_reduction <add>, %80, %cst_49 [0, 1] : vector<8x16x128xf32> to vector<128xf32>
    %86 = vector.shape_cast %85 : vector<128xf32> to vector<1x128xf32>
    %87 = arith.addf %84, %86 : vector<1x128xf32>
    %c0_50 = arith.constant 0 : index
    %c0_51 = arith.constant 0 : index
    %88 = vector.load %arg13[%c0_50, %c0_51] : memref<1x128xf32, #tpu.memory_space<vmem>>, vector<1x128xf32>
    tpu.vector_store %arg13[%c0_50, %c0_51], %87 {strides = array<i32>} : memref<1x128xf32, #tpu.memory_space<vmem>>, vector<1x128xf32>,
    %c1_i32 = arith.constant 1 : i32
    %89 = arith.cmpi eq, %arg1, %c1_i32 : i32
    %90 = arith.extui %89 : i1 to i32
    %c0_i32_52 = arith.constant 0 : i32
    %91 = arith.cmpi ne, %90, %c0_i32_52 : i32
    scf.if %91 {
      %c0_53 = arith.constant 0 : index
      %c0_54 = arith.constant 0 : index
      %92 = vector.load %arg13[%c0_53, %c0_54] : memref<1x128xf32, #tpu.memory_space<vmem>>, vector<1x128xf32>
      %cst_55 = arith.constant 3.906250e-03 : f32
      %93 = vector.broadcast %cst_55 : f32 to vector<1x128xf32>
      %94 = arith.mulf %92, %93 : vector<1x128xf32>
      %c0_56 = arith.constant 0 : index
      %c0_57 = arith.constant 0 : index
      %95 = vector.load %arg5[%c0_56, %c0_57] : memref<128x8xf32, #tpu.memory_space<vmem>>, vector<128x8xf32>
      %cst_58 = arith.constant dense<0.000000e+00> : vector<1x8xf32>
      %96 = tpu.matmul %94, %95, %cst_58 {dimension_numbers = #tpu.dot_dimension_numbers<[1], [0], [0], [1], [0, 0, 1, 1], [], []>} : vector<1x128xf32>, vector<128x8xf32>, vector<1x8xf32> -> vector<1x8xf32>
      %c0_59 = arith.constant 0 : index
      %c0_60 = arith.constant 0 : index
      %97 = vector.load %arg6[%c0_59, %c0_60] : memref<1x8xf32, #tpu.memory_space<vmem>>, vector<1x8xf32>
      %98 = arith.addf %96, %97 : vector<1x8xf32>
      %99 = arith.negf %98 : vector<1x8xf32>
      %100 = math.exp %99 : vector<1x8xf32>
      %cst_61 = arith.constant 1.000000e+00 : f32
      %101 = vector.broadcast %cst_61 : f32 to vector<1x8xf32>
      %102 = arith.addf %101, %100 : vector<1x8xf32>
      %103 = arith.divf %101, %102 : vector<1x8xf32>
      %104 = arith.mulf %98, %103 : vector<1x8xf32>
      %c0_62 = arith.constant 0 : index
      %c0_63 = arith.constant 0 : index
      %105 = vector.load %arg7[%c0_62, %c0_63] : memref<8x128xf32, #tpu.memory_space<vmem>>, vector<8x128xf32>
      %cst_64 = arith.constant dense<0.000000e+00> : vector<1x128xf32>
      %106 = tpu.matmul %104, %105, %cst_64 {dimension_numbers = #tpu.dot_dimension_numbers<[1], [0], [0], [1], [0, 0, 1, 1], [], []>} : vector<1x8xf32>, vector<8x128xf32>, vector<1x128xf32> -> vector<1x128xf32>
      %c0_65 = arith.constant 0 : index
      %c0_66 = arith.constant 0 : index
      %107 = vector.load %arg8[%c0_65, %c0_66] : memref<1x128xf32, #tpu.memory_space<vmem>>, vector<1x128xf32>
      %108 = arith.addf %106, %107 : vector<1x128xf32>
      %109 = arith.negf %108 : vector<1x128xf32>
      %110 = math.exp %109 : vector<1x128xf32>
      %cst_67 = arith.constant 1.000000e+00 : f32
      %111 = vector.broadcast %cst_67 : f32 to vector<1x128xf32>
      %112 = arith.addf %111, %110 : vector<1x128xf32>
      %113 = arith.divf %111, %112 : vector<1x128xf32>
      %114 = vector.shape_cast %113 : vector<1x128xf32> to vector<1x1x128xf32>
      %c0_68 = arith.constant 0 : index
      %c0_69 = arith.constant 0 : index
      %c0_70 = arith.constant 0 : index
      %115 = vector.load %arg10[%c0_68, %c0_69, %c0_70] : memref<1x1x128xf32, #tpu.memory_space<vmem>>, vector<1x1x128xf32>
      tpu.vector_store %arg10[%c0_68, %c0_69, %c0_70], %114 {strides = array<i32>} : memref<1x1x128xf32, #tpu.memory_space<vmem>>, vector<1x1x128xf32>,
    } else {
    }
    return
  }
  func.func @transform_1(%arg0: i32, %arg1: i32) -> (i32, i32) {
    %c0_i32 = arith.constant 0 : i32
    %c0_i32_0 = arith.constant 0 : i32
    %c0_i32_1 = arith.constant 0 : i32
    return %c0_i32, %c0_i32_0 : i32, i32
  }
  func.func @transform_2(%arg0: i32, %arg1: i32) -> (i32, i32) {
    %c0_i32 = arith.constant 0 : i32
    %c0_i32_0 = arith.constant 0 : i32
    %c0_i32_1 = arith.constant 0 : i32
    return %c0_i32, %c0_i32_0 : i32, i32
  }
  func.func @transform_3(%arg0: i32, %arg1: i32) -> (i32, i32) {
    %c0_i32 = arith.constant 0 : i32
    %c0_i32_0 = arith.constant 0 : i32
    %c0_i32_1 = arith.constant 0 : i32
    return %c0_i32, %c0_i32_0 : i32, i32
  }
  func.func @transform_4(%arg0: i32, %arg1: i32) -> (i32, i32) {
    %c0_i32 = arith.constant 0 : i32
    %c0_i32_0 = arith.constant 0 : i32
    %c0_i32_1 = arith.constant 0 : i32
    return %c0_i32, %c0_i32_0 : i32, i32
  }
  func.func @transform_5(%arg0: i32, %arg1: i32) -> (i32, i32) {
    %c0_i32 = arith.constant 0 : i32
    %c0_i32_0 = arith.constant 0 : i32
    %c0_i32_1 = arith.constant 0 : i32
    return %c0_i32, %c0_i32_0 : i32, i32
  }
  func.func @transform_6(%arg0: i32, %arg1: i32) -> (i32, i32) {
    %c0_i32 = arith.constant 0 : i32
    %c0_i32_0 = arith.constant 0 : i32
    %c0_i32_1 = arith.constant 0 : i32
    return %c0_i32, %c0_i32_0 : i32, i32
  }
  func.func @transform_7(%arg0: i32, %arg1: i32) -> (i32, i32, i32, i32) {
    %c0_i32 = arith.constant 0 : i32
    %c0_i32_0 = arith.constant 0 : i32
    %c0_i32_1 = arith.constant 0 : i32
    return %arg0, %arg1, %c0_i32, %c0_i32_0 : i32, i32, i32, i32
  }
  func.func @transform_8(%arg0: i32, %arg1: i32) -> (i32, i32, i32) {
    %c0_i32 = arith.constant 0 : i32
    %c0_i32_0 = arith.constant 0 : i32
    %c0_i32_1 = arith.constant 0 : i32
    return %arg0, %c0_i32, %c0_i32_0 : i32, i32, i32
  }
}

module attributes {stable_mosaic.version = 11 : i64} {
  func.func @_head_kernel(%arg0: i32, %arg1: i32, %arg2: memref<1x256x128xf32, #tpu.memory_space<vmem>>, %arg3: memref<1x1x128xf32, #tpu.memory_space<vmem>>, %arg4: memref<128x1792xbf16, #tpu.memory_space<vmem>>, %arg5: memref<1x1792xf32, #tpu.memory_space<vmem>>, %arg6: memref<1792x128xbf16, #tpu.memory_space<vmem>>, %arg7: memref<1x128xf32, #tpu.memory_space<vmem>>, %arg8: memref<1x1x128xf32, #tpu.memory_space<vmem>>, %arg9: memref<1x1792xf32, #tpu.memory_space<vmem>>) attributes {dimension_semantics = [#tpu.dimension_semantics<parallel>, #tpu.dimension_semantics<arbitrary>], iteration_bounds = array<i64: 2, 1>, scalar_prefetch = 0 : i64, scratch_operands = 1 : i64, tpu.core_type = #tpu.core_type<tc>, window_params = [{transform_indices = @transform_0, window_bounds = array<i64: 1, 256, 128>}, {transform_indices = @transform_1, window_bounds = array<i64: 1, 1, 128>}, {pipeline_mode = #tpu.pipeline_mode<synchronous>, transform_indices = @transform_2, window_bounds = array<i64: 128, 1792>}, {pipeline_mode = #tpu.pipeline_mode<synchronous>, transform_indices = @transform_3, window_bounds = array<i64: 1, 1792>}, {pipeline_mode = #tpu.pipeline_mode<synchronous>, transform_indices = @transform_4, window_bounds = array<i64: 1792, 128>}, {pipeline_mode = #tpu.pipeline_mode<synchronous>, transform_indices = @transform_5, window_bounds = array<i64: 1, 128>}, {transform_indices = @transform_6, window_bounds = array<i64: 1, 1, 128>}]} {
    %c0_i32 = arith.constant 0 : i32
    %0 = arith.cmpi eq, %arg1, %c0_i32 : i32
    %1 = arith.extui %0 : i1 to i32
    %c0_i32_0 = arith.constant 0 : i32
    %2 = arith.cmpi ne, %1, %c0_i32_0 : i32
    scf.if %2 {
      %cst_18 = arith.constant 0.000000e+00 : f32
      %29 = vector.broadcast %cst_18 : f32 to vector<1x1792xf32>
      %c0_19 = arith.constant 0 : index
      %c0_20 = arith.constant 0 : index
      %30 = vector.load %arg9[%c0_19, %c0_20] : memref<1x1792xf32, #tpu.memory_space<vmem>>, vector<1x1792xf32>
      tpu.vector_store %arg9[%c0_19, %c0_20], %29 {strides = array<i32>} : memref<1x1792xf32, #tpu.memory_space<vmem>>, vector<1x1792xf32>,
    } else {
    }
    %c0 = arith.constant 0 : index
    %c0_1 = arith.constant 0 : index
    %c0_2 = arith.constant 0 : index
    %3 = vector.load %arg2[%c0, %c0_1, %c0_2] : memref<1x256x128xf32, #tpu.memory_space<vmem>>, vector<1x256x128xf32>
    %4 = vector.shape_cast %3 : vector<1x256x128xf32> to vector<256x128xf32>
    %c0_3 = arith.constant 0 : index
    %c0_4 = arith.constant 0 : index
    %c0_5 = arith.constant 0 : index
    %5 = vector.load %arg3[%c0_3, %c0_4, %c0_5] : memref<1x1x128xf32, #tpu.memory_space<vmem>>, vector<1x1x128xf32>
    %6 = vector.shape_cast %5 : vector<1x1x128xf32> to vector<1x128xf32>
    %7 = vector.broadcast %6 : vector<1x128xf32> to vector<256x128xf32>
    %8 = arith.mulf %4, %7 : vector<256x128xf32>
    %9 = arith.truncf %8 : vector<256x128xf32> to vector<256x128xbf16>
    %c0_6 = arith.constant 0 : index
    %c0_7 = arith.constant 0 : index
    %10 = vector.load %arg4[%c0_6, %c0_7] : memref<128x1792xbf16, #tpu.memory_space<vmem>>, vector<128x1792xbf16>
    %cst = arith.constant dense<0.000000e+00> : vector<256x1792xf32>
    %11 = tpu.matmul %9, %10, %cst {dimension_numbers = #tpu.dot_dimension_numbers<[1], [0], [0], [1], [0, 0, 1, 1], [], []>} : vector<256x128xbf16>, vector<128x1792xbf16>, vector<256x1792xf32> -> vector<256x1792xf32>
    %c0_8 = arith.constant 0 : index
    %c0_9 = arith.constant 0 : index
    %12 = vector.load %arg5[%c0_8, %c0_9] : memref<1x1792xf32, #tpu.memory_space<vmem>>, vector<1x1792xf32>
    %13 = vector.broadcast %12 : vector<1x1792xf32> to vector<256x1792xf32>
    %14 = arith.addf %11, %13 : vector<256x1792xf32>
    %15 = arith.negf %14 : vector<256x1792xf32>
    %16 = math.exp %15 : vector<256x1792xf32>
    %cst_10 = arith.constant 1.000000e+00 : f32
    %17 = vector.broadcast %cst_10 : f32 to vector<256x1792xf32>
    %18 = arith.addf %17, %16 : vector<256x1792xf32>
    %19 = arith.divf %17, %18 : vector<256x1792xf32>
    %20 = arith.mulf %14, %19 : vector<256x1792xf32>
    %c0_11 = arith.constant 0 : index
    %c0_12 = arith.constant 0 : index
    %21 = vector.load %arg9[%c0_11, %c0_12] : memref<1x1792xf32, #tpu.memory_space<vmem>>, vector<1x1792xf32>
    %cst_13 = arith.constant dense<0.000000e+00> : vector<1792xf32>
    %22 = vector.multi_reduction <add>, %20, %cst_13 [0] : vector<256x1792xf32> to vector<1792xf32>
    %23 = vector.shape_cast %22 : vector<1792xf32> to vector<1x1792xf32>
    %24 = arith.addf %21, %23 : vector<1x1792xf32>
    %c0_14 = arith.constant 0 : index
    %c0_15 = arith.constant 0 : index
    %25 = vector.load %arg9[%c0_14, %c0_15] : memref<1x1792xf32, #tpu.memory_space<vmem>>, vector<1x1792xf32>
    tpu.vector_store %arg9[%c0_14, %c0_15], %24 {strides = array<i32>} : memref<1x1792xf32, #tpu.memory_space<vmem>>, vector<1x1792xf32>,
    %c0_i32_16 = arith.constant 0 : i32
    %26 = arith.cmpi eq, %arg1, %c0_i32_16 : i32
    %27 = arith.extui %26 : i1 to i32
    %c0_i32_17 = arith.constant 0 : i32
    %28 = arith.cmpi ne, %27, %c0_i32_17 : i32
    scf.if %28 {
      %c0_18 = arith.constant 0 : index
      %c0_19 = arith.constant 0 : index
      %29 = vector.load %arg9[%c0_18, %c0_19] : memref<1x1792xf32, #tpu.memory_space<vmem>>, vector<1x1792xf32>
      %cst_20 = arith.constant 3.906250e-03 : f32
      %30 = vector.broadcast %cst_20 : f32 to vector<1x1792xf32>
      %31 = arith.mulf %29, %30 : vector<1x1792xf32>
      %32 = arith.truncf %31 : vector<1x1792xf32> to vector<1x1792xbf16>
      %c0_21 = arith.constant 0 : index
      %c0_22 = arith.constant 0 : index
      %33 = vector.load %arg6[%c0_21, %c0_22] : memref<1792x128xbf16, #tpu.memory_space<vmem>>, vector<1792x128xbf16>
      %cst_23 = arith.constant dense<0.000000e+00> : vector<1x128xf32>
      %34 = tpu.matmul %32, %33, %cst_23 {dimension_numbers = #tpu.dot_dimension_numbers<[1], [0], [0], [1], [0, 0, 1, 1], [], []>} : vector<1x1792xbf16>, vector<1792x128xbf16>, vector<1x128xf32> -> vector<1x128xf32>
      %c0_24 = arith.constant 0 : index
      %c0_25 = arith.constant 0 : index
      %35 = vector.load %arg7[%c0_24, %c0_25] : memref<1x128xf32, #tpu.memory_space<vmem>>, vector<1x128xf32>
      %36 = arith.addf %34, %35 : vector<1x128xf32>
      %37 = arith.negf %36 : vector<1x128xf32>
      %38 = math.exp %37 : vector<1x128xf32>
      %cst_26 = arith.constant 1.000000e+00 : f32
      %39 = vector.broadcast %cst_26 : f32 to vector<1x128xf32>
      %40 = arith.addf %39, %38 : vector<1x128xf32>
      %41 = arith.divf %39, %40 : vector<1x128xf32>
      %42 = vector.shape_cast %41 : vector<1x128xf32> to vector<1x1x128xf32>
      %c0_27 = arith.constant 0 : index
      %c0_28 = arith.constant 0 : index
      %c0_29 = arith.constant 0 : index
      %43 = vector.load %arg8[%c0_27, %c0_28, %c0_29] : memref<1x1x128xf32, #tpu.memory_space<vmem>>, vector<1x1x128xf32>
      tpu.vector_store %arg8[%c0_27, %c0_28, %c0_29], %42 {strides = array<i32>} : memref<1x1x128xf32, #tpu.memory_space<vmem>>, vector<1x1x128xf32>,
    } else {
    }
    return
  }
  func.func @transform_0(%arg0: i32, %arg1: i32) -> (i32, i32, i32) {
    %c0_i32 = arith.constant 0 : i32
    %c0_i32_0 = arith.constant 0 : i32
    return %arg0, %arg1, %c0_i32 : i32, i32, i32
  }
  func.func @transform_1(%arg0: i32, %arg1: i32) -> (i32, i32, i32) {
    %c0_i32 = arith.constant 0 : i32
    %c0_i32_0 = arith.constant 0 : i32
    %c0_i32_1 = arith.constant 0 : i32
    return %arg0, %c0_i32, %c0_i32_0 : i32, i32, i32
  }
  func.func @transform_2(%arg0: i32, %arg1: i32) -> (i32, i32) {
    %c0_i32 = arith.constant 0 : i32
    %c0_i32_0 = arith.constant 0 : i32
    %c0_i32_1 = arith.constant 0 : i32
    return %c0_i32, %c0_i32_0 : i32, i32
  }
  func.func @transform_3(%arg0: i32, %arg1: i32) -> (i32, i32) {
    %c0_i32 = arith.constant 0 : i32
    %c0_i32_0 = arith.constant 0 : i32
    %c0_i32_1 = arith.constant 0 : i32
    return %c0_i32, %c0_i32_0 : i32, i32
  }
  func.func @transform_4(%arg0: i32, %arg1: i32) -> (i32, i32) {
    %c0_i32 = arith.constant 0 : i32
    %c0_i32_0 = arith.constant 0 : i32
    %c0_i32_1 = arith.constant 0 : i32
    return %c0_i32, %c0_i32_0 : i32, i32
  }
  func.func @transform_5(%arg0: i32, %arg1: i32) -> (i32, i32) {
    %c0_i32 = arith.constant 0 : i32
    %c0_i32_0 = arith.constant 0 : i32
    %c0_i32_1 = arith.constant 0 : i32
    return %c0_i32, %c0_i32_0 : i32, i32
  }
  func.func @transform_6(%arg0: i32, %arg1: i32) -> (i32, i32, i32) {
    %c0_i32 = arith.constant 0 : i32
    %c0_i32_0 = arith.constant 0 : i32
    %c0_i32_1 = arith.constant 0 : i32
    return %arg0, %c0_i32, %c0_i32_0 : i32, i32, i32
  }
}

</mosaic_0001>

<llo_original>
// kernel: cnn_model_forward.4
$region0: #{cnn_model_forward.4}
  #allocation0 [shape = 'u32[]', space=smem, size = 0x4, offset = 0x4, fixed_abs, tag = 'smem constant byte address 0x4 - core index']
  #allocation1 [shape = 'u32[144,128]{1,0:T(1,128)}', space=vmem, size = 0x12000, scoped, tag = 'internal scratch']
  #allocation2 [shape = 'f32[10,18,128]{2,1,0:T(8,128)}', space=vmem, size = 0x1e000, scoped, tag = 'scratch operand']
  #allocation3 [shape = 's32[1]{0}', space=sflag, size = 0x4, scoped, tag = 'scratch operand']
  #allocation4 [shape = 'f32[1,128]{1,0:T(1,128)}', space=vmem, size = 0x200, scoped, tag = 'scratch operand']
  #allocation5 [shape = 's32[]', space=sflag, size = 0x4, offset = 0, fixed_abs, tag = 'sflag constant byte address 0x0 - dummy sync flag']
  %s0 = inlined_call_operand.vmem [shape: f32[2,18,18,128], index: 0, kind: input, shape index: {}]
  %s1 = inlined_call_operand.vmem [shape: f32[9,128], index: 1, kind: input, shape index: {}]
  %s2 = inlined_call_operand.vmem [shape: f32[1,128], index: 2, kind: input, shape index: {}]
  %s3 = inlined_call_operand.vmem [shape: f32[128,8], index: 3, kind: input, shape index: {}]
  %s4 = inlined_call_operand.vmem [shape: f32[1,8], index: 4, kind: input, shape index: {}]
  %s5 = inlined_call_operand.vmem [shape: f32[8,128], index: 5, kind: input, shape index: {}]
  %s6 = inlined_call_operand.vmem [shape: f32[1,128], index: 6, kind: input, shape index: {}]
  %s7 = inlined_call_operand.vmem [shape: f32[2,16,16,128], index: 7, kind: output, shape index: {0}]
  %s8 = inlined_call_operand.vmem [shape: f32[2,1,128], index: 8, kind: output, shape index: {1}]
  %9 = xla_tuple %s7, %s8
  %s10 = sld [smem:[#allocation0]]
  $region110: #{cnn_model_forward.4} parent=0
    _
  %s12 = ssub.s32 1, %s10
  %s13 = scalar_select 0, %s12, %s10
  loop: start=0, step=1, limit=6
  $region2: #{cnn_model_forward.4} parent=0 // loop_pre_header
    _
  $region3: #{cnn_model_forward.4} parent=0 // loop_header
    %s15 = sphi 0, %s19
    %p16 = scmp.ge.s32.totalorder %s15, 6
    %s22 = sphi 0, %s34
    %s23 = sphi 0, %s30
    %s24 = sphi 0, %s22
    %s25 = sphi 0, %s23
    %s26 = sphi 0, %s24
    %s27 = sphi 0, %s25
    %s35 = sphi 0, %s35
    %s37 = sphi 0, %s35
    %s38 = sphi 0, %s37
    %s52 = sphi 0, %s38
    %s56 = sphi 0, %s56
    %s58 = sphi 0, %s56
    %s59 = sphi 0, %s58
    %s73 = sphi 0, %s59
    %s77 = sphi 0, %s77
    %s79 = sphi 0, %s77
    %s80 = sphi 0, %s79
    %s94 = sphi 0, %s80
    %s98 = sphi 0, %s98
    %s100 = sphi 0, %s98
    %s101 = sphi 0, %s100
    %s115 = sphi 0, %s101
    %s119 = sphi 0, %s119
    %s121 = sphi 0, %s119
    %s122 = sphi 0, %s121
    %s136 = sphi 0, %s122
    %s140 = sphi 0, %s140
    %s142 = sphi 0, %s140
    %s143 = sphi 0, %s142
    %s157 = sphi 0, %s143
    %s165 = sphi 0, %s167
    %s168 = sphi 0, %s165
    %s169 = sphi 0, %s168
    %s185 = sphi 0, %s169
    %s191 = sphi 0, %s193
    %s194 = sphi 0, %s191
    %s195 = sphi 0, %s194
    %s211 = sphi 0, %s195
  $region4: #{cnn_model_forward.4} parent=0 // loop_header_branch
    %18 = sbr.rel (%p16) target = $region8
  $region5: #{cnn_model_forward.4} parent=0 // loop_body
    %s20 = ssub.s32 %s15, 1
    %s21 = ssub.s32 %s15, 2
    %s28 = sadd.s32 1, %s23
    %p29 = scmp.ge.s32.totalorder %s28, 2
    %s30 = scalar_select %p29, 0, %s28
    %s31 = sadd.s32 1, %s22
    %s32 = scalar_select %p29, %s31, %s22
    %p33 = scmp.ge.s32.totalorder %s32, 2
    %s34 = scalar_select %p33, 0, %s32
    %s36 = sadd.s32 %s35, 1
    %p39 = scmp.eq.s32.totalorder %s15, 3
    %p40 = scmp.ne.s32.totalorder %s35, %s37
    %p41 = scmp.eq.s32.totalorder %s15, 0
    %p42 = por %p40, %p41
    %p43 = scmp.ne.s32.totalorder %s35, %s37
    %p44 = scmp.eq.s32.totalorder %s20, 3
    %p45 = por %p43, %p44
    %p46 = scmp.ne.s32.totalorder %s37, %s38
    %p47 = scmp.eq.s32.totalorder %s20, 0
    %p48 = por %p46, %p47
    %p49 = scmp.ne.s32.totalorder %s37, %s38
    %p50 = scmp.eq.s32.totalorder %s21, 3
    %p51 = por %p49, %p50
    %p53 = scmp.ne.s32.totalorder %s38, %s52
    %p54 = scmp.eq.s32.totalorder %s21, 0
    %p55 = por %p53, %p54
    %s57 = sadd.s32 %s56, 1
    %p60 = scmp.eq.s32.totalorder %s15, 3
    %p61 = scmp.ne.s32.totalorder %s56, %s58
    %p62 = scmp.eq.s32.totalorder %s15, 0
    %p63 = por %p61, %p62
    %p64 = scmp.ne.s32.totalorder %s56, %s58
    %p65 = scmp.eq.s32.totalorder %s20, 3
    %p66 = por %p64, %p65
    %p67 = scmp.ne.s32.totalorder %s58, %s59
    %p68 = scmp.eq.s32.totalorder %s20, 0
    %p69 = por %p67, %p68
    %p70 = scmp.ne.s32.totalorder %s58, %s59
    %p71 = scmp.eq.s32.totalorder %s21, 3
    %p72 = por %p70, %p71
    %p74 = scmp.ne.s32.totalorder %s59, %s73
    %p75 = scmp.eq.s32.totalorder %s21, 0
    %p76 = por %p74, %p75
    %s78 = sadd.s32 %s77, 1
    %p81 = scmp.eq.s32.totalorder %s15, 3
    %p82 = scmp.ne.s32.totalorder %s77, %s79
    %p83 = scmp.eq.s32.totalorder %s15, 0
    %p84 = por %p82, %p83
    %p85 = scmp.ne.s32.totalorder %s77, %s79
    %p86 = scmp.eq.s32.totalorder %s20, 3
    %p87 = por %p85, %p86
    %p88 = scmp.ne.s32.totalorder %s79, %s80
    %p89 = scmp.eq.s32.totalorder %s20, 0
    %p90 = por %p88, %p89
    %p91 = scmp.ne.s32.totalorder %s79, %s80
    %p92 = scmp.eq.s32.totalorder %s21, 3
    %p93 = por %p91, %p92
    %p95 = scmp.ne.s32.totalorder %s80, %s94
    %p96 = scmp.eq.s32.totalorder %s21, 0
    %p97 = por %p95, %p96
    %s99 = sadd.s32 %s98, 1
    %p102 = scmp.eq.s32.totalorder %s15, 3
    %p103 = scmp.ne.s32.totalorder %s98, %s100
    %p104 = scmp.eq.s32.totalorder %s15, 0
    %p105 = por %p103, %p104
    %p106 = scmp.ne.s32.totalorder %s98, %s100
    %p107 = scmp.eq.s32.totalorder %s20, 3
    %p108 = por %p106, %p107
    %p109 = scmp.ne.s32.totalorder %s100, %s101
    %p110 = scmp.eq.s32.totalorder %s20, 0
    %p111 = por %p109, %p110
    %p112 = scmp.ne.s32.totalorder %s100, %s101
    %p113 = scmp.eq.s32.totalorder %s21, 3
    %p114 = por %p112, %p113
    %p116 = scmp.ne.s32.totalorder %s101, %s115
    %p117 = scmp.eq.s32.totalorder %s21, 0
    %p118 = por %p116, %p117
    %s120 = sadd.s32 %s119, 1
    %p123 = scmp.eq.s32.totalorder %s15, 3
    %p124 = scmp.ne.s32.totalorder %s119, %s121
    %p125 = scmp.eq.s32.totalorder %s15, 0
    %p126 = por %p124, %p125
    %p127 = scmp.ne.s32.totalorder %s119, %s121
    %p128 = scmp.eq.s32.totalorder %s20, 3
    %p129 = por %p127, %p128
    %p130 = scmp.ne.s32.totalorder %s121, %s122
    %p131 = scmp.eq.s32.totalorder %s20, 0
    %p132 = por %p130, %p131
    %p133 = scmp.ne.s32.totalorder %s121, %s122
    %p134 = scmp.eq.s32.totalorder %s21, 3
    %p135 = por %p133, %p134
    %p137 = scmp.ne.s32.totalorder %s122, %s136
    %p138 = scmp.eq.s32.totalorder %s21, 0
    %p139 = por %p137, %p138
    %s141 = sadd.s32 %s140, 1
    %p144 = scmp.eq.s32.totalorder %s15, 3
    %p145 = scmp.ne.s32.totalorder %s140, %s142
    %p146 = scmp.eq.s32.totalorder %s15, 0
    %p147 = por %p145, %p146
    %p148 = scmp.ne.s32.totalorder %s140, %s142
    %p149 = scmp.eq.s32.totalorder %s20, 3
    %p150 = por %p148, %p149
    %p151 = scmp.ne.s32.totalorder %s142, %s143
    %p152 = scmp.eq.s32.totalorder %s20, 0
    %p153 = por %p151, %p152
    %p154 = scmp.ne.s32.totalorder %s142, %s143
    %p155 = scmp.eq.s32.totalorder %s21, 3
    %p156 = por %p154, %p155
    %p158 = scmp.ne.s32.totalorder %s143, %s157
    %p159 = scmp.eq.s32.totalorder %s21, 0
    %p160 = por %p158, %p159
    %s161 = ssub.s32 %s22, %s34
    %s162 = ssub.s32 %s23, %s30
    %s163 = sor.u32 %s161, %s162
    %p164 = scmp.eq.s32.totalorder %s163, 0
    %s166 = sadd.s32 %s165, 1
    %s167 = scalar_select %p164, %s165, %s166
    %p170 = pneg %p164
    %p171 = scmp.eq.s32.totalorder %s15, 3
    %p172 = por %p170, %p171
    %p173 = scmp.ne.s32.totalorder %s165, %s168
    %p174 = scmp.eq.s32.totalorder %s15, 0
    %p175 = por %p173, %p174
    %p176 = scmp.ne.s32.totalorder %s165, %s168
    %p177 = scmp.eq.s32.totalorder %s20, 3
    %p178 = por %p176, %p177
    %p179 = scmp.ne.s32.totalorder %s168, %s169
    %p180 = scmp.eq.s32.totalorder %s20, 0
    %p181 = por %p179, %p180
    %p182 = scmp.ne.s32.totalorder %s168, %s169
    %p183 = scmp.eq.s32.totalorder %s21, 3
    %p184 = por %p182, %p183
    %p186 = scmp.ne.s32.totalorder %s169, %s185
    %p187 = scmp.eq.s32.totalorder %s21, 0
    %p188 = por %p186, %p187
    %s189 = ssub.s32 %s22, %s34
    %p190 = scmp.eq.s32.totalorder %s189, 0
    %s192 = sadd.s32 %s191, 1
    %s193 = scalar_select %p190, %s191, %s192
    %p196 = pneg %p190
    %p197 = scmp.eq.s32.totalorder %s15, 3
    %p198 = por %p196, %p197
    %p199 = scmp.ne.s32.totalorder %s191, %s194
    %p200 = scmp.eq.s32.totalorder %s15, 0
    %p201 = por %p199, %p200
    %p202 = scmp.ne.s32.totalorder %s191, %s194
    %p203 = scmp.eq.s32.totalorder %s20, 3
    %p204 = por %p202, %p203
    %p205 = scmp.ne.s32.totalorder %s194, %s195
    %p206 = scmp.eq.s32.totalorder %s20, 0
    %p207 = por %p205, %p206
    %p208 = scmp.ne.s32.totalorder %s194, %s195
    %p209 = scmp.eq.s32.totalorder %s21, 3
    %p210 = por %p208, %p209
    %p212 = scmp.ne.s32.totalorder %s195, %s211
    %p213 = scmp.eq.s32.totalorder %s21, 0
    %p214 = por %p212, %p213
    %p215 = scmp.le.s32.totalorder 1, %s15
    %p216 = scmp.lt.s32.totalorder %s15, 5
    %p217 = pnand %p215, %p216
    %p218 = pneg %p217
    // Predicated region
    $region9: #{cnn_model_forward.4} parent=5 // pred_check
      _
    $region10: #{cnn_model_forward.4} parent=5 // pred_check_branch
      %220 = sbr.rel (%p217) target = $region12
    $region11: #{cnn_model_forward.4} parent=5 // pred_region
      %s221 = ssub.s32 %s15, 1
      // Predicated region
      $region13: #{cnn_model_forward.4} parent=11 // pred_check
        %p222 = pneg %p48
      $region14: #{cnn_model_forward.4} parent=11 // pred_check_branch
        %224 = sbr.rel (%p222) target = $region16
      $region15: #{cnn_model_forward.4} parent=11 // pred_region
        _
      $region16: #{cnn_model_forward.4} parent=11 // pred_fallthru
        _
      // Predicated region
      $region17: #{cnn_model_forward.4} parent=11 // pred_check
        %p225 = pneg %p69
      $region18: #{cnn_model_forward.4} parent=11 // pred_check_branch
        %227 = sbr.rel (%p225) target = $region20
      $region19: #{cnn_model_forward.4} parent=11 // pred_region
        _
      $region20: #{cnn_model_forward.4} parent=11 // pred_fallthru
        _
      // Predicated region
      $region21: #{cnn_model_forward.4} parent=11 // pred_check
        %p228 = pneg %p90
      $region22: #{cnn_model_forward.4} parent=11 // pred_check_branch
        %230 = sbr.rel (%p228) target = $region24
      $region23: #{cnn_model_forward.4} parent=11 // pred_region
        _
      $region24: #{cnn_model_forward.4} parent=11 // pred_fallthru
        _
      // Predicated region
      $region25: #{cnn_model_forward.4} parent=11 // pred_check
        %p231 = pneg %p111
      $region26: #{cnn_model_forward.4} parent=11 // pred_check_branch
        %233 = sbr.rel (%p231) target = $region28
      $region27: #{cnn_model_forward.4} parent=11 // pred_region
        _
      $region28: #{cnn_model_forward.4} parent=11 // pred_fallthru
        _
      // Predicated region
      $region29: #{cnn_model_forward.4} parent=11 // pred_check
        %p234 = pneg %p132
      $region30: #{cnn_model_forward.4} parent=11 // pred_check_branch
        %236 = sbr.rel (%p234) target = $region32
      $region31: #{cnn_model_forward.4} parent=11 // pred_region
        _
      $region32: #{cnn_model_forward.4} parent=11 // pred_fallthru
        _
      // Predicated region
      $region33: #{cnn_model_forward.4} parent=11 // pred_check
        %p237 = pneg %p153
      $region34: #{cnn_model_forward.4} parent=11 // pred_check_branch
        %239 = sbr.rel (%p237) target = $region36
      $region35: #{cnn_model_forward.4} parent=11 // pred_region
        _
      $region36: #{cnn_model_forward.4} parent=11 // pred_fallthru
        _
    $region12: #{cnn_model_forward.4} parent=5 // pred_fallthru
      _
    %p240 = scmp.lt.s32.totalorder %s15, 4
    // Predicated region
    $region37: #{cnn_model_forward.4} parent=5 // pred_check
      %p241 = pneg %p240
    $region38: #{cnn_model_forward.4} parent=5 // pred_check_branch
      %243 = sbr.rel (%p241) target = $region40
    $region39: #{cnn_model_forward.4} parent=5 // pred_region
      _
    $region40: #{cnn_model_forward.4} parent=5 // pred_fallthru
      _
    %p244 = scmp.le.s32.totalorder 1, %s15
    %p245 = scmp.lt.s32.totalorder %s15, 5
    %p246 = pnand %p244, %p245
    %p247 = pneg %p246
    // Predicated region
    $region41: #{cnn_model_forward.4} parent=5 // pred_check
      _
    $region42: #{cnn_model_forward.4} parent=5 // pred_check_branch
      %249 = sbr.rel (%p246) target = $region44
    $region43: #{cnn_model_forward.4} parent=5 // pred_region
      %s250 = ssub.s32 %s15, 1
      %p251 = pneg %p48
      %p252 = pneg %p45
      %p253 = pneg %p69
      %p254 = pneg %p66
      %p255 = pneg %p90
      %p256 = pneg %p87
      %p257 = pneg %p111
      %p258 = pneg %p108
      %p259 = pneg %p132
      %p260 = pneg %p129
      %p261 = pneg %p153
      %p262 = pneg %p150
      %p263 = pneg %p181
      %p264 = pneg %p178
      %s265 = smul.u32 8, %s25
      %p266 = scmp.lt.s32.totalorder %s24, 1
      %s267 = scalar_select %p266, %s24, 1
      %p268 = scmp.lt.s32.totalorder %s265, 15
      %s269 = scalar_select %p268, %s265, 15
      %s270 = smul.addr %s269, 2
      %s271 = smul.addr %s267, 32
      %s272 = sadd.s32 %s270, %s271
      %s273 = smul.addr %s272, 8
      %s274 = scalar_lea.vmem %s7, %s273
      %p275 = pneg %p207
      %p276 = pneg %p204
      %p277 = scmp.lt.s32.totalorder %s24, 1
      %s278 = scalar_select %p277, %s24, 1
      %s279 = scalar_lea.vmem %s8, %s278
      %s280 = smul.u32 8, %s25
      %p281 = scmp.lt.s32.totalorder %s24, 1
      %s282 = scalar_select %p281, %s24, 1
      %p283 = scmp.lt.s32.totalorder %s280, 15
      %s284 = scalar_select %p283, %s280, 15
      %s285 = smul.addr %s284, 2
      %s286 = smul.addr %s282, 32
      %s287 = sadd.s32 %s285, %s286
      %s288 = smul.addr %s287, 8
      %s289 = scalar_lea.vmem %s7, %s288
      %s290 = smul.u32 8, %s25
      %p291 = scmp.lt.s32.totalorder %s24, 1
      %s292 = scalar_select %p291, %s24, 1
      %s293 = scalar_lea.vmem %s8, %s292
      %s294 = smul.u32 %s25, 8
      %p295 = scmp.eq.s32.totalorder %s25, 0
      // Predicated region
      $region45: #{cnn_model_forward.4} parent=43 // pred_check
        %p296 = pneg %p295
      $region46: #{cnn_model_forward.4} parent=43 // pred_check_branch
        %298 = sbr.rel (%p296) target = $region48
      $region47: #{cnn_model_forward.4} parent=43 // pred_region
        %299 = vst [vmem:[#allocation4] sm:$0x1] 0.0
      $region48: #{cnn_model_forward.4} parent=43 // pred_fallthru
        _
      %s300 = smul.u32 %s294, 24
      %s301 = smul.u32 %s24, 432
      %s302 = sadd.s32 %s300, %s301
      %s303 = scalar_lea.vmem %s0, %s302
      %p305 = scmp.lt.u32.totalorder 18, 8
      %p306 = pneg %p305
      // Predicated region
      $region49: #{cnn_model_forward.4} parent=43 // pred_check
        _
      $region50: #{cnn_model_forward.4} parent=43 // pred_check_branch
        %308 = sbr.rel (%p305) target = $region52
      $region51: #{cnn_model_forward.4} parent=43 // pred_region
        %s341 = sand.u32 18, 7
        %p342 = scmp.eq.s32.totalorder %s341, 0
        %p343 = pneg %p342
        // Predicated region
        $region64: #{cnn_model_forward.4} parent=51 // pred_check
          _
        $region65: #{cnn_model_forward.4} parent=51 // pred_check_branch
          %345 = sbr.rel (%p342) target = $region67
        $region66: #{cnn_model_forward.4} parent=51 // pred_region
          %s346 = sand.u32 18, 7
          %s347 = ssub.s32 18, %s346
          %s348 = scalar_lea.vmem %s303, %s347
          %s349 = ssub.s32 18, %s346
          %s350 = scalar_lea.vmem [#allocation2], %s349
          loop: start=0, step=1, limit=1
          $region68: #{cnn_model_forward.4} parent=66 // loop_pre_header
            _
          $region69: #{cnn_model_forward.4} parent=66 // loop_header
            %s352 = sphi 0, %s356
            %p353 = scmp.ge.s32.totalorder %s352, 1
            %s357 = sphi %s303, %s303
            %s358 = sphi [#allocation2], [#allocation2]
          $region70: #{cnn_model_forward.4} parent=66 // loop_header_branch
            %355 = sbr.rel (%p353) target = $region74
          $region71: #{cnn_model_forward.4} parent=66 // loop_body
            %v359 = vld [vmem:[%s357] sm:$0xff]
            %360 = vst [vmem:[%s358] sm:$0xff] %v359
            %v361 = vld [vmem:[%s357 + $0x8] sm:$0xff]
            %362 = vst [vmem:[%s358 + $0x8] sm:$0xff] %v361
            %v363 = vld [vmem:[%s357 + $0x18] sm:$0xff]
            %364 = vst [vmem:[%s358 + $0x18] sm:$0xff] %v363
            %v365 = vld [vmem:[%s357 + $0x20] sm:$0xff]
            %366 = vst [vmem:[%s358 + $0x20] sm:$0xff] %v365
            %v367 = vld [vmem:[%s357 + $0x30] sm:$0xff]
            %368 = vst [vmem:[%s358 + $0x30] sm:$0xff] %v367
            %v369 = vld [vmem:[%s357 + $0x38] sm:$0xff]
            %370 = vst [vmem:[%s358 + $0x38] sm:$0xff] %v369
            %v371 = vld [vmem:[%s357 + $0x48] sm:$0xff]
            %372 = vst [vmem:[%s358 + $0x48] sm:$0xff] %v371
            %v373 = vld [vmem:[%s357 + $0x50] sm:$0xff]
            %374 = vst [vmem:[%s358 + $0x50] sm:$0xff] %v373
            %v375 = vld [vmem:[%s357 + $0x60] sm:$0xff]
            %376 = vst [vmem:[%s358 + $0x60] sm:$0xff] %v375
            %v377 = vld [vmem:[%s357 + $0x68] sm:$0xff]
            %378 = vst [vmem:[%s358 + $0x68] sm:$0xff] %v377
            %v379 = vld [vmem:[%s357 + $0x78] sm:$0xff]
            %380 = vst [vmem:[%s358 + $0x78] sm:$0xff] %v379
            %v381 = vld [vmem:[%s357 + $0x80] sm:$0xff]
            %382 = vst [vmem:[%s358 + $0x80] sm:$0xff] %v381
            %v383 = vld [vmem:[%s357 + $0x90] sm:$0xff]
            %384 = vst [vmem:[%s358 + $0x90] sm:$0xff] %v383
            %v385 = vld [vmem:[%s357 + $0x98] sm:$0xff]
            %386 = vst [vmem:[%s358 + $0x98] sm:$0xff] %v385
            %v387 = vld [vmem:[%s357 + $0xa8] sm:$0xff]
            %388 = vst [vmem:[%s358 + $0xa8] sm:$0xff] %v387
            %v389 = vld [vmem:[%s357 + $0xb0] sm:$0xff]
            %390 = vst [vmem:[%s358 + $0xb0] sm:$0xff] %v389
            %v391 = vld [vmem:[%s357 + $0xc0] sm:$0xff]
            %392 = vst [vmem:[%s358 + $0xc0] sm:$0xff] %v391
            %v393 = vld [vmem:[%s357 + $0xc8] sm:$0xff]
            %394 = vst [vmem:[%s358 + $0xc8] sm:$0xff] %v393
            %v395 = vld [vmem:[%s357 + $0xd8] sm:$0xff]
            %396 = vst [vmem:[%s358 + $0xd8] sm:$0xff] %v395
            %v397 = vld [vmem:[%s357 + $0xe0] sm:$0xff]
            %398 = vst [vmem:[%s358 + $0xe0] sm:$0xff] %v397
          $region72: #{cnn_model_forward.4} parent=66 // loop_footer
            %s356 = sadd.s32 1, %s352
          $region73: #{cnn_model_forward.4} parent=66 // loop_footer_branch
            %351 = sbr.rel target = $region69
          $region74: #{cnn_model_forward.4} parent=66 // loop_exit
            _
          %s399 = sshllo.u32 0, %s346
          loop: start=0, step=1, limit=1
          $region75: #{cnn_model_forward.4} parent=66 // loop_pre_header
            _
          $region76: #{cnn_model_forward.4} parent=66 // loop_header
            %s401 = sphi 0, %s405
            %p402 = scmp.ge.s32.totalorder %s401, 1
            %s406 = sphi %s348, %s348
            %s407 = sphi %s350, %s350
          $region77: #{cnn_model_forward.4} parent=66 // loop_header_branch
            %404 = sbr.rel (%p402) target = $region81
          $region78: #{cnn_model_forward.4} parent=66 // loop_body
            %v408 = vld [vmem:[%s406] sm:%s399]
            %409 = vst [vmem:[%s407] sm:%s399] %v408
            %v410 = vld [vmem:[%s406 + $0x18] sm:%s399]
            %411 = vst [vmem:[%s407 + $0x18] sm:%s399] %v410
            %v412 = vld [vmem:[%s406 + $0x30] sm:%s399]
            %413 = vst [vmem:[%s407 + $0x30] sm:%s399] %v412
            %v414 = vld [vmem:[%s406 + $0x48] sm:%s399]
            %415 = vst [vmem:[%s407 + $0x48] sm:%s399] %v414
            %v416 = vld [vmem:[%s406 + $0x60] sm:%s399]
            %417 = vst [vmem:[%s407 + $0x60] sm:%s399] %v416
            %v418 = vld [vmem:[%s406 + $0x78] sm:%s399]
            %419 = vst [vmem:[%s407 + $0x78] sm:%s399] %v418
            %v420 = vld [vmem:[%s406 + $0x90] sm:%s399]
            %421 = vst [vmem:[%s407 + $0x90] sm:%s399] %v420
            %v422 = vld [vmem:[%s406 + $0xa8] sm:%s399]
            %423 = vst [vmem:[%s407 + $0xa8] sm:%s399] %v422
            %v424 = vld [vmem:[%s406 + $0xc0] sm:%s399]
            %425 = vst [vmem:[%s407 + $0xc0] sm:%s399] %v424
            %v426 = vld [vmem:[%s406 + $0xd8] sm:%s399]
            %427 = vst [vmem:[%s407 + $0xd8] sm:%s399] %v426
          $region79: #{cnn_model_forward.4} parent=66 // loop_footer
            %s405 = sadd.s32 1, %s401
          $region80: #{cnn_model_forward.4} parent=66 // loop_footer_branch
            %400 = sbr.rel target = $region76
          $region81: #{cnn_model_forward.4} parent=66 // loop_exit
            _
        $region67: #{cnn_model_forward.4} parent=51 // pred_fallthru
          _
      $region52: #{cnn_model_forward.4} parent=43 // pred_fallthru
        _
      // Predicated region
      $region53: #{cnn_model_forward.4} parent=43 // pred_check
        %p309 = pneg %p305
      $region54: #{cnn_model_forward.4} parent=43 // pred_check_branch
        %311 = sbr.rel (%p309) target = $region56
      $region55: #{cnn_model_forward.4} parent=43 // pred_region
        %s312 = sshllo.u32 0, 18
        loop: start=0, step=1, limit=1
        $region57: #{cnn_model_forward.4} parent=55 // loop_pre_header
          _
        $region58: #{cnn_model_forward.4} parent=55 // loop_header
          %s314 = sphi 0, %s318
          %p315 = scmp.ge.s32.totalorder %s314, 1
          %s319 = sphi %s303, %s303
          %s320 = sphi [#allocation2], [#allocation2]
        $region59: #{cnn_model_forward.4} parent=55 // loop_header_branch
          %317 = sbr.rel (%p315) target = $region63
        $region60: #{cnn_model_forward.4} parent=55 // loop_body
          %v321 = vld [vmem:[%s319] sm:%s312]
          %322 = vst [vmem:[%s320] sm:%s312] %v321
          %v323 = vld [vmem:[%s319 + $0x18] sm:%s312]
          %324 = vst [vmem:[%s320 + $0x18] sm:%s312] %v323
          %v325 = vld [vmem:[%s319 + $0x30] sm:%s312]
          %326 = vst [vmem:[%s320 + $0x30] sm:%s312] %v325
          %v327 = vld [vmem:[%s319 + $0x48] sm:%s312]
          %328 = vst [vmem:[%s320 + $0x48] sm:%s312] %v327
          %v329 = vld [vmem:[%s319 + $0x60] sm:%s312]
          %330 = vst [vmem:[%s320 + $0x60] sm:%s312] %v329
          %v331 = vld [vmem:[%s319 + $0x78] sm:%s312]
          %332 = vst [vmem:[%s320 + $0x78] sm:%s312] %v331
          %v333 = vld [vmem:[%s319 + $0x90] sm:%s312]
          %334 = vst [vmem:[%s320 + $0x90] sm:%s312] %v333
          %v335 = vld [vmem:[%s319 + $0xa8] sm:%s312]
          %336 = vst [vmem:[%s320 + $0xa8] sm:%s312] %v335
          %v337 = vld [vmem:[%s319 + $0xc0] sm:%s312]
          %338 = vst [vmem:[%s320 + $0xc0] sm:%s312] %v337
          %v339 = vld [vmem:[%s319 + $0xd8] sm:%s312]
          %340 = vst [vmem:[%s320 + $0xd8] sm:%s312] %v339
        $region61: #{cnn_model_forward.4} parent=55 // loop_footer
          %s318 = sadd.s32 1, %s314
        $region62: #{cnn_model_forward.4} parent=55 // loop_footer_branch
          %313 = sbr.rel target = $region58
        $region63: #{cnn_model_forward.4} parent=55 // loop_exit
          _
      $region56: #{cnn_model_forward.4} parent=43 // pred_fallthru
        _
      // Predicated region
      $region82: #{cnn_model_forward.4} parent=43 // pred_check
        _
      $region83: #{cnn_model_forward.4} parent=43 // pred_check_branch
        %430 = sbr.rel (0) target = $region85
      $region84: #{cnn_model_forward.4} parent=43 // pred_region
        %431 = vsyncadd [#allocation3], 2880
      $region85: #{cnn_model_forward.4} parent=43 // pred_fallthru
        _
      %s432 = smul.u32 10, 18
      %s433 = smul.u32 %s432, 1
      %s434 = sshll.u32 %s433, 4
      %435 = dma.done [#allocation3], %s434
      %v436 = vld [vmem:[#allocation2] sm:$0xff]
      %v437 = vld [vmem:[#allocation2 + $0x8] sm:$0xff]
      %v438 = vld [vmem:[#allocation2 + $0x18] sm:$0xff]
      %v439 = vld [vmem:[#allocation2 + $0x20] sm:$0xff]
      %v440 = vld [vmem:[#allocation2 + $0x30] sm:$0xff]
      %v441 = vld [vmem:[#allocation2 + $0x38] sm:$0xff]
      %v442 = vld [vmem:[#allocation2 + $0x48] sm:$0xff]
      %v443 = vld [vmem:[#allocation2 + $0x50] sm:$0xff]
      %v444 = vld [vmem:[#allocation2 + $0x60] sm:$0xff]
      %v445 = vld [vmem:[#allocation2 + $0x68] sm:$0xff]
      %v446 = vld [vmem:[#allocation2 + $0x78] sm:$0xff]
      %v447 = vld [vmem:[#allocation2 + $0x80] sm:$0xff]
      %v448 = vld [vmem:[#allocation2 + $0x90] sm:$0xff]
      %v449 = vld [vmem:[#allocation2 + $0x98] sm:$0xff]
      %v450 = vld [vmem:[#allocation2 + $0xa8] sm:$0xff]
      %v451 = vld [vmem:[#allocation2 + $0xb0] sm:$0xff]
      %v452 = vld [vmem:[%s1] sm:$0x1]
      %v453 = vlaneseq
      %v454 = vshrl.u32 %v453, 7
      %v455 = vsub.s32 0, %v454
      %v456 = vrot.slane %v452, %v455
      %v457 = vmul.f32 %v436, %v456
      %v458 = vmul.f32 %v437, %v456
      %v459 = vmul.f32 %v438, %v456
      %v460 = vmul.f32 %v439, %v456
      %v461 = vmul.f32 %v440, %v456
      %v462 = vmul.f32 %v441, %v456
      %v463 = vmul.f32 %v442, %v456
      %v464 = vmul.f32 %v443, %v456
      %v465 = vmul.f32 %v444, %v456
      %v466 = vmul.f32 %v445, %v456
      %v467 = vmul.f32 %v446, %v456
      %v468 = vmul.f32 %v447, %v456
      %v469 = vmul.f32 %v448, %v456
      %v470 = vmul.f32 %v449, %v456
      %v471 = vmul.f32 %v450, %v456
      %v472 = vmul.f32 %v451, %v456
      %v473 = vld [vmem:[#allocation2 + $0x1] sm:$0xff]
      %v474 = vld [vmem:[#allocation2 + $0x9] sm:$0xff]
      %v475 = vld [vmem:[#allocation2 + $0x19] sm:$0xff]
      %v476 = vld [vmem:[#allocation2 + $0x21] sm:$0xff]
      %v477 = vld [vmem:[#allocation2 + $0x31] sm:$0xff]
      %v478 = vld [vmem:[#allocation2 + $0x39] sm:$0xff]
      %v479 = vld [vmem:[#allocation2 + $0x49] sm:$0xff]
      %v480 = vld [vmem:[#allocation2 + $0x51] sm:$0xff]
      %v481 = vld [vmem:[#allocation2 + $0x61] sm:$0xff]
      %v482 = vld [vmem:[#allocation2 + $0x69] sm:$0xff]
      %v483 = vld [vmem:[#allocation2 + $0x79] sm:$0xff]
      %v484 = vld [vmem:[#allocation2 + $0x81] sm:$0xff]
      %v485 = vld [vmem:[#allocation2 + $0x91] sm:$0xff]
      %v486 = vld [vmem:[#allocation2 + $0x99] sm:$0xff]
      %v487 = vld [vmem:[#allocation2 + $0xa9] sm:$0xff]
      %v488 = vld [vmem:[#allocation2 + $0xb1] sm:$0xff]
      %v489 = vld [vmem:[%s1 + $0x1] sm:$0x1]
      %v490 = vlaneseq
      %v491 = vshrl.u32 %v490, 7
      %v492 = vsub.s32 0, %v491
      %v493 = vrot.slane %v489, %v492
      %v494 = vmul.f32 %v473, %v493
      %v495 = vmul.f32 %v474, %v493
      %v496 = vmul.f32 %v475, %v493
      %v497 = vmul.f32 %v476, %v493
      %v498 = vmul.f32 %v477, %v493
      %v499 = vmul.f32 %v478, %v493
      %v500 = vmul.f32 %v479, %v493
      %v501 = vmul.f32 %v480, %v493
      %v502 = vmul.f32 %v481, %v493
      %v503 = vmul.f32 %v482, %v493
      %v504 = vmul.f32 %v483, %v493
      %v505 = vmul.f32 %v484, %v493
      %v506 = vmul.f32 %v485, %v493
      %v507 = vmul.f32 %v486, %v493
      %v508 = vmul.f32 %v487, %v493
      %v509 = vmul.f32 %v488, %v493
      %v510 = vadd.f32 %v457, %v494
      %v511 = vadd.f32 %v458, %v495
      %v512 = vadd.f32 %v459, %v496
      %v513 = vadd.f32 %v460, %v497
      %v514 = vadd.f32 %v461, %v498
      %v515 = vadd.f32 %v462, %v499
      %v516 = vadd.f32 %v463, %v500
      %v517 = vadd.f32 %v464, %v501
      %v518 = vadd.f32 %v465, %v502
      %v519 = vadd.f32 %v466, %v503
      %v520 = vadd.f32 %v467, %v504
      %v521 = vadd.f32 %v468, %v505
      %v522 = vadd.f32 %v469, %v506
      %v523 = vadd.f32 %v470, %v507
      %v524 = vadd.f32 %v471, %v508
      %v525 = vadd.f32 %v472, %v509
      %v526 = vld [vmem:[#allocation2 + $0x2] sm:$0xff]
      %v527 = vld [vmem:[#allocation2 + $0xa] sm:$0xff]
      %v528 = vld [vmem:[#allocation2 + $0x1a] sm:$0xff]
      %v529 = vld [vmem:[#allocation2 + $0x22] sm:$0xff]
      %v530 = vld [vmem:[#allocation2 + $0x32] sm:$0xff]
      %v531 = vld [vmem:[#allocation2 + $0x3a] sm:$0xff]
      %v532 = vld [vmem:[#allocation2 + $0x4a] sm:$0xff]
      %v533 = vld [vmem:[#allocation2 + $0x52] sm:$0xff]
      %v534 = vld [vmem:[#allocation2 + $0x62] sm:$0xff]
      %v535 = vld [vmem:[#allocation2 + $0x6a] sm:$0xff]
      %v536 = vld [vmem:[#allocation2 + $0x7a] sm:$0xff]
      %v537 = vld [vmem:[#allocation2 + $0x82] sm:$0xff]
      %v538 = vld [vmem:[#allocation2 + $0x92] sm:$0xff]
      %v539 = vld [vmem:[#allocation2 + $0x9a] sm:$0xff]
      %v540 = vld [vmem:[#allocation2 + $0xaa] sm:$0xff]
      %v541 = vld [vmem:[#allocation2 + $0xb2] sm:$0xff]
      %v542 = vld [vmem:[%s1 + $0x2] sm:$0x1]
      %v543 = vlaneseq
      %v544 = vshrl.u32 %v543, 7
      %v545 = vsub.s32 0, %v544
      %v546 = vrot.slane %v542, %v545
      %v547 = vmul.f32 %v526, %v546
      %v548 = vmul.f32 %v527, %v546
      %v549 = vmul.f32 %v528, %v546
      %v550 = vmul.f32 %v529, %v546
      %v551 = vmul.f32 %v530, %v546
      %v552 = vmul.f32 %v531, %v546
      %v553 = vmul.f32 %v532, %v546
      %v554 = vmul.f32 %v533, %v546
      %v555 = vmul.f32 %v534, %v546
      %v556 = vmul.f32 %v535, %v546
      %v557 = vmul.f32 %v536, %v546
      %v558 = vmul.f32 %v537, %v546
      %v559 = vmul.f32 %v538, %v546
      %v560 = vmul.f32 %v539, %v546
      %v561 = vmul.f32 %v540, %v546
      %v562 = vmul.f32 %v541, %v546
      %v563 = vadd.f32 %v510, %v547
      %v564 = vadd.f32 %v511, %v548
      %v565 = vadd.f32 %v512, %v549
      %v566 = vadd.f32 %v513, %v550
      %v567 = vadd.f32 %v514, %v551
      %v568 = vadd.f32 %v515, %v552
      %v569 = vadd.f32 %v516, %v553
      %v570 = vadd.f32 %v517, %v554
      %v571 = vadd.f32 %v518, %v555
      %v572 = vadd.f32 %v519, %v556
      %v573 = vadd.f32 %v520, %v557
      %v574 = vadd.f32 %v521, %v558
      %v575 = vadd.f32 %v522, %v559
      %v576 = vadd.f32 %v523, %v560
      %v577 = vadd.f32 %v524, %v561
      %v578 = vadd.f32 %v525, %v562
      %s579 = scalar_lea.vmem [#allocation2], 24
      %v580 = vld [vmem:[%s579] sm:$0xff]
      %v581 = vld [vmem:[%s579 + $0x8] sm:$0xff]
      %v582 = vld [vmem:[%s579 + $0x18] sm:$0xff]
      %v583 = vld [vmem:[%s579 + $0x20] sm:$0xff]
      %v584 = vld [vmem:[%s579 + $0x30] sm:$0xff]
      %v585 = vld [vmem:[%s579 + $0x38] sm:$0xff]
      %v586 = vld [vmem:[%s579 + $0x48] sm:$0xff]
      %v587 = vld [vmem:[%s579 + $0x50] sm:$0xff]
      %v588 = vld [vmem:[%s579 + $0x60] sm:$0xff]
      %v589 = vld [vmem:[%s579 + $0x68] sm:$0xff]
      %v590 = vld [vmem:[%s579 + $0x78] sm:$0xff]
      %v591 = vld [vmem:[%s579 + $0x80] sm:$0xff]
      %v592 = vld [vmem:[%s579 + $0x90] sm:$0xff]
      %v593 = vld [vmem:[%s579 + $0x98] sm:$0xff]
      %v594 = vld [vmem:[%s579 + $0xa8] sm:$0xff]
      %v595 = vld [vmem:[%s579 + $0xb0] sm:$0xff]
      %v596 = vld [vmem:[%s1 + $0x3] sm:$0x1]
      %v597 = vlaneseq
      %v598 = vshrl.u32 %v597, 7
      %v599 = vsub.s32 0, %v598
      %v600 = vrot.slane %v596, %v599
      %v601 = vmul.f32 %v580, %v600
      %v602 = vmul.f32 %v581, %v600
      %v603 = vmul.f32 %v582, %v600
      %v604 = vmul.f32 %v583, %v600
      %v605 = vmul.f32 %v584, %v600
      %v606 = vmul.f32 %v585, %v600
      %v607 = vmul.f32 %v586, %v600
      %v608 = vmul.f32 %v587, %v600
      %v609 = vmul.f32 %v588, %v600
      %v610 = vmul.f32 %v589, %v600
      %v611 = vmul.f32 %v590, %v600
      %v612 = vmul.f32 %v591, %v600
      %v613 = vmul.f32 %v592, %v600
      %v614 = vmul.f32 %v593, %v600
      %v615 = vmul.f32 %v594, %v600
      %v616 = vmul.f32 %v595, %v600
      %v617 = vadd.f32 %v563, %v601
      %v618 = vadd.f32 %v564, %v602
      %v619 = vadd.f32 %v565, %v603
      %v620 = vadd.f32 %v566, %v604
      %v621 = vadd.f32 %v567, %v605
      %v622 = vadd.f32 %v568, %v606
      %v623 = vadd.f32 %v569, %v607
      %v624 = vadd.f32 %v570, %v608
      %v625 = vadd.f32 %v571, %v609
      %v626 = vadd.f32 %v572, %v610
      %v627 = vadd.f32 %v573, %v611
      %v628 = vadd.f32 %v574, %v612
      %v629 = vadd.f32 %v575, %v613
      %v630 = vadd.f32 %v576, %v614
      %v631 = vadd.f32 %v577, %v615
      %v632 = vadd.f32 %v578, %v616
      %v633 = vld [vmem:[%s579 + $0x1] sm:$0xff]
      %v634 = vld [vmem:[%s579 + $0x9] sm:$0xff]
      %v635 = vld [vmem:[%s579 + $0x19] sm:$0xff]
      %v636 = vld [vmem:[%s579 + $0x21] sm:$0xff]
      %v637 = vld [vmem:[%s579 + $0x31] sm:$0xff]
      %v638 = vld [vmem:[%s579 + $0x39] sm:$0xff]
      %v639 = vld [vmem:[%s579 + $0x49] sm:$0xff]
      %v640 = vld [vmem:[%s579 + $0x51] sm:$0xff]
      %v641 = vld [vmem:[%s579 + $0x61] sm:$0xff]
      %v642 = vld [vmem:[%s579 + $0x69] sm:$0xff]
      %v643 = vld [vmem:[%s579 + $0x79] sm:$0xff]
      %v644 = vld [vmem:[%s579 + $0x81] sm:$0xff]
      %v645 = vld [vmem:[%s579 + $0x91] sm:$0xff]
      %v646 = vld [vmem:[%s579 + $0x99] sm:$0xff]
      %v647 = vld [vmem:[%s579 + $0xa9] sm:$0xff]
      %v648 = vld [vmem:[%s579 + $0xb1] sm:$0xff]
      %v649 = vld [vmem:[%s1 + $0x4] sm:$0x1]
      %v650 = vlaneseq
      %v651 = vshrl.u32 %v650, 7
      %v652 = vsub.s32 0, %v651
      %v653 = vrot.slane %v649, %v652
      %v654 = vmul.f32 %v633, %v653
      %v655 = vmul.f32 %v634, %v653
      %v656 = vmul.f32 %v635, %v653
      %v657 = vmul.f32 %v636, %v653
      %v658 = vmul.f32 %v637, %v653
      %v659 = vmul.f32 %v638, %v653
      %v660 = vmul.f32 %v639, %v653
      %v661 = vmul.f32 %v640, %v653
      %v662 = vmul.f32 %v641, %v653
      %v663 = vmul.f32 %v642, %v653
      %v664 = vmul.f32 %v643, %v653
      %v665 = vmul.f32 %v644, %v653
      %v666 = vmul.f32 %v645, %v653
      %v667 = vmul.f32 %v646, %v653
      %v668 = vmul.f32 %v647, %v653
      %v669 = vmul.f32 %v648, %v653
      %v670 = vadd.f32 %v617, %v654
      %v671 = vadd.f32 %v618, %v655
      %v672 = vadd.f32 %v619, %v656
      %v673 = vadd.f32 %v620, %v657
      %v674 = vadd.f32 %v621, %v658
      %v675 = vadd.f32 %v622, %v659
      %v676 = vadd.f32 %v623, %v660
      %v677 = vadd.f32 %v624, %v661
      %v678 = vadd.f32 %v625, %v662
      %v679 = vadd.f32 %v626, %v663
      %v680 = vadd.f32 %v627, %v664
      %v681 = vadd.f32 %v628, %v665
      %v682 = vadd.f32 %v629, %v666
      %v683 = vadd.f32 %v630, %v667
      %v684 = vadd.f32 %v631, %v668
      %v685 = vadd.f32 %v632, %v669
      %v686 = vld [vmem:[%s579 + $0x2] sm:$0xff]
      %v687 = vld [vmem:[%s579 + $0xa] sm:$0xff]
      %v688 = vld [vmem:[%s579 + $0x1a] sm:$0xff]
      %v689 = vld [vmem:[%s579 + $0x22] sm:$0xff]
      %v690 = vld [vmem:[%s579 + $0x32] sm:$0xff]
      %v691 = vld [vmem:[%s579 + $0x3a] sm:$0xff]
      %v692 = vld [vmem:[%s579 + $0x4a] sm:$0xff]
      %v693 = vld [vmem:[%s579 + $0x52] sm:$0xff]
      %v694 = vld [vmem:[%s579 + $0x62] sm:$0xff]
      %v695 = vld [vmem:[%s579 + $0x6a] sm:$0xff]
      %v696 = vld [vmem:[%s579 + $0x7a] sm:$0xff]
      %v697 = vld [vmem:[%s579 + $0x82] sm:$0xff]
      %v698 = vld [vmem:[%s579 + $0x92] sm:$0xff]
      %v699 = vld [vmem:[%s579 + $0x9a] sm:$0xff]
      %v700 = vld [vmem:[%s579 + $0xaa] sm:$0xff]
      %v701 = vld [vmem:[%s579 + $0xb2] sm:$0xff]
      %v702 = vld [vmem:[%s1 + $0x5] sm:$0x1]
      %v703 = vlaneseq
      %v704 = vshrl.u32 %v703, 7
      %v705 = vsub.s32 0, %v704
      %v706 = vrot.slane %v702, %v705
      %v707 = vmul.f32 %v686, %v706
      %v708 = vmul.f32 %v687, %v706
      %v709 = vmul.f32 %v688, %v706
      %v710 = vmul.f32 %v689, %v706
      %v711 = vmul.f32 %v690, %v706
      %v712 = vmul.f32 %v691, %v706
      %v713 = vmul.f32 %v692, %v706
      %v714 = vmul.f32 %v693, %v706
      %v715 = vmul.f32 %v694, %v706
      %v716 = vmul.f32 %v695, %v706
      %v717 = vmul.f32 %v696, %v706
      %v718 = vmul.f32 %v697, %v706
      %v719 = vmul.f32 %v698, %v706
      %v720 = vmul.f32 %v699, %v706
      %v721 = vmul.f32 %v700, %v706
      %v722 = vmul.f32 %v701, %v706
      %v723 = vadd.f32 %v670, %v707
      %v724 = vadd.f32 %v671, %v708
      %v725 = vadd.f32 %v672, %v709
      %v726 = vadd.f32 %v673, %v710
      %v727 = vadd.f32 %v674, %v711
      %v728 = vadd.f32 %v675, %v712
      %v729 = vadd.f32 %v676, %v713
      %v730 = vadd.f32 %v677, %v714
      %v731 = vadd.f32 %v678, %v715
      %v732 = vadd.f32 %v679, %v716
      %v733 = vadd.f32 %v680, %v717
      %v734 = vadd.f32 %v681, %v718
      %v735 = vadd.f32 %v682, %v719
      %v736 = vadd.f32 %v683, %v720
      %v737 = vadd.f32 %v684, %v721
      %v738 = vadd.f32 %v685, %v722
      %s739 = scalar_lea.vmem [#allocation2], 48
      %v740 = vld [vmem:[%s739] sm:$0xff]
      %v741 = vld [vmem:[%s739 + $0x8] sm:$0xff]
      %v742 = vld [vmem:[%s739 + $0x18] sm:$0xff]
      %v743 = vld [vmem:[%s739 + $0x20] sm:$0xff]
      %v744 = vld [vmem:[%s739 + $0x30] sm:$0xff]
      %v745 = vld [vmem:[%s739 + $0x38] sm:$0xff]
      %v746 = vld [vmem:[%s739 + $0x48] sm:$0xff]
      %v747 = vld [vmem:[%s739 + $0x50] sm:$0xff]
      %v748 = vld [vmem:[%s739 + $0x60] sm:$0xff]
      %v749 = vld [vmem:[%s739 + $0x68] sm:$0xff]
      %v750 = vld [vmem:[%s739 + $0x78] sm:$0xff]
      %v751 = vld [vmem:[%s739 + $0x80] sm:$0xff]
      %v752 = vld [vmem:[%s739 + $0x90] sm:$0xff]
      %v753 = vld [vmem:[%s739 + $0x98] sm:$0xff]
      %v754 = vld [vmem:[%s739 + $0xa8] sm:$0xff]
      %v755 = vld [vmem:[%s739 + $0xb0] sm:$0xff]
      %v756 = vld [vmem:[%s1 + $0x6] sm:$0x1]
      %v757 = vlaneseq
      %v758 = vshrl.u32 %v757, 7
      %v759 = vsub.s32 0, %v758
      %v760 = vrot.slane %v756, %v759
      %v761 = vmul.f32 %v740, %v760
      %v762 = vmul.f32 %v741, %v760
      %v763 = vmul.f32 %v742, %v760
      %v764 = vmul.f32 %v743, %v760
      %v765 = vmul.f32 %v744, %v760
      %v766 = vmul.f32 %v745, %v760
      %v767 = vmul.f32 %v746, %v760
      %v768 = vmul.f32 %v747, %v760
      %v769 = vmul.f32 %v748, %v760
      %v770 = vmul.f32 %v749, %v760
      %v771 = vmul.f32 %v750, %v760
      %v772 = vmul.f32 %v751, %v760
      %v773 = vmul.f32 %v752, %v760
      %v774 = vmul.f32 %v753, %v760
      %v775 = vmul.f32 %v754, %v760
      %v776 = vmul.f32 %v755, %v760
      %v777 = vadd.f32 %v723, %v761
      %v778 = vadd.f32 %v724, %v762
      %v779 = vadd.f32 %v725, %v763
      %v780 = vadd.f32 %v726, %v764
      %v781 = vadd.f32 %v727, %v765
      %v782 = vadd.f32 %v728, %v766
      %v783 = vadd.f32 %v729, %v767
      %v784 = vadd.f32 %v730, %v768
      %v785 = vadd.f32 %v731, %v769
      %v786 = vadd.f32 %v732, %v770
      %v787 = vadd.f32 %v733, %v771
      %v788 = vadd.f32 %v734, %v772
      %v789 = vadd.f32 %v735, %v773
      %v790 = vadd.f32 %v736, %v774
      %v791 = vadd.f32 %v737, %v775
      %v792 = vadd.f32 %v738, %v776
      %v793 = vld [vmem:[%s739 + $0x1] sm:$0xff]
      %v794 = vld [vmem:[%s739 + $0x9] sm:$0xff]
      %v795 = vld [vmem:[%s739 + $0x19] sm:$0xff]
      %v796 = vld [vmem:[%s739 + $0x21] sm:$0xff]
      %v797 = vld [vmem:[%s739 + $0x31] sm:$0xff]
      %v798 = vld [vmem:[%s739 + $0x39] sm:$0xff]
      %v799 = vld [vmem:[%s739 + $0x49] sm:$0xff]
      %v800 = vld [vmem:[%s739 + $0x51] sm:$0xff]
      %v801 = vld [vmem:[%s739 + $0x61] sm:$0xff]
      %v802 = vld [vmem:[%s739 + $0x69] sm:$0xff]
      %v803 = vld [vmem:[%s739 + $0x79] sm:$0xff]
      %v804 = vld [vmem:[%s739 + $0x81] sm:$0xff]
      %v805 = vld [vmem:[%s739 + $0x91] sm:$0xff]
      %v806 = vld [vmem:[%s739 + $0x99] sm:$0xff]
      %v807 = vld [vmem:[%s739 + $0xa9] sm:$0xff]
      %v808 = vld [vmem:[%s739 + $0xb1] sm:$0xff]
      %v809 = vld [vmem:[%s1 + $0x7] sm:$0x1]
      %v810 = vlaneseq
      %v811 = vshrl.u32 %v810, 7
      %v812 = vsub.s32 0, %v811
      %v813 = vrot.slane %v809, %v812
      %v814 = vmul.f32 %v793, %v813
      %v815 = vmul.f32 %v794, %v813
      %v816 = vmul.f32 %v795, %v813
      %v817 = vmul.f32 %v796, %v813
      %v818 = vmul.f32 %v797, %v813
      %v819 = vmul.f32 %v798, %v813
      %v820 = vmul.f32 %v799, %v813
      %v821 = vmul.f32 %v800, %v813
      %v822 = vmul.f32 %v801, %v813
      %v823 = vmul.f32 %v802, %v813
      %v824 = vmul.f32 %v803, %v813
      %v825 = vmul.f32 %v804, %v813
      %v826 = vmul.f32 %v805, %v813
      %v827 = vmul.f32 %v806, %v813
      %v828 = vmul.f32 %v807, %v813
      %v829 = vmul.f32 %v808, %v813
      %v830 = vadd.f32 %v777, %v814
      %v831 = vadd.f32 %v778, %v815
      %v832 = vadd.f32 %v779, %v816
      %v833 = vadd.f32 %v780, %v817
      %v834 = vadd.f32 %v781, %v818
      %v835 = vadd.f32 %v782, %v819
      %v836 = vadd.f32 %v783, %v820
      %v837 = vadd.f32 %v784, %v821
      %v838 = vadd.f32 %v785, %v822
      %v839 = vadd.f32 %v786, %v823
      %v840 = vadd.f32 %v787, %v824
      %v841 = vadd.f32 %v788, %v825
      %v842 = vadd.f32 %v789, %v826
      %v843 = vadd.f32 %v790, %v827
      %v844 = vadd.f32 %v791, %v828
      %v845 = vadd.f32 %v792, %v829
      %v846 = vld [vmem:[%s739 + $0x2] sm:$0xff]
      %v847 = vld [vmem:[%s739 + $0xa] sm:$0xff]
      %v848 = vld [vmem:[%s739 + $0x1a] sm:$0xff]
      %v849 = vld [vmem:[%s739 + $0x22] sm:$0xff]
      %v850 = vld [vmem:[%s739 + $0x32] sm:$0xff]
      %v851 = vld [vmem:[%s739 + $0x3a] sm:$0xff]
      %v852 = vld [vmem:[%s739 + $0x4a] sm:$0xff]
      %v853 = vld [vmem:[%s739 + $0x52] sm:$0xff]
      %v854 = vld [vmem:[%s739 + $0x62] sm:$0xff]
      %v855 = vld [vmem:[%s739 + $0x6a] sm:$0xff]
      %v856 = vld [vmem:[%s739 + $0x7a] sm:$0xff]
      %v857 = vld [vmem:[%s739 + $0x82] sm:$0xff]
      %v858 = vld [vmem:[%s739 + $0x92] sm:$0xff]
      %v859 = vld [vmem:[%s739 + $0x9a] sm:$0xff]
      %v860 = vld [vmem:[%s739 + $0xaa] sm:$0xff]
      %v861 = vld [vmem:[%s739 + $0xb2] sm:$0xff]
      %v862 = vld [vmem:[%s1 + $0x8] sm:$0x1]
      %v863 = vlaneseq
      %v864 = vshrl.u32 %v863, 7
      %v865 = vsub.s32 0, %v864
      %v866 = vrot.slane %v862, %v865
      %v867 = vmul.f32 %v846, %v866
      %v868 = vmul.f32 %v847, %v866
      %v869 = vmul.f32 %v848, %v866
      %v870 = vmul.f32 %v849, %v866
      %v871 = vmul.f32 %v850, %v866
      %v872 = vmul.f32 %v851, %v866
      %v873 = vmul.f32 %v852, %v866
      %v874 = vmul.f32 %v853, %v866
      %v875 = vmul.f32 %v854, %v866
      %v876 = vmul.f32 %v855, %v866
      %v877 = vmul.f32 %v856, %v866
      %v878 = vmul.f32 %v857, %v866
      %v879 = vmul.f32 %v858, %v866
      %v880 = vmul.f32 %v859, %v866
      %v881 = vmul.f32 %v860, %v866
      %v882 = vmul.f32 %v861, %v866
      %v883 = vadd.f32 %v830, %v867
      %v884 = vadd.f32 %v831, %v868
      %v885 = vadd.f32 %v832, %v869
      %v886 = vadd.f32 %v833, %v870
      %v887 = vadd.f32 %v834, %v871
      %v888 = vadd.f32 %v835, %v872
      %v889 = vadd.f32 %v836, %v873
      %v890 = vadd.f32 %v837, %v874
      %v891 = vadd.f32 %v838, %v875
      %v892 = vadd.f32 %v839, %v876
      %v893 = vadd.f32 %v840, %v877
      %v894 = vadd.f32 %v841, %v878
      %v895 = vadd.f32 %v842, %v879
      %v896 = vadd.f32 %v843, %v880
      %v897 = vadd.f32 %v844, %v881
      %v898 = vadd.f32 %v845, %v882
      %v899 = vld [vmem:[%s2] sm:$0x1]
      %v901 = vlaneseq
      %v902 = vshrl.u32 %v901, 7
      %v903 = vsub.s32 0, %v902
      %v904 = vrot.slane %v899, %v903
      %v906 = vadd.f32 %v883, %v904
      %v907 = vadd.f32 %v884, %v904
      %v908 = vadd.f32 %v885, %v904
      %v909 = vadd.f32 %v886, %v904
      %v910 = vadd.f32 %v887, %v904
      %v911 = vadd.f32 %v888, %v904
      %v912 = vadd.f32 %v889, %v904
      %v913 = vadd.f32 %v890, %v904
      %v914 = vadd.f32 %v891, %v904
      %v915 = vadd.f32 %v892, %v904
      %v916 = vadd.f32 %v893, %v904
      %v917 = vadd.f32 %v894, %v904
      %v918 = vadd.f32 %v895, %v904
      %v919 = vadd.f32 %v896, %v904
      %v920 = vadd.f32 %v897, %v904
      %v921 = vadd.f32 %v898, %v904
      %v922 = vxor.u32 %v906, 2147483648
      %v923 = vxor.u32 %v907, 2147483648
      %v924 = vxor.u32 %v908, 2147483648
      %v925 = vxor.u32 %v909, 2147483648
      %v926 = vxor.u32 %v910, 2147483648
      %v927 = vxor.u32 %v911, 2147483648
      %v928 = vxor.u32 %v912, 2147483648
      %v929 = vxor.u32 %v913, 2147483648
      %v930 = vxor.u32 %v914, 2147483648
      %v931 = vxor.u32 %v915, 2147483648
      %v932 = vxor.u32 %v916, 2147483648
      %v933 = vxor.u32 %v917, 2147483648
      %v934 = vxor.u32 %v918, 2147483648
      %v935 = vxor.u32 %v919, 2147483648
      %v936 = vxor.u32 %v920, 2147483648
      %v937 = vxor.u32 %v921, 2147483648
      %v938 = vmul.f32 %v922, 1.442695
      %v939 = vpow.pop %v938
      %v940 = vmul.f32 %v923, 1.442695
      %v941 = vpow.pop %v940
      %v942 = vmul.f32 %v924, 1.442695
      %v943 = vpow.pop %v942
      %v944 = vmul.f32 %v925, 1.442695
      %v945 = vpow.pop %v944
      %v946 = vmul.f32 %v926, 1.442695
      %v947 = vpow.pop %v946
      %v948 = vmul.f32 %v927, 1.442695
      %v949 = vpow.pop %v948
      %v950 = vmul.f32 %v928, 1.442695
      %v951 = vpow.pop %v950
      %v952 = vmul.f32 %v929, 1.442695
      %v953 = vpow.pop %v952
      %v954 = vmul.f32 %v930, 1.442695
      %v955 = vpow.pop %v954
      %v956 = vmul.f32 %v931, 1.442695
      %v957 = vpow.pop %v956
      %v958 = vmul.f32 %v932, 1.442695
      %v959 = vpow.pop %v958
      %v960 = vmul.f32 %v933, 1.442695
      %v961 = vpow.pop %v960
      %v962 = vmul.f32 %v934, 1.442695
      %v963 = vpow.pop %v962
      %v964 = vmul.f32 %v935, 1.442695
      %v965 = vpow.pop %v964
      %v966 = vmul.f32 %v936, 1.442695
      %v967 = vpow.pop %v966
      %v968 = vmul.f32 %v937, 1.442695
      %v969 = vpow.pop %v968
      %v970 = vadd.f32 %v939, 1.0
      %v971 = vadd.f32 %v941, 1.0
      %v972 = vadd.f32 %v943, 1.0
      %v973 = vadd.f32 %v945, 1.0
      %v974 = vadd.f32 %v947, 1.0
      %v975 = vadd.f32 %v949, 1.0
      %v976 = vadd.f32 %v951, 1.0
      %v977 = vadd.f32 %v953, 1.0
      %v978 = vadd.f32 %v955, 1.0
      %v979 = vadd.f32 %v957, 1.0
      %v980 = vadd.f32 %v959, 1.0
      %v981 = vadd.f32 %v961, 1.0
      %v982 = vadd.f32 %v963, 1.0
      %v983 = vadd.f32 %v965, 1.0
      %v984 = vadd.f32 %v967, 1.0
      %v985 = vadd.f32 %v969, 1.0
      %v986 = vrcp.pop %v970
      %v987 = vmul.f32 1.0, %v986
      %v988 = vrcp.pop %v971
      %v989 = vmul.f32 1.0, %v988
      %v990 = vrcp.pop %v972
      %v991 = vmul.f32 1.0, %v990
      %v992 = vrcp.pop %v973
      %v993 = vmul.f32 1.0, %v992
      %v994 = vrcp.pop %v974
      %v995 = vmul.f32 1.0, %v994
      %v996 = vrcp.pop %v975
      %v997 = vmul.f32 1.0, %v996
      %v998 = vrcp.pop %v976
      %v999 = vmul.f32 1.0, %v998
      %v1000 = vrcp.pop %v977
      %v1001 = vmul.f32 1.0, %v1000
      %v1002 = vrcp.pop %v978
      %v1003 = vmul.f32 1.0, %v1002
      %v1004 = vrcp.pop %v979
      %v1005 = vmul.f32 1.0, %v1004
      %v1006 = vrcp.pop %v980
      %v1007 = vmul.f32 1.0, %v1006
      %v1008 = vrcp.pop %v981
      %v1009 = vmul.f32 1.0, %v1008
      %v1010 = vrcp.pop %v982
      %v1011 = vmul.f32 1.0, %v1010
      %v1012 = vrcp.pop %v983
      %v1013 = vmul.f32 1.0, %v1012
      %v1014 = vrcp.pop %v984
      %v1015 = vmul.f32 1.0, %v1014
      %v1016 = vrcp.pop %v985
      %v1017 = vmul.f32 1.0, %v1016
      %v1018 = vmul.f32 %v906, %v987
      %v1019 = vmul.f32 %v907, %v989
      %v1020 = vmul.f32 %v908, %v991
      %v1021 = vmul.f32 %v909, %v993
      %v1022 = vmul.f32 %v910, %v995
      %v1023 = vmul.f32 %v911, %v997
      %v1024 = vmul.f32 %v912, %v999
      %v1025 = vmul.f32 %v913, %v1001
      %v1026 = vmul.f32 %v914, %v1003
      %v1027 = vmul.f32 %v915, %v1005
      %v1028 = vmul.f32 %v916, %v1007
      %v1029 = vmul.f32 %v917, %v1009
      %v1030 = vmul.f32 %v918, %v1011
      %v1031 = vmul.f32 %v919, %v1013
      %v1032 = vmul.f32 %v920, %v1015
      %v1033 = vmul.f32 %v921, %v1017
      %1034 = vst [vmem:[%s289] sm:$0xff] %v1018
      %1035 = vst [vmem:[%s289 + $0x8] sm:$0xff] %v1019
      %1036 = vst [vmem:[%s289 + $0x10] sm:$0xff] %v1020
      %1037 = vst [vmem:[%s289 + $0x18] sm:$0xff] %v1021
      %1038 = vst [vmem:[%s289 + $0x20] sm:$0xff] %v1022
      %1039 = vst [vmem:[%s289 + $0x28] sm:$0xff] %v1023
      %1040 = vst [vmem:[%s289 + $0x30] sm:$0xff] %v1024
      %1041 = vst [vmem:[%s289 + $0x38] sm:$0xff] %v1025
      %1042 = vst [vmem:[%s289 + $0x40] sm:$0xff] %v1026
      %1043 = vst [vmem:[%s289 + $0x48] sm:$0xff] %v1027
      %1044 = vst [vmem:[%s289 + $0x50] sm:$0xff] %v1028
      %1045 = vst [vmem:[%s289 + $0x58] sm:$0xff] %v1029
      %1046 = vst [vmem:[%s289 + $0x60] sm:$0xff] %v1030
      %1047 = vst [vmem:[%s289 + $0x68] sm:$0xff] %v1031
      %1048 = vst [vmem:[%s289 + $0x70] sm:$0xff] %v1032
      %1049 = vst [vmem:[%s289 + $0x78] sm:$0xff] %v1033
      %v1050 = vld [vmem:[#allocation4] sm:$0x1]
      %v1051 = vadd.f32 %v1018, %v1019
      %v1052 = vadd.f32 %v1051, %v1020
      %v1053 = vadd.f32 %v1052, %v1021
      %v1054 = vadd.f32 %v1053, %v1022
      %v1055 = vadd.f32 %v1054, %v1023
      %v1056 = vadd.f32 %v1055, %v1024
      %v1057 = vadd.f32 %v1056, %v1025
      %v1058 = vadd.f32 %v1057, %v1026
      %v1059 = vadd.f32 %v1058, %v1027
      %v1060 = vadd.f32 %v1059, %v1028
      %v1061 = vadd.f32 %v1060, %v1029
      %v1062 = vadd.f32 %v1061, %v1030
      %v1063 = vadd.f32 %v1062, %v1031
      %v1064 = vadd.f32 %v1063, %v1032
      %v1065 = vadd.f32 %v1064, %v1033
      %v1066 = vrot.slane %v1065, 4
      %v1067 = vadd.f32 %v1065, %v1066
      %v1068 = vrot.slane %v1067, 2
      %v1069 = vadd.f32 %v1067, %v1068
      %v1070 = vrot.slane %v1069, 1
      %v1071 = vadd.f32 %v1069, %v1070
      %v1072 = vadd.f32 %v1050, %v1071
      %1073 = vst [vmem:[#allocation4] sm:$0x1] %v1072
      %p1074 = scmp.eq.s32.totalorder %s25, 1
      // Predicated region
      $region86: #{cnn_model_forward.4} parent=43 // pred_check
        %p1075 = pneg %p1074
      $region87: #{cnn_model_forward.4} parent=43 // pred_check_branch
        %1077 = sbr.rel (%p1075) target = $region89
      $region88: #{cnn_model_forward.4} parent=43 // pred_region
        %v1078 = vld [vmem:[#allocation4] sm:$0x1]
        %v1079 = vmul.f32 %v1078, 0.00390625
        %v1080 = vld [vmem:[%s3] sm:$0xff]
        %v1081 = vld [vmem:[%s3 + $0x8] sm:$0xff]
        %v1082 = vld [vmem:[%s3 + $0x10] sm:$0xff]
        %v1083 = vld [vmem:[%s3 + $0x18] sm:$0xff]
        %v1084 = vld [vmem:[%s3 + $0x20] sm:$0xff]
        %v1085 = vld [vmem:[%s3 + $0x28] sm:$0xff]
        %v1086 = vld [vmem:[%s3 + $0x30] sm:$0xff]
        %v1087 = vld [vmem:[%s3 + $0x38] sm:$0xff]
        %v1088 = vld [vmem:[%s3 + $0x40] sm:$0xff]
        %v1089 = vld [vmem:[%s3 + $0x48] sm:$0xff]
        %v1090 = vld [vmem:[%s3 + $0x50] sm:$0xff]
        %v1091 = vld [vmem:[%s3 + $0x58] sm:$0xff]
        %v1092 = vld [vmem:[%s3 + $0x60] sm:$0xff]
        %v1093 = vld [vmem:[%s3 + $0x68] sm:$0xff]
        %v1094 = vld [vmem:[%s3 + $0x70] sm:$0xff]
        %v1095 = vld [vmem:[%s3 + $0x78] sm:$0xff]
        %v1096 = vld [vmem:[%s4] sm:$0x1]
        %1097 = vmatprep.subr.mxu0 0.0
        %1098 = vmatpush1.msra.mxu0 %v1080
        %1099 = vmatprep.subr.mxu0 0.0
        %1100 = vmatpush1.msra.mxu0 %v1081
        %1101 = vmatprep.subr.mxu0 0.0
        %1102 = vmatpush1.msra.mxu0 %v1082
        %1103 = vmatprep.subr.mxu0 0.0
        %1104 = vmatpush1.msra.mxu0 %v1083
        %1105 = vmatprep.subr.mxu0 0.0
        %1106 = vmatpush1.msra.mxu0 %v1084
        %1107 = vmatprep.subr.mxu0 0.0
        %1108 = vmatpush1.msra.mxu0 %v1085
        %1109 = vmatprep.subr.mxu0 0.0
        %1110 = vmatpush1.msra.mxu0 %v1086
        %1111 = vmatprep.subr.mxu0 0.0
        %1112 = vmatpush1.msra.mxu0 %v1087
        %1113 = vmatprep.subr.mxu0 0.0
        %1114 = vmatpush1.msra.mxu0 %v1088
        %1115 = vmatprep.subr.mxu0 0.0
        %1116 = vmatpush1.msra.mxu0 %v1089
        %1117 = vmatprep.subr.mxu0 0.0
        %1118 = vmatpush1.msra.mxu0 %v1090
        %1119 = vmatprep.subr.mxu0 0.0
        %1120 = vmatpush1.msra.mxu0 %v1091
        %1121 = vmatprep.subr.mxu0 0.0
        %1122 = vmatpush1.msra.mxu0 %v1092
        %1123 = vmatprep.subr.mxu0 0.0
        %1124 = vmatpush1.msra.mxu0 %v1093
        %1125 = vmatprep.subr.mxu0 0.0
        %1126 = vmatpush1.msra.mxu0 %v1094
        %1127 = vmatprep.subr.mxu0 0.0
        %1128 = vmatpush1.msra.mxu0 %v1095
        %1129 = vmatprep.subr.mxu0 0.0
        %1130 = vmatpush1.msra.mxu0 0.0
        %1131 = vmatprep.subr.mxu0 0.0
        %1132 = vmatpush1.msra.mxu0 0.0
        %1133 = vmatprep.subr.mxu0 0.0
        %1134 = vmatpush1.msra.mxu0 0.0
        %1135 = vmatprep.subr.mxu0 0.0
        %1136 = vmatpush1.msra.mxu0 0.0
        %1137 = vmatprep.subr.mxu0 0.0
        %1138 = vmatpush1.msra.mxu0 0.0
        %1139 = vmatprep.subr.mxu0 0.0
        %1140 = vmatpush1.msra.mxu0 0.0
        %1141 = vmatprep.subr.mxu0 0.0
        %1142 = vmatpush1.msra.mxu0 0.0
        %1143 = vmatprep.subr.mxu0 0.0
        %1144 = vmatpush1.msra.mxu0 0.0
        %1145 = vmatprep.subr.mxu0 0.0
        %1146 = vmatpush1.msra.mxu0 0.0
        %1147 = vmatprep.subr.mxu0 0.0
        %1148 = vmatpush1.msra.mxu0 0.0
        %1149 = vmatprep.subr.mxu0 0.0
        %1150 = vmatpush1.msra.mxu0 0.0
        %1151 = vmatprep.subr.mxu0 0.0
        %1152 = vmatpush1.msra.mxu0 0.0
        %1153 = vmatprep.subr.mxu0 0.0
        %1154 = vmatpush1.msra.mxu0 0.0
        %1155 = vmatprep.subr.mxu0 0.0
        %1156 = vmatpush1.msra.mxu0 0.0
        %1157 = vmatprep.subr.mxu0 0.0
        %1158 = vmatpush1.msra.mxu0 0.0
        %1159 = vmatprep.subr.mxu0 0.0
        %1160 = vmatpush1.msra.mxu0 0.0
        %1161 = vmatprep.mubr.f32.mxu0 0.0
        %1162 = vmatmul.mubr.f32.gmra.mrb[0].mxu0 %v1079
        %v1163 = vpop.f32.mrb[0].mxu0
        %v1164 = vadd.f32 %v1096, %v1163
        %v1165 = vpop.f32.mrb[0].mxu0
        %1166 = vdwg.mxu0
        %v1167 = vxor.u32 %v1164, 2147483648
        %v1168 = vmul.f32 %v1167, 1.442695
        %v1169 = vpow.pop %v1168
        %v1170 = vadd.f32 %v1169, 1.0
        %v1171 = vrcp.pop %v1170
        %v1172 = vmul.f32 1.0, %v1171
        %v1173 = vmul.f32 %v1164, %v1172
        %v1174 = vld [vmem:[%s5] sm:$0xff]
        %v1175 = vld [vmem:[%s6] sm:$0x1]
        %vm1176 = vcmask 64512
        %v1178 = vsel %vm1176, %v1173, 0
        %1180 = vmatprep.subr.mxu0 0.0
        %1181 = vmatpush1.msra.mxu0 %v1174
        %1182 = vmatprep.subr.mxu0 0.0
        %1183 = vmatpush1.msra.mxu0 0.0
        %1184 = vmatprep.subr.mxu0 0.0
        %1185 = vmatpush1.msra.mxu0 0.0
        %1186 = vmatprep.subr.mxu0 0.0
        %1187 = vmatpush1.msra.mxu0 0.0
        %1188 = vmatprep.subr.mxu0 0.0
        %1189 = vmatpush1.msra.mxu0 0.0
        %1190 = vmatprep.subr.mxu0 0.0
        %1191 = vmatpush1.msra.mxu0 0.0
        %1192 = vmatprep.subr.mxu0 0.0
        %1193 = vmatpush1.msra.mxu0 0.0
        %1194 = vmatprep.subr.mxu0 0.0
        %1195 = vmatpush1.msra.mxu0 0.0
        %1196 = vmatprep.subr.mxu0 0.0
        %1197 = vmatpush1.msra.mxu0 0.0
        %1198 = vmatprep.subr.mxu0 0.0
        %1199 = vmatpush1.msra.mxu0 0.0
        %1200 = vmatprep.subr.mxu0 0.0
        %1201 = vmatpush1.msra.mxu0 0.0
        %1202 = vmatprep.subr.mxu0 0.0
        %1203 = vmatpush1.msra.mxu0 0.0
        %1204 = vmatprep.subr.mxu0 0.0
        %1205 = vmatpush1.msra.mxu0 0.0
        %1206 = vmatprep.subr.mxu0 0.0
        %1207 = vmatpush1.msra.mxu0 0.0
        %1208 = vmatprep.subr.mxu0 0.0
        %1209 = vmatpush1.msra.mxu0 0.0
        %1210 = vmatprep.subr.mxu0 0.0
        %1211 = vmatpush1.msra.mxu0 0.0
        %1212 = vmatprep.subr.mxu0 0.0
        %1213 = vmatpush1.msra.mxu0 0.0
        %1214 = vmatprep.subr.mxu0 0.0
        %1215 = vmatpush1.msra.mxu0 0.0
        %1216 = vmatprep.subr.mxu0 0.0
        %1217 = vmatpush1.msra.mxu0 0.0
        %1218 = vmatprep.subr.mxu0 0.0
        %1219 = vmatpush1.msra.mxu0 0.0
        %1220 = vmatprep.subr.mxu0 0.0
        %1221 = vmatpush1.msra.mxu0 0.0
        %1222 = vmatprep.subr.mxu0 0.0
        %1223 = vmatpush1.msra.mxu0 0.0
        %1224 = vmatprep.subr.mxu0 0.0
        %1225 = vmatpush1.msra.mxu0 0.0
        %1226 = vmatprep.subr.mxu0 0.0
        %1227 = vmatpush1.msra.mxu0 0.0
        %1228 = vmatprep.subr.mxu0 0.0
        %1229 = vmatpush1.msra.mxu0 0.0
        %1230 = vmatprep.subr.mxu0 0.0
        %1231 = vmatpush1.msra.mxu0 0.0
        %1232 = vmatprep.subr.mxu0 0.0
        %1233 = vmatpush1.msra.mxu0 0.0
        %1234 = vmatprep.subr.mxu0 0.0
        %1235 = vmatpush1.msra.mxu0 0.0
        %1236 = vmatprep.subr.mxu0 0.0
        %1237 = vmatpush1.msra.mxu0 0.0
        %1238 = vmatprep.subr.mxu0 0.0
        %1239 = vmatpush1.msra.mxu0 0.0
        %1240 = vmatprep.subr.mxu0 0.0
        %1241 = vmatpush1.msra.mxu0 0.0
        %1242 = vmatprep.subr.mxu0 0.0
        %1243 = vmatpush1.msra.mxu0 0.0
        %1244 = vmatprep.mubr.f32.mxu0 0.0
        %1245 = vmatmul.mubr.f32.gmra.mrb[0].mxu0 %v1178
        %v1246 = vpop.f32.mrb[0].mxu0
        %v1247 = vadd.f32 %v1175, %v1246
        %v1248 = vpop.f32.mrb[0].mxu0
        %1249 = vdwg.mxu0
        %v1250 = vxor.u32 %v1247, 2147483648
        %v1251 = vmul.f32 %v1250, 1.442695
        %v1252 = vpow.pop %v1251
        %v1253 = vadd.f32 %v1252, 1.0
        %v1254 = vrcp.pop %v1253
        %v1255 = vmul.f32 1.0, %v1254
        %1256 = vst [vmem:[%s293] sm:$0x1] %v1255
      $region89: #{cnn_model_forward.4} parent=43 // pred_fallthru
        _
      %s1257 = smul.u32 8, %s25
      %p1258 = scmp.lt.s32.totalorder %s24, 1
      %s1259 = scalar_select %p1258, %s24, 1
      %p1260 = scmp.lt.s32.totalorder %s1257, 15
      %s1261 = scalar_select %p1260, %s1257, 15
      %s1262 = smul.addr %s1261, 2
      %s1263 = smul.addr %s1259, 32
      %s1264 = sadd.s32 %s1262, %s1263
      %s1265 = smul.addr %s1264, 8
      %s1266 = scalar_lea.vmem %s7, %s1265
      %p1267 = scmp.lt.s32.totalorder %s24, 1
      %s1268 = scalar_select %p1267, %s24, 1
      %s1269 = scalar_lea.vmem %s8, %s1268
      // Predicated region
      $region90: #{cnn_model_forward.4} parent=43 // pred_check
        %p1270 = pneg %p178
      $region91: #{cnn_model_forward.4} parent=43 // pred_check_branch
        %1272 = sbr.rel (%p1270) target = $region93
      $region92: #{cnn_model_forward.4} parent=43 // pred_region
        %s1273 = smul.u32 8, %s25
      $region93: #{cnn_model_forward.4} parent=43 // pred_fallthru
        _
      // Predicated region
      $region94: #{cnn_model_forward.4} parent=43 // pred_check
        %p1274 = pneg %p204
      $region95: #{cnn_model_forward.4} parent=43 // pred_check_branch
        %1276 = sbr.rel (%p1274) target = $region97
      $region96: #{cnn_model_forward.4} parent=43 // pred_region
        _
      $region97: #{cnn_model_forward.4} parent=43 // pred_fallthru
        _
    $region44: #{cnn_model_forward.4} parent=5 // pred_fallthru
      _
    %p1277 = scmp.le.s32.totalorder 2, %s15
    // Predicated region
    $region98: #{cnn_model_forward.4} parent=5 // pred_check
      %p1278 = pneg %p1277
    $region99: #{cnn_model_forward.4} parent=5 // pred_check_branch
      %1280 = sbr.rel (%p1278) target = $region101
    $region100: #{cnn_model_forward.4} parent=5 // pred_region
      %s1281 = ssub.s32 %s15, 2
      // Predicated region
      $region102: #{cnn_model_forward.4} parent=100 // pred_check
        %p1282 = pneg %p184
      $region103: #{cnn_model_forward.4} parent=100 // pred_check_branch
        %1284 = sbr.rel (%p1282) target = $region105
      $region104: #{cnn_model_forward.4} parent=100 // pred_region
        %s1285 = smul.u32 8, %s27
        %p1286 = scmp.lt.s32.totalorder %s26, 1
        %s1287 = scalar_select %p1286, %s26, 1
        %p1288 = scmp.lt.s32.totalorder %s1285, 15
        %s1289 = scalar_select %p1288, %s1285, 15
        %s1290 = smul.addr %s1289, 2
        %s1291 = smul.addr %s1287, 32
        %s1292 = sadd.s32 %s1290, %s1291
        %s1293 = smul.addr %s1292, 8
        %s1294 = scalar_lea.vmem %s7, %s1293
      $region105: #{cnn_model_forward.4} parent=100 // pred_fallthru
        _
      // Predicated region
      $region106: #{cnn_model_forward.4} parent=100 // pred_check
        %p1295 = pneg %p210
      $region107: #{cnn_model_forward.4} parent=100 // pred_check_branch
        %1297 = sbr.rel (%p1295) target = $region109
      $region108: #{cnn_model_forward.4} parent=100 // pred_region
        %p1298 = scmp.lt.s32.totalorder %s26, 1
        %s1299 = scalar_select %p1298, %s26, 1
        %s1300 = scalar_lea.vmem %s8, %s1299
      $region109: #{cnn_model_forward.4} parent=100 // pred_fallthru
        _
    $region101: #{cnn_model_forward.4} parent=5 // pred_fallthru
      _
  $region6: #{cnn_model_forward.4} parent=0 // loop_footer
    %s19 = sadd.s32 1, %s15
  $region7: #{cnn_model_forward.4} parent=0 // loop_footer_branch
    %14 = sbr.rel target = $region3
  $region8: #{cnn_model_forward.4} parent=0 // loop_exit
    _
  %1301 = vsyncmov [#allocation3]
  %s1302 = vpop.sfrf %1301
  %p1303 = scmp.eq.s32.totalorder %s1302, 0
  %p1304 = pneg %p1303
  %1306 = shalt.err (%p1304)

// kernel: cnn_model_forward.3
$region0: #{cnn_model_forward.3}
  #allocation0 [shape = 'u32[]', space=smem, size = 0x4, offset = 0x4, fixed_abs, tag = 'smem constant byte address 0x4 - core index']
  #allocation1 [shape = 'u32[144,128]{1,0:T(1,128)}', space=vmem, size = 0x12000, scoped, tag = 'internal scratch']
  %s0 = inlined_call_operand.vmem [shape: bf16[512,32], index: 0, kind: input, shape index: {}]
  %s1 = inlined_call_operand.vmem [shape: bf16[32,32], index: 1, kind: input, shape index: {}]
  %s2 = inlined_call_operand.vmem [shape: f32[1,32], index: 2, kind: input, shape index: {}]
  %s3 = inlined_call_operand.vmem [shape: bf16[32,128], index: 3, kind: input, shape index: {}]
  %s4 = inlined_call_operand.vmem [shape: f32[1,128], index: 4, kind: input, shape index: {}]
  %s5 = inlined_call_operand.vmem [shape: f32[512,128], index: 5, kind: output, shape index: {}]
  %s6 = sld [smem:[#allocation0]]
  $region30: #{cnn_model_forward.3} parent=0
    _
  %s8 = ssub.s32 1, %s6
  %s9 = scalar_select 0, %s8, %s6
  // Predicated region
  $region2: #{cnn_model_forward.3} parent=0 // pred_check
    _
  $region3: #{cnn_model_forward.3} parent=0 // pred_check_branch
    %11 = sbr.rel (0) target = $region5
  $region4: #{cnn_model_forward.3} parent=0 // pred_region
    _
  $region5: #{cnn_model_forward.3} parent=0 // pred_fallthru
    _
  // Predicated region
  $region6: #{cnn_model_forward.3} parent=0 // pred_check
    _
  $region7: #{cnn_model_forward.3} parent=0 // pred_check_branch
    %13 = sbr.rel (0) target = $region9
  $region8: #{cnn_model_forward.3} parent=0 // pred_region
    _
  $region9: #{cnn_model_forward.3} parent=0 // pred_fallthru
    _
  // Predicated region
  $region10: #{cnn_model_forward.3} parent=0 // pred_check
    _
  $region11: #{cnn_model_forward.3} parent=0 // pred_check_branch
    %15 = sbr.rel (0) target = $region13
  $region12: #{cnn_model_forward.3} parent=0 // pred_region
    _
  $region13: #{cnn_model_forward.3} parent=0 // pred_fallthru
    _
  // Predicated region
  $region14: #{cnn_model_forward.3} parent=0 // pred_check
    _
  $region15: #{cnn_model_forward.3} parent=0 // pred_check_branch
    %17 = sbr.rel (0) target = $region17
  $region16: #{cnn_model_forward.3} parent=0 // pred_region
    _
  $region17: #{cnn_model_forward.3} parent=0 // pred_fallthru
    _
  // Predicated region
  $region18: #{cnn_model_forward.3} parent=0 // pred_check
    _
  $region19: #{cnn_model_forward.3} parent=0 // pred_check_branch
    %19 = sbr.rel (0) target = $region21
  $region20: #{cnn_model_forward.3} parent=0 // pred_region
    _
  $region21: #{cnn_model_forward.3} parent=0 // pred_fallthru
    _
  %v21 = vld [vmem:[%s0] sm:$0xf]
  %v22 = vld [vmem:[%s0 + $0x4] sm:$0xf]
  %v23 = vld [vmem:[%s0 + $0x8] sm:$0xf]
  %v24 = vld [vmem:[%s0 + $0xc] sm:$0xf]
  %v25 = vld [vmem:[%s0 + $0x10] sm:$0xf]
  %v26 = vld [vmem:[%s0 + $0x14] sm:$0xf]
  %v27 = vld [vmem:[%s0 + $0x18] sm:$0xf]
  %v28 = vld [vmem:[%s0 + $0x1c] sm:$0xf]
  %v29 = vld [vmem:[%s0 + $0x20] sm:$0xf]
  %v30 = vld [vmem:[%s0 + $0x24] sm:$0xf]
  %v31 = vld [vmem:[%s0 + $0x28] sm:$0xf]
  %v32 = vld [vmem:[%s0 + $0x2c] sm:$0xf]
  %v33 = vld [vmem:[%s0 + $0x30] sm:$0xf]
  %v34 = vld [vmem:[%s0 + $0x34] sm:$0xf]
  %v35 = vld [vmem:[%s0 + $0x38] sm:$0xf]
  %v36 = vld [vmem:[%s0 + $0x3c] sm:$0xf]
  %v37 = vld [vmem:[%s0 + $0x40] sm:$0xf]
  %v38 = vld [vmem:[%s0 + $0x44] sm:$0xf]
  %v39 = vld [vmem:[%s0 + $0x48] sm:$0xf]
  %v40 = vld [vmem:[%s0 + $0x4c] sm:$0xf]
  %v41 = vld [vmem:[%s0 + $0x50] sm:$0xf]
  %v42 = vld [vmem:[%s0 + $0x54] sm:$0xf]
  %v43 = vld [vmem:[%s0 + $0x58] sm:$0xf]
  %v44 = vld [vmem:[%s0 + $0x5c] sm:$0xf]
  %v45 = vld [vmem:[%s0 + $0x60] sm:$0xf]
  %v46 = vld [vmem:[%s0 + $0x64] sm:$0xf]
  %v47 = vld [vmem:[%s0 + $0x68] sm:$0xf]
  %v48 = vld [vmem:[%s0 + $0x6c] sm:$0xf]
  %v49 = vld [vmem:[%s0 + $0x70] sm:$0xf]
  %v50 = vld [vmem:[%s0 + $0x74] sm:$0xf]
  %v51 = vld [vmem:[%s0 + $0x78] sm:$0xf]
  %v52 = vld [vmem:[%s0 + $0x7c] sm:$0xf]
  %v53 = vld [vmem:[%s0 + $0x80] sm:$0xf]
  %v54 = vld [vmem:[%s0 + $0x84] sm:$0xf]
  %v55 = vld [vmem:[%s0 + $0x88] sm:$0xf]
  %v56 = vld [vmem:[%s0 + $0x8c] sm:$0xf]
  %v57 = vld [vmem:[%s0 + $0x90] sm:$0xf]
  %v58 = vld [vmem:[%s0 + $0x94] sm:$0xf]
  %v59 = vld [vmem:[%s0 + $0x98] sm:$0xf]
  %v60 = vld [vmem:[%s0 + $0x9c] sm:$0xf]
  %v61 = vld [vmem:[%s0 + $0xa0] sm:$0xf]
  %v62 = vld [vmem:[%s0 + $0xa4] sm:$0xf]
  %v63 = vld [vmem:[%s0 + $0xa8] sm:$0xf]
  %v64 = vld [vmem:[%s0 + $0xac] sm:$0xf]
  %v65 = vld [vmem:[%s0 + $0xb0] sm:$0xf]
  %v66 = vld [vmem:[%s0 + $0xb4] sm:$0xf]
  %v67 = vld [vmem:[%s0 + $0xb8] sm:$0xf]
  %v68 = vld [vmem:[%s0 + $0xbc] sm:$0xf]
  %v69 = vld [vmem:[%s0 + $0xc0] sm:$0xf]
  %v70 = vld [vmem:[%s0 + $0xc4] sm:$0xf]
  %v71 = vld [vmem:[%s0 + $0xc8] sm:$0xf]
  %v72 = vld [vmem:[%s0 + $0xcc] sm:$0xf]
  %v73 = vld [vmem:[%s0 + $0xd0] sm:$0xf]
  %v74 = vld [vmem:[%s0 + $0xd4] sm:$0xf]
  %v75 = vld [vmem:[%s0 + $0xd8] sm:$0xf]
  %v76 = vld [vmem:[%s0 + $0xdc] sm:$0xf]
  %v77 = vld [vmem:[%s0 + $0xe0] sm:$0xf]
  %v78 = vld [vmem:[%s0 + $0xe4] sm:$0xf]
  %v79 = vld [vmem:[%s0 + $0xe8] sm:$0xf]
  %v80 = vld [vmem:[%s0 + $0xec] sm:$0xf]
  %v81 = vld [vmem:[%s0 + $0xf0] sm:$0xf]
  %v82 = vld [vmem:[%s0 + $0xf4] sm:$0xf]
  %v83 = vld [vmem:[%s0 + $0xf8] sm:$0xf]
  %v84 = vld [vmem:[%s0 + $0xfc] sm:$0xf]
  %v85 = vld [vmem:[%s1] sm:$0xf]
  %v86 = vld [vmem:[%s1 + $0x4] sm:$0xf]
  %v87 = vld [vmem:[%s1 + $0x8] sm:$0xf]
  %v88 = vld [vmem:[%s1 + $0xc] sm:$0xf]
  %v89 = vld [vmem:[%s2] sm:$0x1]
  %v91 = vlaneseq
  %v92 = vshrl.u32 %v91, 7
  %v93 = vsub.s32 0, %v92
  %v94 = vrot.slane %v89, %v93
  %v160 = vunpack.c.l.b16 %v21
  %v161 = vunpack.c.l.b16 %v22
  %v162 = vunpack.c.l.b16 %v23
  %v163 = vunpack.c.l.b16 %v24
  %v164 = vunpack.c.l.b16 %v25
  %v165 = vunpack.c.l.b16 %v26
  %v166 = vunpack.c.l.b16 %v27
  %v167 = vunpack.c.l.b16 %v28
  %v168 = vunpack.c.l.b16 %v29
  %v169 = vunpack.c.l.b16 %v30
  %v170 = vunpack.c.l.b16 %v31
  %v171 = vunpack.c.l.b16 %v32
  %v172 = vunpack.c.l.b16 %v33
  %v173 = vunpack.c.l.b16 %v34
  %v174 = vunpack.c.l.b16 %v35
  %v175 = vunpack.c.l.b16 %v36
  %v176 = vunpack.c.l.b16 %v37
  %v177 = vunpack.c.l.b16 %v38
  %v178 = vunpack.c.l.b16 %v39
  %v179 = vunpack.c.l.b16 %v40
  %v180 = vunpack.c.l.b16 %v41
  %v181 = vunpack.c.l.b16 %v42
  %v182 = vunpack.c.l.b16 %v43
  %v183 = vunpack.c.l.b16 %v44
  %v184 = vunpack.c.l.b16 %v45
  %v185 = vunpack.c.l.b16 %v46
  %v186 = vunpack.c.l.b16 %v47
  %v187 = vunpack.c.l.b16 %v48
  %v188 = vunpack.c.l.b16 %v49
  %v189 = vunpack.c.l.b16 %v50
  %v190 = vunpack.c.l.b16 %v51
  %v191 = vunpack.c.l.b16 %v52
  %v192 = vunpack.c.l.b16 %v53
  %v193 = vunpack.c.l.b16 %v54
  %v194 = vunpack.c.l.b16 %v55
  %v195 = vunpack.c.l.b16 %v56
  %v196 = vunpack.c.l.b16 %v57
  %v197 = vunpack.c.l.b16 %v58
  %v198 = vunpack.c.l.b16 %v59
  %v199 = vunpack.c.l.b16 %v60
  %v200 = vunpack.c.l.b16 %v61
  %v201 = vunpack.c.l.b16 %v62
  %v202 = vunpack.c.l.b16 %v63
  %v203 = vunpack.c.l.b16 %v64
  %v204 = vunpack.c.l.b16 %v65
  %v205 = vunpack.c.l.b16 %v66
  %v206 = vunpack.c.l.b16 %v67
  %v207 = vunpack.c.l.b16 %v68
  %v208 = vunpack.c.l.b16 %v69
  %v209 = vunpack.c.l.b16 %v70
  %v210 = vunpack.c.l.b16 %v71
  %v211 = vunpack.c.l.b16 %v72
  %v212 = vunpack.c.l.b16 %v73
  %v213 = vunpack.c.l.b16 %v74
  %v214 = vunpack.c.l.b16 %v75
  %v215 = vunpack.c.l.b16 %v76
  %v216 = vunpack.c.l.b16 %v77
  %v217 = vunpack.c.l.b16 %v78
  %v218 = vunpack.c.l.b16 %v79
  %v219 = vunpack.c.l.b16 %v80
  %v220 = vunpack.c.l.b16 %v81
  %v221 = vunpack.c.l.b16 %v82
  %v222 = vunpack.c.l.b16 %v83
  %v223 = vunpack.c.l.b16 %v84
  %v224 = vpack.c.b16 %v161, %v160
  %v225 = vpack.c.b16 %v163, %v162
  %v226 = vpack.c.b16 %v165, %v164
  %v227 = vpack.c.b16 %v167, %v166
  %v228 = vpack.c.b16 %v169, %v168
  %v229 = vpack.c.b16 %v171, %v170
  %v230 = vpack.c.b16 %v173, %v172
  %v231 = vpack.c.b16 %v175, %v174
  %v232 = vpack.c.b16 %v177, %v176
  %v233 = vpack.c.b16 %v179, %v178
  %v234 = vpack.c.b16 %v181, %v180
  %v235 = vpack.c.b16 %v183, %v182
  %v236 = vpack.c.b16 %v185, %v184
  %v237 = vpack.c.b16 %v187, %v186
  %v238 = vpack.c.b16 %v189, %v188
  %v239 = vpack.c.b16 %v191, %v190
  %v240 = vpack.c.b16 %v193, %v192
  %v241 = vpack.c.b16 %v195, %v194
  %v242 = vpack.c.b16 %v197, %v196
  %v243 = vpack.c.b16 %v199, %v198
  %v244 = vpack.c.b16 %v201, %v200
  %v245 = vpack.c.b16 %v203, %v202
  %v246 = vpack.c.b16 %v205, %v204
  %v247 = vpack.c.b16 %v207, %v206
  %v248 = vpack.c.b16 %v209, %v208
  %v249 = vpack.c.b16 %v211, %v210
  %v250 = vpack.c.b16 %v213, %v212
  %v251 = vpack.c.b16 %v215, %v214
  %v252 = vpack.c.b16 %v217, %v216
  %v253 = vpack.c.b16 %v219, %v218
  %v254 = vpack.c.b16 %v221, %v220
  %v255 = vpack.c.b16 %v223, %v222
  %v260 = vunpack.c.l.b16 %v85
  %v261 = vunpack.c.l.b16 %v86
  %v262 = vunpack.c.l.b16 %v87
  %v263 = vunpack.c.l.b16 %v88
  %v264 = vpack.c.b16 %v261, %v260
  %v265 = vpack.c.b16 %v263, %v262
  %vm268 = vcmask 261120
  %v270 = vsel %vm268, %v224, 0
  %v273 = vsel %vm268, %v225, 0
  %v276 = vsel %vm268, %v226, 0
  %v279 = vsel %vm268, %v227, 0
  %v282 = vsel %vm268, %v228, 0
  %v285 = vsel %vm268, %v229, 0
  %v288 = vsel %vm268, %v230, 0
  %v291 = vsel %vm268, %v231, 0
  %v294 = vsel %vm268, %v232, 0
  %v297 = vsel %vm268, %v233, 0
  %v300 = vsel %vm268, %v234, 0
  %v303 = vsel %vm268, %v235, 0
  %v306 = vsel %vm268, %v236, 0
  %v309 = vsel %vm268, %v237, 0
  %v312 = vsel %vm268, %v238, 0
  %v315 = vsel %vm268, %v239, 0
  %v318 = vsel %vm268, %v240, 0
  %v321 = vsel %vm268, %v241, 0
  %v324 = vsel %vm268, %v242, 0
  %v327 = vsel %vm268, %v243, 0
  %v330 = vsel %vm268, %v244, 0
  %v333 = vsel %vm268, %v245, 0
  %v336 = vsel %vm268, %v246, 0
  %v339 = vsel %vm268, %v247, 0
  %v342 = vsel %vm268, %v248, 0
  %v345 = vsel %vm268, %v249, 0
  %v348 = vsel %vm268, %v250, 0
  %v351 = vsel %vm268, %v251, 0
  %v354 = vsel %vm268, %v252, 0
  %v357 = vsel %vm268, %v253, 0
  %v360 = vsel %vm268, %v254, 0
  %v363 = vsel %vm268, %v255, 0
  %365 = vmatprep.subr.bf16.mxu0 0
  %366 = vmatpush1.bf16.msra.mxu0 %v264
  %367 = vmatprep.subr.bf16.mxu0 0
  %368 = vmatpush1.bf16.msra.mxu0 %v265
  %369 = vmatprep.subr.bf16.mxu0 0
  %370 = vmatpush1.bf16.msra.mxu0 0
  %371 = vmatprep.subr.bf16.mxu0 0
  %372 = vmatpush1.bf16.msra.mxu0 0
  %373 = vmatprep.subr.bf16.mxu0 0
  %374 = vmatpush1.bf16.msra.mxu0 0
  %375 = vmatprep.subr.bf16.mxu0 0
  %376 = vmatpush1.bf16.msra.mxu0 0
  %377 = vmatprep.subr.bf16.mxu0 0
  %378 = vmatpush1.bf16.msra.mxu0 0
  %379 = vmatprep.subr.bf16.mxu0 0
  %380 = vmatpush1.bf16.msra.mxu0 0
  %381 = vmatprep.subr.bf16.mxu0 0
  %382 = vmatpush1.bf16.msra.mxu0 0
  %383 = vmatprep.subr.bf16.mxu0 0
  %384 = vmatpush1.bf16.msra.mxu0 0
  %385 = vmatprep.subr.bf16.mxu0 0
  %386 = vmatpush1.bf16.msra.mxu0 0
  %387 = vmatprep.subr.bf16.mxu0 0
  %388 = vmatpush1.bf16.msra.mxu0 0
  %389 = vmatprep.subr.bf16.mxu0 0
  %390 = vmatpush1.bf16.msra.mxu0 0
  %391 = vmatprep.subr.bf16.mxu0 0
  %392 = vmatpush1.bf16.msra.mxu0 0
  %393 = vmatprep.subr.bf16.mxu0 0
  %394 = vmatpush1.bf16.msra.mxu0 0
  %395 = vmatprep.subr.bf16.mxu0 0
  %396 = vmatpush1.bf16.msra.mxu0 0
  %397 = vmatprep.mubr.bf16.mxu0 0
  %398 = vmatmul.mubr.bf16.gmra.mrb[0].mxu0 %v270
  %v399 = vpop.f32.mrb[0].mxu0
  %v400 = vadd.f32 %v94, %v399
  %v401 = vpop.f32.mrb[0].mxu0
  %v402 = vpop.f32.mrb[0].mxu0
  %v403 = vadd.f32 %v94, %v402
  %v404 = vpop.f32.mrb[0].mxu0
  %405 = vmatprep.mubr.bf16.mxu0 0
  %406 = vmatmul.mubr.bf16.gmra.mrb[0].mxu0 %v273
  %v407 = vpop.f32.mrb[0].mxu0
  %v408 = vadd.f32 %v94, %v407
  %v409 = vpop.f32.mrb[0].mxu0
  %v410 = vpop.f32.mrb[0].mxu0
  %v411 = vadd.f32 %v94, %v410
  %v412 = vpop.f32.mrb[0].mxu0
  %413 = vmatprep.mubr.bf16.mxu0 0
  %414 = vmatmul.mubr.bf16.gmra.mrb[0].mxu0 %v276
  %v415 = vpop.f32.mrb[0].mxu0
  %v416 = vadd.f32 %v94, %v415
  %v417 = vpop.f32.mrb[0].mxu0
  %v418 = vpop.f32.mrb[0].mxu0
  %v419 = vadd.f32 %v94, %v418
  %v420 = vpop.f32.mrb[0].mxu0
  %421 = vmatprep.mubr.bf16.mxu0 0
  %422 = vmatmul.mubr.bf16.gmra.mrb[0].mxu0 %v279
  %v423 = vpop.f32.mrb[0].mxu0
  %v424 = vadd.f32 %v94, %v423
  %v425 = vpop.f32.mrb[0].mxu0
  %v426 = vpop.f32.mrb[0].mxu0
  %v427 = vadd.f32 %v94, %v426
  %v428 = vpop.f32.mrb[0].mxu0
  %429 = vmatprep.mubr.bf16.mxu0 0
  %430 = vmatmul.mubr.bf16.gmra.mrb[0].mxu0 %v282
  %v431 = vpop.f32.mrb[0].mxu0
  %v432 = vadd.f32 %v94, %v431
  %v433 = vpop.f32.mrb[0].mxu0
  %v434 = vpop.f32.mrb[0].mxu0
  %v435 = vadd.f32 %v94, %v434
  %v436 = vpop.f32.mrb[0].mxu0
  %437 = vmatprep.mubr.bf16.mxu0 0
  %438 = vmatmul.mubr.bf16.gmra.mrb[0].mxu0 %v285
  %v439 = vpop.f32.mrb[0].mxu0
  %v440 = vadd.f32 %v94, %v439
  %v441 = vpop.f32.mrb[0].mxu0
  %v442 = vpop.f32.mrb[0].mxu0
  %v443 = vadd.f32 %v94, %v442
  %v444 = vpop.f32.mrb[0].mxu0
  %445 = vmatprep.mubr.bf16.mxu0 0
  %446 = vmatmul.mubr.bf16.gmra.mrb[0].mxu0 %v288
  %v447 = vpop.f32.mrb[0].mxu0
  %v448 = vadd.f32 %v94, %v447
  %v449 = vpop.f32.mrb[0].mxu0
  %v450 = vpop.f32.mrb[0].mxu0
  %v451 = vadd.f32 %v94, %v450
  %v452 = vpop.f32.mrb[0].mxu0
  %453 = vmatprep.mubr.bf16.mxu0 0
  %454 = vmatmul.mubr.bf16.gmra.mrb[0].mxu0 %v291
  %v455 = vpop.f32.mrb[0].mxu0
  %v456 = vadd.f32 %v94, %v455
  %v457 = vpop.f32.mrb[0].mxu0
  %v458 = vpop.f32.mrb[0].mxu0
  %v459 = vadd.f32 %v94, %v458
  %v460 = vpop.f32.mrb[0].mxu0
  %461 = vmatprep.mubr.bf16.mxu0 0
  %462 = vmatmul.mubr.bf16.gmra.mrb[0].mxu0 %v294
  %v463 = vpop.f32.mrb[0].mxu0
  %v464 = vadd.f32 %v94, %v463
  %v465 = vpop.f32.mrb[0].mxu0
  %v466 = vpop.f32.mrb[0].mxu0
  %v467 = vadd.f32 %v94, %v466
  %v468 = vpop.f32.mrb[0].mxu0
  %469 = vmatprep.mubr.bf16.mxu0 0
  %470 = vmatmul.mubr.bf16.gmra.mrb[0].mxu0 %v297
  %v471 = vpop.f32.mrb[0].mxu0
  %v472 = vadd.f32 %v94, %v471
  %v473 = vpop.f32.mrb[0].mxu0
  %v474 = vpop.f32.mrb[0].mxu0
  %v475 = vadd.f32 %v94, %v474
  %v476 = vpop.f32.mrb[0].mxu0
  %477 = vmatprep.mubr.bf16.mxu0 0
  %478 = vmatmul.mubr.bf16.gmra.mrb[0].mxu0 %v300
  %v479 = vpop.f32.mrb[0].mxu0
  %v480 = vadd.f32 %v94, %v479
  %v481 = vpop.f32.mrb[0].mxu0
  %v482 = vpop.f32.mrb[0].mxu0
  %v483 = vadd.f32 %v94, %v482
  %v484 = vpop.f32.mrb[0].mxu0
  %485 = vmatprep.mubr.bf16.mxu0 0
  %486 = vmatmul.mubr.bf16.gmra.mrb[0].mxu0 %v303
  %v487 = vpop.f32.mrb[0].mxu0
  %v488 = vadd.f32 %v94, %v487
  %v489 = vpop.f32.mrb[0].mxu0
  %v490 = vpop.f32.mrb[0].mxu0
  %v491 = vadd.f32 %v94, %v490
  %v492 = vpop.f32.mrb[0].mxu0
  %493 = vmatprep.mubr.bf16.mxu0 0
  %494 = vmatmul.mubr.bf16.gmra.mrb[0].mxu0 %v306
  %v495 = vpop.f32.mrb[0].mxu0
  %v496 = vadd.f32 %v94, %v495
  %v497 = vpop.f32.mrb[0].mxu0
  %v498 = vpop.f32.mrb[0].mxu0
  %v499 = vadd.f32 %v94, %v498
  %v500 = vpop.f32.mrb[0].mxu0
  %501 = vmatprep.mubr.bf16.mxu0 0
  %502 = vmatmul.mubr.bf16.gmra.mrb[0].mxu0 %v309
  %v503 = vpop.f32.mrb[0].mxu0
  %v504 = vadd.f32 %v94, %v503
  %v505 = vpop.f32.mrb[0].mxu0
  %v506 = vpop.f32.mrb[0].mxu0
  %v507 = vadd.f32 %v94, %v506
  %v508 = vpop.f32.mrb[0].mxu0
  %509 = vmatprep.mubr.bf16.mxu0 0
  %510 = vmatmul.mubr.bf16.gmra.mrb[0].mxu0 %v312
  %v511 = vpop.f32.mrb[0].mxu0
  %v512 = vadd.f32 %v94, %v511
  %v513 = vpop.f32.mrb[0].mxu0
  %v514 = vpop.f32.mrb[0].mxu0
  %v515 = vadd.f32 %v94, %v514
  %v516 = vpop.f32.mrb[0].mxu0
  %517 = vmatprep.mubr.bf16.mxu0 0
  %518 = vmatmul.mubr.bf16.gmra.mrb[0].mxu0 %v315
  %v519 = vpop.f32.mrb[0].mxu0
  %v520 = vadd.f32 %v94, %v519
  %v521 = vpop.f32.mrb[0].mxu0
  %v522 = vpop.f32.mrb[0].mxu0
  %v523 = vadd.f32 %v94, %v522
  %v524 = vpop.f32.mrb[0].mxu0
  %525 = vmatprep.mubr.bf16.mxu0 0
  %526 = vmatmul.mubr.bf16.gmra.mrb[0].mxu0 %v318
  %v527 = vpop.f32.mrb[0].mxu0
  %v528 = vadd.f32 %v94, %v527
  %v529 = vpop.f32.mrb[0].mxu0
  %v530 = vpop.f32.mrb[0].mxu0
  %v531 = vadd.f32 %v94, %v530
  %v532 = vpop.f32.mrb[0].mxu0
  %533 = vmatprep.mubr.bf16.mxu0 0
  %534 = vmatmul.mubr.bf16.gmra.mrb[0].mxu0 %v321
  %v535 = vpop.f32.mrb[0].mxu0
  %v536 = vadd.f32 %v94, %v535
  %v537 = vpop.f32.mrb[0].mxu0
  %v538 = vpop.f32.mrb[0].mxu0
  %v539 = vadd.f32 %v94, %v538
  %v540 = vpop.f32.mrb[0].mxu0
  %541 = vmatprep.mubr.bf16.mxu0 0
  %542 = vmatmul.mubr.bf16.gmra.mrb[0].mxu0 %v324
  %v543 = vpop.f32.mrb[0].mxu0
  %v544 = vadd.f32 %v94, %v543
  %v545 = vpop.f32.mrb[0].mxu0
  %v546 = vpop.f32.mrb[0].mxu0
  %v547 = vadd.f32 %v94, %v546
  %v548 = vpop.f32.mrb[0].mxu0
  %549 = vmatprep.mubr.bf16.mxu0 0
  %550 = vmatmul.mubr.bf16.gmra.mrb[0].mxu0 %v327
  %v551 = vpop.f32.mrb[0].mxu0
  %v552 = vadd.f32 %v94, %v551
  %v553 = vpop.f32.mrb[0].mxu0
  %v554 = vpop.f32.mrb[0].mxu0
  %v555 = vadd.f32 %v94, %v554
  %v556 = vpop.f32.mrb[0].mxu0
  %557 = vmatprep.mubr.bf16.mxu0 0
  %558 = vmatmul.mubr.bf16.gmra.mrb[0].mxu0 %v330
  %v559 = vpop.f32.mrb[0].mxu0
  %v560 = vadd.f32 %v94, %v559
  %v561 = vpop.f32.mrb[0].mxu0
  %v562 = vpop.f32.mrb[0].mxu0
  %v563 = vadd.f32 %v94, %v562
  %v564 = vpop.f32.mrb[0].mxu0
  %565 = vmatprep.mubr.bf16.mxu0 0
  %566 = vmatmul.mubr.bf16.gmra.mrb[0].mxu0 %v333
  %v567 = vpop.f32.mrb[0].mxu0
  %v568 = vadd.f32 %v94, %v567
  %v569 = vpop.f32.mrb[0].mxu0
  %v570 = vpop.f32.mrb[0].mxu0
  %v571 = vadd.f32 %v94, %v570
  %v572 = vpop.f32.mrb[0].mxu0
  %573 = vmatprep.mubr.bf16.mxu0 0
  %574 = vmatmul.mubr.bf16.gmra.mrb[0].mxu0 %v336
  %v575 = vpop.f32.mrb[0].mxu0
  %v576 = vadd.f32 %v94, %v575
  %v577 = vpop.f32.mrb[0].mxu0
  %v578 = vpop.f32.mrb[0].mxu0
  %v579 = vadd.f32 %v94, %v578
  %v580 = vpop.f32.mrb[0].mxu0
  %581 = vmatprep.mubr.bf16.mxu0 0
  %582 = vmatmul.mubr.bf16.gmra.mrb[0].mxu0 %v339
  %v583 = vpop.f32.mrb[0].mxu0
  %v584 = vadd.f32 %v94, %v583
  %v585 = vpop.f32.mrb[0].mxu0
  %v586 = vpop.f32.mrb[0].mxu0
  %v587 = vadd.f32 %v94, %v586
  %v588 = vpop.f32.mrb[0].mxu0
  %589 = vmatprep.mubr.bf16.mxu0 0
  %590 = vmatmul.mubr.bf16.gmra.mrb[0].mxu0 %v342
  %v591 = vpop.f32.mrb[0].mxu0
  %v592 = vadd.f32 %v94, %v591
  %v593 = vpop.f32.mrb[0].mxu0
  %v594 = vpop.f32.mrb[0].mxu0
  %v595 = vadd.f32 %v94, %v594
  %v596 = vpop.f32.mrb[0].mxu0
  %597 = vmatprep.mubr.bf16.mxu0 0
  %598 = vmatmul.mubr.bf16.gmra.mrb[0].mxu0 %v345
  %v599 = vpop.f32.mrb[0].mxu0
  %v600 = vadd.f32 %v94, %v599
  %v601 = vpop.f32.mrb[0].mxu0
  %v602 = vpop.f32.mrb[0].mxu0
  %v603 = vadd.f32 %v94, %v602
  %v604 = vpop.f32.mrb[0].mxu0
  %605 = vmatprep.mubr.bf16.mxu0 0
  %606 = vmatmul.mubr.bf16.gmra.mrb[0].mxu0 %v348
  %v607 = vpop.f32.mrb[0].mxu0
  %v608 = vadd.f32 %v94, %v607
  %v609 = vpop.f32.mrb[0].mxu0
  %v610 = vpop.f32.mrb[0].mxu0
  %v611 = vadd.f32 %v94, %v610
  %v612 = vpop.f32.mrb[0].mxu0
  %613 = vmatprep.mubr.bf16.mxu0 0
  %614 = vmatmul.mubr.bf16.gmra.mrb[0].mxu0 %v351
  %v615 = vpop.f32.mrb[0].mxu0
  %v616 = vadd.f32 %v94, %v615
  %v617 = vpop.f32.mrb[0].mxu0
  %v618 = vpop.f32.mrb[0].mxu0
  %v619 = vadd.f32 %v94, %v618
  %v620 = vpop.f32.mrb[0].mxu0
  %621 = vmatprep.mubr.bf16.mxu0 0
  %622 = vmatmul.mubr.bf16.gmra.mrb[0].mxu0 %v354
  %v623 = vpop.f32.mrb[0].mxu0
  %v624 = vadd.f32 %v94, %v623
  %v625 = vpop.f32.mrb[0].mxu0
  %v626 = vpop.f32.mrb[0].mxu0
  %v627 = vadd.f32 %v94, %v626
  %v628 = vpop.f32.mrb[0].mxu0
  %629 = vmatprep.mubr.bf16.mxu0 0
  %630 = vmatmul.mubr.bf16.gmra.mrb[0].mxu0 %v357
  %v631 = vpop.f32.mrb[0].mxu0
  %v632 = vadd.f32 %v94, %v631
  %v633 = vpop.f32.mrb[0].mxu0
  %v634 = vpop.f32.mrb[0].mxu0
  %v635 = vadd.f32 %v94, %v634
  %v636 = vpop.f32.mrb[0].mxu0
  %637 = vmatprep.mubr.bf16.mxu0 0
  %638 = vmatmul.mubr.bf16.gmra.mrb[0].mxu0 %v360
  %v639 = vpop.f32.mrb[0].mxu0
  %v640 = vadd.f32 %v94, %v639
  %v641 = vpop.f32.mrb[0].mxu0
  %v642 = vpop.f32.mrb[0].mxu0
  %v643 = vadd.f32 %v94, %v642
  %v644 = vpop.f32.mrb[0].mxu0
  %645 = vmatprep.mubr.bf16.mxu0 0
  %646 = vmatmul.mubr.bf16.gmra.mrb[0].mxu0 %v363
  %v647 = vpop.f32.mrb[0].mxu0
  %v648 = vadd.f32 %v94, %v647
  %v649 = vpop.f32.mrb[0].mxu0
  %v650 = vpop.f32.mrb[0].mxu0
  %v651 = vadd.f32 %v94, %v650
  %v652 = vpop.f32.mrb[0].mxu0
  %653 = vdwg.mxu0
  %v654 = vxor.u32 %v400, 2147483648
  %v655 = vxor.u32 %v403, 2147483648
  %v656 = vxor.u32 %v408, 2147483648
  %v657 = vxor.u32 %v411, 2147483648
  %v658 = vxor.u32 %v416, 2147483648
  %v659 = vxor.u32 %v419, 2147483648
  %v660 = vxor.u32 %v424, 2147483648
  %v661 = vxor.u32 %v427, 2147483648
  %v662 = vxor.u32 %v432, 2147483648
  %v663 = vxor.u32 %v435, 2147483648
  %v664 = vxor.u32 %v440, 2147483648
  %v665 = vxor.u32 %v443, 2147483648
  %v666 = vxor.u32 %v448, 2147483648
  %v667 = vxor.u32 %v451, 2147483648
  %v668 = vxor.u32 %v456, 2147483648
  %v669 = vxor.u32 %v459, 2147483648
  %v670 = vxor.u32 %v464, 2147483648
  %v671 = vxor.u32 %v467, 2147483648
  %v672 = vxor.u32 %v472, 2147483648
  %v673 = vxor.u32 %v475, 2147483648
  %v674 = vxor.u32 %v480, 2147483648
  %v675 = vxor.u32 %v483, 2147483648
  %v676 = vxor.u32 %v488, 2147483648
  %v677 = vxor.u32 %v491, 2147483648
  %v678 = vxor.u32 %v496, 2147483648
  %v679 = vxor.u32 %v499, 2147483648
  %v680 = vxor.u32 %v504, 2147483648
  %v681 = vxor.u32 %v507, 2147483648
  %v682 = vxor.u32 %v512, 2147483648
  %v683 = vxor.u32 %v515, 2147483648
  %v684 = vxor.u32 %v520, 2147483648
  %v685 = vxor.u32 %v523, 2147483648
  %v686 = vxor.u32 %v528, 2147483648
  %v687 = vxor.u32 %v531, 2147483648
  %v688 = vxor.u32 %v536, 2147483648
  %v689 = vxor.u32 %v539, 2147483648
  %v690 = vxor.u32 %v544, 2147483648
  %v691 = vxor.u32 %v547, 2147483648
  %v692 = vxor.u32 %v552, 2147483648
  %v693 = vxor.u32 %v555, 2147483648
  %v694 = vxor.u32 %v560, 2147483648
  %v695 = vxor.u32 %v563, 2147483648
  %v696 = vxor.u32 %v568, 2147483648
  %v697 = vxor.u32 %v571, 2147483648
  %v698 = vxor.u32 %v576, 2147483648
  %v699 = vxor.u32 %v579, 2147483648
  %v700 = vxor.u32 %v584, 2147483648
  %v701 = vxor.u32 %v587, 2147483648
  %v702 = vxor.u32 %v592, 2147483648
  %v703 = vxor.u32 %v595, 2147483648
  %v704 = vxor.u32 %v600, 2147483648
  %v705 = vxor.u32 %v603, 2147483648
  %v706 = vxor.u32 %v608, 2147483648
  %v707 = vxor.u32 %v611, 2147483648
  %v708 = vxor.u32 %v616, 2147483648
  %v709 = vxor.u32 %v619, 2147483648
  %v710 = vxor.u32 %v624, 2147483648
  %v711 = vxor.u32 %v627, 2147483648
  %v712 = vxor.u32 %v632, 2147483648
  %v713 = vxor.u32 %v635, 2147483648
  %v714 = vxor.u32 %v640, 2147483648
  %v715 = vxor.u32 %v643, 2147483648
  %v716 = vxor.u32 %v648, 2147483648
  %v717 = vxor.u32 %v651, 2147483648
  %v718 = vmul.f32 %v654, 1.442695
  %v719 = vpow.pop %v718
  %v720 = vmul.f32 %v655, 1.442695
  %v721 = vpow.pop %v720
  %v722 = vmul.f32 %v656, 1.442695
  %v723 = vpow.pop %v722
  %v724 = vmul.f32 %v657, 1.442695
  %v725 = vpow.pop %v724
  %v726 = vmul.f32 %v658, 1.442695
  %v727 = vpow.pop %v726
  %v728 = vmul.f32 %v659, 1.442695
  %v729 = vpow.pop %v728
  %v730 = vmul.f32 %v660, 1.442695
  %v731 = vpow.pop %v730
  %v732 = vmul.f32 %v661, 1.442695
  %v733 = vpow.pop %v732
  %v734 = vmul.f32 %v662, 1.442695
  %v735 = vpow.pop %v734
  %v736 = vmul.f32 %v663, 1.442695
  %v737 = vpow.pop %v736
  %v738 = vmul.f32 %v664, 1.442695
  %v739 = vpow.pop %v738
  %v740 = vmul.f32 %v665, 1.442695
  %v741 = vpow.pop %v740
  %v742 = vmul.f32 %v666, 1.442695
  %v743 = vpow.pop %v742
  %v744 = vmul.f32 %v667, 1.442695
  %v745 = vpow.pop %v744
  %v746 = vmul.f32 %v668, 1.442695
  %v747 = vpow.pop %v746
  %v748 = vmul.f32 %v669, 1.442695
  %v749 = vpow.pop %v748
  %v750 = vmul.f32 %v670, 1.442695
  %v751 = vpow.pop %v750
  %v752 = vmul.f32 %v671, 1.442695
  %v753 = vpow.pop %v752
  %v754 = vmul.f32 %v672, 1.442695
  %v755 = vpow.pop %v754
  %v756 = vmul.f32 %v673, 1.442695
  %v757 = vpow.pop %v756
  %v758 = vmul.f32 %v674, 1.442695
  %v759 = vpow.pop %v758
  %v760 = vmul.f32 %v675, 1.442695
  %v761 = vpow.pop %v760
  %v762 = vmul.f32 %v676, 1.442695
  %v763 = vpow.pop %v762
  %v764 = vmul.f32 %v677, 1.442695
  %v765 = vpow.pop %v764
  %v766 = vmul.f32 %v678, 1.442695
  %v767 = vpow.pop %v766
  %v768 = vmul.f32 %v679, 1.442695
  %v769 = vpow.pop %v768
  %v770 = vmul.f32 %v680, 1.442695
  %v771 = vpow.pop %v770
  %v772 = vmul.f32 %v681, 1.442695
  %v773 = vpow.pop %v772
  %v774 = vmul.f32 %v682, 1.442695
  %v775 = vpow.pop %v774
  %v776 = vmul.f32 %v683, 1.442695
  %v777 = vpow.pop %v776
  %v778 = vmul.f32 %v684, 1.442695
  %v779 = vpow.pop %v778
  %v780 = vmul.f32 %v685, 1.442695
  %v781 = vpow.pop %v780
  %v782 = vmul.f32 %v686, 1.442695
  %v783 = vpow.pop %v782
  %v784 = vmul.f32 %v687, 1.442695
  %v785 = vpow.pop %v784
  %v786 = vmul.f32 %v688, 1.442695
  %v787 = vpow.pop %v786
  %v788 = vmul.f32 %v689, 1.442695
  %v789 = vpow.pop %v788
  %v790 = vmul.f32 %v690, 1.442695
  %v791 = vpow.pop %v790
  %v792 = vmul.f32 %v691, 1.442695
  %v793 = vpow.pop %v792
  %v794 = vmul.f32 %v692, 1.442695
  %v795 = vpow.pop %v794
  %v796 = vmul.f32 %v693, 1.442695
  %v797 = vpow.pop %v796
  %v798 = vmul.f32 %v694, 1.442695
  %v799 = vpow.pop %v798
  %v800 = vmul.f32 %v695, 1.442695
  %v801 = vpow.pop %v800
  %v802 = vmul.f32 %v696, 1.442695
  %v803 = vpow.pop %v802
  %v804 = vmul.f32 %v697, 1.442695
  %v805 = vpow.pop %v804
  %v806 = vmul.f32 %v698, 1.442695
  %v807 = vpow.pop %v806
  %v808 = vmul.f32 %v699, 1.442695
  %v809 = vpow.pop %v808
  %v810 = vmul.f32 %v700, 1.442695
  %v811 = vpow.pop %v810
  %v812 = vmul.f32 %v701, 1.442695
  %v813 = vpow.pop %v812
  %v814 = vmul.f32 %v702, 1.442695
  %v815 = vpow.pop %v814
  %v816 = vmul.f32 %v703, 1.442695
  %v817 = vpow.pop %v816
  %v818 = vmul.f32 %v704, 1.442695
  %v819 = vpow.pop %v818
  %v820 = vmul.f32 %v705, 1.442695
  %v821 = vpow.pop %v820
  %v822 = vmul.f32 %v706, 1.442695
  %v823 = vpow.pop %v822
  %v824 = vmul.f32 %v707, 1.442695
  %v825 = vpow.pop %v824
  %v826 = vmul.f32 %v708, 1.442695
  %v827 = vpow.pop %v826
  %v828 = vmul.f32 %v709, 1.442695
  %v829 = vpow.pop %v828
  %v830 = vmul.f32 %v710, 1.442695
  %v831 = vpow.pop %v830
  %v832 = vmul.f32 %v711, 1.442695
  %v833 = vpow.pop %v832
  %v834 = vmul.f32 %v712, 1.442695
  %v835 = vpow.pop %v834
  %v836 = vmul.f32 %v713, 1.442695
  %v837 = vpow.pop %v836
  %v838 = vmul.f32 %v714, 1.442695
  %v839 = vpow.pop %v838
  %v840 = vmul.f32 %v715, 1.442695
  %v841 = vpow.pop %v840
  %v842 = vmul.f32 %v716, 1.442695
  %v843 = vpow.pop %v842
  %v844 = vmul.f32 %v717, 1.442695
  %v845 = vpow.pop %v844
  %v846 = vadd.f32 %v719, 1.0
  %v847 = vadd.f32 %v721, 1.0
  %v848 = vadd.f32 %v723, 1.0
  %v849 = vadd.f32 %v725, 1.0
  %v850 = vadd.f32 %v727, 1.0
  %v851 = vadd.f32 %v729, 1.0
  %v852 = vadd.f32 %v731, 1.0
  %v853 = vadd.f32 %v733, 1.0
  %v854 = vadd.f32 %v735, 1.0
  %v855 = vadd.f32 %v737, 1.0
  %v856 = vadd.f32 %v739, 1.0
  %v857 = vadd.f32 %v741, 1.0
  %v858 = vadd.f32 %v743, 1.0
  %v859 = vadd.f32 %v745, 1.0
  %v860 = vadd.f32 %v747, 1.0
  %v861 = vadd.f32 %v749, 1.0
  %v862 = vadd.f32 %v751, 1.0
  %v863 = vadd.f32 %v753, 1.0
  %v864 = vadd.f32 %v755, 1.0
  %v865 = vadd.f32 %v757, 1.0
  %v866 = vadd.f32 %v759, 1.0
  %v867 = vadd.f32 %v761, 1.0
  %v868 = vadd.f32 %v763, 1.0
  %v869 = vadd.f32 %v765, 1.0
  %v870 = vadd.f32 %v767, 1.0
  %v871 = vadd.f32 %v769, 1.0
  %v872 = vadd.f32 %v771, 1.0
  %v873 = vadd.f32 %v773, 1.0
  %v874 = vadd.f32 %v775, 1.0
  %v875 = vadd.f32 %v777, 1.0
  %v876 = vadd.f32 %v779, 1.0
  %v877 = vadd.f32 %v781, 1.0
  %v878 = vadd.f32 %v783, 1.0
  %v879 = vadd.f32 %v785, 1.0
  %v880 = vadd.f32 %v787, 1.0
  %v881 = vadd.f32 %v789, 1.0
  %v882 = vadd.f32 %v791, 1.0
  %v883 = vadd.f32 %v793, 1.0
  %v884 = vadd.f32 %v795, 1.0
  %v885 = vadd.f32 %v797, 1.0
  %v886 = vadd.f32 %v799, 1.0
  %v887 = vadd.f32 %v801, 1.0
  %v888 = vadd.f32 %v803, 1.0
  %v889 = vadd.f32 %v805, 1.0
  %v890 = vadd.f32 %v807, 1.0
  %v891 = vadd.f32 %v809, 1.0
  %v892 = vadd.f32 %v811, 1.0
  %v893 = vadd.f32 %v813, 1.0
  %v894 = vadd.f32 %v815, 1.0
  %v895 = vadd.f32 %v817, 1.0
  %v896 = vadd.f32 %v819, 1.0
  %v897 = vadd.f32 %v821, 1.0
  %v898 = vadd.f32 %v823, 1.0
  %v899 = vadd.f32 %v825, 1.0
  %v900 = vadd.f32 %v827, 1.0
  %v901 = vadd.f32 %v829, 1.0
  %v902 = vadd.f32 %v831, 1.0
  %v903 = vadd.f32 %v833, 1.0
  %v904 = vadd.f32 %v835, 1.0
  %v905 = vadd.f32 %v837, 1.0
  %v906 = vadd.f32 %v839, 1.0
  %v907 = vadd.f32 %v841, 1.0
  %v908 = vadd.f32 %v843, 1.0
  %v909 = vadd.f32 %v845, 1.0
  %v910 = vrcp.pop %v846
  %v911 = vmul.f32 1.0, %v910
  %v912 = vrcp.pop %v847
  %v913 = vmul.f32 1.0, %v912
  %v914 = vrcp.pop %v848
  %v915 = vmul.f32 1.0, %v914
  %v916 = vrcp.pop %v849
  %v917 = vmul.f32 1.0, %v916
  %v918 = vrcp.pop %v850
  %v919 = vmul.f32 1.0, %v918
  %v920 = vrcp.pop %v851
  %v921 = vmul.f32 1.0, %v920
  %v922 = vrcp.pop %v852
  %v923 = vmul.f32 1.0, %v922
  %v924 = vrcp.pop %v853
  %v925 = vmul.f32 1.0, %v924
  %v926 = vrcp.pop %v854
  %v927 = vmul.f32 1.0, %v926
  %v928 = vrcp.pop %v855
  %v929 = vmul.f32 1.0, %v928
  %v930 = vrcp.pop %v856
  %v931 = vmul.f32 1.0, %v930
  %v932 = vrcp.pop %v857
  %v933 = vmul.f32 1.0, %v932
  %v934 = vrcp.pop %v858
  %v935 = vmul.f32 1.0, %v934
  %v936 = vrcp.pop %v859
  %v937 = vmul.f32 1.0, %v936
  %v938 = vrcp.pop %v860
  %v939 = vmul.f32 1.0, %v938
  %v940 = vrcp.pop %v861
  %v941 = vmul.f32 1.0, %v940
  %v942 = vrcp.pop %v862
  %v943 = vmul.f32 1.0, %v942
  %v944 = vrcp.pop %v863
  %v945 = vmul.f32 1.0, %v944
  %v946 = vrcp.pop %v864
  %v947 = vmul.f32 1.0, %v946
  %v948 = vrcp.pop %v865
  %v949 = vmul.f32 1.0, %v948
  %v950 = vrcp.pop %v866
  %v951 = vmul.f32 1.0, %v950
  %v952 = vrcp.pop %v867
  %v953 = vmul.f32 1.0, %v952
  %v954 = vrcp.pop %v868
  %v955 = vmul.f32 1.0, %v954
  %v956 = vrcp.pop %v869
  %v957 = vmul.f32 1.0, %v956
  %v958 = vrcp.pop %v870
  %v959 = vmul.f32 1.0, %v958
  %v960 = vrcp.pop %v871
  %v961 = vmul.f32 1.0, %v960
  %v962 = vrcp.pop %v872
  %v963 = vmul.f32 1.0, %v962
  %v964 = vrcp.pop %v873
  %v965 = vmul.f32 1.0, %v964
  %v966 = vrcp.pop %v874
  %v967 = vmul.f32 1.0, %v966
  %v968 = vrcp.pop %v875
  %v969 = vmul.f32 1.0, %v968
  %v970 = vrcp.pop %v876
  %v971 = vmul.f32 1.0, %v970
  %v972 = vrcp.pop %v877
  %v973 = vmul.f32 1.0, %v972
  %v974 = vrcp.pop %v878
  %v975 = vmul.f32 1.0, %v974
  %v976 = vrcp.pop %v879
  %v977 = vmul.f32 1.0, %v976
  %v978 = vrcp.pop %v880
  %v979 = vmul.f32 1.0, %v978
  %v980 = vrcp.pop %v881
  %v981 = vmul.f32 1.0, %v980
  %v982 = vrcp.pop %v882
  %v983 = vmul.f32 1.0, %v982
  %v984 = vrcp.pop %v883
  %v985 = vmul.f32 1.0, %v984
  %v986 = vrcp.pop %v884
  %v987 = vmul.f32 1.0, %v986
  %v988 = vrcp.pop %v885
  %v989 = vmul.f32 1.0, %v988
  %v990 = vrcp.pop %v886
  %v991 = vmul.f32 1.0, %v990
  %v992 = vrcp.pop %v887
  %v993 = vmul.f32 1.0, %v992
  %v994 = vrcp.pop %v888
  %v995 = vmul.f32 1.0, %v994
  %v996 = vrcp.pop %v889
  %v997 = vmul.f32 1.0, %v996
  %v998 = vrcp.pop %v890
  %v999 = vmul.f32 1.0, %v998
  %v1000 = vrcp.pop %v891
  %v1001 = vmul.f32 1.0, %v1000
  %v1002 = vrcp.pop %v892
  %v1003 = vmul.f32 1.0, %v1002
  %v1004 = vrcp.pop %v893
  %v1005 = vmul.f32 1.0, %v1004
  %v1006 = vrcp.pop %v894
  %v1007 = vmul.f32 1.0, %v1006
  %v1008 = vrcp.pop %v895
  %v1009 = vmul.f32 1.0, %v1008
  %v1010 = vrcp.pop %v896
  %v1011 = vmul.f32 1.0, %v1010
  %v1012 = vrcp.pop %v897
  %v1013 = vmul.f32 1.0, %v1012
  %v1014 = vrcp.pop %v898
  %v1015 = vmul.f32 1.0, %v1014
  %v1016 = vrcp.pop %v899
  %v1017 = vmul.f32 1.0, %v1016
  %v1018 = vrcp.pop %v900
  %v1019 = vmul.f32 1.0, %v1018
  %v1020 = vrcp.pop %v901
  %v1021 = vmul.f32 1.0, %v1020
  %v1022 = vrcp.pop %v902
  %v1023 = vmul.f32 1.0, %v1022
  %v1024 = vrcp.pop %v903
  %v1025 = vmul.f32 1.0, %v1024
  %v1026 = vrcp.pop %v904
  %v1027 = vmul.f32 1.0, %v1026
  %v1028 = vrcp.pop %v905
  %v1029 = vmul.f32 1.0, %v1028
  %v1030 = vrcp.pop %v906
  %v1031 = vmul.f32 1.0, %v1030
  %v1032 = vrcp.pop %v907
  %v1033 = vmul.f32 1.0, %v1032
  %v1034 = vrcp.pop %v908
  %v1035 = vmul.f32 1.0, %v1034
  %v1036 = vrcp.pop %v909
  %v1037 = vmul.f32 1.0, %v1036
  %v1038 = vmul.f32 %v400, %v911
  %v1039 = vmul.f32 %v403, %v913
  %v1040 = vmul.f32 %v408, %v915
  %v1041 = vmul.f32 %v411, %v917
  %v1042 = vmul.f32 %v416, %v919
  %v1043 = vmul.f32 %v419, %v921
  %v1044 = vmul.f32 %v424, %v923
  %v1045 = vmul.f32 %v427, %v925
  %v1046 = vmul.f32 %v432, %v927
  %v1047 = vmul.f32 %v435, %v929
  %v1048 = vmul.f32 %v440, %v931
  %v1049 = vmul.f32 %v443, %v933
  %v1050 = vmul.f32 %v448, %v935
  %v1051 = vmul.f32 %v451, %v937
  %v1052 = vmul.f32 %v456, %v939
  %v1053 = vmul.f32 %v459, %v941
  %v1054 = vmul.f32 %v464, %v943
  %v1055 = vmul.f32 %v467, %v945
  %v1056 = vmul.f32 %v472, %v947
  %v1057 = vmul.f32 %v475, %v949
  %v1058 = vmul.f32 %v480, %v951
  %v1059 = vmul.f32 %v483, %v953
  %v1060 = vmul.f32 %v488, %v955
  %v1061 = vmul.f32 %v491, %v957
  %v1062 = vmul.f32 %v496, %v959
  %v1063 = vmul.f32 %v499, %v961
  %v1064 = vmul.f32 %v504, %v963
  %v1065 = vmul.f32 %v507, %v965
  %v1066 = vmul.f32 %v512, %v967
  %v1067 = vmul.f32 %v515, %v969
  %v1068 = vmul.f32 %v520, %v971
  %v1069 = vmul.f32 %v523, %v973
  %v1070 = vmul.f32 %v528, %v975
  %v1071 = vmul.f32 %v531, %v977
  %v1072 = vmul.f32 %v536, %v979
  %v1073 = vmul.f32 %v539, %v981
  %v1074 = vmul.f32 %v544, %v983
  %v1075 = vmul.f32 %v547, %v985
  %v1076 = vmul.f32 %v552, %v987
  %v1077 = vmul.f32 %v555, %v989
  %v1078 = vmul.f32 %v560, %v991
  %v1079 = vmul.f32 %v563, %v993
  %v1080 = vmul.f32 %v568, %v995
  %v1081 = vmul.f32 %v571, %v997
  %v1082 = vmul.f32 %v576, %v999
  %v1083 = vmul.f32 %v579, %v1001
  %v1084 = vmul.f32 %v584, %v1003
  %v1085 = vmul.f32 %v587, %v1005
  %v1086 = vmul.f32 %v592, %v1007
  %v1087 = vmul.f32 %v595, %v1009
  %v1088 = vmul.f32 %v600, %v1011
  %v1089 = vmul.f32 %v603, %v1013
  %v1090 = vmul.f32 %v608, %v1015
  %v1091 = vmul.f32 %v611, %v1017
  %v1092 = vmul.f32 %v616, %v1019
  %v1093 = vmul.f32 %v619, %v1021
  %v1094 = vmul.f32 %v624, %v1023
  %v1095 = vmul.f32 %v627, %v1025
  %v1096 = vmul.f32 %v632, %v1027
  %v1097 = vmul.f32 %v635, %v1029
  %v1098 = vmul.f32 %v640, %v1031
  %v1099 = vmul.f32 %v643, %v1033
  %v1100 = vmul.f32 %v648, %v1035
  %v1101 = vmul.f32 %v651, %v1037
  %v1102 = vpack.c.bf16 %v1039, %v1038
  %v1103 = vpack.c.bf16 %v1041, %v1040
  %v1104 = vpack.c.bf16 %v1043, %v1042
  %v1105 = vpack.c.bf16 %v1045, %v1044
  %v1106 = vpack.c.bf16 %v1047, %v1046
  %v1107 = vpack.c.bf16 %v1049, %v1048
  %v1108 = vpack.c.bf16 %v1051, %v1050
  %v1109 = vpack.c.bf16 %v1053, %v1052
  %v1110 = vpack.c.bf16 %v1055, %v1054
  %v1111 = vpack.c.bf16 %v1057, %v1056
  %v1112 = vpack.c.bf16 %v1059, %v1058
  %v1113 = vpack.c.bf16 %v1061, %v1060
  %v1114 = vpack.c.bf16 %v1063, %v1062
  %v1115 = vpack.c.bf16 %v1065, %v1064
  %v1116 = vpack.c.bf16 %v1067, %v1066
  %v1117 = vpack.c.bf16 %v1069, %v1068
  %v1118 = vpack.c.bf16 %v1071, %v1070
  %v1119 = vpack.c.bf16 %v1073, %v1072
  %v1120 = vpack.c.bf16 %v1075, %v1074
  %v1121 = vpack.c.bf16 %v1077, %v1076
  %v1122 = vpack.c.bf16 %v1079, %v1078
  %v1123 = vpack.c.bf16 %v1081, %v1080
  %v1124 = vpack.c.bf16 %v1083, %v1082
  %v1125 = vpack.c.bf16 %v1085, %v1084
  %v1126 = vpack.c.bf16 %v1087, %v1086
  %v1127 = vpack.c.bf16 %v1089, %v1088
  %v1128 = vpack.c.bf16 %v1091, %v1090
  %v1129 = vpack.c.bf16 %v1093, %v1092
  %v1130 = vpack.c.bf16 %v1095, %v1094
  %v1131 = vpack.c.bf16 %v1097, %v1096
  %v1132 = vpack.c.bf16 %v1099, %v1098
  %v1133 = vpack.c.bf16 %v1101, %v1100
  %v1134 = vld [vmem:[%s3] sm:$0xf]
  %v1135 = vld [vmem:[%s3 + $0x4] sm:$0xf]
  %v1136 = vld [vmem:[%s3 + $0x8] sm:$0xf]
  %v1137 = vld [vmem:[%s3 + $0xc] sm:$0xf]
  %v1138 = vld [vmem:[%s4] sm:$0x1]
  %v1140 = vlaneseq
  %v1141 = vshrl.u32 %v1140, 7
  %v1142 = vsub.s32 0, %v1141
  %v1143 = vrot.slane %v1138, %v1142
  %v1149 = vunpack.c.l.b16 %v1134
  %v1150 = vunpack.c.l.b16 %v1135
  %v1151 = vunpack.c.l.b16 %v1136
  %v1152 = vunpack.c.l.b16 %v1137
  %v1153 = vpack.c.b16 %v1150, %v1149
  %v1154 = vpack.c.b16 %v1152, %v1151
  %v1158 = vsel %vm268, %v1102, 0
  %v1161 = vsel %vm268, %v1103, 0
  %v1164 = vsel %vm268, %v1104, 0
  %v1167 = vsel %vm268, %v1105, 0
  %v1170 = vsel %vm268, %v1106, 0
  %v1173 = vsel %vm268, %v1107, 0
  %v1176 = vsel %vm268, %v1108, 0
  %v1179 = vsel %vm268, %v1109, 0
  %v1182 = vsel %vm268, %v1110, 0
  %v1185 = vsel %vm268, %v1111, 0
  %v1188 = vsel %vm268, %v1112, 0
  %v1191 = vsel %vm268, %v1113, 0
  %v1194 = vsel %vm268, %v1114, 0
  %v1197 = vsel %vm268, %v1115, 0
  %v1200 = vsel %vm268, %v1116, 0
  %v1203 = vsel %vm268, %v1117, 0
  %v1206 = vsel %vm268, %v1118, 0
  %v1209 = vsel %vm268, %v1119, 0
  %v1212 = vsel %vm268, %v1120, 0
  %v1215 = vsel %vm268, %v1121, 0
  %v1218 = vsel %vm268, %v1122, 0
  %v1221 = vsel %vm268, %v1123, 0
  %v1224 = vsel %vm268, %v1124, 0
  %v1227 = vsel %vm268, %v1125, 0
  %v1230 = vsel %vm268, %v1126, 0
  %v1233 = vsel %vm268, %v1127, 0
  %v1236 = vsel %vm268, %v1128, 0
  %v1239 = vsel %vm268, %v1129, 0
  %v1242 = vsel %vm268, %v1130, 0
  %v1245 = vsel %vm268, %v1131, 0
  %v1248 = vsel %vm268, %v1132, 0
  %v1251 = vsel %vm268, %v1133, 0
  %1253 = vmatprep.subr.bf16.mxu0 0
  %1254 = vmatpush1.bf16.msra.mxu0 %v1153
  %1255 = vmatprep.subr.bf16.mxu0 0
  %1256 = vmatpush1.bf16.msra.mxu0 %v1154
  %1257 = vmatprep.subr.bf16.mxu0 0
  %1258 = vmatpush1.bf16.msra.mxu0 0
  %1259 = vmatprep.subr.bf16.mxu0 0
  %1260 = vmatpush1.bf16.msra.mxu0 0
  %1261 = vmatprep.subr.bf16.mxu0 0
  %1262 = vmatpush1.bf16.msra.mxu0 0
  %1263 = vmatprep.subr.bf16.mxu0 0
  %1264 = vmatpush1.bf16.msra.mxu0 0
  %1265 = vmatprep.subr.bf16.mxu0 0
  %1266 = vmatpush1.bf16.msra.mxu0 0
  %1267 = vmatprep.subr.bf16.mxu0 0
  %1268 = vmatpush1.bf16.msra.mxu0 0
  %1269 = vmatprep.subr.bf16.mxu0 0
  %1270 = vmatpush1.bf16.msra.mxu0 0
  %1271 = vmatprep.subr.bf16.mxu0 0
  %1272 = vmatpush1.bf16.msra.mxu0 0
  %1273 = vmatprep.subr.bf16.mxu0 0
  %1274 = vmatpush1.bf16.msra.mxu0 0
  %1275 = vmatprep.subr.bf16.mxu0 0
  %1276 = vmatpush1.bf16.msra.mxu0 0
  %1277 = vmatprep.subr.bf16.mxu0 0
  %1278 = vmatpush1.bf16.msra.mxu0 0
  %1279 = vmatprep.subr.bf16.mxu0 0
  %1280 = vmatpush1.bf16.msra.mxu0 0
  %1281 = vmatprep.subr.bf16.mxu0 0
  %1282 = vmatpush1.bf16.msra.mxu0 0
  %1283 = vmatprep.subr.bf16.mxu0 0
  %1284 = vmatpush1.bf16.msra.mxu0 0
  %1285 = vmatprep.mubr.bf16.mxu0 0
  %1286 = vmatmul.mubr.bf16.gmra.mrb[0].mxu0 %v1158
  %v1287 = vpop.f32.mrb[0].mxu0
  %v1288 = vadd.f32 %v1143, %v1287
  %v1289 = vpop.f32.mrb[0].mxu0
  %v1290 = vpop.f32.mrb[0].mxu0
  %v1291 = vadd.f32 %v1143, %v1290
  %v1292 = vpop.f32.mrb[0].mxu0
  %1293 = vmatprep.mubr.bf16.mxu0 0
  %1294 = vmatmul.mubr.bf16.gmra.mrb[0].mxu0 %v1161
  %v1295 = vpop.f32.mrb[0].mxu0
  %v1296 = vadd.f32 %v1143, %v1295
  %v1297 = vpop.f32.mrb[0].mxu0
  %v1298 = vpop.f32.mrb[0].mxu0
  %v1299 = vadd.f32 %v1143, %v1298
  %v1300 = vpop.f32.mrb[0].mxu0
  %1301 = vmatprep.mubr.bf16.mxu0 0
  %1302 = vmatmul.mubr.bf16.gmra.mrb[0].mxu0 %v1164
  %v1303 = vpop.f32.mrb[0].mxu0
  %v1304 = vadd.f32 %v1143, %v1303
  %v1305 = vpop.f32.mrb[0].mxu0
  %v1306 = vpop.f32.mrb[0].mxu0
  %v1307 = vadd.f32 %v1143, %v1306
  %v1308 = vpop.f32.mrb[0].mxu0
  %1309 = vmatprep.mubr.bf16.mxu0 0
  %1310 = vmatmul.mubr.bf16.gmra.mrb[0].mxu0 %v1167
  %v1311 = vpop.f32.mrb[0].mxu0
  %v1312 = vadd.f32 %v1143, %v1311
  %v1313 = vpop.f32.mrb[0].mxu0
  %v1314 = vpop.f32.mrb[0].mxu0
  %v1315 = vadd.f32 %v1143, %v1314
  %v1316 = vpop.f32.mrb[0].mxu0
  %1317 = vmatprep.mubr.bf16.mxu0 0
  %1318 = vmatmul.mubr.bf16.gmra.mrb[0].mxu0 %v1170
  %v1319 = vpop.f32.mrb[0].mxu0
  %v1320 = vadd.f32 %v1143, %v1319
  %v1321 = vpop.f32.mrb[0].mxu0
  %v1322 = vpop.f32.mrb[0].mxu0
  %v1323 = vadd.f32 %v1143, %v1322
  %v1324 = vpop.f32.mrb[0].mxu0
  %1325 = vmatprep.mubr.bf16.mxu0 0
  %1326 = vmatmul.mubr.bf16.gmra.mrb[0].mxu0 %v1173
  %v1327 = vpop.f32.mrb[0].mxu0
  %v1328 = vadd.f32 %v1143, %v1327
  %v1329 = vpop.f32.mrb[0].mxu0
  %v1330 = vpop.f32.mrb[0].mxu0
  %v1331 = vadd.f32 %v1143, %v1330
  %v1332 = vpop.f32.mrb[0].mxu0
  %1333 = vmatprep.mubr.bf16.mxu0 0
  %1334 = vmatmul.mubr.bf16.gmra.mrb[0].mxu0 %v1176
  %v1335 = vpop.f32.mrb[0].mxu0
  %v1336 = vadd.f32 %v1143, %v1335
  %v1337 = vpop.f32.mrb[0].mxu0
  %v1338 = vpop.f32.mrb[0].mxu0
  %v1339 = vadd.f32 %v1143, %v1338
  %v1340 = vpop.f32.mrb[0].mxu0
  %1341 = vmatprep.mubr.bf16.mxu0 0
  %1342 = vmatmul.mubr.bf16.gmra.mrb[0].mxu0 %v1179
  %v1343 = vpop.f32.mrb[0].mxu0
  %v1344 = vadd.f32 %v1143, %v1343
  %v1345 = vpop.f32.mrb[0].mxu0
  %v1346 = vpop.f32.mrb[0].mxu0
  %v1347 = vadd.f32 %v1143, %v1346
  %v1348 = vpop.f32.mrb[0].mxu0
  %1349 = vmatprep.mubr.bf16.mxu0 0
  %1350 = vmatmul.mubr.bf16.gmra.mrb[0].mxu0 %v1182
  %v1351 = vpop.f32.mrb[0].mxu0
  %v1352 = vadd.f32 %v1143, %v1351
  %v1353 = vpop.f32.mrb[0].mxu0
  %v1354 = vpop.f32.mrb[0].mxu0
  %v1355 = vadd.f32 %v1143, %v1354
  %v1356 = vpop.f32.mrb[0].mxu0
  %1357 = vmatprep.mubr.bf16.mxu0 0
  %1358 = vmatmul.mubr.bf16.gmra.mrb[0].mxu0 %v1185
  %v1359 = vpop.f32.mrb[0].mxu0
  %v1360 = vadd.f32 %v1143, %v1359
  %v1361 = vpop.f32.mrb[0].mxu0
  %v1362 = vpop.f32.mrb[0].mxu0
  %v1363 = vadd.f32 %v1143, %v1362
  %v1364 = vpop.f32.mrb[0].mxu0
  %1365 = vmatprep.mubr.bf16.mxu0 0
  %1366 = vmatmul.mubr.bf16.gmra.mrb[0].mxu0 %v1188
  %v1367 = vpop.f32.mrb[0].mxu0
  %v1368 = vadd.f32 %v1143, %v1367
  %v1369 = vpop.f32.mrb[0].mxu0
  %v1370 = vpop.f32.mrb[0].mxu0
  %v1371 = vadd.f32 %v1143, %v1370
  %v1372 = vpop.f32.mrb[0].mxu0
  %1373 = vmatprep.mubr.bf16.mxu0 0
  %1374 = vmatmul.mubr.bf16.gmra.mrb[0].mxu0 %v1191
  %v1375 = vpop.f32.mrb[0].mxu0
  %v1376 = vadd.f32 %v1143, %v1375
  %v1377 = vpop.f32.mrb[0].mxu0
  %v1378 = vpop.f32.mrb[0].mxu0
  %v1379 = vadd.f32 %v1143, %v1378
  %v1380 = vpop.f32.mrb[0].mxu0
  %1381 = vmatprep.mubr.bf16.mxu0 0
  %1382 = vmatmul.mubr.bf16.gmra.mrb[0].mxu0 %v1194
  %v1383 = vpop.f32.mrb[0].mxu0
  %v1384 = vadd.f32 %v1143, %v1383
  %v1385 = vpop.f32.mrb[0].mxu0
  %v1386 = vpop.f32.mrb[0].mxu0
  %v1387 = vadd.f32 %v1143, %v1386
  %v1388 = vpop.f32.mrb[0].mxu0
  %1389 = vmatprep.mubr.bf16.mxu0 0
  %1390 = vmatmul.mubr.bf16.gmra.mrb[0].mxu0 %v1197
  %v1391 = vpop.f32.mrb[0].mxu0
  %v1392 = vadd.f32 %v1143, %v1391
  %v1393 = vpop.f32.mrb[0].mxu0
  %v1394 = vpop.f32.mrb[0].mxu0
  %v1395 = vadd.f32 %v1143, %v1394
  %v1396 = vpop.f32.mrb[0].mxu0
  %1397 = vmatprep.mubr.bf16.mxu0 0
  %1398 = vmatmul.mubr.bf16.gmra.mrb[0].mxu0 %v1200
  %v1399 = vpop.f32.mrb[0].mxu0
  %v1400 = vadd.f32 %v1143, %v1399
  %v1401 = vpop.f32.mrb[0].mxu0
  %v1402 = vpop.f32.mrb[0].mxu0
  %v1403 = vadd.f32 %v1143, %v1402
  %v1404 = vpop.f32.mrb[0].mxu0
  %1405 = vmatprep.mubr.bf16.mxu0 0
  %1406 = vmatmul.mubr.bf16.gmra.mrb[0].mxu0 %v1203
  %v1407 = vpop.f32.mrb[0].mxu0
  %v1408 = vadd.f32 %v1143, %v1407
  %v1409 = vpop.f32.mrb[0].mxu0
  %v1410 = vpop.f32.mrb[0].mxu0
  %v1411 = vadd.f32 %v1143, %v1410
  %v1412 = vpop.f32.mrb[0].mxu0
  %1413 = vmatprep.mubr.bf16.mxu0 0
  %1414 = vmatmul.mubr.bf16.gmra.mrb[0].mxu0 %v1206
  %v1415 = vpop.f32.mrb[0].mxu0
  %v1416 = vadd.f32 %v1143, %v1415
  %v1417 = vpop.f32.mrb[0].mxu0
  %v1418 = vpop.f32.mrb[0].mxu0
  %v1419 = vadd.f32 %v1143, %v1418
  %v1420 = vpop.f32.mrb[0].mxu0
  %1421 = vmatprep.mubr.bf16.mxu0 0
  %1422 = vmatmul.mubr.bf16.gmra.mrb[0].mxu0 %v1209
  %v1423 = vpop.f32.mrb[0].mxu0
  %v1424 = vadd.f32 %v1143, %v1423
  %v1425 = vpop.f32.mrb[0].mxu0
  %v1426 = vpop.f32.mrb[0].mxu0
  %v1427 = vadd.f32 %v1143, %v1426
  %v1428 = vpop.f32.mrb[0].mxu0
  %1429 = vmatprep.mubr.bf16.mxu0 0
  %1430 = vmatmul.mubr.bf16.gmra.mrb[0].mxu0 %v1212
  %v1431 = vpop.f32.mrb[0].mxu0
  %v1432 = vadd.f32 %v1143, %v1431
  %v1433 = vpop.f32.mrb[0].mxu0
  %v1434 = vpop.f32.mrb[0].mxu0
  %v1435 = vadd.f32 %v1143, %v1434
  %v1436 = vpop.f32.mrb[0].mxu0
  %1437 = vmatprep.mubr.bf16.mxu0 0
  %1438 = vmatmul.mubr.bf16.gmra.mrb[0].mxu0 %v1215
  %v1439 = vpop.f32.mrb[0].mxu0
  %v1440 = vadd.f32 %v1143, %v1439
  %v1441 = vpop.f32.mrb[0].mxu0
  %v1442 = vpop.f32.mrb[0].mxu0
  %v1443 = vadd.f32 %v1143, %v1442
  %v1444 = vpop.f32.mrb[0].mxu0
  %1445 = vmatprep.mubr.bf16.mxu0 0
  %1446 = vmatmul.mubr.bf16.gmra.mrb[0].mxu0 %v1218
  %v1447 = vpop.f32.mrb[0].mxu0
  %v1448 = vadd.f32 %v1143, %v1447
  %v1449 = vpop.f32.mrb[0].mxu0
  %v1450 = vpop.f32.mrb[0].mxu0
  %v1451 = vadd.f32 %v1143, %v1450
  %v1452 = vpop.f32.mrb[0].mxu0
  %1453 = vmatprep.mubr.bf16.mxu0 0
  %1454 = vmatmul.mubr.bf16.gmra.mrb[0].mxu0 %v1221
  %v1455 = vpop.f32.mrb[0].mxu0
  %v1456 = vadd.f32 %v1143, %v1455
  %v1457 = vpop.f32.mrb[0].mxu0
  %v1458 = vpop.f32.mrb[0].mxu0
  %v1459 = vadd.f32 %v1143, %v1458
  %v1460 = vpop.f32.mrb[0].mxu0
  %1461 = vmatprep.mubr.bf16.mxu0 0
  %1462 = vmatmul.mubr.bf16.gmra.mrb[0].mxu0 %v1224
  %v1463 = vpop.f32.mrb[0].mxu0
  %v1464 = vadd.f32 %v1143, %v1463
  %v1465 = vpop.f32.mrb[0].mxu0
  %v1466 = vpop.f32.mrb[0].mxu0
  %v1467 = vadd.f32 %v1143, %v1466
  %v1468 = vpop.f32.mrb[0].mxu0
  %1469 = vmatprep.mubr.bf16.mxu0 0
  %1470 = vmatmul.mubr.bf16.gmra.mrb[0].mxu0 %v1227
  %v1471 = vpop.f32.mrb[0].mxu0
  %v1472 = vadd.f32 %v1143, %v1471
  %v1473 = vpop.f32.mrb[0].mxu0
  %v1474 = vpop.f32.mrb[0].mxu0
  %v1475 = vadd.f32 %v1143, %v1474
  %v1476 = vpop.f32.mrb[0].mxu0
  %1477 = vmatprep.mubr.bf16.mxu0 0
  %1478 = vmatmul.mubr.bf16.gmra.mrb[0].mxu0 %v1230
  %v1479 = vpop.f32.mrb[0].mxu0
  %v1480 = vadd.f32 %v1143, %v1479
  %v1481 = vpop.f32.mrb[0].mxu0
  %v1482 = vpop.f32.mrb[0].mxu0
  %v1483 = vadd.f32 %v1143, %v1482
  %v1484 = vpop.f32.mrb[0].mxu0
  %1485 = vmatprep.mubr.bf16.mxu0 0
  %1486 = vmatmul.mubr.bf16.gmra.mrb[0].mxu0 %v1233
  %v1487 = vpop.f32.mrb[0].mxu0
  %v1488 = vadd.f32 %v1143, %v1487
  %v1489 = vpop.f32.mrb[0].mxu0
  %v1490 = vpop.f32.mrb[0].mxu0
  %v1491 = vadd.f32 %v1143, %v1490
  %v1492 = vpop.f32.mrb[0].mxu0
  %1493 = vmatprep.mubr.bf16.mxu0 0
  %1494 = vmatmul.mubr.bf16.gmra.mrb[0].mxu0 %v1236
  %v1495 = vpop.f32.mrb[0].mxu0
  %v1496 = vadd.f32 %v1143, %v1495
  %v1497 = vpop.f32.mrb[0].mxu0
  %v1498 = vpop.f32.mrb[0].mxu0
  %v1499 = vadd.f32 %v1143, %v1498
  %v1500 = vpop.f32.mrb[0].mxu0
  %1501 = vmatprep.mubr.bf16.mxu0 0
  %1502 = vmatmul.mubr.bf16.gmra.mrb[0].mxu0 %v1239
  %v1503 = vpop.f32.mrb[0].mxu0
  %v1504 = vadd.f32 %v1143, %v1503
  %v1505 = vpop.f32.mrb[0].mxu0
  %v1506 = vpop.f32.mrb[0].mxu0
  %v1507 = vadd.f32 %v1143, %v1506
  %v1508 = vpop.f32.mrb[0].mxu0
  %1509 = vmatprep.mubr.bf16.mxu0 0
  %1510 = vmatmul.mubr.bf16.gmra.mrb[0].mxu0 %v1242
  %v1511 = vpop.f32.mrb[0].mxu0
  %v1512 = vadd.f32 %v1143, %v1511
  %v1513 = vpop.f32.mrb[0].mxu0
  %v1514 = vpop.f32.mrb[0].mxu0
  %v1515 = vadd.f32 %v1143, %v1514
  %v1516 = vpop.f32.mrb[0].mxu0
  %1517 = vmatprep.mubr.bf16.mxu0 0
  %1518 = vmatmul.mubr.bf16.gmra.mrb[0].mxu0 %v1245
  %v1519 = vpop.f32.mrb[0].mxu0
  %v1520 = vadd.f32 %v1143, %v1519
  %v1521 = vpop.f32.mrb[0].mxu0
  %v1522 = vpop.f32.mrb[0].mxu0
  %v1523 = vadd.f32 %v1143, %v1522
  %v1524 = vpop.f32.mrb[0].mxu0
  %1525 = vmatprep.mubr.bf16.mxu0 0
  %1526 = vmatmul.mubr.bf16.gmra.mrb[0].mxu0 %v1248
  %v1527 = vpop.f32.mrb[0].mxu0
  %v1528 = vadd.f32 %v1143, %v1527
  %v1529 = vpop.f32.mrb[0].mxu0
  %v1530 = vpop.f32.mrb[0].mxu0
  %v1531 = vadd.f32 %v1143, %v1530
  %v1532 = vpop.f32.mrb[0].mxu0
  %1533 = vmatprep.mubr.bf16.mxu0 0
  %1534 = vmatmul.mubr.bf16.gmra.mrb[0].mxu0 %v1251
  %v1535 = vpop.f32.mrb[0].mxu0
  %v1536 = vadd.f32 %v1143, %v1535
  %v1537 = vpop.f32.mrb[0].mxu0
  %v1538 = vpop.f32.mrb[0].mxu0
  %v1539 = vadd.f32 %v1143, %v1538
  %v1540 = vpop.f32.mrb[0].mxu0
  %1541 = vdwg.mxu0
  %v1542 = vxor.u32 %v1288, 2147483648
  %v1543 = vxor.u32 %v1291, 2147483648
  %v1544 = vxor.u32 %v1296, 2147483648
  %v1545 = vxor.u32 %v1299, 2147483648
  %v1546 = vxor.u32 %v1304, 2147483648
  %v1547 = vxor.u32 %v1307, 2147483648
  %v1548 = vxor.u32 %v1312, 2147483648
  %v1549 = vxor.u32 %v1315, 2147483648
  %v1550 = vxor.u32 %v1320, 2147483648
  %v1551 = vxor.u32 %v1323, 2147483648
  %v1552 = vxor.u32 %v1328, 2147483648
  %v1553 = vxor.u32 %v1331, 2147483648
  %v1554 = vxor.u32 %v1336, 2147483648
  %v1555 = vxor.u32 %v1339, 2147483648
  %v1556 = vxor.u32 %v1344, 2147483648
  %v1557 = vxor.u32 %v1347, 2147483648
  %v1558 = vxor.u32 %v1352, 2147483648
  %v1559 = vxor.u32 %v1355, 2147483648
  %v1560 = vxor.u32 %v1360, 2147483648
  %v1561 = vxor.u32 %v1363, 2147483648
  %v1562 = vxor.u32 %v1368, 2147483648
  %v1563 = vxor.u32 %v1371, 2147483648
  %v1564 = vxor.u32 %v1376, 2147483648
  %v1565 = vxor.u32 %v1379, 2147483648
  %v1566 = vxor.u32 %v1384, 2147483648
  %v1567 = vxor.u32 %v1387, 2147483648
  %v1568 = vxor.u32 %v1392, 2147483648
  %v1569 = vxor.u32 %v1395, 2147483648
  %v1570 = vxor.u32 %v1400, 2147483648
  %v1571 = vxor.u32 %v1403, 2147483648
  %v1572 = vxor.u32 %v1408, 2147483648
  %v1573 = vxor.u32 %v1411, 2147483648
  %v1574 = vxor.u32 %v1416, 2147483648
  %v1575 = vxor.u32 %v1419, 2147483648
  %v1576 = vxor.u32 %v1424, 2147483648
  %v1577 = vxor.u32 %v1427, 2147483648
  %v1578 = vxor.u32 %v1432, 2147483648
  %v1579 = vxor.u32 %v1435, 2147483648
  %v1580 = vxor.u32 %v1440, 2147483648
  %v1581 = vxor.u32 %v1443, 2147483648
  %v1582 = vxor.u32 %v1448, 2147483648
  %v1583 = vxor.u32 %v1451, 2147483648
  %v1584 = vxor.u32 %v1456, 2147483648
  %v1585 = vxor.u32 %v1459, 2147483648
  %v1586 = vxor.u32 %v1464, 2147483648
  %v1587 = vxor.u32 %v1467, 2147483648
  %v1588 = vxor.u32 %v1472, 2147483648
  %v1589 = vxor.u32 %v1475, 2147483648
  %v1590 = vxor.u32 %v1480, 2147483648
  %v1591 = vxor.u32 %v1483, 2147483648
  %v1592 = vxor.u32 %v1488, 2147483648
  %v1593 = vxor.u32 %v1491, 2147483648
  %v1594 = vxor.u32 %v1496, 2147483648
  %v1595 = vxor.u32 %v1499, 2147483648
  %v1596 = vxor.u32 %v1504, 2147483648
  %v1597 = vxor.u32 %v1507, 2147483648
  %v1598 = vxor.u32 %v1512, 2147483648
  %v1599 = vxor.u32 %v1515, 2147483648
  %v1600 = vxor.u32 %v1520, 2147483648
  %v1601 = vxor.u32 %v1523, 2147483648
  %v1602 = vxor.u32 %v1528, 2147483648
  %v1603 = vxor.u32 %v1531, 2147483648
  %v1604 = vxor.u32 %v1536, 2147483648
  %v1605 = vxor.u32 %v1539, 2147483648
  %v1606 = vmul.f32 %v1542, 1.442695
  %v1607 = vpow.pop %v1606
  %v1608 = vmul.f32 %v1543, 1.442695
  %v1609 = vpow.pop %v1608
  %v1610 = vmul.f32 %v1544, 1.442695
  %v1611 = vpow.pop %v1610
  %v1612 = vmul.f32 %v1545, 1.442695
  %v1613 = vpow.pop %v1612
  %v1614 = vmul.f32 %v1546, 1.442695
  %v1615 = vpow.pop %v1614
  %v1616 = vmul.f32 %v1547, 1.442695
  %v1617 = vpow.pop %v1616
  %v1618 = vmul.f32 %v1548, 1.442695
  %v1619 = vpow.pop %v1618
  %v1620 = vmul.f32 %v1549, 1.442695
  %v1621 = vpow.pop %v1620
  %v1622 = vmul.f32 %v1550, 1.442695
  %v1623 = vpow.pop %v1622
  %v1624 = vmul.f32 %v1551, 1.442695
  %v1625 = vpow.pop %v1624
  %v1626 = vmul.f32 %v1552, 1.442695
  %v1627 = vpow.pop %v1626
  %v1628 = vmul.f32 %v1553, 1.442695
  %v1629 = vpow.pop %v1628
  %v1630 = vmul.f32 %v1554, 1.442695
  %v1631 = vpow.pop %v1630
  %v1632 = vmul.f32 %v1555, 1.442695
  %v1633 = vpow.pop %v1632
  %v1634 = vmul.f32 %v1556, 1.442695
  %v1635 = vpow.pop %v1634
  %v1636 = vmul.f32 %v1557, 1.442695
  %v1637 = vpow.pop %v1636
  %v1638 = vmul.f32 %v1558, 1.442695
  %v1639 = vpow.pop %v1638
  %v1640 = vmul.f32 %v1559, 1.442695
  %v1641 = vpow.pop %v1640
  %v1642 = vmul.f32 %v1560, 1.442695
  %v1643 = vpow.pop %v1642
  %v1644 = vmul.f32 %v1561, 1.442695
  %v1645 = vpow.pop %v1644
  %v1646 = vmul.f32 %v1562, 1.442695
  %v1647 = vpow.pop %v1646
  %v1648 = vmul.f32 %v1563, 1.442695
  %v1649 = vpow.pop %v1648
  %v1650 = vmul.f32 %v1564, 1.442695
  %v1651 = vpow.pop %v1650
  %v1652 = vmul.f32 %v1565, 1.442695
  %v1653 = vpow.pop %v1652
  %v1654 = vmul.f32 %v1566, 1.442695
  %v1655 = vpow.pop %v1654
  %v1656 = vmul.f32 %v1567, 1.442695
  %v1657 = vpow.pop %v1656
  %v1658 = vmul.f32 %v1568, 1.442695
  %v1659 = vpow.pop %v1658
  %v1660 = vmul.f32 %v1569, 1.442695
  %v1661 = vpow.pop %v1660
  %v1662 = vmul.f32 %v1570, 1.442695
  %v1663 = vpow.pop %v1662
  %v1664 = vmul.f32 %v1571, 1.442695
  %v1665 = vpow.pop %v1664
  %v1666 = vmul.f32 %v1572, 1.442695
  %v1667 = vpow.pop %v1666
  %v1668 = vmul.f32 %v1573, 1.442695
  %v1669 = vpow.pop %v1668
  %v1670 = vmul.f32 %v1574, 1.442695
  %v1671 = vpow.pop %v1670
  %v1672 = vmul.f32 %v1575, 1.442695
  %v1673 = vpow.pop %v1672
  %v1674 = vmul.f32 %v1576, 1.442695
  %v1675 = vpow.pop %v1674
  %v1676 = vmul.f32 %v1577, 1.442695
  %v1677 = vpow.pop %v1676
  %v1678 = vmul.f32 %v1578, 1.442695
  %v1679 = vpow.pop %v1678
  %v1680 = vmul.f32 %v1579, 1.442695
  %v1681 = vpow.pop %v1680
  %v1682 = vmul.f32 %v1580, 1.442695
  %v1683 = vpow.pop %v1682
  %v1684 = vmul.f32 %v1581, 1.442695
  %v1685 = vpow.pop %v1684
  %v1686 = vmul.f32 %v1582, 1.442695
  %v1687 = vpow.pop %v1686
  %v1688 = vmul.f32 %v1583, 1.442695
  %v1689 = vpow.pop %v1688
  %v1690 = vmul.f32 %v1584, 1.442695
  %v1691 = vpow.pop %v1690
  %v1692 = vmul.f32 %v1585, 1.442695
  %v1693 = vpow.pop %v1692
  %v1694 = vmul.f32 %v1586, 1.442695
  %v1695 = vpow.pop %v1694
  %v1696 = vmul.f32 %v1587, 1.442695
  %v1697 = vpow.pop %v1696
  %v1698 = vmul.f32 %v1588, 1.442695
  %v1699 = vpow.pop %v1698
  %v1700 = vmul.f32 %v1589, 1.442695
  %v1701 = vpow.pop %v1700
  %v1702 = vmul.f32 %v1590, 1.442695
  %v1703 = vpow.pop %v1702
  %v1704 = vmul.f32 %v1591, 1.442695
  %v1705 = vpow.pop %v1704
  %v1706 = vmul.f32 %v1592, 1.442695
  %v1707 = vpow.pop %v1706
  %v1708 = vmul.f32 %v1593, 1.442695
  %v1709 = vpow.pop %v1708
  %v1710 = vmul.f32 %v1594, 1.442695
  %v1711 = vpow.pop %v1710
  %v1712 = vmul.f32 %v1595, 1.442695
  %v1713 = vpow.pop %v1712
  %v1714 = vmul.f32 %v1596, 1.442695
  %v1715 = vpow.pop %v1714
  %v1716 = vmul.f32 %v1597, 1.442695
  %v1717 = vpow.pop %v1716
  %v1718 = vmul.f32 %v1598, 1.442695
  %v1719 = vpow.pop %v1718
  %v1720 = vmul.f32 %v1599, 1.442695
  %v1721 = vpow.pop %v1720
  %v1722 = vmul.f32 %v1600, 1.442695
  %v1723 = vpow.pop %v1722
  %v1724 = vmul.f32 %v1601, 1.442695
  %v1725 = vpow.pop %v1724
  %v1726 = vmul.f32 %v1602, 1.442695
  %v1727 = vpow.pop %v1726
  %v1728 = vmul.f32 %v1603, 1.442695
  %v1729 = vpow.pop %v1728
  %v1730 = vmul.f32 %v1604, 1.442695
  %v1731 = vpow.pop %v1730
  %v1732 = vmul.f32 %v1605, 1.442695
  %v1733 = vpow.pop %v1732
  %v1734 = vadd.f32 %v1607, 1.0
  %v1735 = vadd.f32 %v1609, 1.0
  %v1736 = vadd.f32 %v1611, 1.0
  %v1737 = vadd.f32 %v1613, 1.0
  %v1738 = vadd.f32 %v1615, 1.0
  %v1739 = vadd.f32 %v1617, 1.0
  %v1740 = vadd.f32 %v1619, 1.0
  %v1741 = vadd.f32 %v1621, 1.0
  %v1742 = vadd.f32 %v1623, 1.0
  %v1743 = vadd.f32 %v1625, 1.0
  %v1744 = vadd.f32 %v1627, 1.0
  %v1745 = vadd.f32 %v1629, 1.0
  %v1746 = vadd.f32 %v1631, 1.0
  %v1747 = vadd.f32 %v1633, 1.0
  %v1748 = vadd.f32 %v1635, 1.0
  %v1749 = vadd.f32 %v1637, 1.0
  %v1750 = vadd.f32 %v1639, 1.0
  %v1751 = vadd.f32 %v1641, 1.0
  %v1752 = vadd.f32 %v1643, 1.0
  %v1753 = vadd.f32 %v1645, 1.0
  %v1754 = vadd.f32 %v1647, 1.0
  %v1755 = vadd.f32 %v1649, 1.0
  %v1756 = vadd.f32 %v1651, 1.0
  %v1757 = vadd.f32 %v1653, 1.0
  %v1758 = vadd.f32 %v1655, 1.0
  %v1759 = vadd.f32 %v1657, 1.0
  %v1760 = vadd.f32 %v1659, 1.0
  %v1761 = vadd.f32 %v1661, 1.0
  %v1762 = vadd.f32 %v1663, 1.0
  %v1763 = vadd.f32 %v1665, 1.0
  %v1764 = vadd.f32 %v1667, 1.0
  %v1765 = vadd.f32 %v1669, 1.0
  %v1766 = vadd.f32 %v1671, 1.0
  %v1767 = vadd.f32 %v1673, 1.0
  %v1768 = vadd.f32 %v1675, 1.0
  %v1769 = vadd.f32 %v1677, 1.0
  %v1770 = vadd.f32 %v1679, 1.0
  %v1771 = vadd.f32 %v1681, 1.0
  %v1772 = vadd.f32 %v1683, 1.0
  %v1773 = vadd.f32 %v1685, 1.0
  %v1774 = vadd.f32 %v1687, 1.0
  %v1775 = vadd.f32 %v1689, 1.0
  %v1776 = vadd.f32 %v1691, 1.0
  %v1777 = vadd.f32 %v1693, 1.0
  %v1778 = vadd.f32 %v1695, 1.0
  %v1779 = vadd.f32 %v1697, 1.0
  %v1780 = vadd.f32 %v1699, 1.0
  %v1781 = vadd.f32 %v1701, 1.0
  %v1782 = vadd.f32 %v1703, 1.0
  %v1783 = vadd.f32 %v1705, 1.0
  %v1784 = vadd.f32 %v1707, 1.0
  %v1785 = vadd.f32 %v1709, 1.0
  %v1786 = vadd.f32 %v1711, 1.0
  %v1787 = vadd.f32 %v1713, 1.0
  %v1788 = vadd.f32 %v1715, 1.0
  %v1789 = vadd.f32 %v1717, 1.0
  %v1790 = vadd.f32 %v1719, 1.0
  %v1791 = vadd.f32 %v1721, 1.0
  %v1792 = vadd.f32 %v1723, 1.0
  %v1793 = vadd.f32 %v1725, 1.0
  %v1794 = vadd.f32 %v1727, 1.0
  %v1795 = vadd.f32 %v1729, 1.0
  %v1796 = vadd.f32 %v1731, 1.0
  %v1797 = vadd.f32 %v1733, 1.0
  %v1798 = vrcp.pop %v1734
  %v1799 = vmul.f32 1.0, %v1798
  %v1800 = vrcp.pop %v1735
  %v1801 = vmul.f32 1.0, %v1800
  %v1802 = vrcp.pop %v1736
  %v1803 = vmul.f32 1.0, %v1802
  %v1804 = vrcp.pop %v1737
  %v1805 = vmul.f32 1.0, %v1804
  %v1806 = vrcp.pop %v1738
  %v1807 = vmul.f32 1.0, %v1806
  %v1808 = vrcp.pop %v1739
  %v1809 = vmul.f32 1.0, %v1808
  %v1810 = vrcp.pop %v1740
  %v1811 = vmul.f32 1.0, %v1810
  %v1812 = vrcp.pop %v1741
  %v1813 = vmul.f32 1.0, %v1812
  %v1814 = vrcp.pop %v1742
  %v1815 = vmul.f32 1.0, %v1814
  %v1816 = vrcp.pop %v1743
  %v1817 = vmul.f32 1.0, %v1816
  %v1818 = vrcp.pop %v1744
  %v1819 = vmul.f32 1.0, %v1818
  %v1820 = vrcp.pop %v1745
  %v1821 = vmul.f32 1.0, %v1820
  %v1822 = vrcp.pop %v1746
  %v1823 = vmul.f32 1.0, %v1822
  %v1824 = vrcp.pop %v1747
  %v1825 = vmul.f32 1.0, %v1824
  %v1826 = vrcp.pop %v1748
  %v1827 = vmul.f32 1.0, %v1826
  %v1828 = vrcp.pop %v1749
  %v1829 = vmul.f32 1.0, %v1828
  %v1830 = vrcp.pop %v1750
  %v1831 = vmul.f32 1.0, %v1830
  %v1832 = vrcp.pop %v1751
  %v1833 = vmul.f32 1.0, %v1832
  %v1834 = vrcp.pop %v1752
  %v1835 = vmul.f32 1.0, %v1834
  %v1836 = vrcp.pop %v1753
  %v1837 = vmul.f32 1.0, %v1836
  %v1838 = vrcp.pop %v1754
  %v1839 = vmul.f32 1.0, %v1838
  %v1840 = vrcp.pop %v1755
  %v1841 = vmul.f32 1.0, %v1840
  %v1842 = vrcp.pop %v1756
  %v1843 = vmul.f32 1.0, %v1842
  %v1844 = vrcp.pop %v1757
  %v1845 = vmul.f32 1.0, %v1844
  %v1846 = vrcp.pop %v1758
  %v1847 = vmul.f32 1.0, %v1846
  %v1848 = vrcp.pop %v1759
  %v1849 = vmul.f32 1.0, %v1848
  %v1850 = vrcp.pop %v1760
  %v1851 = vmul.f32 1.0, %v1850
  %v1852 = vrcp.pop %v1761
  %v1853 = vmul.f32 1.0, %v1852
  %v1854 = vrcp.pop %v1762
  %v1855 = vmul.f32 1.0, %v1854
  %v1856 = vrcp.pop %v1763
  %v1857 = vmul.f32 1.0, %v1856
  %v1858 = vrcp.pop %v1764
  %v1859 = vmul.f32 1.0, %v1858
  %v1860 = vrcp.pop %v1765
  %v1861 = vmul.f32 1.0, %v1860
  %v1862 = vrcp.pop %v1766
  %v1863 = vmul.f32 1.0, %v1862
  %v1864 = vrcp.pop %v1767
  %v1865 = vmul.f32 1.0, %v1864
  %v1866 = vrcp.pop %v1768
  %v1867 = vmul.f32 1.0, %v1866
  %v1868 = vrcp.pop %v1769
  %v1869 = vmul.f32 1.0, %v1868
  %v1870 = vrcp.pop %v1770
  %v1871 = vmul.f32 1.0, %v1870
  %v1872 = vrcp.pop %v1771
  %v1873 = vmul.f32 1.0, %v1872
  %v1874 = vrcp.pop %v1772
  %v1875 = vmul.f32 1.0, %v1874
  %v1876 = vrcp.pop %v1773
  %v1877 = vmul.f32 1.0, %v1876
  %v1878 = vrcp.pop %v1774
  %v1879 = vmul.f32 1.0, %v1878
  %v1880 = vrcp.pop %v1775
  %v1881 = vmul.f32 1.0, %v1880
  %v1882 = vrcp.pop %v1776
  %v1883 = vmul.f32 1.0, %v1882
  %v1884 = vrcp.pop %v1777
  %v1885 = vmul.f32 1.0, %v1884
  %v1886 = vrcp.pop %v1778
  %v1887 = vmul.f32 1.0, %v1886
  %v1888 = vrcp.pop %v1779
  %v1889 = vmul.f32 1.0, %v1888
  %v1890 = vrcp.pop %v1780
  %v1891 = vmul.f32 1.0, %v1890
  %v1892 = vrcp.pop %v1781
  %v1893 = vmul.f32 1.0, %v1892
  %v1894 = vrcp.pop %v1782
  %v1895 = vmul.f32 1.0, %v1894
  %v1896 = vrcp.pop %v1783
  %v1897 = vmul.f32 1.0, %v1896
  %v1898 = vrcp.pop %v1784
  %v1899 = vmul.f32 1.0, %v1898
  %v1900 = vrcp.pop %v1785
  %v1901 = vmul.f32 1.0, %v1900
  %v1902 = vrcp.pop %v1786
  %v1903 = vmul.f32 1.0, %v1902
  %v1904 = vrcp.pop %v1787
  %v1905 = vmul.f32 1.0, %v1904
  %v1906 = vrcp.pop %v1788
  %v1907 = vmul.f32 1.0, %v1906
  %v1908 = vrcp.pop %v1789
  %v1909 = vmul.f32 1.0, %v1908
  %v1910 = vrcp.pop %v1790
  %v1911 = vmul.f32 1.0, %v1910
  %v1912 = vrcp.pop %v1791
  %v1913 = vmul.f32 1.0, %v1912
  %v1914 = vrcp.pop %v1792
  %v1915 = vmul.f32 1.0, %v1914
  %v1916 = vrcp.pop %v1793
  %v1917 = vmul.f32 1.0, %v1916
  %v1918 = vrcp.pop %v1794
  %v1919 = vmul.f32 1.0, %v1918
  %v1920 = vrcp.pop %v1795
  %v1921 = vmul.f32 1.0, %v1920
  %v1922 = vrcp.pop %v1796
  %v1923 = vmul.f32 1.0, %v1922
  %v1924 = vrcp.pop %v1797
  %v1925 = vmul.f32 1.0, %v1924
  %v1926 = vmul.f32 %v1288, %v1799
  %v1927 = vmul.f32 %v1291, %v1801
  %v1928 = vmul.f32 %v1296, %v1803
  %v1929 = vmul.f32 %v1299, %v1805
  %v1930 = vmul.f32 %v1304, %v1807
  %v1931 = vmul.f32 %v1307, %v1809
  %v1932 = vmul.f32 %v1312, %v1811
  %v1933 = vmul.f32 %v1315, %v1813
  %v1934 = vmul.f32 %v1320, %v1815
  %v1935 = vmul.f32 %v1323, %v1817
  %v1936 = vmul.f32 %v1328, %v1819
  %v1937 = vmul.f32 %v1331, %v1821
  %v1938 = vmul.f32 %v1336, %v1823
  %v1939 = vmul.f32 %v1339, %v1825
  %v1940 = vmul.f32 %v1344, %v1827
  %v1941 = vmul.f32 %v1347, %v1829
  %v1942 = vmul.f32 %v1352, %v1831
  %v1943 = vmul.f32 %v1355, %v1833
  %v1944 = vmul.f32 %v1360, %v1835
  %v1945 = vmul.f32 %v1363, %v1837
  %v1946 = vmul.f32 %v1368, %v1839
  %v1947 = vmul.f32 %v1371, %v1841
  %v1948 = vmul.f32 %v1376, %v1843
  %v1949 = vmul.f32 %v1379, %v1845
  %v1950 = vmul.f32 %v1384, %v1847
  %v1951 = vmul.f32 %v1387, %v1849
  %v1952 = vmul.f32 %v1392, %v1851
  %v1953 = vmul.f32 %v1395, %v1853
  %v1954 = vmul.f32 %v1400, %v1855
  %v1955 = vmul.f32 %v1403, %v1857
  %v1956 = vmul.f32 %v1408, %v1859
  %v1957 = vmul.f32 %v1411, %v1861
  %v1958 = vmul.f32 %v1416, %v1863
  %v1959 = vmul.f32 %v1419, %v1865
  %v1960 = vmul.f32 %v1424, %v1867
  %v1961 = vmul.f32 %v1427, %v1869
  %v1962 = vmul.f32 %v1432, %v1871
  %v1963 = vmul.f32 %v1435, %v1873
  %v1964 = vmul.f32 %v1440, %v1875
  %v1965 = vmul.f32 %v1443, %v1877
  %v1966 = vmul.f32 %v1448, %v1879
  %v1967 = vmul.f32 %v1451, %v1881
  %v1968 = vmul.f32 %v1456, %v1883
  %v1969 = vmul.f32 %v1459, %v1885
  %v1970 = vmul.f32 %v1464, %v1887
  %v1971 = vmul.f32 %v1467, %v1889
  %v1972 = vmul.f32 %v1472, %v1891
  %v1973 = vmul.f32 %v1475, %v1893
  %v1974 = vmul.f32 %v1480, %v1895
  %v1975 = vmul.f32 %v1483, %v1897
  %v1976 = vmul.f32 %v1488, %v1899
  %v1977 = vmul.f32 %v1491, %v1901
  %v1978 = vmul.f32 %v1496, %v1903
  %v1979 = vmul.f32 %v1499, %v1905
  %v1980 = vmul.f32 %v1504, %v1907
  %v1981 = vmul.f32 %v1507, %v1909
  %v1982 = vmul.f32 %v1512, %v1911
  %v1983 = vmul.f32 %v1515, %v1913
  %v1984 = vmul.f32 %v1520, %v1915
  %v1985 = vmul.f32 %v1523, %v1917
  %v1986 = vmul.f32 %v1528, %v1919
  %v1987 = vmul.f32 %v1531, %v1921
  %v1988 = vmul.f32 %v1536, %v1923
  %v1989 = vmul.f32 %v1539, %v1925
  %1990 = vst [vmem:[%s5] sm:$0xff] %v1926
  %1991 = vst [vmem:[%s5 + $0x8] sm:$0xff] %v1927
  %1992 = vst [vmem:[%s5 + $0x10] sm:$0xff] %v1928
  %1993 = vst [vmem:[%s5 + $0x18] sm:$0xff] %v1929
  %1994 = vst [vmem:[%s5 + $0x20] sm:$0xff] %v1930
  %1995 = vst [vmem:[%s5 + $0x28] sm:$0xff] %v1931
  %1996 = vst [vmem:[%s5 + $0x30] sm:$0xff] %v1932
  %1997 = vst [vmem:[%s5 + $0x38] sm:$0xff] %v1933
  %1998 = vst [vmem:[%s5 + $0x40] sm:$0xff] %v1934
  %1999 = vst [vmem:[%s5 + $0x48] sm:$0xff] %v1935
  %2000 = vst [vmem:[%s5 + $0x50] sm:$0xff] %v1936
  %2001 = vst [vmem:[%s5 + $0x58] sm:$0xff] %v1937
  %2002 = vst [vmem:[%s5 + $0x60] sm:$0xff] %v1938
  %2003 = vst [vmem:[%s5 + $0x68] sm:$0xff] %v1939
  %2004 = vst [vmem:[%s5 + $0x70] sm:$0xff] %v1940
  %2005 = vst [vmem:[%s5 + $0x78] sm:$0xff] %v1941
  %2006 = vst [vmem:[%s5 + $0x80] sm:$0xff] %v1942
  %2007 = vst [vmem:[%s5 + $0x88] sm:$0xff] %v1943
  %2008 = vst [vmem:[%s5 + $0x90] sm:$0xff] %v1944
  %2009 = vst [vmem:[%s5 + $0x98] sm:$0xff] %v1945
  %2010 = vst [vmem:[%s5 + $0xa0] sm:$0xff] %v1946
  %2011 = vst [vmem:[%s5 + $0xa8] sm:$0xff] %v1947
  %2012 = vst [vmem:[%s5 + $0xb0] sm:$0xff] %v1948
  %2013 = vst [vmem:[%s5 + $0xb8] sm:$0xff] %v1949
  %2014 = vst [vmem:[%s5 + $0xc0] sm:$0xff] %v1950
  %2015 = vst [vmem:[%s5 + $0xc8] sm:$0xff] %v1951
  %2016 = vst [vmem:[%s5 + $0xd0] sm:$0xff] %v1952
  %2017 = vst [vmem:[%s5 + $0xd8] sm:$0xff] %v1953
  %2018 = vst [vmem:[%s5 + $0xe0] sm:$0xff] %v1954
  %2019 = vst [vmem:[%s5 + $0xe8] sm:$0xff] %v1955
  %2020 = vst [vmem:[%s5 + $0xf0] sm:$0xff] %v1956
  %2021 = vst [vmem:[%s5 + $0xf8] sm:$0xff] %v1957
  %2022 = vst [vmem:[%s5 + $0x100] sm:$0xff] %v1958
  %2023 = vst [vmem:[%s5 + $0x108] sm:$0xff] %v1959
  %2024 = vst [vmem:[%s5 + $0x110] sm:$0xff] %v1960
  %2025 = vst [vmem:[%s5 + $0x118] sm:$0xff] %v1961
  %2026 = vst [vmem:[%s5 + $0x120] sm:$0xff] %v1962
  %2027 = vst [vmem:[%s5 + $0x128] sm:$0xff] %v1963
  %2028 = vst [vmem:[%s5 + $0x130] sm:$0xff] %v1964
  %2029 = vst [vmem:[%s5 + $0x138] sm:$0xff] %v1965
  %2030 = vst [vmem:[%s5 + $0x140] sm:$0xff] %v1966
  %2031 = vst [vmem:[%s5 + $0x148] sm:$0xff] %v1967
  %2032 = vst [vmem:[%s5 + $0x150] sm:$0xff] %v1968
  %2033 = vst [vmem:[%s5 + $0x158] sm:$0xff] %v1969
  %2034 = vst [vmem:[%s5 + $0x160] sm:$0xff] %v1970
  %2035 = vst [vmem:[%s5 + $0x168] sm:$0xff] %v1971
  %2036 = vst [vmem:[%s5 + $0x170] sm:$0xff] %v1972
  %2037 = vst [vmem:[%s5 + $0x178] sm:$0xff] %v1973
  %2038 = vst [vmem:[%s5 + $0x180] sm:$0xff] %v1974
  %2039 = vst [vmem:[%s5 + $0x188] sm:$0xff] %v1975
  %2040 = vst [vmem:[%s5 + $0x190] sm:$0xff] %v1976
  %2041 = vst [vmem:[%s5 + $0x198] sm:$0xff] %v1977
  %2042 = vst [vmem:[%s5 + $0x1a0] sm:$0xff] %v1978
  %2043 = vst [vmem:[%s5 + $0x1a8] sm:$0xff] %v1979
  %2044 = vst [vmem:[%s5 + $0x1b0] sm:$0xff] %v1980
  %2045 = vst [vmem:[%s5 + $0x1b8] sm:$0xff] %v1981
  %2046 = vst [vmem:[%s5 + $0x1c0] sm:$0xff] %v1982
  %2047 = vst [vmem:[%s5 + $0x1c8] sm:$0xff] %v1983
  %2048 = vst [vmem:[%s5 + $0x1d0] sm:$0xff] %v1984
  %2049 = vst [vmem:[%s5 + $0x1d8] sm:$0xff] %v1985
  %2050 = vst [vmem:[%s5 + $0x1e0] sm:$0xff] %v1986
  %2051 = vst [vmem:[%s5 + $0x1e8] sm:$0xff] %v1987
  %2052 = vst [vmem:[%s5 + $0x1f0] sm:$0xff] %v1988
  %2053 = vst [vmem:[%s5 + $0x1f8] sm:$0xff] %v1989
  // Predicated region
  $region22: #{cnn_model_forward.3} parent=0 // pred_check
    _
  $region23: #{cnn_model_forward.3} parent=0 // pred_check_branch
    %2055 = sbr.rel (0) target = $region25
  $region24: #{cnn_model_forward.3} parent=0 // pred_region
    _
  $region25: #{cnn_model_forward.3} parent=0 // pred_fallthru
    _
  // Predicated region
  $region26: #{cnn_model_forward.3} parent=0 // pred_check
    _
  $region27: #{cnn_model_forward.3} parent=0 // pred_check_branch
    %2057 = sbr.rel (0) target = $region29
  $region28: #{cnn_model_forward.3} parent=0 // pred_region
    _
  $region29: #{cnn_model_forward.3} parent=0 // pred_fallthru
    _

// kernel: cnn_model_forward.5
$region0: #{cnn_model_forward.5}
  #allocation0 [shape = 'u32[]', space=smem, size = 0x4, offset = 0x4, fixed_abs, tag = 'smem constant byte address 0x4 - core index']
  #allocation1 [shape = 'u32[144,128]{1,0:T(1,128)}', space=vmem, size = 0x12000, scoped, tag = 'internal scratch']
  #allocation2 [shape = 'f32[1,1792]{1,0:T(1,128)}', space=vmem, size = 0x1c00, scoped, tag = 'scratch operand']
  %s0 = inlined_call_operand.vmem [shape: f32[2,256,128], index: 0, kind: input, shape index: {}]
  %s1 = inlined_call_operand.vmem [shape: f32[2,1,128], index: 1, kind: input, shape index: {}]
  %s2 = inlined_call_operand.vmem [shape: bf16[128,1792], index: 2, kind: input, shape index: {}]
  %s3 = inlined_call_operand.vmem [shape: f32[1,1792], index: 3, kind: input, shape index: {}]
  %s4 = inlined_call_operand.vmem [shape: bf16[1792,128], index: 4, kind: input, shape index: {}]
  %s5 = inlined_call_operand.vmem [shape: f32[1,128], index: 5, kind: input, shape index: {}]
  %s6 = inlined_call_operand.hbm [shape: f32[2,1,128], index: 6, kind: output, shape index: {}]
  %s7 = sld [smem:[#allocation0]]
  $region65: #{cnn_model_forward.5} parent=0
    _
  %s9 = ssub.s32 1, %s7
  %s10 = scalar_select 0, %s9, %s7
  $region1: #{cnn_model_forward.5} parent=0
    #allocation3 [shape = 'u8[1024]{0}', space=vmem, size = 0x400, scoped, tag = 'output window, operand 0']
    #allocation4 [shape = 's32[2]{0}', space=sflag, size = 0x8, scoped, tag = 'scoped memory for cnn_model_forward.5']
    %11 = vsyncpa [#allocation4], 0
    %s12 = scalar_lea.sflag [#allocation4], 1
    %13 = vsyncpa %s12, 0
    loop: start=0, step=1, limit=4
    $region2: #{cnn_model_forward.5} parent=1 // loop_pre_header
      _
    $region3: #{cnn_model_forward.5} parent=1 // loop_header
      %s15 = sphi 0, %s19
      %p16 = scmp.ge.s32.totalorder %s15, 4
      %s22 = sphi 0, %s34
      %s23 = sphi 0, %s30
      %s24 = sphi 0, %s22
      %s25 = sphi 0, %s23
      %s26 = sphi 0, %s24
      %s27 = sphi 0, %s25
      %s39 = sphi 0, %s41
      %s42 = sphi 0, %s39
      %s43 = sphi 0, %s42
      %s59 = sphi 0, %s43
      %s65 = sphi 0, %s67
      %s68 = sphi 0, %s65
      %s69 = sphi 0, %s68
      %s85 = sphi 0, %s69
      %s89 = sphi 0, %s89
      %s91 = sphi 0, %s89
      %s92 = sphi 0, %s91
      %s106 = sphi 0, %s92
      %s110 = sphi 0, %s110
      %s112 = sphi 0, %s110
      %s113 = sphi 0, %s112
      %s127 = sphi 0, %s113
      %s131 = sphi 0, %s131
      %s133 = sphi 0, %s131
      %s134 = sphi 0, %s133
      %s148 = sphi 0, %s134
      %s152 = sphi 0, %s152
      %s154 = sphi 0, %s152
      %s155 = sphi 0, %s154
      %s169 = sphi 0, %s155
      %s175 = sphi 0, %s177
      %s178 = sphi 0, %s175
      %s179 = sphi 0, %s178
      %s195 = sphi 0, %s179
    $region4: #{cnn_model_forward.5} parent=1 // loop_header_branch
      %18 = sbr.rel (%p16) target = $region8
    $region5: #{cnn_model_forward.5} parent=1 // loop_body
      %s20 = ssub.s32 %s15, 1
      %s21 = ssub.s32 %s15, 2
      %s28 = sadd.s32 1, %s23
      %p29 = scmp.ge.s32.totalorder %s28, 1
      %s30 = scalar_select %p29, 0, %s28
      %s31 = sadd.s32 1, %s22
      %s32 = scalar_select %p29, %s31, %s22
      %p33 = scmp.ge.s32.totalorder %s32, 2
      %s34 = scalar_select %p33, 0, %s32
      %s35 = ssub.s32 %s22, %s34
      %s36 = ssub.s32 %s23, %s30
      %s37 = sor.u32 %s35, %s36
      %p38 = scmp.eq.s32.totalorder %s37, 0
      %s40 = sadd.s32 %s39, 1
      %s41 = scalar_select %p38, %s39, %s40
      %p44 = pneg %p38
      %p45 = scmp.eq.s32.totalorder %s15, 1
      %p46 = por %p44, %p45
      %p47 = scmp.ne.s32.totalorder %s39, %s42
      %p48 = scmp.eq.s32.totalorder %s15, 0
      %p49 = por %p47, %p48
      %p50 = scmp.ne.s32.totalorder %s39, %s42
      %p51 = scmp.eq.s32.totalorder %s20, 1
      %p52 = por %p50, %p51
      %p53 = scmp.ne.s32.totalorder %s42, %s43
      %p54 = scmp.eq.s32.totalorder %s20, 0
      %p55 = por %p53, %p54
      %p56 = scmp.ne.s32.totalorder %s42, %s43
      %p57 = scmp.eq.s32.totalorder %s21, 1
      %p58 = por %p56, %p57
      %p60 = scmp.ne.s32.totalorder %s43, %s59
      %p61 = scmp.eq.s32.totalorder %s21, 0
      %p62 = por %p60, %p61
      %s63 = ssub.s32 %s22, %s34
      %p64 = scmp.eq.s32.totalorder %s63, 0
      %s66 = sadd.s32 %s65, 1
      %s67 = scalar_select %p64, %s65, %s66
      %p70 = pneg %p64
      %p71 = scmp.eq.s32.totalorder %s15, 1
      %p72 = por %p70, %p71
      %p73 = scmp.ne.s32.totalorder %s65, %s68
      %p74 = scmp.eq.s32.totalorder %s15, 0
      %p75 = por %p73, %p74
      %p76 = scmp.ne.s32.totalorder %s65, %s68
      %p77 = scmp.eq.s32.totalorder %s20, 1
      %p78 = por %p76, %p77
      %p79 = scmp.ne.s32.totalorder %s68, %s69
      %p80 = scmp.eq.s32.totalorder %s20, 0
      %p81 = por %p79, %p80
      %p82 = scmp.ne.s32.totalorder %s68, %s69
      %p83 = scmp.eq.s32.totalorder %s21, 1
      %p84 = por %p82, %p83
      %p86 = scmp.ne.s32.totalorder %s69, %s85
      %p87 = scmp.eq.s32.totalorder %s21, 0
      %p88 = por %p86, %p87
      %s90 = sadd.s32 %s89, 1
      %p93 = scmp.eq.s32.totalorder %s15, 1
      %p94 = scmp.ne.s32.totalorder %s89, %s91
      %p95 = scmp.eq.s32.totalorder %s15, 0
      %p96 = por %p94, %p95
      %p97 = scmp.ne.s32.totalorder %s89, %s91
      %p98 = scmp.eq.s32.totalorder %s20, 1
      %p99 = por %p97, %p98
      %p100 = scmp.ne.s32.totalorder %s91, %s92
      %p101 = scmp.eq.s32.totalorder %s20, 0
      %p102 = por %p100, %p101
      %p103 = scmp.ne.s32.totalorder %s91, %s92
      %p104 = scmp.eq.s32.totalorder %s21, 1
      %p105 = por %p103, %p104
      %p107 = scmp.ne.s32.totalorder %s92, %s106
      %p108 = scmp.eq.s32.totalorder %s21, 0
      %p109 = por %p107, %p108
      %s111 = sadd.s32 %s110, 1
      %p114 = scmp.eq.s32.totalorder %s15, 1
      %p115 = scmp.ne.s32.totalorder %s110, %s112
      %p116 = scmp.eq.s32.totalorder %s15, 0
      %p117 = por %p115, %p116
      %p118 = scmp.ne.s32.totalorder %s110, %s112
      %p119 = scmp.eq.s32.totalorder %s20, 1
      %p120 = por %p118, %p119
      %p121 = scmp.ne.s32.totalorder %s112, %s113
      %p122 = scmp.eq.s32.totalorder %s20, 0
      %p123 = por %p121, %p122
      %p124 = scmp.ne.s32.totalorder %s112, %s113
      %p125 = scmp.eq.s32.totalorder %s21, 1
      %p126 = por %p124, %p125
      %p128 = scmp.ne.s32.totalorder %s113, %s127
      %p129 = scmp.eq.s32.totalorder %s21, 0
      %p130 = por %p128, %p129
      %s132 = sadd.s32 %s131, 1
      %p135 = scmp.eq.s32.totalorder %s15, 1
      %p136 = scmp.ne.s32.totalorder %s131, %s133
      %p137 = scmp.eq.s32.totalorder %s15, 0
      %p138 = por %p136, %p137
      %p139 = scmp.ne.s32.totalorder %s131, %s133
      %p140 = scmp.eq.s32.totalorder %s20, 1
      %p141 = por %p139, %p140
      %p142 = scmp.ne.s32.totalorder %s133, %s134
      %p143 = scmp.eq.s32.totalorder %s20, 0
      %p144 = por %p142, %p143
      %p145 = scmp.ne.s32.totalorder %s133, %s134
      %p146 = scmp.eq.s32.totalorder %s21, 1
      %p147 = por %p145, %p146
      %p149 = scmp.ne.s32.totalorder %s134, %s148
      %p150 = scmp.eq.s32.totalorder %s21, 0
      %p151 = por %p149, %p150
      %s153 = sadd.s32 %s152, 1
      %p156 = scmp.eq.s32.totalorder %s15, 1
      %p157 = scmp.ne.s32.totalorder %s152, %s154
      %p158 = scmp.eq.s32.totalorder %s15, 0
      %p159 = por %p157, %p158
      %p160 = scmp.ne.s32.totalorder %s152, %s154
      %p161 = scmp.eq.s32.totalorder %s20, 1
      %p162 = por %p160, %p161
      %p163 = scmp.ne.s32.totalorder %s154, %s155
      %p164 = scmp.eq.s32.totalorder %s20, 0
      %p165 = por %p163, %p164
      %p166 = scmp.ne.s32.totalorder %s154, %s155
      %p167 = scmp.eq.s32.totalorder %s21, 1
      %p168 = por %p166, %p167
      %p170 = scmp.ne.s32.totalorder %s155, %s169
      %p171 = scmp.eq.s32.totalorder %s21, 0
      %p172 = por %p170, %p171
      %s173 = ssub.s32 %s22, %s34
      %p174 = scmp.eq.s32.totalorder %s173, 0
      %s176 = sadd.s32 %s175, 1
      %s177 = scalar_select %p174, %s175, %s176
      %p180 = pneg %p174
      %p181 = scmp.eq.s32.totalorder %s15, 1
      %p182 = por %p180, %p181
      %p183 = scmp.ne.s32.totalorder %s175, %s178
      %p184 = scmp.eq.s32.totalorder %s15, 0
      %p185 = por %p183, %p184
      %p186 = scmp.ne.s32.totalorder %s175, %s178
      %p187 = scmp.eq.s32.totalorder %s20, 1
      %p188 = por %p186, %p187
      %p189 = scmp.ne.s32.totalorder %s178, %s179
      %p190 = scmp.eq.s32.totalorder %s20, 0
      %p191 = por %p189, %p190
      %p192 = scmp.ne.s32.totalorder %s178, %s179
      %p193 = scmp.eq.s32.totalorder %s21, 1
      %p194 = por %p192, %p193
      %p196 = scmp.ne.s32.totalorder %s179, %s195
      %p197 = scmp.eq.s32.totalorder %s21, 0
      %p198 = por %p196, %p197
      %p199 = scmp.le.s32.totalorder 1, %s15
      %p200 = scmp.lt.s32.totalorder %s15, 3
      %p201 = pnand %p199, %p200
      %p202 = pneg %p201
      // Predicated region
      $region9: #{cnn_model_forward.5} parent=5 // pred_check
        _
      $region10: #{cnn_model_forward.5} parent=5 // pred_check_branch
        %204 = sbr.rel (%p201) target = $region12
      $region11: #{cnn_model_forward.5} parent=5 // pred_region
        %s205 = ssub.s32 %s15, 1
        // Predicated region
        $region13: #{cnn_model_forward.5} parent=11 // pred_check
          %p206 = pneg %p102
        $region14: #{cnn_model_forward.5} parent=11 // pred_check_branch
          %208 = sbr.rel (%p206) target = $region16
        $region15: #{cnn_model_forward.5} parent=11 // pred_region
          _
        $region16: #{cnn_model_forward.5} parent=11 // pred_fallthru
          _
        // Predicated region
        $region17: #{cnn_model_forward.5} parent=11 // pred_check
          %p209 = pneg %p123
        $region18: #{cnn_model_forward.5} parent=11 // pred_check_branch
          %211 = sbr.rel (%p209) target = $region20
        $region19: #{cnn_model_forward.5} parent=11 // pred_region
          _
        $region20: #{cnn_model_forward.5} parent=11 // pred_fallthru
          _
        // Predicated region
        $region21: #{cnn_model_forward.5} parent=11 // pred_check
          %p212 = pneg %p144
        $region22: #{cnn_model_forward.5} parent=11 // pred_check_branch
          %214 = sbr.rel (%p212) target = $region24
        $region23: #{cnn_model_forward.5} parent=11 // pred_region
          _
        $region24: #{cnn_model_forward.5} parent=11 // pred_fallthru
          _
        // Predicated region
        $region25: #{cnn_model_forward.5} parent=11 // pred_check
          %p215 = pneg %p165
        $region26: #{cnn_model_forward.5} parent=11 // pred_check_branch
          %217 = sbr.rel (%p215) target = $region28
        $region27: #{cnn_model_forward.5} parent=11 // pred_region
          _
        $region28: #{cnn_model_forward.5} parent=11 // pred_fallthru
          _
      $region12: #{cnn_model_forward.5} parent=5 // pred_fallthru
        _
      %p218 = scmp.lt.s32.totalorder %s15, 2
      // Predicated region
      $region29: #{cnn_model_forward.5} parent=5 // pred_check
        %p219 = pneg %p218
      $region30: #{cnn_model_forward.5} parent=5 // pred_check_branch
        %221 = sbr.rel (%p219) target = $region32
      $region31: #{cnn_model_forward.5} parent=5 // pred_region
        // Predicated region
        $region33: #{cnn_model_forward.5} parent=31 // pred_check
          %p222 = pneg %p49
        $region34: #{cnn_model_forward.5} parent=31 // pred_check_branch
          %224 = sbr.rel (%p222) target = $region36
        $region35: #{cnn_model_forward.5} parent=31 // pred_region
          %s225 = smul.u32 32, %s23
          %p226 = scmp.lt.s32.totalorder %s22, 1
          %s227 = scalar_select %p226, %s22, 1
          %p228 = scmp.lt.s32.totalorder %s225, 31
          %s229 = scalar_select %p228, %s225, 31
          %s230 = smul.addr %s227, 32
          %s231 = sadd.s32 %s229, %s230
          %s232 = smul.addr %s231, 8
          %s233 = scalar_lea.vmem %s0, %s232
          %s234 = smul.u32 32, %s23
        $region36: #{cnn_model_forward.5} parent=31 // pred_fallthru
          _
        // Predicated region
        $region37: #{cnn_model_forward.5} parent=31 // pred_check
          %p235 = pneg %p75
        $region38: #{cnn_model_forward.5} parent=31 // pred_check_branch
          %237 = sbr.rel (%p235) target = $region40
        $region39: #{cnn_model_forward.5} parent=31 // pred_region
          %p238 = scmp.lt.s32.totalorder %s22, 1
          %s239 = scalar_select %p238, %s22, 1
          %s240 = scalar_lea.vmem %s1, %s239
        $region40: #{cnn_model_forward.5} parent=31 // pred_fallthru
          _
      $region32: #{cnn_model_forward.5} parent=5 // pred_fallthru
        _
      %p241 = scmp.le.s32.totalorder 1, %s15
      %p242 = scmp.lt.s32.totalorder %s15, 3
      %p243 = pnand %p241, %p242
      %p244 = pneg %p243
      // Predicated region
      $region41: #{cnn_model_forward.5} parent=5 // pred_check
        _
      $region42: #{cnn_model_forward.5} parent=5 // pred_check_branch
        %246 = sbr.rel (%p243) target = $region44
      $region43: #{cnn_model_forward.5} parent=5 // pred_region
        %s247 = ssub.s32 %s15, 1
        %s248 = smul.u32 32, %s25
        %p249 = scmp.lt.s32.totalorder %s24, 1
        %s250 = scalar_select %p249, %s24, 1
        %p251 = scmp.lt.s32.totalorder %s248, 31
        %s252 = scalar_select %p251, %s248, 31
        %s253 = smul.addr %s250, 32
        %s254 = sadd.s32 %s252, %s253
        %s255 = smul.addr %s254, 8
        %s256 = scalar_lea.vmem %s0, %s255
        %p257 = pneg %p55
        %p258 = pneg %p52
        %p259 = scmp.lt.s32.totalorder %s24, 1
        %s260 = scalar_select %p259, %s24, 1
        %s261 = scalar_lea.vmem %s1, %s260
        %p262 = pneg %p81
        %p263 = pneg %p78
        %p264 = pneg %p102
        %p265 = pneg %p99
        %p266 = pneg %p123
        %p267 = pneg %p120
        %p268 = pneg %p144
        %p269 = pneg %p141
        %p270 = pneg %p165
        %p271 = pneg %p162
        %p272 = pneg %p191
        %p273 = pneg %p188
        %s274 = sand.u32 %s178, 1
        %s275 = scalar_lea.sflag [#allocation4], %s274
        %s276 = sand.u32 %s178, 1
        %s277 = scalar_lea.vmem [#allocation3], %s276
        %s278 = smul.u32 32, %s25
        %p279 = scmp.lt.s32.totalorder %s24, 1
        %s280 = scalar_select %p279, %s24, 1
        %p281 = scmp.lt.s32.totalorder %s278, 31
        %s282 = scalar_select %p281, %s278, 31
        %s283 = smul.addr %s280, 32
        %s284 = sadd.s32 %s282, %s283
        %s285 = smul.addr %s284, 8
        %s286 = scalar_lea.vmem %s0, %s285
        %s287 = smul.u32 32, %s25
        %p288 = scmp.lt.s32.totalorder %s24, 1
        %s289 = scalar_select %p288, %s24, 1
        %s290 = scalar_lea.vmem %s1, %s289
        %p292 = scmp.eq.s32.totalorder %s25, 0
        // Predicated region
        $region45: #{cnn_model_forward.5} parent=43 // pred_check
          %p293 = pneg %p292
        $region46: #{cnn_model_forward.5} parent=43 // pred_check_branch
          %295 = sbr.rel (%p293) target = $region48
        $region47: #{cnn_model_forward.5} parent=43 // pred_region
          %296 = vst [vmem:[#allocation2] sm:$0xff] 0.0
          %v297 = vlaneseq
          %vm298 = vcmp.ge.s32.totalorder %v297, 0
          %vm299 = vcmp.lt.s32.totalorder %v297, 768
          %vm300 = vmand %vm298, %vm299
          %301 = vst.msk [vmem:[#allocation2 + $0x8] sm:$0x3f] %vm300, 0.0
        $region48: #{cnn_model_forward.5} parent=43 // pred_fallthru
          _
        %v302 = vld [vmem:[%s286] sm:$0xff]
        %v303 = vld [vmem:[%s286 + $0x8] sm:$0xff]
        %v304 = vld [vmem:[%s286 + $0x10] sm:$0xff]
        %v305 = vld [vmem:[%s286 + $0x18] sm:$0xff]
        %v306 = vld [vmem:[%s286 + $0x20] sm:$0xff]
        %v307 = vld [vmem:[%s286 + $0x28] sm:$0xff]
        %v308 = vld [vmem:[%s286 + $0x30] sm:$0xff]
        %v309 = vld [vmem:[%s286 + $0x38] sm:$0xff]
        %v310 = vld [vmem:[%s286 + $0x40] sm:$0xff]
        %v311 = vld [vmem:[%s286 + $0x48] sm:$0xff]
        %v312 = vld [vmem:[%s286 + $0x50] sm:$0xff]
        %v313 = vld [vmem:[%s286 + $0x58] sm:$0xff]
        %v314 = vld [vmem:[%s286 + $0x60] sm:$0xff]
        %v315 = vld [vmem:[%s286 + $0x68] sm:$0xff]
        %v316 = vld [vmem:[%s286 + $0x70] sm:$0xff]
        %v317 = vld [vmem:[%s286 + $0x78] sm:$0xff]
        %v318 = vld [vmem:[%s286 + $0x80] sm:$0xff]
        %v319 = vld [vmem:[%s286 + $0x88] sm:$0xff]
        %v320 = vld [vmem:[%s286 + $0x90] sm:$0xff]
        %v321 = vld [vmem:[%s286 + $0x98] sm:$0xff]
        %v322 = vld [vmem:[%s286 + $0xa0] sm:$0xff]
        %v323 = vld [vmem:[%s286 + $0xa8] sm:$0xff]
        %v324 = vld [vmem:[%s286 + $0xb0] sm:$0xff]
        %v325 = vld [vmem:[%s286 + $0xb8] sm:$0xff]
        %v326 = vld [vmem:[%s286 + $0xc0] sm:$0xff]
        %v327 = vld [vmem:[%s286 + $0xc8] sm:$0xff]
        %v328 = vld [vmem:[%s286 + $0xd0] sm:$0xff]
        %v329 = vld [vmem:[%s286 + $0xd8] sm:$0xff]
        %v330 = vld [vmem:[%s286 + $0xe0] sm:$0xff]
        %v331 = vld [vmem:[%s286 + $0xe8] sm:$0xff]
        %v332 = vld [vmem:[%s286 + $0xf0] sm:$0xff]
        %v333 = vld [vmem:[%s286 + $0xf8] sm:$0xff]
        %v334 = vld [vmem:[%s290] sm:$0x1]
        %v336 = vlaneseq
        %v337 = vshrl.u32 %v336, 7
        %v338 = vsub.s32 0, %v337
        %v339 = vrot.slane %v334, %v338
        %v341 = vmul.f32 %v302, %v339
        %v342 = vmul.f32 %v303, %v339
        %v343 = vmul.f32 %v304, %v339
        %v344 = vmul.f32 %v305, %v339
        %v345 = vmul.f32 %v306, %v339
        %v346 = vmul.f32 %v307, %v339
        %v347 = vmul.f32 %v308, %v339
        %v348 = vmul.f32 %v309, %v339
        %v349 = vmul.f32 %v310, %v339
        %v350 = vmul.f32 %v311, %v339
        %v351 = vmul.f32 %v312, %v339
        %v352 = vmul.f32 %v313, %v339
        %v353 = vmul.f32 %v314, %v339
        %v354 = vmul.f32 %v315, %v339
        %v355 = vmul.f32 %v316, %v339
        %v356 = vmul.f32 %v317, %v339
        %v357 = vmul.f32 %v318, %v339
        %v358 = vmul.f32 %v319, %v339
        %v359 = vmul.f32 %v320, %v339
        %v360 = vmul.f32 %v321, %v339
        %v361 = vmul.f32 %v322, %v339
        %v362 = vmul.f32 %v323, %v339
        %v363 = vmul.f32 %v324, %v339
        %v364 = vmul.f32 %v325, %v339
        %v365 = vmul.f32 %v326, %v339
        %v366 = vmul.f32 %v327, %v339
        %v367 = vmul.f32 %v328, %v339
        %v368 = vmul.f32 %v329, %v339
        %v369 = vmul.f32 %v330, %v339
        %v370 = vmul.f32 %v331, %v339
        %v371 = vmul.f32 %v332, %v339
        %v372 = vmul.f32 %v333, %v339
        %v373 = vpack.c.bf16 %v342, %v341
        %v374 = vpack.c.bf16 %v344, %v343
        %v375 = vpack.c.bf16 %v346, %v345
        %v376 = vpack.c.bf16 %v348, %v347
        %v377 = vpack.c.bf16 %v350, %v349
        %v378 = vpack.c.bf16 %v352, %v351
        %v379 = vpack.c.bf16 %v354, %v353
        %v380 = vpack.c.bf16 %v356, %v355
        %v381 = vpack.c.bf16 %v358, %v357
        %v382 = vpack.c.bf16 %v360, %v359
        %v383 = vpack.c.bf16 %v362, %v361
        %v384 = vpack.c.bf16 %v364, %v363
        %v385 = vpack.c.bf16 %v366, %v365
        %v386 = vpack.c.bf16 %v368, %v367
        %v387 = vpack.c.bf16 %v370, %v369
        %v388 = vpack.c.bf16 %v372, %v371
        %v389 = vld [vmem:[%s2] sm:$0xff]
        %v390 = vld [vmem:[%s2 + $0x8] sm:$0xff]
        %v391 = vld [vmem:[%s2 + $0x10] sm:$0xff]
        %v392 = vld [vmem:[%s2 + $0x18] sm:$0xff]
        %v393 = vld [vmem:[%s2 + $0x20] sm:$0xff]
        %v394 = vld [vmem:[%s2 + $0x28] sm:$0xff]
        %v395 = vld [vmem:[%s2 + $0x30] sm:$0xff]
        %v396 = vld [vmem:[%s2 + $0x38] sm:$0xff]
        %v397 = vld [vmem:[%s2 + $0x40] sm:$0xff]
        %v398 = vld [vmem:[%s2 + $0x48] sm:$0xff]
        %v399 = vld [vmem:[%s2 + $0x50] sm:$0xff]
        %v400 = vld [vmem:[%s2 + $0x58] sm:$0xff]
        %v401 = vld [vmem:[%s2 + $0x60] sm:$0xff]
        %v402 = vld [vmem:[%s2 + $0x68] sm:$0xff]
        %v403 = vld [vmem:[%s2 + $0x70] sm:$0xff]
        %v404 = vld [vmem:[%s2 + $0x78] sm:$0xff]
        %v405 = vld [vmem:[%s2 + $0x80] sm:$0xff]
        %v406 = vld [vmem:[%s2 + $0x88] sm:$0xff]
        %v407 = vld [vmem:[%s2 + $0x90] sm:$0xff]
        %v408 = vld [vmem:[%s2 + $0x98] sm:$0xff]
        %v409 = vld [vmem:[%s2 + $0xa0] sm:$0xff]
        %v410 = vld [vmem:[%s2 + $0xa8] sm:$0xff]
        %v411 = vld [vmem:[%s2 + $0xb0] sm:$0xff]
        %v412 = vld [vmem:[%s2 + $0xb8] sm:$0xff]
        %v413 = vld [vmem:[%s2 + $0xc0] sm:$0xff]
        %v414 = vld [vmem:[%s2 + $0xc8] sm:$0xff]
        %v415 = vld [vmem:[%s2 + $0xd0] sm:$0xff]
        %v416 = vld [vmem:[%s2 + $0xd8] sm:$0xff]
        %v417 = vld [vmem:[%s2 + $0xe0] sm:$0xff]
        %v418 = vld [vmem:[%s2 + $0xe8] sm:$0xff]
        %v419 = vld [vmem:[%s2 + $0xf0] sm:$0xff]
        %v420 = vld [vmem:[%s2 + $0xf8] sm:$0xff]
        %v421 = vld [vmem:[%s2 + $0x100] sm:$0xff]
        %v422 = vld [vmem:[%s2 + $0x108] sm:$0xff]
        %v423 = vld [vmem:[%s2 + $0x110] sm:$0xff]
        %v424 = vld [vmem:[%s2 + $0x118] sm:$0xff]
        %v425 = vld [vmem:[%s2 + $0x120] sm:$0xff]
        %v426 = vld [vmem:[%s2 + $0x128] sm:$0xff]
        %v427 = vld [vmem:[%s2 + $0x130] sm:$0xff]
        %v428 = vld [vmem:[%s2 + $0x138] sm:$0xff]
        %v429 = vld [vmem:[%s2 + $0x140] sm:$0xff]
        %v430 = vld [vmem:[%s2 + $0x148] sm:$0xff]
        %v431 = vld [vmem:[%s2 + $0x150] sm:$0xff]
        %v432 = vld [vmem:[%s2 + $0x158] sm:$0xff]
        %v433 = vld [vmem:[%s2 + $0x160] sm:$0xff]
        %v434 = vld [vmem:[%s2 + $0x168] sm:$0xff]
        %v435 = vld [vmem:[%s2 + $0x170] sm:$0xff]
        %v436 = vld [vmem:[%s2 + $0x178] sm:$0xff]
        %v437 = vld [vmem:[%s2 + $0x180] sm:$0xff]
        %v438 = vld [vmem:[%s2 + $0x188] sm:$0xff]
        %v439 = vld [vmem:[%s2 + $0x190] sm:$0xff]
        %v440 = vld [vmem:[%s2 + $0x198] sm:$0xff]
        %v441 = vld [vmem:[%s2 + $0x1a0] sm:$0xff]
        %v442 = vld [vmem:[%s2 + $0x1a8] sm:$0xff]
        %v443 = vld [vmem:[%s2 + $0x1b0] sm:$0xff]
        %v444 = vld [vmem:[%s2 + $0x1b8] sm:$0xff]
        %v445 = vld [vmem:[%s2 + $0x1c0] sm:$0xff]
        %v446 = vld [vmem:[%s2 + $0x1c8] sm:$0xff]
        %v447 = vld [vmem:[%s2 + $0x1d0] sm:$0xff]
        %v448 = vld [vmem:[%s2 + $0x1d8] sm:$0xff]
        %v449 = vld [vmem:[%s2 + $0x1e0] sm:$0xff]
        %v450 = vld [vmem:[%s2 + $0x1e8] sm:$0xff]
        %v451 = vld [vmem:[%s2 + $0x1f0] sm:$0xff]
        %v452 = vld [vmem:[%s2 + $0x1f8] sm:$0xff]
        %v453 = vld [vmem:[%s2 + $0x200] sm:$0xff]
        %v454 = vld [vmem:[%s2 + $0x208] sm:$0xff]
        %v455 = vld [vmem:[%s2 + $0x210] sm:$0xff]
        %v456 = vld [vmem:[%s2 + $0x218] sm:$0xff]
        %v457 = vld [vmem:[%s2 + $0x220] sm:$0xff]
        %v458 = vld [vmem:[%s2 + $0x228] sm:$0xff]
        %v459 = vld [vmem:[%s2 + $0x230] sm:$0xff]
        %v460 = vld [vmem:[%s2 + $0x238] sm:$0xff]
        %v461 = vld [vmem:[%s2 + $0x240] sm:$0xff]
        %v462 = vld [vmem:[%s2 + $0x248] sm:$0xff]
        %v463 = vld [vmem:[%s2 + $0x250] sm:$0xff]
        %v464 = vld [vmem:[%s2 + $0x258] sm:$0xff]
        %v465 = vld [vmem:[%s2 + $0x260] sm:$0xff]
        %v466 = vld [vmem:[%s2 + $0x268] sm:$0xff]
        %v467 = vld [vmem:[%s2 + $0x270] sm:$0xff]
        %v468 = vld [vmem:[%s2 + $0x278] sm:$0xff]
        %v469 = vld [vmem:[%s2 + $0x280] sm:$0xff]
        %v470 = vld [vmem:[%s2 + $0x288] sm:$0xff]
        %v471 = vld [vmem:[%s2 + $0x290] sm:$0xff]
        %v472 = vld [vmem:[%s2 + $0x298] sm:$0xff]
        %v473 = vld [vmem:[%s2 + $0x2a0] sm:$0xff]
        %v474 = vld [vmem:[%s2 + $0x2a8] sm:$0xff]
        %v475 = vld [vmem:[%s2 + $0x2b0] sm:$0xff]
        %v476 = vld [vmem:[%s2 + $0x2b8] sm:$0xff]
        %v477 = vld [vmem:[%s2 + $0x2c0] sm:$0xff]
        %v478 = vld [vmem:[%s2 + $0x2c8] sm:$0xff]
        %v479 = vld [vmem:[%s2 + $0x2d0] sm:$0xff]
        %v480 = vld [vmem:[%s2 + $0x2d8] sm:$0xff]
        %v481 = vld [vmem:[%s2 + $0x2e0] sm:$0xff]
        %v482 = vld [vmem:[%s2 + $0x2e8] sm:$0xff]
        %v483 = vld [vmem:[%s2 + $0x2f0] sm:$0xff]
        %v484 = vld [vmem:[%s2 + $0x2f8] sm:$0xff]
        %v485 = vld [vmem:[%s2 + $0x300] sm:$0xff]
        %v486 = vld [vmem:[%s2 + $0x308] sm:$0xff]
        %v487 = vld [vmem:[%s2 + $0x310] sm:$0xff]
        %v488 = vld [vmem:[%s2 + $0x318] sm:$0xff]
        %v489 = vld [vmem:[%s2 + $0x320] sm:$0xff]
        %v490 = vld [vmem:[%s2 + $0x328] sm:$0xff]
        %v491 = vld [vmem:[%s2 + $0x330] sm:$0xff]
        %v492 = vld [vmem:[%s2 + $0x338] sm:$0xff]
        %v493 = vld [vmem:[%s2 + $0x340] sm:$0xff]
        %v494 = vld [vmem:[%s2 + $0x348] sm:$0xff]
        %v495 = vld [vmem:[%s2 + $0x350] sm:$0xff]
        %v496 = vld [vmem:[%s2 + $0x358] sm:$0xff]
        %v497 = vld [vmem:[%s2 + $0x360] sm:$0xff]
        %v498 = vld [vmem:[%s2 + $0x368] sm:$0xff]
        %v499 = vld [vmem:[%s2 + $0x370] sm:$0xff]
        %v500 = vld [vmem:[%s2 + $0x378] sm:$0xff]
        %v501 = vld [vmem:[%s3] sm:$0xff]
        %v502 = vld [vmem:[%s3 + $0x8] sm:$0x3f]
        %v505 = vlaneseq
        %v506 = vshrl.u32 %v505, 7
        %v507 = vsub.s32 0, %v506
        %v508 = vrot.slane %v501, %v507
        %v509 = vlaneseq
        %v510 = vshrl.u32 %v509, 7
        %v511 = vsub.s32 1, %v510
        %v512 = vrot.slane %v501, %v511
        %v513 = vlaneseq
        %v514 = vshrl.u32 %v513, 7
        %v515 = vsub.s32 2, %v514
        %v516 = vrot.slane %v501, %v515
        %v517 = vlaneseq
        %v518 = vshrl.u32 %v517, 7
        %v519 = vsub.s32 3, %v518
        %v520 = vrot.slane %v501, %v519
        %v521 = vlaneseq
        %v522 = vshrl.u32 %v521, 7
        %v523 = vsub.s32 4, %v522
        %v524 = vrot.slane %v501, %v523
        %v525 = vlaneseq
        %v526 = vshrl.u32 %v525, 7
        %v527 = vsub.s32 5, %v526
        %v528 = vrot.slane %v501, %v527
        %v529 = vlaneseq
        %v530 = vshrl.u32 %v529, 7
        %v531 = vsub.s32 6, %v530
        %v532 = vrot.slane %v501, %v531
        %v533 = vlaneseq
        %v534 = vshrl.u32 %v533, 7
        %v535 = vsub.s32 7, %v534
        %v536 = vrot.slane %v501, %v535
        %v537 = vlaneseq
        %v538 = vshrl.u32 %v537, 7
        %v539 = vsub.s32 0, %v538
        %v540 = vrot.slane %v502, %v539
        %v541 = vlaneseq
        %v542 = vshrl.u32 %v541, 7
        %v543 = vsub.s32 1, %v542
        %v544 = vrot.slane %v502, %v543
        %v545 = vlaneseq
        %v546 = vshrl.u32 %v545, 7
        %v547 = vsub.s32 2, %v546
        %v548 = vrot.slane %v502, %v547
        %v549 = vlaneseq
        %v550 = vshrl.u32 %v549, 7
        %v551 = vsub.s32 3, %v550
        %v552 = vrot.slane %v502, %v551
        %v553 = vlaneseq
        %v554 = vshrl.u32 %v553, 7
        %v555 = vsub.s32 4, %v554
        %v556 = vrot.slane %v502, %v555
        %v557 = vlaneseq
        %v558 = vshrl.u32 %v557, 7
        %v559 = vsub.s32 5, %v558
        %v560 = vrot.slane %v502, %v559
        %v687 = vunpack.c.l.b16 %v389
        %v688 = vunpack.c.h.b16 %v389
        %v689 = vunpack.c.l.b16 %v390
        %v690 = vunpack.c.h.b16 %v390
        %v691 = vunpack.c.l.b16 %v391
        %v692 = vunpack.c.h.b16 %v391
        %v693 = vunpack.c.l.b16 %v392
        %v694 = vunpack.c.h.b16 %v392
        %v695 = vunpack.c.l.b16 %v393
        %v696 = vunpack.c.h.b16 %v393
        %v697 = vunpack.c.l.b16 %v394
        %v698 = vunpack.c.h.b16 %v394
        %v699 = vunpack.c.l.b16 %v395
        %v700 = vunpack.c.h.b16 %v395
        %v701 = vunpack.c.l.b16 %v396
        %v702 = vunpack.c.h.b16 %v396
        %v703 = vunpack.c.l.b16 %v397
        %v704 = vunpack.c.h.b16 %v397
        %v705 = vunpack.c.l.b16 %v398
        %v706 = vunpack.c.h.b16 %v398
        %v707 = vunpack.c.l.b16 %v399
        %v708 = vunpack.c.h.b16 %v399
        %v709 = vunpack.c.l.b16 %v400
        %v710 = vunpack.c.h.b16 %v400
        %v711 = vunpack.c.l.b16 %v401
        %v712 = vunpack.c.h.b16 %v401
        %v713 = vunpack.c.l.b16 %v402
        %v714 = vunpack.c.h.b16 %v402
        %v715 = vunpack.c.l.b16 %v403
        %v716 = vunpack.c.h.b16 %v403
        %v717 = vunpack.c.l.b16 %v404
        %v718 = vunpack.c.h.b16 %v404
        %v719 = vunpack.c.l.b16 %v405
        %v720 = vunpack.c.h.b16 %v405
        %v721 = vunpack.c.l.b16 %v406
        %v722 = vunpack.c.h.b16 %v406
        %v723 = vunpack.c.l.b16 %v407
        %v724 = vunpack.c.h.b16 %v407
        %v725 = vunpack.c.l.b16 %v408
        %v726 = vunpack.c.h.b16 %v408
        %v727 = vunpack.c.l.b16 %v409
        %v728 = vunpack.c.h.b16 %v409
        %v729 = vunpack.c.l.b16 %v410
        %v730 = vunpack.c.h.b16 %v410
        %v731 = vunpack.c.l.b16 %v411
        %v732 = vunpack.c.h.b16 %v411
        %v733 = vunpack.c.l.b16 %v412
        %v734 = vunpack.c.h.b16 %v412
        %v735 = vunpack.c.l.b16 %v413
        %v736 = vunpack.c.h.b16 %v413
        %v737 = vunpack.c.l.b16 %v414
        %v738 = vunpack.c.h.b16 %v414
        %v739 = vunpack.c.l.b16 %v415
        %v740 = vunpack.c.h.b16 %v415
        %v741 = vunpack.c.l.b16 %v416
        %v742 = vunpack.c.h.b16 %v416
        %v743 = vunpack.c.l.b16 %v417
        %v744 = vunpack.c.h.b16 %v417
        %v745 = vunpack.c.l.b16 %v418
        %v746 = vunpack.c.h.b16 %v418
        %v747 = vunpack.c.l.b16 %v419
        %v748 = vunpack.c.h.b16 %v419
        %v749 = vunpack.c.l.b16 %v420
        %v750 = vunpack.c.h.b16 %v420
        %v751 = vunpack.c.l.b16 %v421
        %v752 = vunpack.c.h.b16 %v421
        %v753 = vunpack.c.l.b16 %v422
        %v754 = vunpack.c.h.b16 %v422
        %v755 = vunpack.c.l.b16 %v423
        %v756 = vunpack.c.h.b16 %v423
        %v757 = vunpack.c.l.b16 %v424
        %v758 = vunpack.c.h.b16 %v424
        %v759 = vunpack.c.l.b16 %v425
        %v760 = vunpack.c.h.b16 %v425
        %v761 = vunpack.c.l.b16 %v426
        %v762 = vunpack.c.h.b16 %v426
        %v763 = vunpack.c.l.b16 %v427
        %v764 = vunpack.c.h.b16 %v427
        %v765 = vunpack.c.l.b16 %v428
        %v766 = vunpack.c.h.b16 %v428
        %v767 = vunpack.c.l.b16 %v429
        %v768 = vunpack.c.h.b16 %v429
        %v769 = vunpack.c.l.b16 %v430
        %v770 = vunpack.c.h.b16 %v430
        %v771 = vunpack.c.l.b16 %v431
        %v772 = vunpack.c.h.b16 %v431
        %v773 = vunpack.c.l.b16 %v432
        %v774 = vunpack.c.h.b16 %v432
        %v775 = vunpack.c.l.b16 %v433
        %v776 = vunpack.c.h.b16 %v433
        %v777 = vunpack.c.l.b16 %v434
        %v778 = vunpack.c.h.b16 %v434
        %v779 = vunpack.c.l.b16 %v435
        %v780 = vunpack.c.h.b16 %v435
        %v781 = vunpack.c.l.b16 %v436
        %v782 = vunpack.c.h.b16 %v436
        %v783 = vunpack.c.l.b16 %v437
        %v784 = vunpack.c.h.b16 %v437
        %v785 = vunpack.c.l.b16 %v438
        %v786 = vunpack.c.h.b16 %v438
        %v787 = vunpack.c.l.b16 %v439
        %v788 = vunpack.c.h.b16 %v439
        %v789 = vunpack.c.l.b16 %v440
        %v790 = vunpack.c.h.b16 %v440
        %v791 = vunpack.c.l.b16 %v441
        %v792 = vunpack.c.h.b16 %v441
        %v793 = vunpack.c.l.b16 %v442
        %v794 = vunpack.c.h.b16 %v442
        %v795 = vunpack.c.l.b16 %v443
        %v796 = vunpack.c.h.b16 %v443
        %v797 = vunpack.c.l.b16 %v444
        %v798 = vunpack.c.h.b16 %v444
        %v799 = vunpack.c.l.b16 %v445
        %v800 = vunpack.c.h.b16 %v445
        %v801 = vunpack.c.l.b16 %v446
        %v802 = vunpack.c.h.b16 %v446
        %v803 = vunpack.c.l.b16 %v447
        %v804 = vunpack.c.h.b16 %v447
        %v805 = vunpack.c.l.b16 %v448
        %v806 = vunpack.c.h.b16 %v448
        %v807 = vunpack.c.l.b16 %v449
        %v808 = vunpack.c.h.b16 %v449
        %v809 = vunpack.c.l.b16 %v450
        %v810 = vunpack.c.h.b16 %v450
        %v811 = vunpack.c.l.b16 %v451
        %v812 = vunpack.c.h.b16 %v451
        %v813 = vunpack.c.l.b16 %v452
        %v814 = vunpack.c.h.b16 %v452
        %v815 = vunpack.c.l.b16 %v453
        %v816 = vunpack.c.h.b16 %v453
        %v817 = vunpack.c.l.b16 %v454
        %v818 = vunpack.c.h.b16 %v454
        %v819 = vunpack.c.l.b16 %v455
        %v820 = vunpack.c.h.b16 %v455
        %v821 = vunpack.c.l.b16 %v456
        %v822 = vunpack.c.h.b16 %v456
        %v823 = vunpack.c.l.b16 %v457
        %v824 = vunpack.c.h.b16 %v457
        %v825 = vunpack.c.l.b16 %v458
        %v826 = vunpack.c.h.b16 %v458
        %v827 = vunpack.c.l.b16 %v459
        %v828 = vunpack.c.h.b16 %v459
        %v829 = vunpack.c.l.b16 %v460
        %v830 = vunpack.c.h.b16 %v460
        %v831 = vunpack.c.l.b16 %v461
        %v832 = vunpack.c.h.b16 %v461
        %v833 = vunpack.c.l.b16 %v462
        %v834 = vunpack.c.h.b16 %v462
        %v835 = vunpack.c.l.b16 %v463
        %v836 = vunpack.c.h.b16 %v463
        %v837 = vunpack.c.l.b16 %v464
        %v838 = vunpack.c.h.b16 %v464
        %v839 = vunpack.c.l.b16 %v465
        %v840 = vunpack.c.h.b16 %v465
        %v841 = vunpack.c.l.b16 %v466
        %v842 = vunpack.c.h.b16 %v466
        %v843 = vunpack.c.l.b16 %v467
        %v844 = vunpack.c.h.b16 %v467
        %v845 = vunpack.c.l.b16 %v468
        %v846 = vunpack.c.h.b16 %v468
        %v847 = vunpack.c.l.b16 %v469
        %v848 = vunpack.c.h.b16 %v469
        %v849 = vunpack.c.l.b16 %v470
        %v850 = vunpack.c.h.b16 %v470
        %v851 = vunpack.c.l.b16 %v471
        %v852 = vunpack.c.h.b16 %v471
        %v853 = vunpack.c.l.b16 %v472
        %v854 = vunpack.c.h.b16 %v472
        %v855 = vunpack.c.l.b16 %v473
        %v856 = vunpack.c.h.b16 %v473
        %v857 = vunpack.c.l.b16 %v474
        %v858 = vunpack.c.h.b16 %v474
        %v859 = vunpack.c.l.b16 %v475
        %v860 = vunpack.c.h.b16 %v475
        %v861 = vunpack.c.l.b16 %v476
        %v862 = vunpack.c.h.b16 %v476
        %v863 = vunpack.c.l.b16 %v477
        %v864 = vunpack.c.h.b16 %v477
        %v865 = vunpack.c.l.b16 %v478
        %v866 = vunpack.c.h.b16 %v478
        %v867 = vunpack.c.l.b16 %v479
        %v868 = vunpack.c.h.b16 %v479
        %v869 = vunpack.c.l.b16 %v480
        %v870 = vunpack.c.h.b16 %v480
        %v871 = vunpack.c.l.b16 %v481
        %v872 = vunpack.c.h.b16 %v481
        %v873 = vunpack.c.l.b16 %v482
        %v874 = vunpack.c.h.b16 %v482
        %v875 = vunpack.c.l.b16 %v483
        %v876 = vunpack.c.h.b16 %v483
        %v877 = vunpack.c.l.b16 %v484
        %v878 = vunpack.c.h.b16 %v484
        %v879 = vunpack.c.l.b16 %v485
        %v880 = vunpack.c.h.b16 %v485
        %v881 = vunpack.c.l.b16 %v486
        %v882 = vunpack.c.h.b16 %v486
        %v883 = vunpack.c.l.b16 %v487
        %v884 = vunpack.c.h.b16 %v487
        %v885 = vunpack.c.l.b16 %v488
        %v886 = vunpack.c.h.b16 %v488
        %v887 = vunpack.c.l.b16 %v489
        %v888 = vunpack.c.h.b16 %v489
        %v889 = vunpack.c.l.b16 %v490
        %v890 = vunpack.c.h.b16 %v490
        %v891 = vunpack.c.l.b16 %v491
        %v892 = vunpack.c.h.b16 %v491
        %v893 = vunpack.c.l.b16 %v492
        %v894 = vunpack.c.h.b16 %v492
        %v895 = vunpack.c.l.b16 %v493
        %v896 = vunpack.c.h.b16 %v493
        %v897 = vunpack.c.l.b16 %v494
        %v898 = vunpack.c.h.b16 %v494
        %v899 = vunpack.c.l.b16 %v495
        %v900 = vunpack.c.h.b16 %v495
        %v901 = vunpack.c.l.b16 %v496
        %v902 = vunpack.c.h.b16 %v496
        %v903 = vunpack.c.l.b16 %v497
        %v904 = vunpack.c.h.b16 %v497
        %v905 = vunpack.c.l.b16 %v498
        %v906 = vunpack.c.h.b16 %v498
        %v907 = vunpack.c.l.b16 %v499
        %v908 = vunpack.c.h.b16 %v499
        %v909 = vunpack.c.l.b16 %v500
        %v910 = vunpack.c.h.b16 %v500
        %v911 = vpack.c.b16 %v701, %v687
        %v912 = vpack.c.b16 %v702, %v688
        %v913 = vpack.c.b16 %v703, %v689
        %v914 = vpack.c.b16 %v704, %v690
        %v915 = vpack.c.b16 %v705, %v691
        %v916 = vpack.c.b16 %v706, %v692
        %v917 = vpack.c.b16 %v707, %v693
        %v918 = vpack.c.b16 %v708, %v694
        %v919 = vpack.c.b16 %v709, %v695
        %v920 = vpack.c.b16 %v710, %v696
        %v921 = vpack.c.b16 %v711, %v697
        %v922 = vpack.c.b16 %v712, %v698
        %v923 = vpack.c.b16 %v713, %v699
        %v924 = vpack.c.b16 %v714, %v700
        %v925 = vpack.c.b16 %v729, %v715
        %v926 = vpack.c.b16 %v730, %v716
        %v927 = vpack.c.b16 %v731, %v717
        %v928 = vpack.c.b16 %v732, %v718
        %v929 = vpack.c.b16 %v733, %v719
        %v930 = vpack.c.b16 %v734, %v720
        %v931 = vpack.c.b16 %v735, %v721
        %v932 = vpack.c.b16 %v736, %v722
        %v933 = vpack.c.b16 %v737, %v723
        %v934 = vpack.c.b16 %v738, %v724
        %v935 = vpack.c.b16 %v739, %v725
        %v936 = vpack.c.b16 %v740, %v726
        %v937 = vpack.c.b16 %v741, %v727
        %v938 = vpack.c.b16 %v742, %v728
        %v939 = vpack.c.b16 %v757, %v743
        %v940 = vpack.c.b16 %v758, %v744
        %v941 = vpack.c.b16 %v759, %v745
        %v942 = vpack.c.b16 %v760, %v746
        %v943 = vpack.c.b16 %v761, %v747
        %v944 = vpack.c.b16 %v762, %v748
        %v945 = vpack.c.b16 %v763, %v749
        %v946 = vpack.c.b16 %v764, %v750
        %v947 = vpack.c.b16 %v765, %v751
        %v948 = vpack.c.b16 %v766, %v752
        %v949 = vpack.c.b16 %v767, %v753
        %v950 = vpack.c.b16 %v768, %v754
        %v951 = vpack.c.b16 %v769, %v755
        %v952 = vpack.c.b16 %v770, %v756
        %v953 = vpack.c.b16 %v785, %v771
        %v954 = vpack.c.b16 %v786, %v772
        %v955 = vpack.c.b16 %v787, %v773
        %v956 = vpack.c.b16 %v788, %v774
        %v957 = vpack.c.b16 %v789, %v775
        %v958 = vpack.c.b16 %v790, %v776
        %v959 = vpack.c.b16 %v791, %v777
        %v960 = vpack.c.b16 %v792, %v778
        %v961 = vpack.c.b16 %v793, %v779
        %v962 = vpack.c.b16 %v794, %v780
        %v963 = vpack.c.b16 %v795, %v781
        %v964 = vpack.c.b16 %v796, %v782
        %v965 = vpack.c.b16 %v797, %v783
        %v966 = vpack.c.b16 %v798, %v784
        %v967 = vpack.c.b16 %v813, %v799
        %v968 = vpack.c.b16 %v814, %v800
        %v969 = vpack.c.b16 %v815, %v801
        %v970 = vpack.c.b16 %v816, %v802
        %v971 = vpack.c.b16 %v817, %v803
        %v972 = vpack.c.b16 %v818, %v804
        %v973 = vpack.c.b16 %v819, %v805
        %v974 = vpack.c.b16 %v820, %v806
        %v975 = vpack.c.b16 %v821, %v807
        %v976 = vpack.c.b16 %v822, %v808
        %v977 = vpack.c.b16 %v823, %v809
        %v978 = vpack.c.b16 %v824, %v810
        %v979 = vpack.c.b16 %v825, %v811
        %v980 = vpack.c.b16 %v826, %v812
        %v981 = vpack.c.b16 %v841, %v827
        %v982 = vpack.c.b16 %v842, %v828
        %v983 = vpack.c.b16 %v843, %v829
        %v984 = vpack.c.b16 %v844, %v830
        %v985 = vpack.c.b16 %v845, %v831
        %v986 = vpack.c.b16 %v846, %v832
        %v987 = vpack.c.b16 %v847, %v833
        %v988 = vpack.c.b16 %v848, %v834
        %v989 = vpack.c.b16 %v849, %v835
        %v990 = vpack.c.b16 %v850, %v836
        %v991 = vpack.c.b16 %v851, %v837
        %v992 = vpack.c.b16 %v852, %v838
        %v993 = vpack.c.b16 %v853, %v839
        %v994 = vpack.c.b16 %v854, %v840
        %v995 = vpack.c.b16 %v869, %v855
        %v996 = vpack.c.b16 %v870, %v856
        %v997 = vpack.c.b16 %v871, %v857
        %v998 = vpack.c.b16 %v872, %v858
        %v999 = vpack.c.b16 %v873, %v859
        %v1000 = vpack.c.b16 %v874, %v860
        %v1001 = vpack.c.b16 %v875, %v861
        %v1002 = vpack.c.b16 %v876, %v862
        %v1003 = vpack.c.b16 %v877, %v863
        %v1004 = vpack.c.b16 %v878, %v864
        %v1005 = vpack.c.b16 %v879, %v865
        %v1006 = vpack.c.b16 %v880, %v866
        %v1007 = vpack.c.b16 %v881, %v867
        %v1008 = vpack.c.b16 %v882, %v868
        %v1009 = vpack.c.b16 %v897, %v883
        %v1010 = vpack.c.b16 %v898, %v884
        %v1011 = vpack.c.b16 %v899, %v885
        %v1012 = vpack.c.b16 %v900, %v886
        %v1013 = vpack.c.b16 %v901, %v887
        %v1014 = vpack.c.b16 %v902, %v888
        %v1015 = vpack.c.b16 %v903, %v889
        %v1016 = vpack.c.b16 %v904, %v890
        %v1017 = vpack.c.b16 %v905, %v891
        %v1018 = vpack.c.b16 %v906, %v892
        %v1019 = vpack.c.b16 %v907, %v893
        %v1020 = vpack.c.b16 %v908, %v894
        %v1021 = vpack.c.b16 %v909, %v895
        %v1022 = vpack.c.b16 %v910, %v896
        %1135 = vmatprep.subr.bf16.mxu0 %v912
        %1136 = vmatpush1.bf16.msra.mxu0 %v911
        %1137 = vmatprep.subr.bf16.mxu0 %v926
        %1138 = vmatpush1.bf16.msra.mxu0 %v925
        %1139 = vmatprep.subr.bf16.mxu0 %v940
        %1140 = vmatpush1.bf16.msra.mxu0 %v939
        %1141 = vmatprep.subr.bf16.mxu0 %v954
        %1142 = vmatpush1.bf16.msra.mxu0 %v953
        %1143 = vmatprep.subr.bf16.mxu0 %v968
        %1144 = vmatpush1.bf16.msra.mxu0 %v967
        %1145 = vmatprep.subr.bf16.mxu0 %v982
        %1146 = vmatpush1.bf16.msra.mxu0 %v981
        %1147 = vmatprep.subr.bf16.mxu0 %v996
        %1148 = vmatpush1.bf16.msra.mxu0 %v995
        %1149 = vmatprep.subr.bf16.mxu0 %v1010
        %1150 = vmatpush1.bf16.msra.mxu0 %v1009
        %1151 = vmatprep.subr.bf16.mxu0 0
        %1152 = vmatpush1.bf16.msra.mxu0 0
        %1153 = vmatprep.subr.bf16.mxu0 0
        %1154 = vmatpush1.bf16.msra.mxu0 0
        %1155 = vmatprep.subr.bf16.mxu0 0
        %1156 = vmatpush1.bf16.msra.mxu0 0
        %1157 = vmatprep.subr.bf16.mxu0 0
        %1158 = vmatpush1.bf16.msra.mxu0 0
        %1159 = vmatprep.subr.bf16.mxu0 0
        %1160 = vmatpush1.bf16.msra.mxu0 0
        %1161 = vmatprep.subr.bf16.mxu0 0
        %1162 = vmatpush1.bf16.msra.mxu0 0
        %1163 = vmatprep.subr.bf16.mxu0 0
        %1164 = vmatpush1.bf16.msra.mxu0 0
        %1165 = vmatprep.subr.bf16.mxu0 0
        %1166 = vmatpush1.bf16.msra.mxu0 0
        %1167 = vmatprep.mubr.bf16.mxu0 0
        %1168 = vmatmul.mubr.bf16.gmra.mrb[0].mxu0 %v373
        %v1169 = vpop.f32.mrb[0].mxu0
        %v1170 = vadd.f32 %v508, %v1169
        %v1171 = vpop.f32.mrb[0].mxu0
        %v1172 = vadd.f32 %v512, %v1171
        %v1173 = vpop.f32.mrb[0].mxu0
        %v1174 = vadd.f32 %v508, %v1173
        %v1175 = vpop.f32.mrb[0].mxu0
        %v1176 = vadd.f32 %v512, %v1175
        %1177 = vmatprep.mubr.bf16.mxu0 0
        %1178 = vmatmul.mubr.bf16.gmra.mrb[0].mxu0 %v374
        %v1179 = vpop.f32.mrb[0].mxu0
        %v1180 = vadd.f32 %v508, %v1179
        %v1181 = vpop.f32.mrb[0].mxu0
        %v1182 = vadd.f32 %v512, %v1181
        %v1183 = vpop.f32.mrb[0].mxu0
        %v1184 = vadd.f32 %v508, %v1183
        %v1185 = vpop.f32.mrb[0].mxu0
        %v1186 = vadd.f32 %v512, %v1185
        %1187 = vmatprep.mubr.bf16.mxu0 0
        %1188 = vmatmul.mubr.bf16.gmra.mrb[0].mxu0 %v375
        %v1189 = vpop.f32.mrb[0].mxu0
        %v1190 = vadd.f32 %v508, %v1189
        %v1191 = vpop.f32.mrb[0].mxu0
        %v1192 = vadd.f32 %v512, %v1191
        %v1193 = vpop.f32.mrb[0].mxu0
        %v1194 = vadd.f32 %v508, %v1193
        %v1195 = vpop.f32.mrb[0].mxu0
        %v1196 = vadd.f32 %v512, %v1195
        %1197 = vmatprep.mubr.bf16.mxu0 0
        %1198 = vmatmul.mubr.bf16.gmra.mrb[0].mxu0 %v376
        %v1199 = vpop.f32.mrb[0].mxu0
        %v1200 = vadd.f32 %v508, %v1199
        %v1201 = vpop.f32.mrb[0].mxu0
        %v1202 = vadd.f32 %v512, %v1201
        %v1203 = vpop.f32.mrb[0].mxu0
        %v1204 = vadd.f32 %v508, %v1203
        %v1205 = vpop.f32.mrb[0].mxu0
        %v1206 = vadd.f32 %v512, %v1205
        %1207 = vmatprep.mubr.bf16.mxu0 0
        %1208 = vmatmul.mubr.bf16.gmra.mrb[0].mxu0 %v377
        %v1209 = vpop.f32.mrb[0].mxu0
        %v1210 = vadd.f32 %v508, %v1209
        %v1211 = vpop.f32.mrb[0].mxu0
        %v1212 = vadd.f32 %v512, %v1211
        %v1213 = vpop.f32.mrb[0].mxu0
        %v1214 = vadd.f32 %v508, %v1213
        %v1215 = vpop.f32.mrb[0].mxu0
        %v1216 = vadd.f32 %v512, %v1215
        %1217 = vmatprep.mubr.bf16.mxu0 0
        %1218 = vmatmul.mubr.bf16.gmra.mrb[0].mxu0 %v378
        %v1219 = vpop.f32.mrb[0].mxu0
        %v1220 = vadd.f32 %v508, %v1219
        %v1221 = vpop.f32.mrb[0].mxu0
        %v1222 = vadd.f32 %v512, %v1221
        %v1223 = vpop.f32.mrb[0].mxu0
        %v1224 = vadd.f32 %v508, %v1223
        %v1225 = vpop.f32.mrb[0].mxu0
        %v1226 = vadd.f32 %v512, %v1225
        %1227 = vmatprep.mubr.bf16.mxu0 0
        %1228 = vmatmul.mubr.bf16.gmra.mrb[0].mxu0 %v379
        %v1229 = vpop.f32.mrb[0].mxu0
        %v1230 = vadd.f32 %v508, %v1229
        %v1231 = vpop.f32.mrb[0].mxu0
        %v1232 = vadd.f32 %v512, %v1231
        %v1233 = vpop.f32.mrb[0].mxu0
        %v1234 = vadd.f32 %v508, %v1233
        %v1235 = vpop.f32.mrb[0].mxu0
        %v1236 = vadd.f32 %v512, %v1235
        %1237 = vmatprep.mubr.bf16.mxu0 0
        %1238 = vmatmul.mubr.bf16.gmra.mrb[0].mxu0 %v380
        %v1239 = vpop.f32.mrb[0].mxu0
        %v1240 = vadd.f32 %v508, %v1239
        %v1241 = vpop.f32.mrb[0].mxu0
        %v1242 = vadd.f32 %v512, %v1241
        %v1243 = vpop.f32.mrb[0].mxu0
        %v1244 = vadd.f32 %v508, %v1243
        %v1245 = vpop.f32.mrb[0].mxu0
        %v1246 = vadd.f32 %v512, %v1245
        %1247 = vmatprep.mubr.bf16.mxu0 0
        %1248 = vmatmul.mubr.bf16.gmra.mrb[0].mxu0 %v381
        %v1249 = vpop.f32.mrb[0].mxu0
        %v1250 = vadd.f32 %v508, %v1249
        %v1251 = vpop.f32.mrb[0].mxu0
        %v1252 = vadd.f32 %v512, %v1251
        %v1253 = vpop.f32.mrb[0].mxu0
        %v1254 = vadd.f32 %v508, %v1253
        %v1255 = vpop.f32.mrb[0].mxu0
        %v1256 = vadd.f32 %v512, %v1255
        %1257 = vmatprep.mubr.bf16.mxu0 0
        %1258 = vmatmul.mubr.bf16.gmra.mrb[0].mxu0 %v382
        %v1259 = vpop.f32.mrb[0].mxu0
        %v1260 = vadd.f32 %v508, %v1259
        %v1261 = vpop.f32.mrb[0].mxu0
        %v1262 = vadd.f32 %v512, %v1261
        %v1263 = vpop.f32.mrb[0].mxu0
        %v1264 = vadd.f32 %v508, %v1263
        %v1265 = vpop.f32.mrb[0].mxu0
        %v1266 = vadd.f32 %v512, %v1265
        %1267 = vmatprep.mubr.bf16.mxu0 0
        %1268 = vmatmul.mubr.bf16.gmra.mrb[0].mxu0 %v383
        %v1269 = vpop.f32.mrb[0].mxu0
        %v1270 = vadd.f32 %v508, %v1269
        %v1271 = vpop.f32.mrb[0].mxu0
        %v1272 = vadd.f32 %v512, %v1271
        %v1273 = vpop.f32.mrb[0].mxu0
        %v1274 = vadd.f32 %v508, %v1273
        %v1275 = vpop.f32.mrb[0].mxu0
        %v1276 = vadd.f32 %v512, %v1275
        %1277 = vmatprep.mubr.bf16.mxu0 0
        %1278 = vmatmul.mubr.bf16.gmra.mrb[0].mxu0 %v384
        %v1279 = vpop.f32.mrb[0].mxu0
        %v1280 = vadd.f32 %v508, %v1279
        %v1281 = vpop.f32.mrb[0].mxu0
        %v1282 = vadd.f32 %v512, %v1281
        %v1283 = vpop.f32.mrb[0].mxu0
        %v1284 = vadd.f32 %v508, %v1283
        %v1285 = vpop.f32.mrb[0].mxu0
        %v1286 = vadd.f32 %v512, %v1285
        %1287 = vmatprep.mubr.bf16.mxu0 0
        %1288 = vmatmul.mubr.bf16.gmra.mrb[0].mxu0 %v385
        %v1289 = vpop.f32.mrb[0].mxu0
        %v1290 = vadd.f32 %v508, %v1289
        %v1291 = vpop.f32.mrb[0].mxu0
        %v1292 = vadd.f32 %v512, %v1291
        %v1293 = vpop.f32.mrb[0].mxu0
        %v1294 = vadd.f32 %v508, %v1293
        %v1295 = vpop.f32.mrb[0].mxu0
        %v1296 = vadd.f32 %v512, %v1295
        %1297 = vmatprep.mubr.bf16.mxu0 0
        %1298 = vmatmul.mubr.bf16.gmra.mrb[0].mxu0 %v386
        %v1299 = vpop.f32.mrb[0].mxu0
        %v1300 = vadd.f32 %v508, %v1299
        %v1301 = vpop.f32.mrb[0].mxu0
        %v1302 = vadd.f32 %v512, %v1301
        %v1303 = vpop.f32.mrb[0].mxu0
        %v1304 = vadd.f32 %v508, %v1303
        %v1305 = vpop.f32.mrb[0].mxu0
        %v1306 = vadd.f32 %v512, %v1305
        %1307 = vmatprep.mubr.bf16.mxu0 0
        %1308 = vmatmul.mubr.bf16.gmra.mrb[0].mxu0 %v387
        %v1309 = vpop.f32.mrb[0].mxu0
        %v1310 = vadd.f32 %v508, %v1309
        %v1311 = vpop.f32.mrb[0].mxu0
        %v1312 = vadd.f32 %v512, %v1311
        %v1313 = vpop.f32.mrb[0].mxu0
        %v1314 = vadd.f32 %v508, %v1313
        %v1315 = vpop.f32.mrb[0].mxu0
        %v1316 = vadd.f32 %v512, %v1315
        %1317 = vmatprep.mubr.bf16.mxu0 0
        %1318 = vmatmul.mubr.bf16.gmra.mrb[0].mxu0 %v388
        %v1319 = vpop.f32.mrb[0].mxu0
        %v1320 = vadd.f32 %v508, %v1319
        %v1321 = vpop.f32.mrb[0].mxu0
        %v1322 = vadd.f32 %v512, %v1321
        %v1323 = vpop.f32.mrb[0].mxu0
        %v1324 = vadd.f32 %v508, %v1323
        %v1325 = vpop.f32.mrb[0].mxu0
        %v1326 = vadd.f32 %v512, %v1325
        %1327 = vdwg.mxu0
        %1328 = vmatprep.subr.bf16.mxu0 %v914
        %1329 = vmatpush1.bf16.msra.mxu0 %v913
        %1330 = vmatprep.subr.bf16.mxu0 %v928
        %1331 = vmatpush1.bf16.msra.mxu0 %v927
        %1332 = vmatprep.subr.bf16.mxu0 %v942
        %1333 = vmatpush1.bf16.msra.mxu0 %v941
        %1334 = vmatprep.subr.bf16.mxu0 %v956
        %1335 = vmatpush1.bf16.msra.mxu0 %v955
        %1336 = vmatprep.subr.bf16.mxu0 %v970
        %1337 = vmatpush1.bf16.msra.mxu0 %v969
        %1338 = vmatprep.subr.bf16.mxu0 %v984
        %1339 = vmatpush1.bf16.msra.mxu0 %v983
        %1340 = vmatprep.subr.bf16.mxu0 %v998
        %1341 = vmatpush1.bf16.msra.mxu0 %v997
        %1342 = vmatprep.subr.bf16.mxu0 %v1012
        %1343 = vmatpush1.bf16.msra.mxu0 %v1011
        %1344 = vmatprep.subr.bf16.mxu0 0
        %1345 = vmatpush1.bf16.msra.mxu0 0
        %1346 = vmatprep.subr.bf16.mxu0 0
        %1347 = vmatpush1.bf16.msra.mxu0 0
        %1348 = vmatprep.subr.bf16.mxu0 0
        %1349 = vmatpush1.bf16.msra.mxu0 0
        %1350 = vmatprep.subr.bf16.mxu0 0
        %1351 = vmatpush1.bf16.msra.mxu0 0
        %1352 = vmatprep.subr.bf16.mxu0 0
        %1353 = vmatpush1.bf16.msra.mxu0 0
        %1354 = vmatprep.subr.bf16.mxu0 0
        %1355 = vmatpush1.bf16.msra.mxu0 0
        %1356 = vmatprep.subr.bf16.mxu0 0
        %1357 = vmatpush1.bf16.msra.mxu0 0
        %1358 = vmatprep.subr.bf16.mxu0 0
        %1359 = vmatpush1.bf16.msra.mxu0 0
        %1360 = vmatprep.mubr.bf16.mxu0 0
        %1361 = vmatmul.mubr.bf16.gmra.mrb[0].mxu0 %v373
        %v1362 = vpop.f32.mrb[0].mxu0
        %v1363 = vadd.f32 %v516, %v1362
        %v1364 = vpop.f32.mrb[0].mxu0
        %v1365 = vadd.f32 %v520, %v1364
        %v1366 = vpop.f32.mrb[0].mxu0
        %v1367 = vadd.f32 %v516, %v1366
        %v1368 = vpop.f32.mrb[0].mxu0
        %v1369 = vadd.f32 %v520, %v1368
        %1370 = vmatprep.mubr.bf16.mxu0 0
        %1371 = vmatmul.mubr.bf16.gmra.mrb[0].mxu0 %v374
        %v1372 = vpop.f32.mrb[0].mxu0
        %v1373 = vadd.f32 %v516, %v1372
        %v1374 = vpop.f32.mrb[0].mxu0
        %v1375 = vadd.f32 %v520, %v1374
        %v1376 = vpop.f32.mrb[0].mxu0
        %v1377 = vadd.f32 %v516, %v1376
        %v1378 = vpop.f32.mrb[0].mxu0
        %v1379 = vadd.f32 %v520, %v1378
        %1380 = vmatprep.mubr.bf16.mxu0 0
        %1381 = vmatmul.mubr.bf16.gmra.mrb[0].mxu0 %v375
        %v1382 = vpop.f32.mrb[0].mxu0
        %v1383 = vadd.f32 %v516, %v1382
        %v1384 = vpop.f32.mrb[0].mxu0
        %v1385 = vadd.f32 %v520, %v1384
        %v1386 = vpop.f32.mrb[0].mxu0
        %v1387 = vadd.f32 %v516, %v1386
        %v1388 = vpop.f32.mrb[0].mxu0
        %v1389 = vadd.f32 %v520, %v1388
        %1390 = vmatprep.mubr.bf16.mxu0 0
        %1391 = vmatmul.mubr.bf16.gmra.mrb[0].mxu0 %v376
        %v1392 = vpop.f32.mrb[0].mxu0
        %v1393 = vadd.f32 %v516, %v1392
        %v1394 = vpop.f32.mrb[0].mxu0
        %v1395 = vadd.f32 %v520, %v1394
        %v1396 = vpop.f32.mrb[0].mxu0
        %v1397 = vadd.f32 %v516, %v1396
        %v1398 = vpop.f32.mrb[0].mxu0
        %v1399 = vadd.f32 %v520, %v1398
        %1400 = vmatprep.mubr.bf16.mxu0 0
        %1401 = vmatmul.mubr.bf16.gmra.mrb[0].mxu0 %v377
        %v1402 = vpop.f32.mrb[0].mxu0
        %v1403 = vadd.f32 %v516, %v1402
        %v1404 = vpop.f32.mrb[0].mxu0
        %v1405 = vadd.f32 %v520, %v1404
        %v1406 = vpop.f32.mrb[0].mxu0
        %v1407 = vadd.f32 %v516, %v1406
        %v1408 = vpop.f32.mrb[0].mxu0
        %v1409 = vadd.f32 %v520, %v1408
        %1410 = vmatprep.mubr.bf16.mxu0 0
        %1411 = vmatmul.mubr.bf16.gmra.mrb[0].mxu0 %v378
        %v1412 = vpop.f32.mrb[0].mxu0
        %v1413 = vadd.f32 %v516, %v1412
        %v1414 = vpop.f32.mrb[0].mxu0
        %v1415 = vadd.f32 %v520, %v1414
        %v1416 = vpop.f32.mrb[0].mxu0
        %v1417 = vadd.f32 %v516, %v1416
        %v1418 = vpop.f32.mrb[0].mxu0
        %v1419 = vadd.f32 %v520, %v1418
        %1420 = vmatprep.mubr.bf16.mxu0 0
        %1421 = vmatmul.mubr.bf16.gmra.mrb[0].mxu0 %v379
        %v1422 = vpop.f32.mrb[0].mxu0
        %v1423 = vadd.f32 %v516, %v1422
        %v1424 = vpop.f32.mrb[0].mxu0
        %v1425 = vadd.f32 %v520, %v1424
        %v1426 = vpop.f32.mrb[0].mxu0
        %v1427 = vadd.f32 %v516, %v1426
        %v1428 = vpop.f32.mrb[0].mxu0
        %v1429 = vadd.f32 %v520, %v1428
        %1430 = vmatprep.mubr.bf16.mxu0 0
        %1431 = vmatmul.mubr.bf16.gmra.mrb[0].mxu0 %v380
        %v1432 = vpop.f32.mrb[0].mxu0
        %v1433 = vadd.f32 %v516, %v1432
        %v1434 = vpop.f32.mrb[0].mxu0
        %v1435 = vadd.f32 %v520, %v1434
        %v1436 = vpop.f32.mrb[0].mxu0
        %v1437 = vadd.f32 %v516, %v1436
        %v1438 = vpop.f32.mrb[0].mxu0
        %v1439 = vadd.f32 %v520, %v1438
        %1440 = vmatprep.mubr.bf16.mxu0 0
        %1441 = vmatmul.mubr.bf16.gmra.mrb[0].mxu0 %v381
        %v1442 = vpop.f32.mrb[0].mxu0
        %v1443 = vadd.f32 %v516, %v1442
        %v1444 = vpop.f32.mrb[0].mxu0
        %v1445 = vadd.f32 %v520, %v1444
        %v1446 = vpop.f32.mrb[0].mxu0
        %v1447 = vadd.f32 %v516, %v1446
        %v1448 = vpop.f32.mrb[0].mxu0
        %v1449 = vadd.f32 %v520, %v1448
        %1450 = vmatprep.mubr.bf16.mxu0 0
        %1451 = vmatmul.mubr.bf16.gmra.mrb[0].mxu0 %v382
        %v1452 = vpop.f32.mrb[0].mxu0
        %v1453 = vadd.f32 %v516, %v1452
        %v1454 = vpop.f32.mrb[0].mxu0
        %v1455 = vadd.f32 %v520, %v1454
        %v1456 = vpop.f32.mrb[0].mxu0
        %v1457 = vadd.f32 %v516, %v1456
        %v1458 = vpop.f32.mrb[0].mxu0
        %v1459 = vadd.f32 %v520, %v1458
        %1460 = vmatprep.mubr.bf16.mxu0 0
        %1461 = vmatmul.mubr.bf16.gmra.mrb[0].mxu0 %v383
        %v1462 = vpop.f32.mrb[0].mxu0
        %v1463 = vadd.f32 %v516, %v1462
        %v1464 = vpop.f32.mrb[0].mxu0
        %v1465 = vadd.f32 %v520, %v1464
        %v1466 = vpop.f32.mrb[0].mxu0
        %v1467 = vadd.f32 %v516, %v1466
        %v1468 = vpop.f32.mrb[0].mxu0
        %v1469 = vadd.f32 %v520, %v1468
        %1470 = vmatprep.mubr.bf16.mxu0 0
        %1471 = vmatmul.mubr.bf16.gmra.mrb[0].mxu0 %v384
        %v1472 = vpop.f32.mrb[0].mxu0
        %v1473 = vadd.f32 %v516, %v1472
        %v1474 = vpop.f32.mrb[0].mxu0
        %v1475 = vadd.f32 %v520, %v1474
        %v1476 = vpop.f32.mrb[0].mxu0
        %v1477 = vadd.f32 %v516, %v1476
        %v1478 = vpop.f32.mrb[0].mxu0
        %v1479 = vadd.f32 %v520, %v1478
        %1480 = vmatprep.mubr.bf16.mxu0 0
        %1481 = vmatmul.mubr.bf16.gmra.mrb[0].mxu0 %v385
        %v1482 = vpop.f32.mrb[0].mxu0
        %v1483 = vadd.f32 %v516, %v1482
        %v1484 = vpop.f32.mrb[0].mxu0
        %v1485 = vadd.f32 %v520, %v1484
        %v1486 = vpop.f32.mrb[0].mxu0
        %v1487 = vadd.f32 %v516, %v1486
        %v1488 = vpop.f32.mrb[0].mxu0
        %v1489 = vadd.f32 %v520, %v1488
        %1490 = vmatprep.mubr.bf16.mxu0 0
        %1491 = vmatmul.mubr.bf16.gmra.mrb[0].mxu0 %v386
        %v1492 = vpop.f32.mrb[0].mxu0
        %v1493 = vadd.f32 %v516, %v1492
        %v1494 = vpop.f32.mrb[0].mxu0
        %v1495 = vadd.f32 %v520, %v1494
        %v1496 = vpop.f32.mrb[0].mxu0
        %v1497 = vadd.f32 %v516, %v1496
        %v1498 = vpop.f32.mrb[0].mxu0
        %v1499 = vadd.f32 %v520, %v1498
        %1500 = vmatprep.mubr.bf16.mxu0 0
        %1501 = vmatmul.mubr.bf16.gmra.mrb[0].mxu0 %v387
        %v1502 = vpop.f32.mrb[0].mxu0
        %v1503 = vadd.f32 %v516, %v1502
        %v1504 = vpop.f32.mrb[0].mxu0
        %v1505 = vadd.f32 %v520, %v1504
        %v1506 = vpop.f32.mrb[0].mxu0
        %v1507 = vadd.f32 %v516, %v1506
        %v1508 = vpop.f32.mrb[0].mxu0
        %v1509 = vadd.f32 %v520, %v1508
        %1510 = vmatprep.mubr.bf16.mxu0 0
        %1511 = vmatmul.mubr.bf16.gmra.mrb[0].mxu0 %v388
        %v1512 = vpop.f32.mrb[0].mxu0
        %v1513 = vadd.f32 %v516, %v1512
        %v1514 = vpop.f32.mrb[0].mxu0
        %v1515 = vadd.f32 %v520, %v1514
        %v1516 = vpop.f32.mrb[0].mxu0
        %v1517 = vadd.f32 %v516, %v1516
        %v1518 = vpop.f32.mrb[0].mxu0
        %v1519 = vadd.f32 %v520, %v1518
        %1520 = vdwg.mxu0
        %1521 = vmatprep.subr.bf16.mxu0 %v916
        %1522 = vmatpush1.bf16.msra.mxu0 %v915
        %1523 = vmatprep.subr.bf16.mxu0 %v930
        %1524 = vmatpush1.bf16.msra.mxu0 %v929
        %1525 = vmatprep.subr.bf16.mxu0 %v944
        %1526 = vmatpush1.bf16.msra.mxu0 %v943
        %1527 = vmatprep.subr.bf16.mxu0 %v958
        %1528 = vmatpush1.bf16.msra.mxu0 %v957
        %1529 = vmatprep.subr.bf16.mxu0 %v972
        %1530 = vmatpush1.bf16.msra.mxu0 %v971
        %1531 = vmatprep.subr.bf16.mxu0 %v986
        %1532 = vmatpush1.bf16.msra.mxu0 %v985
        %1533 = vmatprep.subr.bf16.mxu0 %v1000
        %1534 = vmatpush1.bf16.msra.mxu0 %v999
        %1535 = vmatprep.subr.bf16.mxu0 %v1014
        %1536 = vmatpush1.bf16.msra.mxu0 %v1013
        %1537 = vmatprep.subr.bf16.mxu0 0
        %1538 = vmatpush1.bf16.msra.mxu0 0
        %1539 = vmatprep.subr.bf16.mxu0 0
        %1540 = vmatpush1.bf16.msra.mxu0 0
        %1541 = vmatprep.subr.bf16.mxu0 0
        %1542 = vmatpush1.bf16.msra.mxu0 0
        %1543 = vmatprep.subr.bf16.mxu0 0
        %1544 = vmatpush1.bf16.msra.mxu0 0
        %1545 = vmatprep.subr.bf16.mxu0 0
        %1546 = vmatpush1.bf16.msra.mxu0 0
        %1547 = vmatprep.subr.bf16.mxu0 0
        %1548 = vmatpush1.bf16.msra.mxu0 0
        %1549 = vmatprep.subr.bf16.mxu0 0
        %1550 = vmatpush1.bf16.msra.mxu0 0
        %1551 = vmatprep.subr.bf16.mxu0 0
        %1552 = vmatpush1.bf16.msra.mxu0 0
        %1553 = vmatprep.mubr.bf16.mxu0 0
        %1554 = vmatmul.mubr.bf16.gmra.mrb[0].mxu0 %v373
        %v1555 = vpop.f32.mrb[0].mxu0
        %v1556 = vadd.f32 %v524, %v1555
        %v1557 = vpop.f32.mrb[0].mxu0
        %v1558 = vadd.f32 %v528, %v1557
        %v1559 = vpop.f32.mrb[0].mxu0
        %v1560 = vadd.f32 %v524, %v1559
        %v1561 = vpop.f32.mrb[0].mxu0
        %v1562 = vadd.f32 %v528, %v1561
        %1563 = vmatprep.mubr.bf16.mxu0 0
        %1564 = vmatmul.mubr.bf16.gmra.mrb[0].mxu0 %v374
        %v1565 = vpop.f32.mrb[0].mxu0
        %v1566 = vadd.f32 %v524, %v1565
        %v1567 = vpop.f32.mrb[0].mxu0
        %v1568 = vadd.f32 %v528, %v1567
        %v1569 = vpop.f32.mrb[0].mxu0
        %v1570 = vadd.f32 %v524, %v1569
        %v1571 = vpop.f32.mrb[0].mxu0
        %v1572 = vadd.f32 %v528, %v1571
        %1573 = vmatprep.mubr.bf16.mxu0 0
        %1574 = vmatmul.mubr.bf16.gmra.mrb[0].mxu0 %v375
        %v1575 = vpop.f32.mrb[0].mxu0
        %v1576 = vadd.f32 %v524, %v1575
        %v1577 = vpop.f32.mrb[0].mxu0
        %v1578 = vadd.f32 %v528, %v1577
        %v1579 = vpop.f32.mrb[0].mxu0
        %v1580 = vadd.f32 %v524, %v1579
        %v1581 = vpop.f32.mrb[0].mxu0
        %v1582 = vadd.f32 %v528, %v1581
        %1583 = vmatprep.mubr.bf16.mxu0 0
        %1584 = vmatmul.mubr.bf16.gmra.mrb[0].mxu0 %v376
        %v1585 = vpop.f32.mrb[0].mxu0
        %v1586 = vadd.f32 %v524, %v1585
        %v1587 = vpop.f32.mrb[0].mxu0
        %v1588 = vadd.f32 %v528, %v1587
        %v1589 = vpop.f32.mrb[0].mxu0
        %v1590 = vadd.f32 %v524, %v1589
        %v1591 = vpop.f32.mrb[0].mxu0
        %v1592 = vadd.f32 %v528, %v1591
        %1593 = vmatprep.mubr.bf16.mxu0 0
        %1594 = vmatmul.mubr.bf16.gmra.mrb[0].mxu0 %v377
        %v1595 = vpop.f32.mrb[0].mxu0
        %v1596 = vadd.f32 %v524, %v1595
        %v1597 = vpop.f32.mrb[0].mxu0
        %v1598 = vadd.f32 %v528, %v1597
        %v1599 = vpop.f32.mrb[0].mxu0
        %v1600 = vadd.f32 %v524, %v1599
        %v1601 = vpop.f32.mrb[0].mxu0
        %v1602 = vadd.f32 %v528, %v1601
        %1603 = vmatprep.mubr.bf16.mxu0 0
        %1604 = vmatmul.mubr.bf16.gmra.mrb[0].mxu0 %v378
        %v1605 = vpop.f32.mrb[0].mxu0
        %v1606 = vadd.f32 %v524, %v1605
        %v1607 = vpop.f32.mrb[0].mxu0
        %v1608 = vadd.f32 %v528, %v1607
        %v1609 = vpop.f32.mrb[0].mxu0
        %v1610 = vadd.f32 %v524, %v1609
        %v1611 = vpop.f32.mrb[0].mxu0
        %v1612 = vadd.f32 %v528, %v1611
        %1613 = vmatprep.mubr.bf16.mxu0 0
        %1614 = vmatmul.mubr.bf16.gmra.mrb[0].mxu0 %v379
        %v1615 = vpop.f32.mrb[0].mxu0
        %v1616 = vadd.f32 %v524, %v1615
        %v1617 = vpop.f32.mrb[0].mxu0
        %v1618 = vadd.f32 %v528, %v1617
        %v1619 = vpop.f32.mrb[0].mxu0
        %v1620 = vadd.f32 %v524, %v1619
        %v1621 = vpop.f32.mrb[0].mxu0
        %v1622 = vadd.f32 %v528, %v1621
        %1623 = vmatprep.mubr.bf16.mxu0 0
        %1624 = vmatmul.mubr.bf16.gmra.mrb[0].mxu0 %v380
        %v1625 = vpop.f32.mrb[0].mxu0
        %v1626 = vadd.f32 %v524, %v1625
        %v1627 = vpop.f32.mrb[0].mxu0
        %v1628 = vadd.f32 %v528, %v1627
        %v1629 = vpop.f32.mrb[0].mxu0
        %v1630 = vadd.f32 %v524, %v1629
        %v1631 = vpop.f32.mrb[0].mxu0
        %v1632 = vadd.f32 %v528, %v1631
        %1633 = vmatprep.mubr.bf16.mxu0 0
        %1634 = vmatmul.mubr.bf16.gmra.mrb[0].mxu0 %v381
        %v1635 = vpop.f32.mrb[0].mxu0
        %v1636 = vadd.f32 %v524, %v1635
        %v1637 = vpop.f32.mrb[0].mxu0
        %v1638 = vadd.f32 %v528, %v1637
        %v1639 = vpop.f32.mrb[0].mxu0
        %v1640 = vadd.f32 %v524, %v1639
        %v1641 = vpop.f32.mrb[0].mxu0
        %v1642 = vadd.f32 %v528, %v1641
        %1643 = vmatprep.mubr.bf16.mxu0 0
        %1644 = vmatmul.mubr.bf16.gmra.mrb[0].mxu0 %v382
        %v1645 = vpop.f32.mrb[0].mxu0
        %v1646 = vadd.f32 %v524, %v1645
        %v1647 = vpop.f32.mrb[0].mxu0
        %v1648 = vadd.f32 %v528, %v1647
        %v1649 = vpop.f32.mrb[0].mxu0
        %v1650 = vadd.f32 %v524, %v1649
        %v1651 = vpop.f32.mrb[0].mxu0
        %v1652 = vadd.f32 %v528, %v1651
        %1653 = vmatprep.mubr.bf16.mxu0 0
        %1654 = vmatmul.mubr.bf16.gmra.mrb[0].mxu0 %v383
        %v1655 = vpop.f32.mrb[0].mxu0
        %v1656 = vadd.f32 %v524, %v1655
        %v1657 = vpop.f32.mrb[0].mxu0
        %v1658 = vadd.f32 %v528, %v1657
        %v1659 = vpop.f32.mrb[0].mxu0
        %v1660 = vadd.f32 %v524, %v1659
        %v1661 = vpop.f32.mrb[0].mxu0
        %v1662 = vadd.f32 %v528, %v1661
        %1663 = vmatprep.mubr.bf16.mxu0 0
        %1664 = vmatmul.mubr.bf16.gmra.mrb[0].mxu0 %v384
        %v1665 = vpop.f32.mrb[0].mxu0
        %v1666 = vadd.f32 %v524, %v1665
        %v1667 = vpop.f32.mrb[0].mxu0
        %v1668 = vadd.f32 %v528, %v1667
        %v1669 = vpop.f32.mrb[0].mxu0
        %v1670 = vadd.f32 %v524, %v1669
        %v1671 = vpop.f32.mrb[0].mxu0
        %v1672 = vadd.f32 %v528, %v1671
        %1673 = vmatprep.mubr.bf16.mxu0 0
        %1674 = vmatmul.mubr.bf16.gmra.mrb[0].mxu0 %v385
        %v1675 = vpop.f32.mrb[0].mxu0
        %v1676 = vadd.f32 %v524, %v1675
        %v1677 = vpop.f32.mrb[0].mxu0
        %v1678 = vadd.f32 %v528, %v1677
        %v1679 = vpop.f32.mrb[0].mxu0
        %v1680 = vadd.f32 %v524, %v1679
        %v1681 = vpop.f32.mrb[0].mxu0
        %v1682 = vadd.f32 %v528, %v1681
        %1683 = vmatprep.mubr.bf16.mxu0 0
        %1684 = vmatmul.mubr.bf16.gmra.mrb[0].mxu0 %v386
        %v1685 = vpop.f32.mrb[0].mxu0
        %v1686 = vadd.f32 %v524, %v1685
        %v1687 = vpop.f32.mrb[0].mxu0
        %v1688 = vadd.f32 %v528, %v1687
        %v1689 = vpop.f32.mrb[0].mxu0
        %v1690 = vadd.f32 %v524, %v1689
        %v1691 = vpop.f32.mrb[0].mxu0
        %v1692 = vadd.f32 %v528, %v1691
        %1693 = vmatprep.mubr.bf16.mxu0 0
        %1694 = vmatmul.mubr.bf16.gmra.mrb[0].mxu0 %v387
        %v1695 = vpop.f32.mrb[0].mxu0
        %v1696 = vadd.f32 %v524, %v1695
        %v1697 = vpop.f32.mrb[0].mxu0
        %v1698 = vadd.f32 %v528, %v1697
        %v1699 = vpop.f32.mrb[0].mxu0
        %v1700 = vadd.f32 %v524, %v1699
        %v1701 = vpop.f32.mrb[0].mxu0
        %v1702 = vadd.f32 %v528, %v1701
        %1703 = vmatprep.mubr.bf16.mxu0 0
        %1704 = vmatmul.mubr.bf16.gmra.mrb[0].mxu0 %v388
        %v1705 = vpop.f32.mrb[0].mxu0
        %v1706 = vadd.f32 %v524, %v1705
        %v1707 = vpop.f32.mrb[0].mxu0
        %v1708 = vadd.f32 %v528, %v1707
        %v1709 = vpop.f32.mrb[0].mxu0
        %v1710 = vadd.f32 %v524, %v1709
        %v1711 = vpop.f32.mrb[0].mxu0
        %v1712 = vadd.f32 %v528, %v1711
        %1713 = vdwg.mxu0
        %1714 = vmatprep.subr.bf16.mxu0 %v918
        %1715 = vmatpush1.bf16.msra.mxu0 %v917
        %1716 = vmatprep.subr.bf16.mxu0 %v932
        %1717 = vmatpush1.bf16.msra.mxu0 %v931
        %1718 = vmatprep.subr.bf16.mxu0 %v946
        %1719 = vmatpush1.bf16.msra.mxu0 %v945
        %1720 = vmatprep.subr.bf16.mxu0 %v960
        %1721 = vmatpush1.bf16.msra.mxu0 %v959
        %1722 = vmatprep.subr.bf16.mxu0 %v974
        %1723 = vmatpush1.bf16.msra.mxu0 %v973
        %1724 = vmatprep.subr.bf16.mxu0 %v988
        %1725 = vmatpush1.bf16.msra.mxu0 %v987
        %1726 = vmatprep.subr.bf16.mxu0 %v1002
        %1727 = vmatpush1.bf16.msra.mxu0 %v1001
        %1728 = vmatprep.subr.bf16.mxu0 %v1016
        %1729 = vmatpush1.bf16.msra.mxu0 %v1015
        %1730 = vmatprep.subr.bf16.mxu0 0
        %1731 = vmatpush1.bf16.msra.mxu0 0
        %1732 = vmatprep.subr.bf16.mxu0 0
        %1733 = vmatpush1.bf16.msra.mxu0 0
        %1734 = vmatprep.subr.bf16.mxu0 0
        %1735 = vmatpush1.bf16.msra.mxu0 0
        %1736 = vmatprep.subr.bf16.mxu0 0
        %1737 = vmatpush1.bf16.msra.mxu0 0
        %1738 = vmatprep.subr.bf16.mxu0 0
        %1739 = vmatpush1.bf16.msra.mxu0 0
        %1740 = vmatprep.subr.bf16.mxu0 0
        %1741 = vmatpush1.bf16.msra.mxu0 0
        %1742 = vmatprep.subr.bf16.mxu0 0
        %1743 = vmatpush1.bf16.msra.mxu0 0
        %1744 = vmatprep.subr.bf16.mxu0 0
        %1745 = vmatpush1.bf16.msra.mxu0 0
        %1746 = vmatprep.mubr.bf16.mxu0 0
        %1747 = vmatmul.mubr.bf16.gmra.mrb[0].mxu0 %v373
        %v1748 = vpop.f32.mrb[0].mxu0
        %v1749 = vadd.f32 %v532, %v1748
        %v1750 = vpop.f32.mrb[0].mxu0
        %v1751 = vadd.f32 %v536, %v1750
        %v1752 = vpop.f32.mrb[0].mxu0
        %v1753 = vadd.f32 %v532, %v1752
        %v1754 = vpop.f32.mrb[0].mxu0
        %v1755 = vadd.f32 %v536, %v1754
        %1756 = vmatprep.mubr.bf16.mxu0 0
        %1757 = vmatmul.mubr.bf16.gmra.mrb[0].mxu0 %v374
        %v1758 = vpop.f32.mrb[0].mxu0
        %v1759 = vadd.f32 %v532, %v1758
        %v1760 = vpop.f32.mrb[0].mxu0
        %v1761 = vadd.f32 %v536, %v1760
        %v1762 = vpop.f32.mrb[0].mxu0
        %v1763 = vadd.f32 %v532, %v1762
        %v1764 = vpop.f32.mrb[0].mxu0
        %v1765 = vadd.f32 %v536, %v1764
        %1766 = vmatprep.mubr.bf16.mxu0 0
        %1767 = vmatmul.mubr.bf16.gmra.mrb[0].mxu0 %v375
        %v1768 = vpop.f32.mrb[0].mxu0
        %v1769 = vadd.f32 %v532, %v1768
        %v1770 = vpop.f32.mrb[0].mxu0
        %v1771 = vadd.f32 %v536, %v1770
        %v1772 = vpop.f32.mrb[0].mxu0
        %v1773 = vadd.f32 %v532, %v1772
        %v1774 = vpop.f32.mrb[0].mxu0
        %v1775 = vadd.f32 %v536, %v1774
        %1776 = vmatprep.mubr.bf16.mxu0 0
        %1777 = vmatmul.mubr.bf16.gmra.mrb[0].mxu0 %v376
        %v1778 = vpop.f32.mrb[0].mxu0
        %v1779 = vadd.f32 %v532, %v1778
        %v1780 = vpop.f32.mrb[0].mxu0
        %v1781 = vadd.f32 %v536, %v1780
        %v1782 = vpop.f32.mrb[0].mxu0
        %v1783 = vadd.f32 %v532, %v1782
        %v1784 = vpop.f32.mrb[0].mxu0
        %v1785 = vadd.f32 %v536, %v1784
        %1786 = vmatprep.mubr.bf16.mxu0 0
        %1787 = vmatmul.mubr.bf16.gmra.mrb[0].mxu0 %v377
        %v1788 = vpop.f32.mrb[0].mxu0
        %v1789 = vadd.f32 %v532, %v1788
        %v1790 = vpop.f32.mrb[0].mxu0
        %v1791 = vadd.f32 %v536, %v1790
        %v1792 = vpop.f32.mrb[0].mxu0
        %v1793 = vadd.f32 %v532, %v1792
        %v1794 = vpop.f32.mrb[0].mxu0
        %v1795 = vadd.f32 %v536, %v1794
        %1796 = vmatprep.mubr.bf16.mxu0 0
        %1797 = vmatmul.mubr.bf16.gmra.mrb[0].mxu0 %v378
        %v1798 = vpop.f32.mrb[0].mxu0
        %v1799 = vadd.f32 %v532, %v1798
        %v1800 = vpop.f32.mrb[0].mxu0
        %v1801 = vadd.f32 %v536, %v1800
        %v1802 = vpop.f32.mrb[0].mxu0
        %v1803 = vadd.f32 %v532, %v1802
        %v1804 = vpop.f32.mrb[0].mxu0
        %v1805 = vadd.f32 %v536, %v1804
        %1806 = vmatprep.mubr.bf16.mxu0 0
        %1807 = vmatmul.mubr.bf16.gmra.mrb[0].mxu0 %v379
        %v1808 = vpop.f32.mrb[0].mxu0
        %v1809 = vadd.f32 %v532, %v1808
        %v1810 = vpop.f32.mrb[0].mxu0
        %v1811 = vadd.f32 %v536, %v1810
        %v1812 = vpop.f32.mrb[0].mxu0
        %v1813 = vadd.f32 %v532, %v1812
        %v1814 = vpop.f32.mrb[0].mxu0
        %v1815 = vadd.f32 %v536, %v1814
        %1816 = vmatprep.mubr.bf16.mxu0 0
        %1817 = vmatmul.mubr.bf16.gmra.mrb[0].mxu0 %v380
        %v1818 = vpop.f32.mrb[0].mxu0
        %v1819 = vadd.f32 %v532, %v1818
        %v1820 = vpop.f32.mrb[0].mxu0
        %v1821 = vadd.f32 %v536, %v1820
        %v1822 = vpop.f32.mrb[0].mxu0
        %v1823 = vadd.f32 %v532, %v1822
        %v1824 = vpop.f32.mrb[0].mxu0
        %v1825 = vadd.f32 %v536, %v1824
        %1826 = vmatprep.mubr.bf16.mxu0 0
        %1827 = vmatmul.mubr.bf16.gmra.mrb[0].mxu0 %v381
        %v1828 = vpop.f32.mrb[0].mxu0
        %v1829 = vadd.f32 %v532, %v1828
        %v1830 = vpop.f32.mrb[0].mxu0
        %v1831 = vadd.f32 %v536, %v1830
        %v1832 = vpop.f32.mrb[0].mxu0
        %v1833 = vadd.f32 %v532, %v1832
        %v1834 = vpop.f32.mrb[0].mxu0
        %v1835 = vadd.f32 %v536, %v1834
        %1836 = vmatprep.mubr.bf16.mxu0 0
        %1837 = vmatmul.mubr.bf16.gmra.mrb[0].mxu0 %v382
        %v1838 = vpop.f32.mrb[0].mxu0
        %v1839 = vadd.f32 %v532, %v1838
        %v1840 = vpop.f32.mrb[0].mxu0
        %v1841 = vadd.f32 %v536, %v1840
        %v1842 = vpop.f32.mrb[0].mxu0
        %v1843 = vadd.f32 %v532, %v1842
        %v1844 = vpop.f32.mrb[0].mxu0
        %v1845 = vadd.f32 %v536, %v1844
        %1846 = vmatprep.mubr.bf16.mxu0 0
        %1847 = vmatmul.mubr.bf16.gmra.mrb[0].mxu0 %v383
        %v1848 = vpop.f32.mrb[0].mxu0
        %v1849 = vadd.f32 %v532, %v1848
        %v1850 = vpop.f32.mrb[0].mxu0
        %v1851 = vadd.f32 %v536, %v1850
        %v1852 = vpop.f32.mrb[0].mxu0
        %v1853 = vadd.f32 %v532, %v1852
        %v1854 = vpop.f32.mrb[0].mxu0
        %v1855 = vadd.f32 %v536, %v1854
        %1856 = vmatprep.mubr.bf16.mxu0 0
        %1857 = vmatmul.mubr.bf16.gmra.mrb[0].mxu0 %v384
        %v1858 = vpop.f32.mrb[0].mxu0
        %v1859 = vadd.f32 %v532, %v1858
        %v1860 = vpop.f32.mrb[0].mxu0
        %v1861 = vadd.f32 %v536, %v1860
        %v1862 = vpop.f32.mrb[0].mxu0
        %v1863 = vadd.f32 %v532, %v1862
        %v1864 = vpop.f32.mrb[0].mxu0
        %v1865 = vadd.f32 %v536, %v1864
        %1866 = vmatprep.mubr.bf16.mxu0 0
        %1867 = vmatmul.mubr.bf16.gmra.mrb[0].mxu0 %v385
        %v1868 = vpop.f32.mrb[0].mxu0
        %v1869 = vadd.f32 %v532, %v1868
        %v1870 = vpop.f32.mrb[0].mxu0
        %v1871 = vadd.f32 %v536, %v1870
        %v1872 = vpop.f32.mrb[0].mxu0
        %v1873 = vadd.f32 %v532, %v1872
        %v1874 = vpop.f32.mrb[0].mxu0
        %v1875 = vadd.f32 %v536, %v1874
        %1876 = vmatprep.mubr.bf16.mxu0 0
        %1877 = vmatmul.mubr.bf16.gmra.mrb[0].mxu0 %v386
        %v1878 = vpop.f32.mrb[0].mxu0
        %v1879 = vadd.f32 %v532, %v1878
        %v1880 = vpop.f32.mrb[0].mxu0
        %v1881 = vadd.f32 %v536, %v1880
        %v1882 = vpop.f32.mrb[0].mxu0
        %v1883 = vadd.f32 %v532, %v1882
        %v1884 = vpop.f32.mrb[0].mxu0
        %v1885 = vadd.f32 %v536, %v1884
        %1886 = vmatprep.mubr.bf16.mxu0 0
        %1887 = vmatmul.mubr.bf16.gmra.mrb[0].mxu0 %v387
        %v1888 = vpop.f32.mrb[0].mxu0
        %v1889 = vadd.f32 %v532, %v1888
        %v1890 = vpop.f32.mrb[0].mxu0
        %v1891 = vadd.f32 %v536, %v1890
        %v1892 = vpop.f32.mrb[0].mxu0
        %v1893 = vadd.f32 %v532, %v1892
        %v1894 = vpop.f32.mrb[0].mxu0
        %v1895 = vadd.f32 %v536, %v1894
        %1896 = vmatprep.mubr.bf16.mxu0 0
        %1897 = vmatmul.mubr.bf16.gmra.mrb[0].mxu0 %v388
        %v1898 = vpop.f32.mrb[0].mxu0
        %v1899 = vadd.f32 %v532, %v1898
        %v1900 = vpop.f32.mrb[0].mxu0
        %v1901 = vadd.f32 %v536, %v1900
        %v1902 = vpop.f32.mrb[0].mxu0
        %v1903 = vadd.f32 %v532, %v1902
        %v1904 = vpop.f32.mrb[0].mxu0
        %v1905 = vadd.f32 %v536, %v1904
        %1906 = vdwg.mxu0
        %1907 = vmatprep.subr.bf16.mxu0 %v920
        %1908 = vmatpush1.bf16.msra.mxu0 %v919
        %1909 = vmatprep.subr.bf16.mxu0 %v934
        %1910 = vmatpush1.bf16.msra.mxu0 %v933
        %1911 = vmatprep.subr.bf16.mxu0 %v948
        %1912 = vmatpush1.bf16.msra.mxu0 %v947
        %1913 = vmatprep.subr.bf16.mxu0 %v962
        %1914 = vmatpush1.bf16.msra.mxu0 %v961
        %1915 = vmatprep.subr.bf16.mxu0 %v976
        %1916 = vmatpush1.bf16.msra.mxu0 %v975
        %1917 = vmatprep.subr.bf16.mxu0 %v990
        %1918 = vmatpush1.bf16.msra.mxu0 %v989
        %1919 = vmatprep.subr.bf16.mxu0 %v1004
        %1920 = vmatpush1.bf16.msra.mxu0 %v1003
        %1921 = vmatprep.subr.bf16.mxu0 %v1018
        %1922 = vmatpush1.bf16.msra.mxu0 %v1017
        %1923 = vmatprep.subr.bf16.mxu0 0
        %1924 = vmatpush1.bf16.msra.mxu0 0
        %1925 = vmatprep.subr.bf16.mxu0 0
        %1926 = vmatpush1.bf16.msra.mxu0 0
        %1927 = vmatprep.subr.bf16.mxu0 0
        %1928 = vmatpush1.bf16.msra.mxu0 0
        %1929 = vmatprep.subr.bf16.mxu0 0
        %1930 = vmatpush1.bf16.msra.mxu0 0
        %1931 = vmatprep.subr.bf16.mxu0 0
        %1932 = vmatpush1.bf16.msra.mxu0 0
        %1933 = vmatprep.subr.bf16.mxu0 0
        %1934 = vmatpush1.bf16.msra.mxu0 0
        %1935 = vmatprep.subr.bf16.mxu0 0
        %1936 = vmatpush1.bf16.msra.mxu0 0
        %1937 = vmatprep.subr.bf16.mxu0 0
        %1938 = vmatpush1.bf16.msra.mxu0 0
        %1939 = vmatprep.mubr.bf16.mxu0 0
        %1940 = vmatmul.mubr.bf16.gmra.mrb[0].mxu0 %v373
        %v1941 = vpop.f32.mrb[0].mxu0
        %v1942 = vadd.f32 %v540, %v1941
        %v1943 = vpop.f32.mrb[0].mxu0
        %v1944 = vadd.f32 %v544, %v1943
        %v1945 = vpop.f32.mrb[0].mxu0
        %v1946 = vadd.f32 %v540, %v1945
        %v1947 = vpop.f32.mrb[0].mxu0
        %v1948 = vadd.f32 %v544, %v1947
        %1949 = vmatprep.mubr.bf16.mxu0 0
        %1950 = vmatmul.mubr.bf16.gmra.mrb[0].mxu0 %v374
        %v1951 = vpop.f32.mrb[0].mxu0
        %v1952 = vadd.f32 %v540, %v1951
        %v1953 = vpop.f32.mrb[0].mxu0
        %v1954 = vadd.f32 %v544, %v1953
        %v1955 = vpop.f32.mrb[0].mxu0
        %v1956 = vadd.f32 %v540, %v1955
        %v1957 = vpop.f32.mrb[0].mxu0
        %v1958 = vadd.f32 %v544, %v1957
        %1959 = vmatprep.mubr.bf16.mxu0 0
        %1960 = vmatmul.mubr.bf16.gmra.mrb[0].mxu0 %v375
        %v1961 = vpop.f32.mrb[0].mxu0
        %v1962 = vadd.f32 %v540, %v1961
        %v1963 = vpop.f32.mrb[0].mxu0
        %v1964 = vadd.f32 %v544, %v1963
        %v1965 = vpop.f32.mrb[0].mxu0
        %v1966 = vadd.f32 %v540, %v1965
        %v1967 = vpop.f32.mrb[0].mxu0
        %v1968 = vadd.f32 %v544, %v1967
        %1969 = vmatprep.mubr.bf16.mxu0 0
        %1970 = vmatmul.mubr.bf16.gmra.mrb[0].mxu0 %v376
        %v1971 = vpop.f32.mrb[0].mxu0
        %v1972 = vadd.f32 %v540, %v1971
        %v1973 = vpop.f32.mrb[0].mxu0
        %v1974 = vadd.f32 %v544, %v1973
        %v1975 = vpop.f32.mrb[0].mxu0
        %v1976 = vadd.f32 %v540, %v1975
        %v1977 = vpop.f32.mrb[0].mxu0
        %v1978 = vadd.f32 %v544, %v1977
        %1979 = vmatprep.mubr.bf16.mxu0 0
        %1980 = vmatmul.mubr.bf16.gmra.mrb[0].mxu0 %v377
        %v1981 = vpop.f32.mrb[0].mxu0
        %v1982 = vadd.f32 %v540, %v1981
        %v1983 = vpop.f32.mrb[0].mxu0
        %v1984 = vadd.f32 %v544, %v1983
        %v1985 = vpop.f32.mrb[0].mxu0
        %v1986 = vadd.f32 %v540, %v1985
        %v1987 = vpop.f32.mrb[0].mxu0
        %v1988 = vadd.f32 %v544, %v1987
        %1989 = vmatprep.mubr.bf16.mxu0 0
        %1990 = vmatmul.mubr.bf16.gmra.mrb[0].mxu0 %v378
        %v1991 = vpop.f32.mrb[0].mxu0
        %v1992 = vadd.f32 %v540, %v1991
        %v1993 = vpop.f32.mrb[0].mxu0
        %v1994 = vadd.f32 %v544, %v1993
        %v1995 = vpop.f32.mrb[0].mxu0
        %v1996 = vadd.f32 %v540, %v1995
        %v1997 = vpop.f32.mrb[0].mxu0
        %v1998 = vadd.f32 %v544, %v1997
        %1999 = vmatprep.mubr.bf16.mxu0 0
        %2000 = vmatmul.mubr.bf16.gmra.mrb[0].mxu0 %v379
        %v2001 = vpop.f32.mrb[0].mxu0
        %v2002 = vadd.f32 %v540, %v2001
        %v2003 = vpop.f32.mrb[0].mxu0
        %v2004 = vadd.f32 %v544, %v2003
        %v2005 = vpop.f32.mrb[0].mxu0
        %v2006 = vadd.f32 %v540, %v2005
        %v2007 = vpop.f32.mrb[0].mxu0
        %v2008 = vadd.f32 %v544, %v2007
        %2009 = vmatprep.mubr.bf16.mxu0 0
        %2010 = vmatmul.mubr.bf16.gmra.mrb[0].mxu0 %v380
        %v2011 = vpop.f32.mrb[0].mxu0
        %v2012 = vadd.f32 %v540, %v2011
        %v2013 = vpop.f32.mrb[0].mxu0
        %v2014 = vadd.f32 %v544, %v2013
        %v2015 = vpop.f32.mrb[0].mxu0
        %v2016 = vadd.f32 %v540, %v2015
        %v2017 = vpop.f32.mrb[0].mxu0
        %v2018 = vadd.f32 %v544, %v2017
        %2019 = vmatprep.mubr.bf16.mxu0 0
        %2020 = vmatmul.mubr.bf16.gmra.mrb[0].mxu0 %v381
        %v2021 = vpop.f32.mrb[0].mxu0
        %v2022 = vadd.f32 %v540, %v2021
        %v2023 = vpop.f32.mrb[0].mxu0
        %v2024 = vadd.f32 %v544, %v2023
        %v2025 = vpop.f32.mrb[0].mxu0
        %v2026 = vadd.f32 %v540, %v2025
        %v2027 = vpop.f32.mrb[0].mxu0
        %v2028 = vadd.f32 %v544, %v2027
        %2029 = vmatprep.mubr.bf16.mxu0 0
        %2030 = vmatmul.mubr.bf16.gmra.mrb[0].mxu0 %v382
        %v2031 = vpop.f32.mrb[0].mxu0
        %v2032 = vadd.f32 %v540, %v2031
        %v2033 = vpop.f32.mrb[0].mxu0
        %v2034 = vadd.f32 %v544, %v2033
        %v2035 = vpop.f32.mrb[0].mxu0
        %v2036 = vadd.f32 %v540, %v2035
        %v2037 = vpop.f32.mrb[0].mxu0
        %v2038 = vadd.f32 %v544, %v2037
        %2039 = vmatprep.mubr.bf16.mxu0 0
        %2040 = vmatmul.mubr.bf16.gmra.mrb[0].mxu0 %v383
        %v2041 = vpop.f32.mrb[0].mxu0
        %v2042 = vadd.f32 %v540, %v2041
        %v2043 = vpop.f32.mrb[0].mxu0
        %v2044 = vadd.f32 %v544, %v2043
        %v2045 = vpop.f32.mrb[0].mxu0
        %v2046 = vadd.f32 %v540, %v2045
        %v2047 = vpop.f32.mrb[0].mxu0
        %v2048 = vadd.f32 %v544, %v2047
        %2049 = vmatprep.mubr.bf16.mxu0 0
        %2050 = vmatmul.mubr.bf16.gmra.mrb[0].mxu0 %v384
        %v2051 = vpop.f32.mrb[0].mxu0
        %v2052 = vadd.f32 %v540, %v2051
        %v2053 = vpop.f32.mrb[0].mxu0
        %v2054 = vadd.f32 %v544, %v2053
        %v2055 = vpop.f32.mrb[0].mxu0
        %v2056 = vadd.f32 %v540, %v2055
        %v2057 = vpop.f32.mrb[0].mxu0
        %v2058 = vadd.f32 %v544, %v2057
        %2059 = vmatprep.mubr.bf16.mxu0 0
        %2060 = vmatmul.mubr.bf16.gmra.mrb[0].mxu0 %v385
        %v2061 = vpop.f32.mrb[0].mxu0
        %v2062 = vadd.f32 %v540, %v2061
        %v2063 = vpop.f32.mrb[0].mxu0
        %v2064 = vadd.f32 %v544, %v2063
        %v2065 = vpop.f32.mrb[0].mxu0
        %v2066 = vadd.f32 %v540, %v2065
        %v2067 = vpop.f32.mrb[0].mxu0
        %v2068 = vadd.f32 %v544, %v2067
        %2069 = vmatprep.mubr.bf16.mxu0 0
        %2070 = vmatmul.mubr.bf16.gmra.mrb[0].mxu0 %v386
        %v2071 = vpop.f32.mrb[0].mxu0
        %v2072 = vadd.f32 %v540, %v2071
        %v2073 = vpop.f32.mrb[0].mxu0
        %v2074 = vadd.f32 %v544, %v2073
        %v2075 = vpop.f32.mrb[0].mxu0
        %v2076 = vadd.f32 %v540, %v2075
        %v2077 = vpop.f32.mrb[0].mxu0
        %v2078 = vadd.f32 %v544, %v2077
        %2079 = vmatprep.mubr.bf16.mxu0 0
        %2080 = vmatmul.mubr.bf16.gmra.mrb[0].mxu0 %v387
        %v2081 = vpop.f32.mrb[0].mxu0
        %v2082 = vadd.f32 %v540, %v2081
        %v2083 = vpop.f32.mrb[0].mxu0
        %v2084 = vadd.f32 %v544, %v2083
        %v2085 = vpop.f32.mrb[0].mxu0
        %v2086 = vadd.f32 %v540, %v2085
        %v2087 = vpop.f32.mrb[0].mxu0
        %v2088 = vadd.f32 %v544, %v2087
        %2089 = vmatprep.mubr.bf16.mxu0 0
        %2090 = vmatmul.mubr.bf16.gmra.mrb[0].mxu0 %v388
        %v2091 = vpop.f32.mrb[0].mxu0
        %v2092 = vadd.f32 %v540, %v2091
        %v2093 = vpop.f32.mrb[0].mxu0
        %v2094 = vadd.f32 %v544, %v2093
        %v2095 = vpop.f32.mrb[0].mxu0
        %v2096 = vadd.f32 %v540, %v2095
        %v2097 = vpop.f32.mrb[0].mxu0
        %v2098 = vadd.f32 %v544, %v2097
        %2099 = vdwg.mxu0
        %2100 = vmatprep.subr.bf16.mxu0 %v922
        %2101 = vmatpush1.bf16.msra.mxu0 %v921
        %2102 = vmatprep.subr.bf16.mxu0 %v936
        %2103 = vmatpush1.bf16.msra.mxu0 %v935
        %2104 = vmatprep.subr.bf16.mxu0 %v950
        %2105 = vmatpush1.bf16.msra.mxu0 %v949
        %2106 = vmatprep.subr.bf16.mxu0 %v964
        %2107 = vmatpush1.bf16.msra.mxu0 %v963
        %2108 = vmatprep.subr.bf16.mxu0 %v978
        %2109 = vmatpush1.bf16.msra.mxu0 %v977
        %2110 = vmatprep.subr.bf16.mxu0 %v992
        %2111 = vmatpush1.bf16.msra.mxu0 %v991
        %2112 = vmatprep.subr.bf16.mxu0 %v1006
        %2113 = vmatpush1.bf16.msra.mxu0 %v1005
        %2114 = vmatprep.subr.bf16.mxu0 %v1020
        %2115 = vmatpush1.bf16.msra.mxu0 %v1019
        %2116 = vmatprep.subr.bf16.mxu0 0
        %2117 = vmatpush1.bf16.msra.mxu0 0
        %2118 = vmatprep.subr.bf16.mxu0 0
        %2119 = vmatpush1.bf16.msra.mxu0 0
        %2120 = vmatprep.subr.bf16.mxu0 0
        %2121 = vmatpush1.bf16.msra.mxu0 0
        %2122 = vmatprep.subr.bf16.mxu0 0
        %2123 = vmatpush1.bf16.msra.mxu0 0
        %2124 = vmatprep.subr.bf16.mxu0 0
        %2125 = vmatpush1.bf16.msra.mxu0 0
        %2126 = vmatprep.subr.bf16.mxu0 0
        %2127 = vmatpush1.bf16.msra.mxu0 0
        %2128 = vmatprep.subr.bf16.mxu0 0
        %2129 = vmatpush1.bf16.msra.mxu0 0
        %2130 = vmatprep.subr.bf16.mxu0 0
        %2131 = vmatpush1.bf16.msra.mxu0 0
        %2132 = vmatprep.mubr.bf16.mxu0 0
        %2133 = vmatmul.mubr.bf16.gmra.mrb[0].mxu0 %v373
        %v2134 = vpop.f32.mrb[0].mxu0
        %v2135 = vadd.f32 %v548, %v2134
        %v2136 = vpop.f32.mrb[0].mxu0
        %v2137 = vadd.f32 %v552, %v2136
        %v2138 = vpop.f32.mrb[0].mxu0
        %v2139 = vadd.f32 %v548, %v2138
        %v2140 = vpop.f32.mrb[0].mxu0
        %v2141 = vadd.f32 %v552, %v2140
        %2142 = vmatprep.mubr.bf16.mxu0 0
        %2143 = vmatmul.mubr.bf16.gmra.mrb[0].mxu0 %v374
        %v2144 = vpop.f32.mrb[0].mxu0
        %v2145 = vadd.f32 %v548, %v2144
        %v2146 = vpop.f32.mrb[0].mxu0
        %v2147 = vadd.f32 %v552, %v2146
        %v2148 = vpop.f32.mrb[0].mxu0
        %v2149 = vadd.f32 %v548, %v2148
        %v2150 = vpop.f32.mrb[0].mxu0
        %v2151 = vadd.f32 %v552, %v2150
        %2152 = vmatprep.mubr.bf16.mxu0 0
        %2153 = vmatmul.mubr.bf16.gmra.mrb[0].mxu0 %v375
        %v2154 = vpop.f32.mrb[0].mxu0
        %v2155 = vadd.f32 %v548, %v2154
        %v2156 = vpop.f32.mrb[0].mxu0
        %v2157 = vadd.f32 %v552, %v2156
        %v2158 = vpop.f32.mrb[0].mxu0
        %v2159 = vadd.f32 %v548, %v2158
        %v2160 = vpop.f32.mrb[0].mxu0
        %v2161 = vadd.f32 %v552, %v2160
        %2162 = vmatprep.mubr.bf16.mxu0 0
        %2163 = vmatmul.mubr.bf16.gmra.mrb[0].mxu0 %v376
        %v2164 = vpop.f32.mrb[0].mxu0
        %v2165 = vadd.f32 %v548, %v2164
        %v2166 = vpop.f32.mrb[0].mxu0
        %v2167 = vadd.f32 %v552, %v2166
        %v2168 = vpop.f32.mrb[0].mxu0
        %v2169 = vadd.f32 %v548, %v2168
        %v2170 = vpop.f32.mrb[0].mxu0
        %v2171 = vadd.f32 %v552, %v2170
        %2172 = vmatprep.mubr.bf16.mxu0 0
        %2173 = vmatmul.mubr.bf16.gmra.mrb[0].mxu0 %v377
        %v2174 = vpop.f32.mrb[0].mxu0
        %v2175 = vadd.f32 %v548, %v2174
        %v2176 = vpop.f32.mrb[0].mxu0
        %v2177 = vadd.f32 %v552, %v2176
        %v2178 = vpop.f32.mrb[0].mxu0
        %v2179 = vadd.f32 %v548, %v2178
        %v2180 = vpop.f32.mrb[0].mxu0
        %v2181 = vadd.f32 %v552, %v2180
        %2182 = vmatprep.mubr.bf16.mxu0 0
        %2183 = vmatmul.mubr.bf16.gmra.mrb[0].mxu0 %v378
        %v2184 = vpop.f32.mrb[0].mxu0
        %v2185 = vadd.f32 %v548, %v2184
        %v2186 = vpop.f32.mrb[0].mxu0
        %v2187 = vadd.f32 %v552, %v2186
        %v2188 = vpop.f32.mrb[0].mxu0
        %v2189 = vadd.f32 %v548, %v2188
        %v2190 = vpop.f32.mrb[0].mxu0
        %v2191 = vadd.f32 %v552, %v2190
        %2192 = vmatprep.mubr.bf16.mxu0 0
        %2193 = vmatmul.mubr.bf16.gmra.mrb[0].mxu0 %v379
        %v2194 = vpop.f32.mrb[0].mxu0
        %v2195 = vadd.f32 %v548, %v2194
        %v2196 = vpop.f32.mrb[0].mxu0
        %v2197 = vadd.f32 %v552, %v2196
        %v2198 = vpop.f32.mrb[0].mxu0
        %v2199 = vadd.f32 %v548, %v2198
        %v2200 = vpop.f32.mrb[0].mxu0
        %v2201 = vadd.f32 %v552, %v2200
        %2202 = vmatprep.mubr.bf16.mxu0 0
        %2203 = vmatmul.mubr.bf16.gmra.mrb[0].mxu0 %v380
        %v2204 = vpop.f32.mrb[0].mxu0
        %v2205 = vadd.f32 %v548, %v2204
        %v2206 = vpop.f32.mrb[0].mxu0
        %v2207 = vadd.f32 %v552, %v2206
        %v2208 = vpop.f32.mrb[0].mxu0
        %v2209 = vadd.f32 %v548, %v2208
        %v2210 = vpop.f32.mrb[0].mxu0
        %v2211 = vadd.f32 %v552, %v2210
        %2212 = vmatprep.mubr.bf16.mxu0 0
        %2213 = vmatmul.mubr.bf16.gmra.mrb[0].mxu0 %v381
        %v2214 = vpop.f32.mrb[0].mxu0
        %v2215 = vadd.f32 %v548, %v2214
        %v2216 = vpop.f32.mrb[0].mxu0
        %v2217 = vadd.f32 %v552, %v2216
        %v2218 = vpop.f32.mrb[0].mxu0
        %v2219 = vadd.f32 %v548, %v2218
        %v2220 = vpop.f32.mrb[0].mxu0
        %v2221 = vadd.f32 %v552, %v2220
        %2222 = vmatprep.mubr.bf16.mxu0 0
        %2223 = vmatmul.mubr.bf16.gmra.mrb[0].mxu0 %v382
        %v2224 = vpop.f32.mrb[0].mxu0
        %v2225 = vadd.f32 %v548, %v2224
        %v2226 = vpop.f32.mrb[0].mxu0
        %v2227 = vadd.f32 %v552, %v2226
        %v2228 = vpop.f32.mrb[0].mxu0
        %v2229 = vadd.f32 %v548, %v2228
        %v2230 = vpop.f32.mrb[0].mxu0
        %v2231 = vadd.f32 %v552, %v2230
        %2232 = vmatprep.mubr.bf16.mxu0 0
        %2233 = vmatmul.mubr.bf16.gmra.mrb[0].mxu0 %v383
        %v2234 = vpop.f32.mrb[0].mxu0
        %v2235 = vadd.f32 %v548, %v2234
        %v2236 = vpop.f32.mrb[0].mxu0
        %v2237 = vadd.f32 %v552, %v2236
        %v2238 = vpop.f32.mrb[0].mxu0
        %v2239 = vadd.f32 %v548, %v2238
        %v2240 = vpop.f32.mrb[0].mxu0
        %v2241 = vadd.f32 %v552, %v2240
        %2242 = vmatprep.mubr.bf16.mxu0 0
        %2243 = vmatmul.mubr.bf16.gmra.mrb[0].mxu0 %v384
        %v2244 = vpop.f32.mrb[0].mxu0
        %v2245 = vadd.f32 %v548, %v2244
        %v2246 = vpop.f32.mrb[0].mxu0
        %v2247 = vadd.f32 %v552, %v2246
        %v2248 = vpop.f32.mrb[0].mxu0
        %v2249 = vadd.f32 %v548, %v2248
        %v2250 = vpop.f32.mrb[0].mxu0
        %v2251 = vadd.f32 %v552, %v2250
        %2252 = vmatprep.mubr.bf16.mxu0 0
        %2253 = vmatmul.mubr.bf16.gmra.mrb[0].mxu0 %v385
        %v2254 = vpop.f32.mrb[0].mxu0
        %v2255 = vadd.f32 %v548, %v2254
        %v2256 = vpop.f32.mrb[0].mxu0
        %v2257 = vadd.f32 %v552, %v2256
        %v2258 = vpop.f32.mrb[0].mxu0
        %v2259 = vadd.f32 %v548, %v2258
        %v2260 = vpop.f32.mrb[0].mxu0
        %v2261 = vadd.f32 %v552, %v2260
        %2262 = vmatprep.mubr.bf16.mxu0 0
        %2263 = vmatmul.mubr.bf16.gmra.mrb[0].mxu0 %v386
        %v2264 = vpop.f32.mrb[0].mxu0
        %v2265 = vadd.f32 %v548, %v2264
        %v2266 = vpop.f32.mrb[0].mxu0
        %v2267 = vadd.f32 %v552, %v2266
        %v2268 = vpop.f32.mrb[0].mxu0
        %v2269 = vadd.f32 %v548, %v2268
        %v2270 = vpop.f32.mrb[0].mxu0
        %v2271 = vadd.f32 %v552, %v2270
        %2272 = vmatprep.mubr.bf16.mxu0 0
        %2273 = vmatmul.mubr.bf16.gmra.mrb[0].mxu0 %v387
        %v2274 = vpop.f32.mrb[0].mxu0
        %v2275 = vadd.f32 %v548, %v2274
        %v2276 = vpop.f32.mrb[0].mxu0
        %v2277 = vadd.f32 %v552, %v2276
        %v2278 = vpop.f32.mrb[0].mxu0
        %v2279 = vadd.f32 %v548, %v2278
        %v2280 = vpop.f32.mrb[0].mxu0
        %v2281 = vadd.f32 %v552, %v2280
        %2282 = vmatprep.mubr.bf16.mxu0 0
        %2283 = vmatmul.mubr.bf16.gmra.mrb[0].mxu0 %v388
        %v2284 = vpop.f32.mrb[0].mxu0
        %v2285 = vadd.f32 %v548, %v2284
        %v2286 = vpop.f32.mrb[0].mxu0
        %v2287 = vadd.f32 %v552, %v2286
        %v2288 = vpop.f32.mrb[0].mxu0
        %v2289 = vadd.f32 %v548, %v2288
        %v2290 = vpop.f32.mrb[0].mxu0
        %v2291 = vadd.f32 %v552, %v2290
        %2292 = vdwg.mxu0
        %2293 = vmatprep.subr.bf16.mxu0 %v924
        %2294 = vmatpush1.bf16.msra.mxu0 %v923
        %2295 = vmatprep.subr.bf16.mxu0 %v938
        %2296 = vmatpush1.bf16.msra.mxu0 %v937
        %2297 = vmatprep.subr.bf16.mxu0 %v952
        %2298 = vmatpush1.bf16.msra.mxu0 %v951
        %2299 = vmatprep.subr.bf16.mxu0 %v966
        %2300 = vmatpush1.bf16.msra.mxu0 %v965
        %2301 = vmatprep.subr.bf16.mxu0 %v980
        %2302 = vmatpush1.bf16.msra.mxu0 %v979
        %2303 = vmatprep.subr.bf16.mxu0 %v994
        %2304 = vmatpush1.bf16.msra.mxu0 %v993
        %2305 = vmatprep.subr.bf16.mxu0 %v1008
        %2306 = vmatpush1.bf16.msra.mxu0 %v1007
        %2307 = vmatprep.subr.bf16.mxu0 %v1022
        %2308 = vmatpush1.bf16.msra.mxu0 %v1021
        %2309 = vmatprep.subr.bf16.mxu0 0
        %2310 = vmatpush1.bf16.msra.mxu0 0
        %2311 = vmatprep.subr.bf16.mxu0 0
        %2312 = vmatpush1.bf16.msra.mxu0 0
        %2313 = vmatprep.subr.bf16.mxu0 0
        %2314 = vmatpush1.bf16.msra.mxu0 0
        %2315 = vmatprep.subr.bf16.mxu0 0
        %2316 = vmatpush1.bf16.msra.mxu0 0
        %2317 = vmatprep.subr.bf16.mxu0 0
        %2318 = vmatpush1.bf16.msra.mxu0 0
        %2319 = vmatprep.subr.bf16.mxu0 0
        %2320 = vmatpush1.bf16.msra.mxu0 0
        %2321 = vmatprep.subr.bf16.mxu0 0
        %2322 = vmatpush1.bf16.msra.mxu0 0
        %2323 = vmatprep.subr.bf16.mxu0 0
        %2324 = vmatpush1.bf16.msra.mxu0 0
        %2325 = vmatprep.mubr.bf16.mxu0 0
        %2326 = vmatmul.mubr.bf16.gmra.mrb[0].mxu0 %v373
        %v2327 = vpop.f32.mrb[0].mxu0
        %v2328 = vadd.f32 %v556, %v2327
        %v2329 = vpop.f32.mrb[0].mxu0
        %v2330 = vadd.f32 %v560, %v2329
        %v2331 = vpop.f32.mrb[0].mxu0
        %v2332 = vadd.f32 %v556, %v2331
        %v2333 = vpop.f32.mrb[0].mxu0
        %v2334 = vadd.f32 %v560, %v2333
        %2335 = vmatprep.mubr.bf16.mxu0 0
        %2336 = vmatmul.mubr.bf16.gmra.mrb[0].mxu0 %v374
        %v2337 = vpop.f32.mrb[0].mxu0
        %v2338 = vadd.f32 %v556, %v2337
        %v2339 = vpop.f32.mrb[0].mxu0
        %v2340 = vadd.f32 %v560, %v2339
        %v2341 = vpop.f32.mrb[0].mxu0
        %v2342 = vadd.f32 %v556, %v2341
        %v2343 = vpop.f32.mrb[0].mxu0
        %v2344 = vadd.f32 %v560, %v2343
        %2345 = vmatprep.mubr.bf16.mxu0 0
        %2346 = vmatmul.mubr.bf16.gmra.mrb[0].mxu0 %v375
        %v2347 = vpop.f32.mrb[0].mxu0
        %v2348 = vadd.f32 %v556, %v2347
        %v2349 = vpop.f32.mrb[0].mxu0
        %v2350 = vadd.f32 %v560, %v2349
        %v2351 = vpop.f32.mrb[0].mxu0
        %v2352 = vadd.f32 %v556, %v2351
        %v2353 = vpop.f32.mrb[0].mxu0
        %v2354 = vadd.f32 %v560, %v2353
        %2355 = vmatprep.mubr.bf16.mxu0 0
        %2356 = vmatmul.mubr.bf16.gmra.mrb[0].mxu0 %v376
        %v2357 = vpop.f32.mrb[0].mxu0
        %v2358 = vadd.f32 %v556, %v2357
        %v2359 = vpop.f32.mrb[0].mxu0
        %v2360 = vadd.f32 %v560, %v2359
        %v2361 = vpop.f32.mrb[0].mxu0
        %v2362 = vadd.f32 %v556, %v2361
        %v2363 = vpop.f32.mrb[0].mxu0
        %v2364 = vadd.f32 %v560, %v2363
        %2365 = vmatprep.mubr.bf16.mxu0 0
        %2366 = vmatmul.mubr.bf16.gmra.mrb[0].mxu0 %v377
        %v2367 = vpop.f32.mrb[0].mxu0
        %v2368 = vadd.f32 %v556, %v2367
        %v2369 = vpop.f32.mrb[0].mxu0
        %v2370 = vadd.f32 %v560, %v2369
        %v2371 = vpop.f32.mrb[0].mxu0
        %v2372 = vadd.f32 %v556, %v2371
        %v2373 = vpop.f32.mrb[0].mxu0
        %v2374 = vadd.f32 %v560, %v2373
        %2375 = vmatprep.mubr.bf16.mxu0 0
        %2376 = vmatmul.mubr.bf16.gmra.mrb[0].mxu0 %v378
        %v2377 = vpop.f32.mrb[0].mxu0
        %v2378 = vadd.f32 %v556, %v2377
        %v2379 = vpop.f32.mrb[0].mxu0
        %v2380 = vadd.f32 %v560, %v2379
        %v2381 = vpop.f32.mrb[0].mxu0
        %v2382 = vadd.f32 %v556, %v2381
        %v2383 = vpop.f32.mrb[0].mxu0
        %v2384 = vadd.f32 %v560, %v2383
        %2385 = vmatprep.mubr.bf16.mxu0 0
        %2386 = vmatmul.mubr.bf16.gmra.mrb[0].mxu0 %v379
        %v2387 = vpop.f32.mrb[0].mxu0
        %v2388 = vadd.f32 %v556, %v2387
        %v2389 = vpop.f32.mrb[0].mxu0
        %v2390 = vadd.f32 %v560, %v2389
        %v2391 = vpop.f32.mrb[0].mxu0
        %v2392 = vadd.f32 %v556, %v2391
        %v2393 = vpop.f32.mrb[0].mxu0
        %v2394 = vadd.f32 %v560, %v2393
        %2395 = vmatprep.mubr.bf16.mxu0 0
        %2396 = vmatmul.mubr.bf16.gmra.mrb[0].mxu0 %v380
        %v2397 = vpop.f32.mrb[0].mxu0
        %v2398 = vadd.f32 %v556, %v2397
        %v2399 = vpop.f32.mrb[0].mxu0
        %v2400 = vadd.f32 %v560, %v2399
        %v2401 = vpop.f32.mrb[0].mxu0
        %v2402 = vadd.f32 %v556, %v2401
        %v2403 = vpop.f32.mrb[0].mxu0
        %v2404 = vadd.f32 %v560, %v2403
        %2405 = vmatprep.mubr.bf16.mxu0 0
        %2406 = vmatmul.mubr.bf16.gmra.mrb[0].mxu0 %v381
        %v2407 = vpop.f32.mrb[0].mxu0
        %v2408 = vadd.f32 %v556, %v2407
        %v2409 = vpop.f32.mrb[0].mxu0
        %v2410 = vadd.f32 %v560, %v2409
        %v2411 = vpop.f32.mrb[0].mxu0
        %v2412 = vadd.f32 %v556, %v2411
        %v2413 = vpop.f32.mrb[0].mxu0
        %v2414 = vadd.f32 %v560, %v2413
        %2415 = vmatprep.mubr.bf16.mxu0 0
        %2416 = vmatmul.mubr.bf16.gmra.mrb[0].mxu0 %v382
        %v2417 = vpop.f32.mrb[0].mxu0
        %v2418 = vadd.f32 %v556, %v2417
        %v2419 = vpop.f32.mrb[0].mxu0
        %v2420 = vadd.f32 %v560, %v2419
        %v2421 = vpop.f32.mrb[0].mxu0
        %v2422 = vadd.f32 %v556, %v2421
        %v2423 = vpop.f32.mrb[0].mxu0
        %v2424 = vadd.f32 %v560, %v2423
        %2425 = vmatprep.mubr.bf16.mxu0 0
        %2426 = vmatmul.mubr.bf16.gmra.mrb[0].mxu0 %v383
        %v2427 = vpop.f32.mrb[0].mxu0
        %v2428 = vadd.f32 %v556, %v2427
        %v2429 = vpop.f32.mrb[0].mxu0
        %v2430 = vadd.f32 %v560, %v2429
        %v2431 = vpop.f32.mrb[0].mxu0
        %v2432 = vadd.f32 %v556, %v2431
        %v2433 = vpop.f32.mrb[0].mxu0
        %v2434 = vadd.f32 %v560, %v2433
        %2435 = vmatprep.mubr.bf16.mxu0 0
        %2436 = vmatmul.mubr.bf16.gmra.mrb[0].mxu0 %v384
        %v2437 = vpop.f32.mrb[0].mxu0
        %v2438 = vadd.f32 %v556, %v2437
        %v2439 = vpop.f32.mrb[0].mxu0
        %v2440 = vadd.f32 %v560, %v2439
        %v2441 = vpop.f32.mrb[0].mxu0
        %v2442 = vadd.f32 %v556, %v2441
        %v2443 = vpop.f32.mrb[0].mxu0
        %v2444 = vadd.f32 %v560, %v2443
        %2445 = vmatprep.mubr.bf16.mxu0 0
        %2446 = vmatmul.mubr.bf16.gmra.mrb[0].mxu0 %v385
        %v2447 = vpop.f32.mrb[0].mxu0
        %v2448 = vadd.f32 %v556, %v2447
        %v2449 = vpop.f32.mrb[0].mxu0
        %v2450 = vadd.f32 %v560, %v2449
        %v2451 = vpop.f32.mrb[0].mxu0
        %v2452 = vadd.f32 %v556, %v2451
        %v2453 = vpop.f32.mrb[0].mxu0
        %v2454 = vadd.f32 %v560, %v2453
        %2455 = vmatprep.mubr.bf16.mxu0 0
        %2456 = vmatmul.mubr.bf16.gmra.mrb[0].mxu0 %v386
        %v2457 = vpop.f32.mrb[0].mxu0
        %v2458 = vadd.f32 %v556, %v2457
        %v2459 = vpop.f32.mrb[0].mxu0
        %v2460 = vadd.f32 %v560, %v2459
        %v2461 = vpop.f32.mrb[0].mxu0
        %v2462 = vadd.f32 %v556, %v2461
        %v2463 = vpop.f32.mrb[0].mxu0
        %v2464 = vadd.f32 %v560, %v2463
        %2465 = vmatprep.mubr.bf16.mxu0 0
        %2466 = vmatmul.mubr.bf16.gmra.mrb[0].mxu0 %v387
        %v2467 = vpop.f32.mrb[0].mxu0
        %v2468 = vadd.f32 %v556, %v2467
        %v2469 = vpop.f32.mrb[0].mxu0
        %v2470 = vadd.f32 %v560, %v2469
        %v2471 = vpop.f32.mrb[0].mxu0
        %v2472 = vadd.f32 %v556, %v2471
        %v2473 = vpop.f32.mrb[0].mxu0
        %v2474 = vadd.f32 %v560, %v2473
        %2475 = vmatprep.mubr.bf16.mxu0 0
        %2476 = vmatmul.mubr.bf16.gmra.mrb[0].mxu0 %v388
        %v2477 = vpop.f32.mrb[0].mxu0
        %v2478 = vadd.f32 %v556, %v2477
        %v2479 = vpop.f32.mrb[0].mxu0
        %v2480 = vadd.f32 %v560, %v2479
        %v2481 = vpop.f32.mrb[0].mxu0
        %v2482 = vadd.f32 %v556, %v2481
        %v2483 = vpop.f32.mrb[0].mxu0
        %v2484 = vadd.f32 %v560, %v2483
        %2485 = vdwg.mxu0
        %v2486 = vxor.u32 %v1170, 2147483648
        %v2487 = vxor.u32 %v1172, 2147483648
        %v2488 = vxor.u32 %v1363, 2147483648
        %v2489 = vxor.u32 %v1365, 2147483648
        %v2490 = vxor.u32 %v1556, 2147483648
        %v2491 = vxor.u32 %v1558, 2147483648
        %v2492 = vxor.u32 %v1749, 2147483648
        %v2493 = vxor.u32 %v1751, 2147483648
        %v2494 = vxor.u32 %v1942, 2147483648
        %v2495 = vxor.u32 %v1944, 2147483648
        %v2496 = vxor.u32 %v2135, 2147483648
        %v2497 = vxor.u32 %v2137, 2147483648
        %v2498 = vxor.u32 %v2328, 2147483648
        %v2499 = vxor.u32 %v2330, 2147483648
        %v2500 = vxor.u32 %v1174, 2147483648
        %v2501 = vxor.u32 %v1176, 2147483648
        %v2502 = vxor.u32 %v1367, 2147483648
        %v2503 = vxor.u32 %v1369, 2147483648
        %v2504 = vxor.u32 %v1560, 2147483648
        %v2505 = vxor.u32 %v1562, 2147483648
        %v2506 = vxor.u32 %v1753, 2147483648
        %v2507 = vxor.u32 %v1755, 2147483648
        %v2508 = vxor.u32 %v1946, 2147483648
        %v2509 = vxor.u32 %v1948, 2147483648
        %v2510 = vxor.u32 %v2139, 2147483648
        %v2511 = vxor.u32 %v2141, 2147483648
        %v2512 = vxor.u32 %v2332, 2147483648
        %v2513 = vxor.u32 %v2334, 2147483648
        %v2514 = vxor.u32 %v1180, 2147483648
        %v2515 = vxor.u32 %v1182, 2147483648
        %v2516 = vxor.u32 %v1373, 2147483648
        %v2517 = vxor.u32 %v1375, 2147483648
        %v2518 = vxor.u32 %v1566, 2147483648
        %v2519 = vxor.u32 %v1568, 2147483648
        %v2520 = vxor.u32 %v1759, 2147483648
        %v2521 = vxor.u32 %v1761, 2147483648
        %v2522 = vxor.u32 %v1952, 2147483648
        %v2523 = vxor.u32 %v1954, 2147483648
        %v2524 = vxor.u32 %v2145, 2147483648
        %v2525 = vxor.u32 %v2147, 2147483648
        %v2526 = vxor.u32 %v2338, 2147483648
        %v2527 = vxor.u32 %v2340, 2147483648
        %v2528 = vxor.u32 %v1184, 2147483648
        %v2529 = vxor.u32 %v1186, 2147483648
        %v2530 = vxor.u32 %v1377, 2147483648
        %v2531 = vxor.u32 %v1379, 2147483648
        %v2532 = vxor.u32 %v1570, 2147483648
        %v2533 = vxor.u32 %v1572, 2147483648
        %v2534 = vxor.u32 %v1763, 2147483648
        %v2535 = vxor.u32 %v1765, 2147483648
        %v2536 = vxor.u32 %v1956, 2147483648
        %v2537 = vxor.u32 %v1958, 2147483648
        %v2538 = vxor.u32 %v2149, 2147483648
        %v2539 = vxor.u32 %v2151, 2147483648
        %v2540 = vxor.u32 %v2342, 2147483648
        %v2541 = vxor.u32 %v2344, 2147483648
        %v2542 = vxor.u32 %v1190, 2147483648
        %v2543 = vxor.u32 %v1192, 2147483648
        %v2544 = vxor.u32 %v1383, 2147483648
        %v2545 = vxor.u32 %v1385, 2147483648
        %v2546 = vxor.u32 %v1576, 2147483648
        %v2547 = vxor.u32 %v1578, 2147483648
        %v2548 = vxor.u32 %v1769, 2147483648
        %v2549 = vxor.u32 %v1771, 2147483648
        %v2550 = vxor.u32 %v1962, 2147483648
        %v2551 = vxor.u32 %v1964, 2147483648
        %v2552 = vxor.u32 %v2155, 2147483648
        %v2553 = vxor.u32 %v2157, 2147483648
        %v2554 = vxor.u32 %v2348, 2147483648
        %v2555 = vxor.u32 %v2350, 2147483648
        %v2556 = vxor.u32 %v1194, 2147483648
        %v2557 = vxor.u32 %v1196, 2147483648
        %v2558 = vxor.u32 %v1387, 2147483648
        %v2559 = vxor.u32 %v1389, 2147483648
        %v2560 = vxor.u32 %v1580, 2147483648
        %v2561 = vxor.u32 %v1582, 2147483648
        %v2562 = vxor.u32 %v1773, 2147483648
        %v2563 = vxor.u32 %v1775, 2147483648
        %v2564 = vxor.u32 %v1966, 2147483648
        %v2565 = vxor.u32 %v1968, 2147483648
        %v2566 = vxor.u32 %v2159, 2147483648
        %v2567 = vxor.u32 %v2161, 2147483648
        %v2568 = vxor.u32 %v2352, 2147483648
        %v2569 = vxor.u32 %v2354, 2147483648
        %v2570 = vxor.u32 %v1200, 2147483648
        %v2571 = vxor.u32 %v1202, 2147483648
        %v2572 = vxor.u32 %v1393, 2147483648
        %v2573 = vxor.u32 %v1395, 2147483648
        %v2574 = vxor.u32 %v1586, 2147483648
        %v2575 = vxor.u32 %v1588, 2147483648
        %v2576 = vxor.u32 %v1779, 2147483648
        %v2577 = vxor.u32 %v1781, 2147483648
        %v2578 = vxor.u32 %v1972, 2147483648
        %v2579 = vxor.u32 %v1974, 2147483648
        %v2580 = vxor.u32 %v2165, 2147483648
        %v2581 = vxor.u32 %v2167, 2147483648
        %v2582 = vxor.u32 %v2358, 2147483648
        %v2583 = vxor.u32 %v2360, 2147483648
        %v2584 = vxor.u32 %v1204, 2147483648
        %v2585 = vxor.u32 %v1206, 2147483648
        %v2586 = vxor.u32 %v1397, 2147483648
        %v2587 = vxor.u32 %v1399, 2147483648
        %v2588 = vxor.u32 %v1590, 2147483648
        %v2589 = vxor.u32 %v1592, 2147483648
        %v2590 = vxor.u32 %v1783, 2147483648
        %v2591 = vxor.u32 %v1785, 2147483648
        %v2592 = vxor.u32 %v1976, 2147483648
        %v2593 = vxor.u32 %v1978, 2147483648
        %v2594 = vxor.u32 %v2169, 2147483648
        %v2595 = vxor.u32 %v2171, 2147483648
        %v2596 = vxor.u32 %v2362, 2147483648
        %v2597 = vxor.u32 %v2364, 2147483648
        %v2598 = vxor.u32 %v1210, 2147483648
        %v2599 = vxor.u32 %v1212, 2147483648
        %v2600 = vxor.u32 %v1403, 2147483648
        %v2601 = vxor.u32 %v1405, 2147483648
        %v2602 = vxor.u32 %v1596, 2147483648
        %v2603 = vxor.u32 %v1598, 2147483648
        %v2604 = vxor.u32 %v1789, 2147483648
        %v2605 = vxor.u32 %v1791, 2147483648
        %v2606 = vxor.u32 %v1982, 2147483648
        %v2607 = vxor.u32 %v1984, 2147483648
        %v2608 = vxor.u32 %v2175, 2147483648
        %v2609 = vxor.u32 %v2177, 2147483648
        %v2610 = vxor.u32 %v2368, 2147483648
        %v2611 = vxor.u32 %v2370, 2147483648
        %v2612 = vxor.u32 %v1214, 2147483648
        %v2613 = vxor.u32 %v1216, 2147483648
        %v2614 = vxor.u32 %v1407, 2147483648
        %v2615 = vxor.u32 %v1409, 2147483648
        %v2616 = vxor.u32 %v1600, 2147483648
        %v2617 = vxor.u32 %v1602, 2147483648
        %v2618 = vxor.u32 %v1793, 2147483648
        %v2619 = vxor.u32 %v1795, 2147483648
        %v2620 = vxor.u32 %v1986, 2147483648
        %v2621 = vxor.u32 %v1988, 2147483648
        %v2622 = vxor.u32 %v2179, 2147483648
        %v2623 = vxor.u32 %v2181, 2147483648
        %v2624 = vxor.u32 %v2372, 2147483648
        %v2625 = vxor.u32 %v2374, 2147483648
        %v2626 = vxor.u32 %v1220, 2147483648
        %v2627 = vxor.u32 %v1222, 2147483648
        %v2628 = vxor.u32 %v1413, 2147483648
        %v2629 = vxor.u32 %v1415, 2147483648
        %v2630 = vxor.u32 %v1606, 2147483648
        %v2631 = vxor.u32 %v1608, 2147483648
        %v2632 = vxor.u32 %v1799, 2147483648
        %v2633 = vxor.u32 %v1801, 2147483648
        %v2634 = vxor.u32 %v1992, 2147483648
        %v2635 = vxor.u32 %v1994, 2147483648
        %v2636 = vxor.u32 %v2185, 2147483648
        %v2637 = vxor.u32 %v2187, 2147483648
        %v2638 = vxor.u32 %v2378, 2147483648
        %v2639 = vxor.u32 %v2380, 2147483648
        %v2640 = vxor.u32 %v1224, 2147483648
        %v2641 = vxor.u32 %v1226, 2147483648
        %v2642 = vxor.u32 %v1417, 2147483648
        %v2643 = vxor.u32 %v1419, 2147483648
        %v2644 = vxor.u32 %v1610, 2147483648
        %v2645 = vxor.u32 %v1612, 2147483648
        %v2646 = vxor.u32 %v1803, 2147483648
        %v2647 = vxor.u32 %v1805, 2147483648
        %v2648 = vxor.u32 %v1996, 2147483648
        %v2649 = vxor.u32 %v1998, 2147483648
        %v2650 = vxor.u32 %v2189, 2147483648
        %v2651 = vxor.u32 %v2191, 2147483648
        %v2652 = vxor.u32 %v2382, 2147483648
        %v2653 = vxor.u32 %v2384, 2147483648
        %v2654 = vxor.u32 %v1230, 2147483648
        %v2655 = vxor.u32 %v1232, 2147483648
        %v2656 = vxor.u32 %v1423, 2147483648
        %v2657 = vxor.u32 %v1425, 2147483648
        %v2658 = vxor.u32 %v1616, 2147483648
        %v2659 = vxor.u32 %v1618, 2147483648
        %v2660 = vxor.u32 %v1809, 2147483648
        %v2661 = vxor.u32 %v1811, 2147483648
        %v2662 = vxor.u32 %v2002, 2147483648
        %v2663 = vxor.u32 %v2004, 2147483648
        %v2664 = vxor.u32 %v2195, 2147483648
        %v2665 = vxor.u32 %v2197, 2147483648
        %v2666 = vxor.u32 %v2388, 2147483648
        %v2667 = vxor.u32 %v2390, 2147483648
        %v2668 = vxor.u32 %v1234, 2147483648
        %v2669 = vxor.u32 %v1236, 2147483648
        %v2670 = vxor.u32 %v1427, 2147483648
        %v2671 = vxor.u32 %v1429, 2147483648
        %v2672 = vxor.u32 %v1620, 2147483648
        %v2673 = vxor.u32 %v1622, 2147483648
        %v2674 = vxor.u32 %v1813, 2147483648
        %v2675 = vxor.u32 %v1815, 2147483648
        %v2676 = vxor.u32 %v2006, 2147483648
        %v2677 = vxor.u32 %v2008, 2147483648
        %v2678 = vxor.u32 %v2199, 2147483648
        %v2679 = vxor.u32 %v2201, 2147483648
        %v2680 = vxor.u32 %v2392, 2147483648
        %v2681 = vxor.u32 %v2394, 2147483648
        %v2682 = vxor.u32 %v1240, 2147483648
        %v2683 = vxor.u32 %v1242, 2147483648
        %v2684 = vxor.u32 %v1433, 2147483648
        %v2685 = vxor.u32 %v1435, 2147483648
        %v2686 = vxor.u32 %v1626, 2147483648
        %v2687 = vxor.u32 %v1628, 2147483648
        %v2688 = vxor.u32 %v1819, 2147483648
        %v2689 = vxor.u32 %v1821, 2147483648
        %v2690 = vxor.u32 %v2012, 2147483648
        %v2691 = vxor.u32 %v2014, 2147483648
        %v2692 = vxor.u32 %v2205, 2147483648
        %v2693 = vxor.u32 %v2207, 2147483648
        %v2694 = vxor.u32 %v2398, 2147483648
        %v2695 = vxor.u32 %v2400, 2147483648
        %v2696 = vxor.u32 %v1244, 2147483648
        %v2697 = vxor.u32 %v1246, 2147483648
        %v2698 = vxor.u32 %v1437, 2147483648
        %v2699 = vxor.u32 %v1439, 2147483648
        %v2700 = vxor.u32 %v1630, 2147483648
        %v2701 = vxor.u32 %v1632, 2147483648
        %v2702 = vxor.u32 %v1823, 2147483648
        %v2703 = vxor.u32 %v1825, 2147483648
        %v2704 = vxor.u32 %v2016, 2147483648
        %v2705 = vxor.u32 %v2018, 2147483648
        %v2706 = vxor.u32 %v2209, 2147483648
        %v2707 = vxor.u32 %v2211, 2147483648
        %v2708 = vxor.u32 %v2402, 2147483648
        %v2709 = vxor.u32 %v2404, 2147483648
        %v2710 = vxor.u32 %v1250, 2147483648
        %v2711 = vxor.u32 %v1252, 2147483648
        %v2712 = vxor.u32 %v1443, 2147483648
        %v2713 = vxor.u32 %v1445, 2147483648
        %v2714 = vxor.u32 %v1636, 2147483648
        %v2715 = vxor.u32 %v1638, 2147483648
        %v2716 = vxor.u32 %v1829, 2147483648
        %v2717 = vxor.u32 %v1831, 2147483648
        %v2718 = vxor.u32 %v2022, 2147483648
        %v2719 = vxor.u32 %v2024, 2147483648
        %v2720 = vxor.u32 %v2215, 2147483648
        %v2721 = vxor.u32 %v2217, 2147483648
        %v2722 = vxor.u32 %v2408, 2147483648
        %v2723 = vxor.u32 %v2410, 2147483648
        %v2724 = vxor.u32 %v1254, 2147483648
        %v2725 = vxor.u32 %v1256, 2147483648
        %v2726 = vxor.u32 %v1447, 2147483648
        %v2727 = vxor.u32 %v1449, 2147483648
        %v2728 = vxor.u32 %v1640, 2147483648
        %v2729 = vxor.u32 %v1642, 2147483648
        %v2730 = vxor.u32 %v1833, 2147483648
        %v2731 = vxor.u32 %v1835, 2147483648
        %v2732 = vxor.u32 %v2026, 2147483648
        %v2733 = vxor.u32 %v2028, 2147483648
        %v2734 = vxor.u32 %v2219, 2147483648
        %v2735 = vxor.u32 %v2221, 2147483648
        %v2736 = vxor.u32 %v2412, 2147483648
        %v2737 = vxor.u32 %v2414, 2147483648
        %v2738 = vxor.u32 %v1260, 2147483648
        %v2739 = vxor.u32 %v1262, 2147483648
        %v2740 = vxor.u32 %v1453, 2147483648
        %v2741 = vxor.u32 %v1455, 2147483648
        %v2742 = vxor.u32 %v1646, 2147483648
        %v2743 = vxor.u32 %v1648, 2147483648
        %v2744 = vxor.u32 %v1839, 2147483648
        %v2745 = vxor.u32 %v1841, 2147483648
        %v2746 = vxor.u32 %v2032, 2147483648
        %v2747 = vxor.u32 %v2034, 2147483648
        %v2748 = vxor.u32 %v2225, 2147483648
        %v2749 = vxor.u32 %v2227, 2147483648
        %v2750 = vxor.u32 %v2418, 2147483648
        %v2751 = vxor.u32 %v2420, 2147483648
        %v2752 = vxor.u32 %v1264, 2147483648
        %v2753 = vxor.u32 %v1266, 2147483648
        %v2754 = vxor.u32 %v1457, 2147483648
        %v2755 = vxor.u32 %v1459, 2147483648
        %v2756 = vxor.u32 %v1650, 2147483648
        %v2757 = vxor.u32 %v1652, 2147483648
        %v2758 = vxor.u32 %v1843, 2147483648
        %v2759 = vxor.u32 %v1845, 2147483648
        %v2760 = vxor.u32 %v2036, 2147483648
        %v2761 = vxor.u32 %v2038, 2147483648
        %v2762 = vxor.u32 %v2229, 2147483648
        %v2763 = vxor.u32 %v2231, 2147483648
        %v2764 = vxor.u32 %v2422, 2147483648
        %v2765 = vxor.u32 %v2424, 2147483648
        %v2766 = vxor.u32 %v1270, 2147483648
        %v2767 = vxor.u32 %v1272, 2147483648
        %v2768 = vxor.u32 %v1463, 2147483648
        %v2769 = vxor.u32 %v1465, 2147483648
        %v2770 = vxor.u32 %v1656, 2147483648
        %v2771 = vxor.u32 %v1658, 2147483648
        %v2772 = vxor.u32 %v1849, 2147483648
        %v2773 = vxor.u32 %v1851, 2147483648
        %v2774 = vxor.u32 %v2042, 2147483648
        %v2775 = vxor.u32 %v2044, 2147483648
        %v2776 = vxor.u32 %v2235, 2147483648
        %v2777 = vxor.u32 %v2237, 2147483648
        %v2778 = vxor.u32 %v2428, 2147483648
        %v2779 = vxor.u32 %v2430, 2147483648
        %v2780 = vxor.u32 %v1274, 2147483648
        %v2781 = vxor.u32 %v1276, 2147483648
        %v2782 = vxor.u32 %v1467, 2147483648
        %v2783 = vxor.u32 %v1469, 2147483648
        %v2784 = vxor.u32 %v1660, 2147483648
        %v2785 = vxor.u32 %v1662, 2147483648
        %v2786 = vxor.u32 %v1853, 2147483648
        %v2787 = vxor.u32 %v1855, 2147483648
        %v2788 = vxor.u32 %v2046, 2147483648
        %v2789 = vxor.u32 %v2048, 2147483648
        %v2790 = vxor.u32 %v2239, 2147483648
        %v2791 = vxor.u32 %v2241, 2147483648
        %v2792 = vxor.u32 %v2432, 2147483648
        %v2793 = vxor.u32 %v2434, 2147483648
        %v2794 = vxor.u32 %v1280, 2147483648
        %v2795 = vxor.u32 %v1282, 2147483648
        %v2796 = vxor.u32 %v1473, 2147483648
        %v2797 = vxor.u32 %v1475, 2147483648
        %v2798 = vxor.u32 %v1666, 2147483648
        %v2799 = vxor.u32 %v1668, 2147483648
        %v2800 = vxor.u32 %v1859, 2147483648
        %v2801 = vxor.u32 %v1861, 2147483648
        %v2802 = vxor.u32 %v2052, 2147483648
        %v2803 = vxor.u32 %v2054, 2147483648
        %v2804 = vxor.u32 %v2245, 2147483648
        %v2805 = vxor.u32 %v2247, 2147483648
        %v2806 = vxor.u32 %v2438, 2147483648
        %v2807 = vxor.u32 %v2440, 2147483648
        %v2808 = vxor.u32 %v1284, 2147483648
        %v2809 = vxor.u32 %v1286, 2147483648
        %v2810 = vxor.u32 %v1477, 2147483648
        %v2811 = vxor.u32 %v1479, 2147483648
        %v2812 = vxor.u32 %v1670, 2147483648
        %v2813 = vxor.u32 %v1672, 2147483648
        %v2814 = vxor.u32 %v1863, 2147483648
        %v2815 = vxor.u32 %v1865, 2147483648
        %v2816 = vxor.u32 %v2056, 2147483648
        %v2817 = vxor.u32 %v2058, 2147483648
        %v2818 = vxor.u32 %v2249, 2147483648
        %v2819 = vxor.u32 %v2251, 2147483648
        %v2820 = vxor.u32 %v2442, 2147483648
        %v2821 = vxor.u32 %v2444, 2147483648
        %v2822 = vxor.u32 %v1290, 2147483648
        %v2823 = vxor.u32 %v1292, 2147483648
        %v2824 = vxor.u32 %v1483, 2147483648
        %v2825 = vxor.u32 %v1485, 2147483648
        %v2826 = vxor.u32 %v1676, 2147483648
        %v2827 = vxor.u32 %v1678, 2147483648
        %v2828 = vxor.u32 %v1869, 2147483648
        %v2829 = vxor.u32 %v1871, 2147483648
        %v2830 = vxor.u32 %v2062, 2147483648
        %v2831 = vxor.u32 %v2064, 2147483648
        %v2832 = vxor.u32 %v2255, 2147483648
        %v2833 = vxor.u32 %v2257, 2147483648
        %v2834 = vxor.u32 %v2448, 2147483648
        %v2835 = vxor.u32 %v2450, 2147483648
        %v2836 = vxor.u32 %v1294, 2147483648
        %v2837 = vxor.u32 %v1296, 2147483648
        %v2838 = vxor.u32 %v1487, 2147483648
        %v2839 = vxor.u32 %v1489, 2147483648
        %v2840 = vxor.u32 %v1680, 2147483648
        %v2841 = vxor.u32 %v1682, 2147483648
        %v2842 = vxor.u32 %v1873, 2147483648
        %v2843 = vxor.u32 %v1875, 2147483648
        %v2844 = vxor.u32 %v2066, 2147483648
        %v2845 = vxor.u32 %v2068, 2147483648
        %v2846 = vxor.u32 %v2259, 2147483648
        %v2847 = vxor.u32 %v2261, 2147483648
        %v2848 = vxor.u32 %v2452, 2147483648
        %v2849 = vxor.u32 %v2454, 2147483648
        %v2850 = vxor.u32 %v1300, 2147483648
        %v2851 = vxor.u32 %v1302, 2147483648
        %v2852 = vxor.u32 %v1493, 2147483648
        %v2853 = vxor.u32 %v1495, 2147483648
        %v2854 = vxor.u32 %v1686, 2147483648
        %v2855 = vxor.u32 %v1688, 2147483648
        %v2856 = vxor.u32 %v1879, 2147483648
        %v2857 = vxor.u32 %v1881, 2147483648
        %v2858 = vxor.u32 %v2072, 2147483648
        %v2859 = vxor.u32 %v2074, 2147483648
        %v2860 = vxor.u32 %v2265, 2147483648
        %v2861 = vxor.u32 %v2267, 2147483648
        %v2862 = vxor.u32 %v2458, 2147483648
        %v2863 = vxor.u32 %v2460, 2147483648
        %v2864 = vxor.u32 %v1304, 2147483648
        %v2865 = vxor.u32 %v1306, 2147483648
        %v2866 = vxor.u32 %v1497, 2147483648
        %v2867 = vxor.u32 %v1499, 2147483648
        %v2868 = vxor.u32 %v1690, 2147483648
        %v2869 = vxor.u32 %v1692, 2147483648
        %v2870 = vxor.u32 %v1883, 2147483648
        %v2871 = vxor.u32 %v1885, 2147483648
        %v2872 = vxor.u32 %v2076, 2147483648
        %v2873 = vxor.u32 %v2078, 2147483648
        %v2874 = vxor.u32 %v2269, 2147483648
        %v2875 = vxor.u32 %v2271, 2147483648
        %v2876 = vxor.u32 %v2462, 2147483648
        %v2877 = vxor.u32 %v2464, 2147483648
        %v2878 = vxor.u32 %v1310, 2147483648
        %v2879 = vxor.u32 %v1312, 2147483648
        %v2880 = vxor.u32 %v1503, 2147483648
        %v2881 = vxor.u32 %v1505, 2147483648
        %v2882 = vxor.u32 %v1696, 2147483648
        %v2883 = vxor.u32 %v1698, 2147483648
        %v2884 = vxor.u32 %v1889, 2147483648
        %v2885 = vxor.u32 %v1891, 2147483648
        %v2886 = vxor.u32 %v2082, 2147483648
        %v2887 = vxor.u32 %v2084, 2147483648
        %v2888 = vxor.u32 %v2275, 2147483648
        %v2889 = vxor.u32 %v2277, 2147483648
        %v2890 = vxor.u32 %v2468, 2147483648
        %v2891 = vxor.u32 %v2470, 2147483648
        %v2892 = vxor.u32 %v1314, 2147483648
        %v2893 = vxor.u32 %v1316, 2147483648
        %v2894 = vxor.u32 %v1507, 2147483648
        %v2895 = vxor.u32 %v1509, 2147483648
        %v2896 = vxor.u32 %v1700, 2147483648
        %v2897 = vxor.u32 %v1702, 2147483648
        %v2898 = vxor.u32 %v1893, 2147483648
        %v2899 = vxor.u32 %v1895, 2147483648
        %v2900 = vxor.u32 %v2086, 2147483648
        %v2901 = vxor.u32 %v2088, 2147483648
        %v2902 = vxor.u32 %v2279, 2147483648
        %v2903 = vxor.u32 %v2281, 2147483648
        %v2904 = vxor.u32 %v2472, 2147483648
        %v2905 = vxor.u32 %v2474, 2147483648
        %v2906 = vxor.u32 %v1320, 2147483648
        %v2907 = vxor.u32 %v1322, 2147483648
        %v2908 = vxor.u32 %v1513, 2147483648
        %v2909 = vxor.u32 %v1515, 2147483648
        %v2910 = vxor.u32 %v1706, 2147483648
        %v2911 = vxor.u32 %v1708, 2147483648
        %v2912 = vxor.u32 %v1899, 2147483648
        %v2913 = vxor.u32 %v1901, 2147483648
        %v2914 = vxor.u32 %v2092, 2147483648
        %v2915 = vxor.u32 %v2094, 2147483648
        %v2916 = vxor.u32 %v2285, 2147483648
        %v2917 = vxor.u32 %v2287, 2147483648
        %v2918 = vxor.u32 %v2478, 2147483648
        %v2919 = vxor.u32 %v2480, 2147483648
        %v2920 = vxor.u32 %v1324, 2147483648
        %v2921 = vxor.u32 %v1326, 2147483648
        %v2922 = vxor.u32 %v1517, 2147483648
        %v2923 = vxor.u32 %v1519, 2147483648
        %v2924 = vxor.u32 %v1710, 2147483648
        %v2925 = vxor.u32 %v1712, 2147483648
        %v2926 = vxor.u32 %v1903, 2147483648
        %v2927 = vxor.u32 %v1905, 2147483648
        %v2928 = vxor.u32 %v2096, 2147483648
        %v2929 = vxor.u32 %v2098, 2147483648
        %v2930 = vxor.u32 %v2289, 2147483648
        %v2931 = vxor.u32 %v2291, 2147483648
        %v2932 = vxor.u32 %v2482, 2147483648
        %v2933 = vxor.u32 %v2484, 2147483648
        %v2934 = vmul.f32 %v2486, 1.442695
        %v2935 = vpow.pop %v2934
        %v2936 = vmul.f32 %v2487, 1.442695
        %v2937 = vpow.pop %v2936
        %v2938 = vmul.f32 %v2488, 1.442695
        %v2939 = vpow.pop %v2938
        %v2940 = vmul.f32 %v2489, 1.442695
        %v2941 = vpow.pop %v2940
        %v2942 = vmul.f32 %v2490, 1.442695
        %v2943 = vpow.pop %v2942
        %v2944 = vmul.f32 %v2491, 1.442695
        %v2945 = vpow.pop %v2944
        %v2946 = vmul.f32 %v2492, 1.442695
        %v2947 = vpow.pop %v2946
        %v2948 = vmul.f32 %v2493, 1.442695
        %v2949 = vpow.pop %v2948
        %v2950 = vmul.f32 %v2494, 1.442695
        %v2951 = vpow.pop %v2950
        %v2952 = vmul.f32 %v2495, 1.442695
        %v2953 = vpow.pop %v2952
        %v2954 = vmul.f32 %v2496, 1.442695
        %v2955 = vpow.pop %v2954
        %v2956 = vmul.f32 %v2497, 1.442695
        %v2957 = vpow.pop %v2956
        %v2958 = vmul.f32 %v2498, 1.442695
        %v2959 = vpow.pop %v2958
        %v2960 = vmul.f32 %v2499, 1.442695
        %v2961 = vpow.pop %v2960
        %v2962 = vmul.f32 %v2500, 1.442695
        %v2963 = vpow.pop %v2962
        %v2964 = vmul.f32 %v2501, 1.442695
        %v2965 = vpow.pop %v2964
        %v2966 = vmul.f32 %v2502, 1.442695
        %v2967 = vpow.pop %v2966
        %v2968 = vmul.f32 %v2503, 1.442695
        %v2969 = vpow.pop %v2968
        %v2970 = vmul.f32 %v2504, 1.442695
        %v2971 = vpow.pop %v2970
        %v2972 = vmul.f32 %v2505, 1.442695
        %v2973 = vpow.pop %v2972
        %v2974 = vmul.f32 %v2506, 1.442695
        %v2975 = vpow.pop %v2974
        %v2976 = vmul.f32 %v2507, 1.442695
        %v2977 = vpow.pop %v2976
        %v2978 = vmul.f32 %v2508, 1.442695
        %v2979 = vpow.pop %v2978
        %v2980 = vmul.f32 %v2509, 1.442695
        %v2981 = vpow.pop %v2980
        %v2982 = vmul.f32 %v2510, 1.442695
        %v2983 = vpow.pop %v2982
        %v2984 = vmul.f32 %v2511, 1.442695
        %v2985 = vpow.pop %v2984
        %v2986 = vmul.f32 %v2512, 1.442695
        %v2987 = vpow.pop %v2986
        %v2988 = vmul.f32 %v2513, 1.442695
        %v2989 = vpow.pop %v2988
        %v2990 = vmul.f32 %v2514, 1.442695
        %v2991 = vpow.pop %v2990
        %v2992 = vmul.f32 %v2515, 1.442695
        %v2993 = vpow.pop %v2992
        %v2994 = vmul.f32 %v2516, 1.442695
        %v2995 = vpow.pop %v2994
        %v2996 = vmul.f32 %v2517, 1.442695
        %v2997 = vpow.pop %v2996
        %v2998 = vmul.f32 %v2518, 1.442695
        %v2999 = vpow.pop %v2998
        %v3000 = vmul.f32 %v2519, 1.442695
        %v3001 = vpow.pop %v3000
        %v3002 = vmul.f32 %v2520, 1.442695
        %v3003 = vpow.pop %v3002
        %v3004 = vmul.f32 %v2521, 1.442695
        %v3005 = vpow.pop %v3004
        %v3006 = vmul.f32 %v2522, 1.442695
        %v3007 = vpow.pop %v3006
        %v3008 = vmul.f32 %v2523, 1.442695
        %v3009 = vpow.pop %v3008
        %v3010 = vmul.f32 %v2524, 1.442695
        %v3011 = vpow.pop %v3010
        %v3012 = vmul.f32 %v2525, 1.442695
        %v3013 = vpow.pop %v3012
        %v3014 = vmul.f32 %v2526, 1.442695
        %v3015 = vpow.pop %v3014
        %v3016 = vmul.f32 %v2527, 1.442695
        %v3017 = vpow.pop %v3016
        %v3018 = vmul.f32 %v2528, 1.442695
        %v3019 = vpow.pop %v3018
        %v3020 = vmul.f32 %v2529, 1.442695
        %v3021 = vpow.pop %v3020
        %v3022 = vmul.f32 %v2530, 1.442695
        %v3023 = vpow.pop %v3022
        %v3024 = vmul.f32 %v2531, 1.442695
        %v3025 = vpow.pop %v3024
        %v3026 = vmul.f32 %v2532, 1.442695
        %v3027 = vpow.pop %v3026
        %v3028 = vmul.f32 %v2533, 1.442695
        %v3029 = vpow.pop %v3028
        %v3030 = vmul.f32 %v2534, 1.442695
        %v3031 = vpow.pop %v3030
        %v3032 = vmul.f32 %v2535, 1.442695
        %v3033 = vpow.pop %v3032
        %v3034 = vmul.f32 %v2536, 1.442695
        %v3035 = vpow.pop %v3034
        %v3036 = vmul.f32 %v2537, 1.442695
        %v3037 = vpow.pop %v3036
        %v3038 = vmul.f32 %v2538, 1.442695
        %v3039 = vpow.pop %v3038
        %v3040 = vmul.f32 %v2539, 1.442695
        %v3041 = vpow.pop %v3040
        %v3042 = vmul.f32 %v2540, 1.442695
        %v3043 = vpow.pop %v3042
        %v3044 = vmul.f32 %v2541, 1.442695
        %v3045 = vpow.pop %v3044
        %v3046 = vmul.f32 %v2542, 1.442695
        %v3047 = vpow.pop %v3046
        %v3048 = vmul.f32 %v2543, 1.442695
        %v3049 = vpow.pop %v3048
        %v3050 = vmul.f32 %v2544, 1.442695
        %v3051 = vpow.pop %v3050
        %v3052 = vmul.f32 %v2545, 1.442695
        %v3053 = vpow.pop %v3052
        %v3054 = vmul.f32 %v2546, 1.442695
        %v3055 = vpow.pop %v3054
        %v3056 = vmul.f32 %v2547, 1.442695
        %v3057 = vpow.pop %v3056
        %v3058 = vmul.f32 %v2548, 1.442695
        %v3059 = vpow.pop %v3058
        %v3060 = vmul.f32 %v2549, 1.442695
        %v3061 = vpow.pop %v3060
        %v3062 = vmul.f32 %v2550, 1.442695
        %v3063 = vpow.pop %v3062
        %v3064 = vmul.f32 %v2551, 1.442695
        %v3065 = vpow.pop %v3064
        %v3066 = vmul.f32 %v2552, 1.442695
        %v3067 = vpow.pop %v3066
        %v3068 = vmul.f32 %v2553, 1.442695
        %v3069 = vpow.pop %v3068
        %v3070 = vmul.f32 %v2554, 1.442695
        %v3071 = vpow.pop %v3070
        %v3072 = vmul.f32 %v2555, 1.442695
        %v3073 = vpow.pop %v3072
        %v3074 = vmul.f32 %v2556, 1.442695
        %v3075 = vpow.pop %v3074
        %v3076 = vmul.f32 %v2557, 1.442695
        %v3077 = vpow.pop %v3076
        %v3078 = vmul.f32 %v2558, 1.442695
        %v3079 = vpow.pop %v3078
        %v3080 = vmul.f32 %v2559, 1.442695
        %v3081 = vpow.pop %v3080
        %v3082 = vmul.f32 %v2560, 1.442695
        %v3083 = vpow.pop %v3082
        %v3084 = vmul.f32 %v2561, 1.442695
        %v3085 = vpow.pop %v3084
        %v3086 = vmul.f32 %v2562, 1.442695
        %v3087 = vpow.pop %v3086
        %v3088 = vmul.f32 %v2563, 1.442695
        %v3089 = vpow.pop %v3088
        %v3090 = vmul.f32 %v2564, 1.442695
        %v3091 = vpow.pop %v3090
        %v3092 = vmul.f32 %v2565, 1.442695
        %v3093 = vpow.pop %v3092
        %v3094 = vmul.f32 %v2566, 1.442695
        %v3095 = vpow.pop %v3094
        %v3096 = vmul.f32 %v2567, 1.442695
        %v3097 = vpow.pop %v3096
        %v3098 = vmul.f32 %v2568, 1.442695
        %v3099 = vpow.pop %v3098
        %v3100 = vmul.f32 %v2569, 1.442695
        %v3101 = vpow.pop %v3100
        %v3102 = vmul.f32 %v2570, 1.442695
        %v3103 = vpow.pop %v3102
        %v3104 = vmul.f32 %v2571, 1.442695
        %v3105 = vpow.pop %v3104
        %v3106 = vmul.f32 %v2572, 1.442695
        %v3107 = vpow.pop %v3106
        %v3108 = vmul.f32 %v2573, 1.442695
        %v3109 = vpow.pop %v3108
        %v3110 = vmul.f32 %v2574, 1.442695
        %v3111 = vpow.pop %v3110
        %v3112 = vmul.f32 %v2575, 1.442695
        %v3113 = vpow.pop %v3112
        %v3114 = vmul.f32 %v2576, 1.442695
        %v3115 = vpow.pop %v3114
        %v3116 = vmul.f32 %v2577, 1.442695
        %v3117 = vpow.pop %v3116
        %v3118 = vmul.f32 %v2578, 1.442695
        %v3119 = vpow.pop %v3118
        %v3120 = vmul.f32 %v2579, 1.442695
        %v3121 = vpow.pop %v3120
        %v3122 = vmul.f32 %v2580, 1.442695
        %v3123 = vpow.pop %v3122
        %v3124 = vmul.f32 %v2581, 1.442695
        %v3125 = vpow.pop %v3124
        %v3126 = vmul.f32 %v2582, 1.442695
        %v3127 = vpow.pop %v3126
        %v3128 = vmul.f32 %v2583, 1.442695
        %v3129 = vpow.pop %v3128
        %v3130 = vmul.f32 %v2584, 1.442695
        %v3131 = vpow.pop %v3130
        %v3132 = vmul.f32 %v2585, 1.442695
        %v3133 = vpow.pop %v3132
        %v3134 = vmul.f32 %v2586, 1.442695
        %v3135 = vpow.pop %v3134
        %v3136 = vmul.f32 %v2587, 1.442695
        %v3137 = vpow.pop %v3136
        %v3138 = vmul.f32 %v2588, 1.442695
        %v3139 = vpow.pop %v3138
        %v3140 = vmul.f32 %v2589, 1.442695
        %v3141 = vpow.pop %v3140
        %v3142 = vmul.f32 %v2590, 1.442695
        %v3143 = vpow.pop %v3142
        %v3144 = vmul.f32 %v2591, 1.442695
        %v3145 = vpow.pop %v3144
        %v3146 = vmul.f32 %v2592, 1.442695
        %v3147 = vpow.pop %v3146
        %v3148 = vmul.f32 %v2593, 1.442695
        %v3149 = vpow.pop %v3148
        %v3150 = vmul.f32 %v2594, 1.442695
        %v3151 = vpow.pop %v3150
        %v3152 = vmul.f32 %v2595, 1.442695
        %v3153 = vpow.pop %v3152
        %v3154 = vmul.f32 %v2596, 1.442695
        %v3155 = vpow.pop %v3154
        %v3156 = vmul.f32 %v2597, 1.442695
        %v3157 = vpow.pop %v3156
        %v3158 = vmul.f32 %v2598, 1.442695
        %v3159 = vpow.pop %v3158
        %v3160 = vmul.f32 %v2599, 1.442695
        %v3161 = vpow.pop %v3160
        %v3162 = vmul.f32 %v2600, 1.442695
        %v3163 = vpow.pop %v3162
        %v3164 = vmul.f32 %v2601, 1.442695
        %v3165 = vpow.pop %v3164
        %v3166 = vmul.f32 %v2602, 1.442695
        %v3167 = vpow.pop %v3166
        %v3168 = vmul.f32 %v2603, 1.442695
        %v3169 = vpow.pop %v3168
        %v3170 = vmul.f32 %v2604, 1.442695
        %v3171 = vpow.pop %v3170
        %v3172 = vmul.f32 %v2605, 1.442695
        %v3173 = vpow.pop %v3172
        %v3174 = vmul.f32 %v2606, 1.442695
        %v3175 = vpow.pop %v3174
        %v3176 = vmul.f32 %v2607, 1.442695
        %v3177 = vpow.pop %v3176
        %v3178 = vmul.f32 %v2608, 1.442695
        %v3179 = vpow.pop %v3178
        %v3180 = vmul.f32 %v2609, 1.442695
        %v3181 = vpow.pop %v3180
        %v3182 = vmul.f32 %v2610, 1.442695
        %v3183 = vpow.pop %v3182
        %v3184 = vmul.f32 %v2611, 1.442695
        %v3185 = vpow.pop %v3184
        %v3186 = vmul.f32 %v2612, 1.442695
        %v3187 = vpow.pop %v3186
        %v3188 = vmul.f32 %v2613, 1.442695
        %v3189 = vpow.pop %v3188
        %v3190 = vmul.f32 %v2614, 1.442695
        %v3191 = vpow.pop %v3190
        %v3192 = vmul.f32 %v2615, 1.442695
        %v3193 = vpow.pop %v3192
        %v3194 = vmul.f32 %v2616, 1.442695
        %v3195 = vpow.pop %v3194
        %v3196 = vmul.f32 %v2617, 1.442695
        %v3197 = vpow.pop %v3196
        %v3198 = vmul.f32 %v2618, 1.442695
        %v3199 = vpow.pop %v3198
        %v3200 = vmul.f32 %v2619, 1.442695
        %v3201 = vpow.pop %v3200
        %v3202 = vmul.f32 %v2620, 1.442695
        %v3203 = vpow.pop %v3202
        %v3204 = vmul.f32 %v2621, 1.442695
        %v3205 = vpow.pop %v3204
        %v3206 = vmul.f32 %v2622, 1.442695
        %v3207 = vpow.pop %v3206
        %v3208 = vmul.f32 %v2623, 1.442695
        %v3209 = vpow.pop %v3208
        %v3210 = vmul.f32 %v2624, 1.442695
        %v3211 = vpow.pop %v3210
        %v3212 = vmul.f32 %v2625, 1.442695
        %v3213 = vpow.pop %v3212
        %v3214 = vmul.f32 %v2626, 1.442695
        %v3215 = vpow.pop %v3214
        %v3216 = vmul.f32 %v2627, 1.442695
        %v3217 = vpow.pop %v3216
        %v3218 = vmul.f32 %v2628, 1.442695
        %v3219 = vpow.pop %v3218
        %v3220 = vmul.f32 %v2629, 1.442695
        %v3221 = vpow.pop %v3220
        %v3222 = vmul.f32 %v2630, 1.442695
        %v3223 = vpow.pop %v3222
        %v3224 = vmul.f32 %v2631, 1.442695
        %v3225 = vpow.pop %v3224
        %v3226 = vmul.f32 %v2632, 1.442695
        %v3227 = vpow.pop %v3226
        %v3228 = vmul.f32 %v2633, 1.442695
        %v3229 = vpow.pop %v3228
        %v3230 = vmul.f32 %v2634, 1.442695
        %v3231 = vpow.pop %v3230
        %v3232 = vmul.f32 %v2635, 1.442695
        %v3233 = vpow.pop %v3232
        %v3234 = vmul.f32 %v2636, 1.442695
        %v3235 = vpow.pop %v3234
        %v3236 = vmul.f32 %v2637, 1.442695
        %v3237 = vpow.pop %v3236
        %v3238 = vmul.f32 %v2638, 1.442695
        %v3239 = vpow.pop %v3238
        %v3240 = vmul.f32 %v2639, 1.442695
        %v3241 = vpow.pop %v3240
        %v3242 = vmul.f32 %v2640, 1.442695
        %v3243 = vpow.pop %v3242
        %v3244 = vmul.f32 %v2641, 1.442695
        %v3245 = vpow.pop %v3244
        %v3246 = vmul.f32 %v2642, 1.442695
        %v3247 = vpow.pop %v3246
        %v3248 = vmul.f32 %v2643, 1.442695
        %v3249 = vpow.pop %v3248
        %v3250 = vmul.f32 %v2644, 1.442695
        %v3251 = vpow.pop %v3250
        %v3252 = vmul.f32 %v2645, 1.442695
        %v3253 = vpow.pop %v3252
        %v3254 = vmul.f32 %v2646, 1.442695
        %v3255 = vpow.pop %v3254
        %v3256 = vmul.f32 %v2647, 1.442695
        %v3257 = vpow.pop %v3256
        %v3258 = vmul.f32 %v2648, 1.442695
        %v3259 = vpow.pop %v3258
        %v3260 = vmul.f32 %v2649, 1.442695
        %v3261 = vpow.pop %v3260
        %v3262 = vmul.f32 %v2650, 1.442695
        %v3263 = vpow.pop %v3262
        %v3264 = vmul.f32 %v2651, 1.442695
        %v3265 = vpow.pop %v3264
        %v3266 = vmul.f32 %v2652, 1.442695
        %v3267 = vpow.pop %v3266
        %v3268 = vmul.f32 %v2653, 1.442695
        %v3269 = vpow.pop %v3268
        %v3270 = vmul.f32 %v2654, 1.442695
        %v3271 = vpow.pop %v3270
        %v3272 = vmul.f32 %v2655, 1.442695
        %v3273 = vpow.pop %v3272
        %v3274 = vmul.f32 %v2656, 1.442695
        %v3275 = vpow.pop %v3274
        %v3276 = vmul.f32 %v2657, 1.442695
        %v3277 = vpow.pop %v3276
        %v3278 = vmul.f32 %v2658, 1.442695
        %v3279 = vpow.pop %v3278
        %v3280 = vmul.f32 %v2659, 1.442695
        %v3281 = vpow.pop %v3280
        %v3282 = vmul.f32 %v2660, 1.442695
        %v3283 = vpow.pop %v3282
        %v3284 = vmul.f32 %v2661, 1.442695
        %v3285 = vpow.pop %v3284
        %v3286 = vmul.f32 %v2662, 1.442695
        %v3287 = vpow.pop %v3286
        %v3288 = vmul.f32 %v2663, 1.442695
        %v3289 = vpow.pop %v3288
        %v3290 = vmul.f32 %v2664, 1.442695
        %v3291 = vpow.pop %v3290
        %v3292 = vmul.f32 %v2665, 1.442695
        %v3293 = vpow.pop %v3292
        %v3294 = vmul.f32 %v2666, 1.442695
        %v3295 = vpow.pop %v3294
        %v3296 = vmul.f32 %v2667, 1.442695
        %v3297 = vpow.pop %v3296
        %v3298 = vmul.f32 %v2668, 1.442695
        %v3299 = vpow.pop %v3298
        %v3300 = vmul.f32 %v2669, 1.442695
        %v3301 = vpow.pop %v3300
        %v3302 = vmul.f32 %v2670, 1.442695
        %v3303 = vpow.pop %v3302
        %v3304 = vmul.f32 %v2671, 1.442695
        %v3305 = vpow.pop %v3304
        %v3306 = vmul.f32 %v2672, 1.442695
        %v3307 = vpow.pop %v3306
        %v3308 = vmul.f32 %v2673, 1.442695
        %v3309 = vpow.pop %v3308
        %v3310 = vmul.f32 %v2674, 1.442695
        %v3311 = vpow.pop %v3310
        %v3312 = vmul.f32 %v2675, 1.442695
        %v3313 = vpow.pop %v3312
        %v3314 = vmul.f32 %v2676, 1.442695
        %v3315 = vpow.pop %v3314
        %v3316 = vmul.f32 %v2677, 1.442695
        %v3317 = vpow.pop %v3316
        %v3318 = vmul.f32 %v2678, 1.442695
        %v3319 = vpow.pop %v3318
        %v3320 = vmul.f32 %v2679, 1.442695
        %v3321 = vpow.pop %v3320
        %v3322 = vmul.f32 %v2680, 1.442695
        %v3323 = vpow.pop %v3322
        %v3324 = vmul.f32 %v2681, 1.442695
        %v3325 = vpow.pop %v3324
        %v3326 = vmul.f32 %v2682, 1.442695
        %v3327 = vpow.pop %v3326
        %v3328 = vmul.f32 %v2683, 1.442695
        %v3329 = vpow.pop %v3328
        %v3330 = vmul.f32 %v2684, 1.442695
        %v3331 = vpow.pop %v3330
        %v3332 = vmul.f32 %v2685, 1.442695
        %v3333 = vpow.pop %v3332
        %v3334 = vmul.f32 %v2686, 1.442695
        %v3335 = vpow.pop %v3334
        %v3336 = vmul.f32 %v2687, 1.442695
        %v3337 = vpow.pop %v3336
        %v3338 = vmul.f32 %v2688, 1.442695
        %v3339 = vpow.pop %v3338
        %v3340 = vmul.f32 %v2689, 1.442695
        %v3341 = vpow.pop %v3340
        %v3342 = vmul.f32 %v2690, 1.442695
        %v3343 = vpow.pop %v3342
        %v3344 = vmul.f32 %v2691, 1.442695
        %v3345 = vpow.pop %v3344
        %v3346 = vmul.f32 %v2692, 1.442695
        %v3347 = vpow.pop %v3346
        %v3348 = vmul.f32 %v2693, 1.442695
        %v3349 = vpow.pop %v3348
        %v3350 = vmul.f32 %v2694, 1.442695
        %v3351 = vpow.pop %v3350
        %v3352 = vmul.f32 %v2695, 1.442695
        %v3353 = vpow.pop %v3352
        %v3354 = vmul.f32 %v2696, 1.442695
        %v3355 = vpow.pop %v3354
        %v3356 = vmul.f32 %v2697, 1.442695
        %v3357 = vpow.pop %v3356
        %v3358 = vmul.f32 %v2698, 1.442695
        %v3359 = vpow.pop %v3358
        %v3360 = vmul.f32 %v2699, 1.442695
        %v3361 = vpow.pop %v3360
        %v3362 = vmul.f32 %v2700, 1.442695
        %v3363 = vpow.pop %v3362
        %v3364 = vmul.f32 %v2701, 1.442695
        %v3365 = vpow.pop %v3364
        %v3366 = vmul.f32 %v2702, 1.442695
        %v3367 = vpow.pop %v3366
        %v3368 = vmul.f32 %v2703, 1.442695
        %v3369 = vpow.pop %v3368
        %v3370 = vmul.f32 %v2704, 1.442695
        %v3371 = vpow.pop %v3370
        %v3372 = vmul.f32 %v2705, 1.442695
        %v3373 = vpow.pop %v3372
        %v3374 = vmul.f32 %v2706, 1.442695
        %v3375 = vpow.pop %v3374
        %v3376 = vmul.f32 %v2707, 1.442695
        %v3377 = vpow.pop %v3376
        %v3378 = vmul.f32 %v2708, 1.442695
        %v3379 = vpow.pop %v3378
        %v3380 = vmul.f32 %v2709, 1.442695
        %v3381 = vpow.pop %v3380
        %v3382 = vmul.f32 %v2710, 1.442695
        %v3383 = vpow.pop %v3382
        %v3384 = vmul.f32 %v2711, 1.442695
        %v3385 = vpow.pop %v3384
        %v3386 = vmul.f32 %v2712, 1.442695
        %v3387 = vpow.pop %v3386
        %v3388 = vmul.f32 %v2713, 1.442695
        %v3389 = vpow.pop %v3388
        %v3390 = vmul.f32 %v2714, 1.442695
        %v3391 = vpow.pop %v3390
        %v3392 = vmul.f32 %v2715, 1.442695
        %v3393 = vpow.pop %v3392
        %v3394 = vmul.f32 %v2716, 1.442695
        %v3395 = vpow.pop %v3394
        %v3396 = vmul.f32 %v2717, 1.442695
        %v3397 = vpow.pop %v3396
        %v3398 = vmul.f32 %v2718, 1.442695
        %v3399 = vpow.pop %v3398
        %v3400 = vmul.f32 %v2719, 1.442695
        %v3401 = vpow.pop %v3400
        %v3402 = vmul.f32 %v2720, 1.442695
        %v3403 = vpow.pop %v3402
        %v3404 = vmul.f32 %v2721, 1.442695
        %v3405 = vpow.pop %v3404
        %v3406 = vmul.f32 %v2722, 1.442695
        %v3407 = vpow.pop %v3406
        %v3408 = vmul.f32 %v2723, 1.442695
        %v3409 = vpow.pop %v3408
        %v3410 = vmul.f32 %v2724, 1.442695
        %v3411 = vpow.pop %v3410
        %v3412 = vmul.f32 %v2725, 1.442695
        %v3413 = vpow.pop %v3412
        %v3414 = vmul.f32 %v2726, 1.442695
        %v3415 = vpow.pop %v3414
        %v3416 = vmul.f32 %v2727, 1.442695
        %v3417 = vpow.pop %v3416
        %v3418 = vmul.f32 %v2728, 1.442695
        %v3419 = vpow.pop %v3418
        %v3420 = vmul.f32 %v2729, 1.442695
        %v3421 = vpow.pop %v3420
        %v3422 = vmul.f32 %v2730, 1.442695
        %v3423 = vpow.pop %v3422
        %v3424 = vmul.f32 %v2731, 1.442695
        %v3425 = vpow.pop %v3424
        %v3426 = vmul.f32 %v2732, 1.442695
        %v3427 = vpow.pop %v3426
        %v3428 = vmul.f32 %v2733, 1.442695
        %v3429 = vpow.pop %v3428
        %v3430 = vmul.f32 %v2734, 1.442695
        %v3431 = vpow.pop %v3430
        %v3432 = vmul.f32 %v2735, 1.442695
        %v3433 = vpow.pop %v3432
        %v3434 = vmul.f32 %v2736, 1.442695
        %v3435 = vpow.pop %v3434
        %v3436 = vmul.f32 %v2737, 1.442695
        %v3437 = vpow.pop %v3436
        %v3438 = vmul.f32 %v2738, 1.442695
        %v3439 = vpow.pop %v3438
        %v3440 = vmul.f32 %v2739, 1.442695
        %v3441 = vpow.pop %v3440
        %v3442 = vmul.f32 %v2740, 1.442695
        %v3443 = vpow.pop %v3442
        %v3444 = vmul.f32 %v2741, 1.442695
        %v3445 = vpow.pop %v3444
        %v3446 = vmul.f32 %v2742, 1.442695
        %v3447 = vpow.pop %v3446
        %v3448 = vmul.f32 %v2743, 1.442695
        %v3449 = vpow.pop %v3448
        %v3450 = vmul.f32 %v2744, 1.442695
        %v3451 = vpow.pop %v3450
        %v3452 = vmul.f32 %v2745, 1.442695
        %v3453 = vpow.pop %v3452
        %v3454 = vmul.f32 %v2746, 1.442695
        %v3455 = vpow.pop %v3454
        %v3456 = vmul.f32 %v2747, 1.442695
        %v3457 = vpow.pop %v3456
        %v3458 = vmul.f32 %v2748, 1.442695
        %v3459 = vpow.pop %v3458
        %v3460 = vmul.f32 %v2749, 1.442695
        %v3461 = vpow.pop %v3460
        %v3462 = vmul.f32 %v2750, 1.442695
        %v3463 = vpow.pop %v3462
        %v3464 = vmul.f32 %v2751, 1.442695
        %v3465 = vpow.pop %v3464
        %v3466 = vmul.f32 %v2752, 1.442695
        %v3467 = vpow.pop %v3466
        %v3468 = vmul.f32 %v2753, 1.442695
        %v3469 = vpow.pop %v3468
        %v3470 = vmul.f32 %v2754, 1.442695
        %v3471 = vpow.pop %v3470
        %v3472 = vmul.f32 %v2755, 1.442695
        %v3473 = vpow.pop %v3472
        %v3474 = vmul.f32 %v2756, 1.442695
        %v3475 = vpow.pop %v3474
        %v3476 = vmul.f32 %v2757, 1.442695
        %v3477 = vpow.pop %v3476
        %v3478 = vmul.f32 %v2758, 1.442695
        %v3479 = vpow.pop %v3478
        %v3480 = vmul.f32 %v2759, 1.442695
        %v3481 = vpow.pop %v3480
        %v3482 = vmul.f32 %v2760, 1.442695
        %v3483 = vpow.pop %v3482
        %v3484 = vmul.f32 %v2761, 1.442695
        %v3485 = vpow.pop %v3484
        %v3486 = vmul.f32 %v2762, 1.442695
        %v3487 = vpow.pop %v3486
        %v3488 = vmul.f32 %v2763, 1.442695
        %v3489 = vpow.pop %v3488
        %v3490 = vmul.f32 %v2764, 1.442695
        %v3491 = vpow.pop %v3490
        %v3492 = vmul.f32 %v2765, 1.442695
        %v3493 = vpow.pop %v3492
        %v3494 = vmul.f32 %v2766, 1.442695
        %v3495 = vpow.pop %v3494
        %v3496 = vmul.f32 %v2767, 1.442695
        %v3497 = vpow.pop %v3496
        %v3498 = vmul.f32 %v2768, 1.442695
        %v3499 = vpow.pop %v3498
        %v3500 = vmul.f32 %v2769, 1.442695
        %v3501 = vpow.pop %v3500
        %v3502 = vmul.f32 %v2770, 1.442695
        %v3503 = vpow.pop %v3502
        %v3504 = vmul.f32 %v2771, 1.442695
        %v3505 = vpow.pop %v3504
        %v3506 = vmul.f32 %v2772, 1.442695
        %v3507 = vpow.pop %v3506
        %v3508 = vmul.f32 %v2773, 1.442695
        %v3509 = vpow.pop %v3508
        %v3510 = vmul.f32 %v2774, 1.442695
        %v3511 = vpow.pop %v3510
        %v3512 = vmul.f32 %v2775, 1.442695
        %v3513 = vpow.pop %v3512
        %v3514 = vmul.f32 %v2776, 1.442695
        %v3515 = vpow.pop %v3514
        %v3516 = vmul.f32 %v2777, 1.442695
        %v3517 = vpow.pop %v3516
        %v3518 = vmul.f32 %v2778, 1.442695
        %v3519 = vpow.pop %v3518
        %v3520 = vmul.f32 %v2779, 1.442695
        %v3521 = vpow.pop %v3520
        %v3522 = vmul.f32 %v2780, 1.442695
        %v3523 = vpow.pop %v3522
        %v3524 = vmul.f32 %v2781, 1.442695
        %v3525 = vpow.pop %v3524
        %v3526 = vmul.f32 %v2782, 1.442695
        %v3527 = vpow.pop %v3526
        %v3528 = vmul.f32 %v2783, 1.442695
        %v3529 = vpow.pop %v3528
        %v3530 = vmul.f32 %v2784, 1.442695
        %v3531 = vpow.pop %v3530
        %v3532 = vmul.f32 %v2785, 1.442695
        %v3533 = vpow.pop %v3532
        %v3534 = vmul.f32 %v2786, 1.442695
        %v3535 = vpow.pop %v3534
        %v3536 = vmul.f32 %v2787, 1.442695
        %v3537 = vpow.pop %v3536
        %v3538 = vmul.f32 %v2788, 1.442695
        %v3539 = vpow.pop %v3538
        %v3540 = vmul.f32 %v2789, 1.442695
        %v3541 = vpow.pop %v3540
        %v3542 = vmul.f32 %v2790, 1.442695
        %v3543 = vpow.pop %v3542
        %v3544 = vmul.f32 %v2791, 1.442695
        %v3545 = vpow.pop %v3544
        %v3546 = vmul.f32 %v2792, 1.442695
        %v3547 = vpow.pop %v3546
        %v3548 = vmul.f32 %v2793, 1.442695
        %v3549 = vpow.pop %v3548
        %v3550 = vmul.f32 %v2794, 1.442695
        %v3551 = vpow.pop %v3550
        %v3552 = vmul.f32 %v2795, 1.442695
        %v3553 = vpow.pop %v3552
        %v3554 = vmul.f32 %v2796, 1.442695
        %v3555 = vpow.pop %v3554
        %v3556 = vmul.f32 %v2797, 1.442695
        %v3557 = vpow.pop %v3556
        %v3558 = vmul.f32 %v2798, 1.442695
        %v3559 = vpow.pop %v3558
        %v3560 = vmul.f32 %v2799, 1.442695
        %v3561 = vpow.pop %v3560
        %v3562 = vmul.f32 %v2800, 1.442695
        %v3563 = vpow.pop %v3562
        %v3564 = vmul.f32 %v2801, 1.442695
        %v3565 = vpow.pop %v3564
        %v3566 = vmul.f32 %v2802, 1.442695
        %v3567 = vpow.pop %v3566
        %v3568 = vmul.f32 %v2803, 1.442695
        %v3569 = vpow.pop %v3568
        %v3570 = vmul.f32 %v2804, 1.442695
        %v3571 = vpow.pop %v3570
        %v3572 = vmul.f32 %v2805, 1.442695
        %v3573 = vpow.pop %v3572
        %v3574 = vmul.f32 %v2806, 1.442695
        %v3575 = vpow.pop %v3574
        %v3576 = vmul.f32 %v2807, 1.442695
        %v3577 = vpow.pop %v3576
        %v3578 = vmul.f32 %v2808, 1.442695
        %v3579 = vpow.pop %v3578
        %v3580 = vmul.f32 %v2809, 1.442695
        %v3581 = vpow.pop %v3580
        %v3582 = vmul.f32 %v2810, 1.442695
        %v3583 = vpow.pop %v3582
        %v3584 = vmul.f32 %v2811, 1.442695
        %v3585 = vpow.pop %v3584
        %v3586 = vmul.f32 %v2812, 1.442695
        %v3587 = vpow.pop %v3586
        %v3588 = vmul.f32 %v2813, 1.442695
        %v3589 = vpow.pop %v3588
        %v3590 = vmul.f32 %v2814, 1.442695
        %v3591 = vpow.pop %v3590
        %v3592 = vmul.f32 %v2815, 1.442695
        %v3593 = vpow.pop %v3592
        %v3594 = vmul.f32 %v2816, 1.442695
        %v3595 = vpow.pop %v3594
        %v3596 = vmul.f32 %v2817, 1.442695
        %v3597 = vpow.pop %v3596
        %v3598 = vmul.f32 %v2818, 1.442695
        %v3599 = vpow.pop %v3598
        %v3600 = vmul.f32 %v2819, 1.442695
        %v3601 = vpow.pop %v3600
        %v3602 = vmul.f32 %v2820, 1.442695
        %v3603 = vpow.pop %v3602
        %v3604 = vmul.f32 %v2821, 1.442695
        %v3605 = vpow.pop %v3604
        %v3606 = vmul.f32 %v2822, 1.442695
        %v3607 = vpow.pop %v3606
        %v3608 = vmul.f32 %v2823, 1.442695
        %v3609 = vpow.pop %v3608
        %v3610 = vmul.f32 %v2824, 1.442695
        %v3611 = vpow.pop %v3610
        %v3612 = vmul.f32 %v2825, 1.442695
        %v3613 = vpow.pop %v3612
        %v3614 = vmul.f32 %v2826, 1.442695
        %v3615 = vpow.pop %v3614
        %v3616 = vmul.f32 %v2827, 1.442695
        %v3617 = vpow.pop %v3616
        %v3618 = vmul.f32 %v2828, 1.442695
        %v3619 = vpow.pop %v3618
        %v3620 = vmul.f32 %v2829, 1.442695
        %v3621 = vpow.pop %v3620
        %v3622 = vmul.f32 %v2830, 1.442695
        %v3623 = vpow.pop %v3622
        %v3624 = vmul.f32 %v2831, 1.442695
        %v3625 = vpow.pop %v3624
        %v3626 = vmul.f32 %v2832, 1.442695
        %v3627 = vpow.pop %v3626
        %v3628 = vmul.f32 %v2833, 1.442695
        %v3629 = vpow.pop %v3628
        %v3630 = vmul.f32 %v2834, 1.442695
        %v3631 = vpow.pop %v3630
        %v3632 = vmul.f32 %v2835, 1.442695
        %v3633 = vpow.pop %v3632
        %v3634 = vmul.f32 %v2836, 1.442695
        %v3635 = vpow.pop %v3634
        %v3636 = vmul.f32 %v2837, 1.442695
        %v3637 = vpow.pop %v3636
        %v3638 = vmul.f32 %v2838, 1.442695
        %v3639 = vpow.pop %v3638
        %v3640 = vmul.f32 %v2839, 1.442695
        %v3641 = vpow.pop %v3640
        %v3642 = vmul.f32 %v2840, 1.442695
        %v3643 = vpow.pop %v3642
        %v3644 = vmul.f32 %v2841, 1.442695
        %v3645 = vpow.pop %v3644
        %v3646 = vmul.f32 %v2842, 1.442695
        %v3647 = vpow.pop %v3646
        %v3648 = vmul.f32 %v2843, 1.442695
        %v3649 = vpow.pop %v3648
        %v3650 = vmul.f32 %v2844, 1.442695
        %v3651 = vpow.pop %v3650
        %v3652 = vmul.f32 %v2845, 1.442695
        %v3653 = vpow.pop %v3652
        %v3654 = vmul.f32 %v2846, 1.442695
        %v3655 = vpow.pop %v3654
        %v3656 = vmul.f32 %v2847, 1.442695
        %v3657 = vpow.pop %v3656
        %v3658 = vmul.f32 %v2848, 1.442695
        %v3659 = vpow.pop %v3658
        %v3660 = vmul.f32 %v2849, 1.442695
        %v3661 = vpow.pop %v3660
        %v3662 = vmul.f32 %v2850, 1.442695
        %v3663 = vpow.pop %v3662
        %v3664 = vmul.f32 %v2851, 1.442695
        %v3665 = vpow.pop %v3664
        %v3666 = vmul.f32 %v2852, 1.442695
        %v3667 = vpow.pop %v3666
        %v3668 = vmul.f32 %v2853, 1.442695
        %v3669 = vpow.pop %v3668
        %v3670 = vmul.f32 %v2854, 1.442695
        %v3671 = vpow.pop %v3670
        %v3672 = vmul.f32 %v2855, 1.442695
        %v3673 = vpow.pop %v3672
        %v3674 = vmul.f32 %v2856, 1.442695
        %v3675 = vpow.pop %v3674
        %v3676 = vmul.f32 %v2857, 1.442695
        %v3677 = vpow.pop %v3676
        %v3678 = vmul.f32 %v2858, 1.442695
        %v3679 = vpow.pop %v3678
        %v3680 = vmul.f32 %v2859, 1.442695
        %v3681 = vpow.pop %v3680
        %v3682 = vmul.f32 %v2860, 1.442695
        %v3683 = vpow.pop %v3682
        %v3684 = vmul.f32 %v2861, 1.442695
        %v3685 = vpow.pop %v3684
        %v3686 = vmul.f32 %v2862, 1.442695
        %v3687 = vpow.pop %v3686
        %v3688 = vmul.f32 %v2863, 1.442695
        %v3689 = vpow.pop %v3688
        %v3690 = vmul.f32 %v2864, 1.442695
        %v3691 = vpow.pop %v3690
        %v3692 = vmul.f32 %v2865, 1.442695
        %v3693 = vpow.pop %v3692
        %v3694 = vmul.f32 %v2866, 1.442695
        %v3695 = vpow.pop %v3694
        %v3696 = vmul.f32 %v2867, 1.442695
        %v3697 = vpow.pop %v3696
        %v3698 = vmul.f32 %v2868, 1.442695
        %v3699 = vpow.pop %v3698
        %v3700 = vmul.f32 %v2869, 1.442695
        %v3701 = vpow.pop %v3700
        %v3702 = vmul.f32 %v2870, 1.442695
        %v3703 = vpow.pop %v3702
        %v3704 = vmul.f32 %v2871, 1.442695
        %v3705 = vpow.pop %v3704
        %v3706 = vmul.f32 %v2872, 1.442695
        %v3707 = vpow.pop %v3706
        %v3708 = vmul.f32 %v2873, 1.442695
        %v3709 = vpow.pop %v3708
        %v3710 = vmul.f32 %v2874, 1.442695
        %v3711 = vpow.pop %v3710
        %v3712 = vmul.f32 %v2875, 1.442695
        %v3713 = vpow.pop %v3712
        %v3714 = vmul.f32 %v2876, 1.442695
        %v3715 = vpow.pop %v3714
        %v3716 = vmul.f32 %v2877, 1.442695
        %v3717 = vpow.pop %v3716
        %v3718 = vmul.f32 %v2878, 1.442695
        %v3719 = vpow.pop %v3718
        %v3720 = vmul.f32 %v2879, 1.442695
        %v3721 = vpow.pop %v3720
        %v3722 = vmul.f32 %v2880, 1.442695
        %v3723 = vpow.pop %v3722
        %v3724 = vmul.f32 %v2881, 1.442695
        %v3725 = vpow.pop %v3724
        %v3726 = vmul.f32 %v2882, 1.442695
        %v3727 = vpow.pop %v3726
        %v3728 = vmul.f32 %v2883, 1.442695
        %v3729 = vpow.pop %v3728
        %v3730 = vmul.f32 %v2884, 1.442695
        %v3731 = vpow.pop %v3730
        %v3732 = vmul.f32 %v2885, 1.442695
        %v3733 = vpow.pop %v3732
        %v3734 = vmul.f32 %v2886, 1.442695
        %v3735 = vpow.pop %v3734
        %v3736 = vmul.f32 %v2887, 1.442695
        %v3737 = vpow.pop %v3736
        %v3738 = vmul.f32 %v2888, 1.442695
        %v3739 = vpow.pop %v3738
        %v3740 = vmul.f32 %v2889, 1.442695
        %v3741 = vpow.pop %v3740
        %v3742 = vmul.f32 %v2890, 1.442695
        %v3743 = vpow.pop %v3742
        %v3744 = vmul.f32 %v2891, 1.442695
        %v3745 = vpow.pop %v3744
        %v3746 = vmul.f32 %v2892, 1.442695
        %v3747 = vpow.pop %v3746
        %v3748 = vmul.f32 %v2893, 1.442695
        %v3749 = vpow.pop %v3748
        %v3750 = vmul.f32 %v2894, 1.442695
        %v3751 = vpow.pop %v3750
        %v3752 = vmul.f32 %v2895, 1.442695
        %v3753 = vpow.pop %v3752
        %v3754 = vmul.f32 %v2896, 1.442695
        %v3755 = vpow.pop %v3754
        %v3756 = vmul.f32 %v2897, 1.442695
        %v3757 = vpow.pop %v3756
        %v3758 = vmul.f32 %v2898, 1.442695
        %v3759 = vpow.pop %v3758
        %v3760 = vmul.f32 %v2899, 1.442695
        %v3761 = vpow.pop %v3760
        %v3762 = vmul.f32 %v2900, 1.442695
        %v3763 = vpow.pop %v3762
        %v3764 = vmul.f32 %v2901, 1.442695
        %v3765 = vpow.pop %v3764
        %v3766 = vmul.f32 %v2902, 1.442695
        %v3767 = vpow.pop %v3766
        %v3768 = vmul.f32 %v2903, 1.442695
        %v3769 = vpow.pop %v3768
        %v3770 = vmul.f32 %v2904, 1.442695
        %v3771 = vpow.pop %v3770
        %v3772 = vmul.f32 %v2905, 1.442695
        %v3773 = vpow.pop %v3772
        %v3774 = vmul.f32 %v2906, 1.442695
        %v3775 = vpow.pop %v3774
        %v3776 = vmul.f32 %v2907, 1.442695
        %v3777 = vpow.pop %v3776
        %v3778 = vmul.f32 %v2908, 1.442695
        %v3779 = vpow.pop %v3778
        %v3780 = vmul.f32 %v2909, 1.442695
        %v3781 = vpow.pop %v3780
        %v3782 = vmul.f32 %v2910, 1.442695
        %v3783 = vpow.pop %v3782
        %v3784 = vmul.f32 %v2911, 1.442695
        %v3785 = vpow.pop %v3784
        %v3786 = vmul.f32 %v2912, 1.442695
        %v3787 = vpow.pop %v3786
        %v3788 = vmul.f32 %v2913, 1.442695
        %v3789 = vpow.pop %v3788
        %v3790 = vmul.f32 %v2914, 1.442695
        %v3791 = vpow.pop %v3790
        %v3792 = vmul.f32 %v2915, 1.442695
        %v3793 = vpow.pop %v3792
        %v3794 = vmul.f32 %v2916, 1.442695
        %v3795 = vpow.pop %v3794
        %v3796 = vmul.f32 %v2917, 1.442695
        %v3797 = vpow.pop %v3796
        %v3798 = vmul.f32 %v2918, 1.442695
        %v3799 = vpow.pop %v3798
        %v3800 = vmul.f32 %v2919, 1.442695
        %v3801 = vpow.pop %v3800
        %v3802 = vmul.f32 %v2920, 1.442695
        %v3803 = vpow.pop %v3802
        %v3804 = vmul.f32 %v2921, 1.442695
        %v3805 = vpow.pop %v3804
        %v3806 = vmul.f32 %v2922, 1.442695
        %v3807 = vpow.pop %v3806
        %v3808 = vmul.f32 %v2923, 1.442695
        %v3809 = vpow.pop %v3808
        %v3810 = vmul.f32 %v2924, 1.442695
        %v3811 = vpow.pop %v3810
        %v3812 = vmul.f32 %v2925, 1.442695
        %v3813 = vpow.pop %v3812
        %v3814 = vmul.f32 %v2926, 1.442695
        %v3815 = vpow.pop %v3814
        %v3816 = vmul.f32 %v2927, 1.442695
        %v3817 = vpow.pop %v3816
        %v3818 = vmul.f32 %v2928, 1.442695
        %v3819 = vpow.pop %v3818
        %v3820 = vmul.f32 %v2929, 1.442695
        %v3821 = vpow.pop %v3820
        %v3822 = vmul.f32 %v2930, 1.442695
        %v3823 = vpow.pop %v3822
        %v3824 = vmul.f32 %v2931, 1.442695
        %v3825 = vpow.pop %v3824
        %v3826 = vmul.f32 %v2932, 1.442695
        %v3827 = vpow.pop %v3826
        %v3828 = vmul.f32 %v2933, 1.442695
        %v3829 = vpow.pop %v3828
        %v3830 = vadd.f32 %v2935, 1.0
        %v3831 = vadd.f32 %v2937, 1.0
        %v3832 = vadd.f32 %v2939, 1.0
        %v3833 = vadd.f32 %v2941, 1.0
        %v3834 = vadd.f32 %v2943, 1.0
        %v3835 = vadd.f32 %v2945, 1.0
        %v3836 = vadd.f32 %v2947, 1.0
        %v3837 = vadd.f32 %v2949, 1.0
        %v3838 = vadd.f32 %v2951, 1.0
        %v3839 = vadd.f32 %v2953, 1.0
        %v3840 = vadd.f32 %v2955, 1.0
        %v3841 = vadd.f32 %v2957, 1.0
        %v3842 = vadd.f32 %v2959, 1.0
        %v3843 = vadd.f32 %v2961, 1.0
        %v3844 = vadd.f32 %v2963, 1.0
        %v3845 = vadd.f32 %v2965, 1.0
        %v3846 = vadd.f32 %v2967, 1.0
        %v3847 = vadd.f32 %v2969, 1.0
        %v3848 = vadd.f32 %v2971, 1.0
        %v3849 = vadd.f32 %v2973, 1.0
        %v3850 = vadd.f32 %v2975, 1.0
        %v3851 = vadd.f32 %v2977, 1.0
        %v3852 = vadd.f32 %v2979, 1.0
        %v3853 = vadd.f32 %v2981, 1.0
        %v3854 = vadd.f32 %v2983, 1.0
        %v3855 = vadd.f32 %v2985, 1.0
        %v3856 = vadd.f32 %v2987, 1.0
        %v3857 = vadd.f32 %v2989, 1.0
        %v3858 = vadd.f32 %v2991, 1.0
        %v3859 = vadd.f32 %v2993, 1.0
        %v3860 = vadd.f32 %v2995, 1.0
        %v3861 = vadd.f32 %v2997, 1.0
        %v3862 = vadd.f32 %v2999, 1.0
        %v3863 = vadd.f32 %v3001, 1.0
        %v3864 = vadd.f32 %v3003, 1.0
        %v3865 = vadd.f32 %v3005, 1.0
        %v3866 = vadd.f32 %v3007, 1.0
        %v3867 = vadd.f32 %v3009, 1.0
        %v3868 = vadd.f32 %v3011, 1.0
        %v3869 = vadd.f32 %v3013, 1.0
        %v3870 = vadd.f32 %v3015, 1.0
        %v3871 = vadd.f32 %v3017, 1.0
        %v3872 = vadd.f32 %v3019, 1.0
        %v3873 = vadd.f32 %v3021, 1.0
        %v3874 = vadd.f32 %v3023, 1.0
        %v3875 = vadd.f32 %v3025, 1.0
        %v3876 = vadd.f32 %v3027, 1.0
        %v3877 = vadd.f32 %v3029, 1.0
        %v3878 = vadd.f32 %v3031, 1.0
        %v3879 = vadd.f32 %v3033, 1.0
        %v3880 = vadd.f32 %v3035, 1.0
        %v3881 = vadd.f32 %v3037, 1.0
        %v3882 = vadd.f32 %v3039, 1.0
        %v3883 = vadd.f32 %v3041, 1.0
        %v3884 = vadd.f32 %v3043, 1.0
        %v3885 = vadd.f32 %v3045, 1.0
        %v3886 = vadd.f32 %v3047, 1.0
        %v3887 = vadd.f32 %v3049, 1.0
        %v3888 = vadd.f32 %v3051, 1.0
        %v3889 = vadd.f32 %v3053, 1.0
        %v3890 = vadd.f32 %v3055, 1.0
        %v3891 = vadd.f32 %v3057, 1.0
        %v3892 = vadd.f32 %v3059, 1.0
        %v3893 = vadd.f32 %v3061, 1.0
        %v3894 = vadd.f32 %v3063, 1.0
        %v3895 = vadd.f32 %v3065, 1.0
        %v3896 = vadd.f32 %v3067, 1.0
        %v3897 = vadd.f32 %v3069, 1.0
        %v3898 = vadd.f32 %v3071, 1.0
        %v3899 = vadd.f32 %v3073, 1.0
        %v3900 = vadd.f32 %v3075, 1.0
        %v3901 = vadd.f32 %v3077, 1.0
        %v3902 = vadd.f32 %v3079, 1.0
        %v3903 = vadd.f32 %v3081, 1.0
        %v3904 = vadd.f32 %v3083, 1.0
        %v3905 = vadd.f32 %v3085, 1.0
        %v3906 = vadd.f32 %v3087, 1.0
        %v3907 = vadd.f32 %v3089, 1.0
        %v3908 = vadd.f32 %v3091, 1.0
        %v3909 = vadd.f32 %v3093, 1.0
        %v3910 = vadd.f32 %v3095, 1.0
        %v3911 = vadd.f32 %v3097, 1.0
        %v3912 = vadd.f32 %v3099, 1.0
        %v3913 = vadd.f32 %v3101, 1.0
        %v3914 = vadd.f32 %v3103, 1.0
        %v3915 = vadd.f32 %v3105, 1.0
        %v3916 = vadd.f32 %v3107, 1.0
        %v3917 = vadd.f32 %v3109, 1.0
        %v3918 = vadd.f32 %v3111, 1.0
        %v3919 = vadd.f32 %v3113, 1.0
        %v3920 = vadd.f32 %v3115, 1.0
        %v3921 = vadd.f32 %v3117, 1.0
        %v3922 = vadd.f32 %v3119, 1.0
        %v3923 = vadd.f32 %v3121, 1.0
        %v3924 = vadd.f32 %v3123, 1.0
        %v3925 = vadd.f32 %v3125, 1.0
        %v3926 = vadd.f32 %v3127, 1.0
        %v3927 = vadd.f32 %v3129, 1.0
        %v3928 = vadd.f32 %v3131, 1.0
        %v3929 = vadd.f32 %v3133, 1.0
        %v3930 = vadd.f32 %v3135, 1.0
        %v3931 = vadd.f32 %v3137, 1.0
        %v3932 = vadd.f32 %v3139, 1.0
        %v3933 = vadd.f32 %v3141, 1.0
        %v3934 = vadd.f32 %v3143, 1.0
        %v3935 = vadd.f32 %v3145, 1.0
        %v3936 = vadd.f32 %v3147, 1.0
        %v3937 = vadd.f32 %v3149, 1.0
        %v3938 = vadd.f32 %v3151, 1.0
        %v3939 = vadd.f32 %v3153, 1.0
        %v3940 = vadd.f32 %v3155, 1.0
        %v3941 = vadd.f32 %v3157, 1.0
        %v3942 = vadd.f32 %v3159, 1.0
        %v3943 = vadd.f32 %v3161, 1.0
        %v3944 = vadd.f32 %v3163, 1.0
        %v3945 = vadd.f32 %v3165, 1.0
        %v3946 = vadd.f32 %v3167, 1.0
        %v3947 = vadd.f32 %v3169, 1.0
        %v3948 = vadd.f32 %v3171, 1.0
        %v3949 = vadd.f32 %v3173, 1.0
        %v3950 = vadd.f32 %v3175, 1.0
        %v3951 = vadd.f32 %v3177, 1.0
        %v3952 = vadd.f32 %v3179, 1.0
        %v3953 = vadd.f32 %v3181, 1.0
        %v3954 = vadd.f32 %v3183, 1.0
        %v3955 = vadd.f32 %v3185, 1.0
        %v3956 = vadd.f32 %v3187, 1.0
        %v3957 = vadd.f32 %v3189, 1.0
        %v3958 = vadd.f32 %v3191, 1.0
        %v3959 = vadd.f32 %v3193, 1.0
        %v3960 = vadd.f32 %v3195, 1.0
        %v3961 = vadd.f32 %v3197, 1.0
        %v3962 = vadd.f32 %v3199, 1.0
        %v3963 = vadd.f32 %v3201, 1.0
        %v3964 = vadd.f32 %v3203, 1.0
        %v3965 = vadd.f32 %v3205, 1.0
        %v3966 = vadd.f32 %v3207, 1.0
        %v3967 = vadd.f32 %v3209, 1.0
        %v3968 = vadd.f32 %v3211, 1.0
        %v3969 = vadd.f32 %v3213, 1.0
        %v3970 = vadd.f32 %v3215, 1.0
        %v3971 = vadd.f32 %v3217, 1.0
        %v3972 = vadd.f32 %v3219, 1.0
        %v3973 = vadd.f32 %v3221, 1.0
        %v3974 = vadd.f32 %v3223, 1.0
        %v3975 = vadd.f32 %v3225, 1.0
        %v3976 = vadd.f32 %v3227, 1.0
        %v3977 = vadd.f32 %v3229, 1.0
        %v3978 = vadd.f32 %v3231, 1.0
        %v3979 = vadd.f32 %v3233, 1.0
        %v3980 = vadd.f32 %v3235, 1.0
        %v3981 = vadd.f32 %v3237, 1.0
        %v3982 = vadd.f32 %v3239, 1.0
        %v3983 = vadd.f32 %v3241, 1.0
        %v3984 = vadd.f32 %v3243, 1.0
        %v3985 = vadd.f32 %v3245, 1.0
        %v3986 = vadd.f32 %v3247, 1.0
        %v3987 = vadd.f32 %v3249, 1.0
        %v3988 = vadd.f32 %v3251, 1.0
        %v3989 = vadd.f32 %v3253, 1.0
        %v3990 = vadd.f32 %v3255, 1.0
        %v3991 = vadd.f32 %v3257, 1.0
        %v3992 = vadd.f32 %v3259, 1.0
        %v3993 = vadd.f32 %v3261, 1.0
        %v3994 = vadd.f32 %v3263, 1.0
        %v3995 = vadd.f32 %v3265, 1.0
        %v3996 = vadd.f32 %v3267, 1.0
        %v3997 = vadd.f32 %v3269, 1.0
        %v3998 = vadd.f32 %v3271, 1.0
        %v3999 = vadd.f32 %v3273, 1.0
        %v4000 = vadd.f32 %v3275, 1.0
        %v4001 = vadd.f32 %v3277, 1.0
        %v4002 = vadd.f32 %v3279, 1.0
        %v4003 = vadd.f32 %v3281, 1.0
        %v4004 = vadd.f32 %v3283, 1.0
        %v4005 = vadd.f32 %v3285, 1.0
        %v4006 = vadd.f32 %v3287, 1.0
        %v4007 = vadd.f32 %v3289, 1.0
        %v4008 = vadd.f32 %v3291, 1.0
        %v4009 = vadd.f32 %v3293, 1.0
        %v4010 = vadd.f32 %v3295, 1.0
        %v4011 = vadd.f32 %v3297, 1.0
        %v4012 = vadd.f32 %v3299, 1.0
        %v4013 = vadd.f32 %v3301, 1.0
        %v4014 = vadd.f32 %v3303, 1.0
        %v4015 = vadd.f32 %v3305, 1.0
        %v4016 = vadd.f32 %v3307, 1.0
        %v4017 = vadd.f32 %v3309, 1.0
        %v4018 = vadd.f32 %v3311, 1.0
        %v4019 = vadd.f32 %v3313, 1.0
        %v4020 = vadd.f32 %v3315, 1.0
        %v4021 = vadd.f32 %v3317, 1.0
        %v4022 = vadd.f32 %v3319, 1.0
        %v4023 = vadd.f32 %v3321, 1.0
        %v4024 = vadd.f32 %v3323, 1.0
        %v4025 = vadd.f32 %v3325, 1.0
        %v4026 = vadd.f32 %v3327, 1.0
        %v4027 = vadd.f32 %v3329, 1.0
        %v4028 = vadd.f32 %v3331, 1.0
        %v4029 = vadd.f32 %v3333, 1.0
        %v4030 = vadd.f32 %v3335, 1.0
        %v4031 = vadd.f32 %v3337, 1.0
        %v4032 = vadd.f32 %v3339, 1.0
        %v4033 = vadd.f32 %v3341, 1.0
        %v4034 = vadd.f32 %v3343, 1.0
        %v4035 = vadd.f32 %v3345, 1.0
        %v4036 = vadd.f32 %v3347, 1.0
        %v4037 = vadd.f32 %v3349, 1.0
        %v4038 = vadd.f32 %v3351, 1.0
        %v4039 = vadd.f32 %v3353, 1.0
        %v4040 = vadd.f32 %v3355, 1.0
        %v4041 = vadd.f32 %v3357, 1.0
        %v4042 = vadd.f32 %v3359, 1.0
        %v4043 = vadd.f32 %v3361, 1.0
        %v4044 = vadd.f32 %v3363, 1.0
        %v4045 = vadd.f32 %v3365, 1.0
        %v4046 = vadd.f32 %v3367, 1.0
        %v4047 = vadd.f32 %v3369, 1.0
        %v4048 = vadd.f32 %v3371, 1.0
        %v4049 = vadd.f32 %v3373, 1.0
        %v4050 = vadd.f32 %v3375, 1.0
        %v4051 = vadd.f32 %v3377, 1.0
        %v4052 = vadd.f32 %v3379, 1.0
        %v4053 = vadd.f32 %v3381, 1.0
        %v4054 = vadd.f32 %v3383, 1.0
        %v4055 = vadd.f32 %v3385, 1.0
        %v4056 = vadd.f32 %v3387, 1.0
        %v4057 = vadd.f32 %v3389, 1.0
        %v4058 = vadd.f32 %v3391, 1.0
        %v4059 = vadd.f32 %v3393, 1.0
        %v4060 = vadd.f32 %v3395, 1.0
        %v4061 = vadd.f32 %v3397, 1.0
        %v4062 = vadd.f32 %v3399, 1.0
        %v4063 = vadd.f32 %v3401, 1.0
        %v4064 = vadd.f32 %v3403, 1.0
        %v4065 = vadd.f32 %v3405, 1.0
        %v4066 = vadd.f32 %v3407, 1.0
        %v4067 = vadd.f32 %v3409, 1.0
        %v4068 = vadd.f32 %v3411, 1.0
        %v4069 = vadd.f32 %v3413, 1.0
        %v4070 = vadd.f32 %v3415, 1.0
        %v4071 = vadd.f32 %v3417, 1.0
        %v4072 = vadd.f32 %v3419, 1.0
        %v4073 = vadd.f32 %v3421, 1.0
        %v4074 = vadd.f32 %v3423, 1.0
        %v4075 = vadd.f32 %v3425, 1.0
        %v4076 = vadd.f32 %v3427, 1.0
        %v4077 = vadd.f32 %v3429, 1.0
        %v4078 = vadd.f32 %v3431, 1.0
        %v4079 = vadd.f32 %v3433, 1.0
        %v4080 = vadd.f32 %v3435, 1.0
        %v4081 = vadd.f32 %v3437, 1.0
        %v4082 = vadd.f32 %v3439, 1.0
        %v4083 = vadd.f32 %v3441, 1.0
        %v4084 = vadd.f32 %v3443, 1.0
        %v4085 = vadd.f32 %v3445, 1.0
        %v4086 = vadd.f32 %v3447, 1.0
        %v4087 = vadd.f32 %v3449, 1.0
        %v4088 = vadd.f32 %v3451, 1.0
        %v4089 = vadd.f32 %v3453, 1.0
        %v4090 = vadd.f32 %v3455, 1.0
        %v4091 = vadd.f32 %v3457, 1.0
        %v4092 = vadd.f32 %v3459, 1.0
        %v4093 = vadd.f32 %v3461, 1.0
        %v4094 = vadd.f32 %v3463, 1.0
        %v4095 = vadd.f32 %v3465, 1.0
        %v4096 = vadd.f32 %v3467, 1.0
        %v4097 = vadd.f32 %v3469, 1.0
        %v4098 = vadd.f32 %v3471, 1.0
        %v4099 = vadd.f32 %v3473, 1.0
        %v4100 = vadd.f32 %v3475, 1.0
        %v4101 = vadd.f32 %v3477, 1.0
        %v4102 = vadd.f32 %v3479, 1.0
        %v4103 = vadd.f32 %v3481, 1.0
        %v4104 = vadd.f32 %v3483, 1.0
        %v4105 = vadd.f32 %v3485, 1.0
        %v4106 = vadd.f32 %v3487, 1.0
        %v4107 = vadd.f32 %v3489, 1.0
        %v4108 = vadd.f32 %v3491, 1.0
        %v4109 = vadd.f32 %v3493, 1.0
        %v4110 = vadd.f32 %v3495, 1.0
        %v4111 = vadd.f32 %v3497, 1.0
        %v4112 = vadd.f32 %v3499, 1.0
        %v4113 = vadd.f32 %v3501, 1.0
        %v4114 = vadd.f32 %v3503, 1.0
        %v4115 = vadd.f32 %v3505, 1.0
        %v4116 = vadd.f32 %v3507, 1.0
        %v4117 = vadd.f32 %v3509, 1.0
        %v4118 = vadd.f32 %v3511, 1.0
        %v4119 = vadd.f32 %v3513, 1.0
        %v4120 = vadd.f32 %v3515, 1.0
        %v4121 = vadd.f32 %v3517, 1.0
        %v4122 = vadd.f32 %v3519, 1.0
        %v4123 = vadd.f32 %v3521, 1.0
        %v4124 = vadd.f32 %v3523, 1.0
        %v4125 = vadd.f32 %v3525, 1.0
        %v4126 = vadd.f32 %v3527, 1.0
        %v4127 = vadd.f32 %v3529, 1.0
        %v4128 = vadd.f32 %v3531, 1.0
        %v4129 = vadd.f32 %v3533, 1.0
        %v4130 = vadd.f32 %v3535, 1.0
        %v4131 = vadd.f32 %v3537, 1.0
        %v4132 = vadd.f32 %v3539, 1.0
        %v4133 = vadd.f32 %v3541, 1.0
        %v4134 = vadd.f32 %v3543, 1.0
        %v4135 = vadd.f32 %v3545, 1.0
        %v4136 = vadd.f32 %v3547, 1.0
        %v4137 = vadd.f32 %v3549, 1.0
        %v4138 = vadd.f32 %v3551, 1.0
        %v4139 = vadd.f32 %v3553, 1.0
        %v4140 = vadd.f32 %v3555, 1.0
        %v4141 = vadd.f32 %v3557, 1.0
        %v4142 = vadd.f32 %v3559, 1.0
        %v4143 = vadd.f32 %v3561, 1.0
        %v4144 = vadd.f32 %v3563, 1.0
        %v4145 = vadd.f32 %v3565, 1.0
        %v4146 = vadd.f32 %v3567, 1.0
        %v4147 = vadd.f32 %v3569, 1.0
        %v4148 = vadd.f32 %v3571, 1.0
        %v4149 = vadd.f32 %v3573, 1.0
        %v4150 = vadd.f32 %v3575, 1.0
        %v4151 = vadd.f32 %v3577, 1.0
        %v4152 = vadd.f32 %v3579, 1.0
        %v4153 = vadd.f32 %v3581, 1.0
        %v4154 = vadd.f32 %v3583, 1.0
        %v4155 = vadd.f32 %v3585, 1.0
        %v4156 = vadd.f32 %v3587, 1.0
        %v4157 = vadd.f32 %v3589, 1.0
        %v4158 = vadd.f32 %v3591, 1.0
        %v4159 = vadd.f32 %v3593, 1.0
        %v4160 = vadd.f32 %v3595, 1.0
        %v4161 = vadd.f32 %v3597, 1.0
        %v4162 = vadd.f32 %v3599, 1.0
        %v4163 = vadd.f32 %v3601, 1.0
        %v4164 = vadd.f32 %v3603, 1.0
        %v4165 = vadd.f32 %v3605, 1.0
        %v4166 = vadd.f32 %v3607, 1.0
        %v4167 = vadd.f32 %v3609, 1.0
        %v4168 = vadd.f32 %v3611, 1.0
        %v4169 = vadd.f32 %v3613, 1.0
        %v4170 = vadd.f32 %v3615, 1.0
        %v4171 = vadd.f32 %v3617, 1.0
        %v4172 = vadd.f32 %v3619, 1.0
        %v4173 = vadd.f32 %v3621, 1.0
        %v4174 = vadd.f32 %v3623, 1.0
        %v4175 = vadd.f32 %v3625, 1.0
        %v4176 = vadd.f32 %v3627, 1.0
        %v4177 = vadd.f32 %v3629, 1.0
        %v4178 = vadd.f32 %v3631, 1.0
        %v4179 = vadd.f32 %v3633, 1.0
        %v4180 = vadd.f32 %v3635, 1.0
        %v4181 = vadd.f32 %v3637, 1.0
        %v4182 = vadd.f32 %v3639, 1.0
        %v4183 = vadd.f32 %v3641, 1.0
        %v4184 = vadd.f32 %v3643, 1.0
        %v4185 = vadd.f32 %v3645, 1.0
        %v4186 = vadd.f32 %v3647, 1.0
        %v4187 = vadd.f32 %v3649, 1.0
        %v4188 = vadd.f32 %v3651, 1.0
        %v4189 = vadd.f32 %v3653, 1.0
        %v4190 = vadd.f32 %v3655, 1.0
        %v4191 = vadd.f32 %v3657, 1.0
        %v4192 = vadd.f32 %v3659, 1.0
        %v4193 = vadd.f32 %v3661, 1.0
        %v4194 = vadd.f32 %v3663, 1.0
        %v4195 = vadd.f32 %v3665, 1.0
        %v4196 = vadd.f32 %v3667, 1.0
        %v4197 = vadd.f32 %v3669, 1.0
        %v4198 = vadd.f32 %v3671, 1.0
        %v4199 = vadd.f32 %v3673, 1.0
        %v4200 = vadd.f32 %v3675, 1.0
        %v4201 = vadd.f32 %v3677, 1.0
        %v4202 = vadd.f32 %v3679, 1.0
        %v4203 = vadd.f32 %v3681, 1.0
        %v4204 = vadd.f32 %v3683, 1.0
        %v4205 = vadd.f32 %v3685, 1.0
        %v4206 = vadd.f32 %v3687, 1.0
        %v4207 = vadd.f32 %v3689, 1.0
        %v4208 = vadd.f32 %v3691, 1.0
        %v4209 = vadd.f32 %v3693, 1.0
        %v4210 = vadd.f32 %v3695, 1.0
        %v4211 = vadd.f32 %v3697, 1.0
        %v4212 = vadd.f32 %v3699, 1.0
        %v4213 = vadd.f32 %v3701, 1.0
        %v4214 = vadd.f32 %v3703, 1.0
        %v4215 = vadd.f32 %v3705, 1.0
        %v4216 = vadd.f32 %v3707, 1.0
        %v4217 = vadd.f32 %v3709, 1.0
        %v4218 = vadd.f32 %v3711, 1.0
        %v4219 = vadd.f32 %v3713, 1.0
        %v4220 = vadd.f32 %v3715, 1.0
        %v4221 = vadd.f32 %v3717, 1.0
        %v4222 = vadd.f32 %v3719, 1.0
        %v4223 = vadd.f32 %v3721, 1.0
        %v4224 = vadd.f32 %v3723, 1.0
        %v4225 = vadd.f32 %v3725, 1.0
        %v4226 = vadd.f32 %v3727, 1.0
        %v4227 = vadd.f32 %v3729, 1.0
        %v4228 = vadd.f32 %v3731, 1.0
        %v4229 = vadd.f32 %v3733, 1.0
        %v4230 = vadd.f32 %v3735, 1.0
        %v4231 = vadd.f32 %v3737, 1.0
        %v4232 = vadd.f32 %v3739, 1.0
        %v4233 = vadd.f32 %v3741, 1.0
        %v4234 = vadd.f32 %v3743, 1.0
        %v4235 = vadd.f32 %v3745, 1.0
        %v4236 = vadd.f32 %v3747, 1.0
        %v4237 = vadd.f32 %v3749, 1.0
        %v4238 = vadd.f32 %v3751, 1.0
        %v4239 = vadd.f32 %v3753, 1.0
        %v4240 = vadd.f32 %v3755, 1.0
        %v4241 = vadd.f32 %v3757, 1.0
        %v4242 = vadd.f32 %v3759, 1.0
        %v4243 = vadd.f32 %v3761, 1.0
        %v4244 = vadd.f32 %v3763, 1.0
        %v4245 = vadd.f32 %v3765, 1.0
        %v4246 = vadd.f32 %v3767, 1.0
        %v4247 = vadd.f32 %v3769, 1.0
        %v4248 = vadd.f32 %v3771, 1.0
        %v4249 = vadd.f32 %v3773, 1.0
        %v4250 = vadd.f32 %v3775, 1.0
        %v4251 = vadd.f32 %v3777, 1.0
        %v4252 = vadd.f32 %v3779, 1.0
        %v4253 = vadd.f32 %v3781, 1.0
        %v4254 = vadd.f32 %v3783, 1.0
        %v4255 = vadd.f32 %v3785, 1.0
        %v4256 = vadd.f32 %v3787, 1.0
        %v4257 = vadd.f32 %v3789, 1.0
        %v4258 = vadd.f32 %v3791, 1.0
        %v4259 = vadd.f32 %v3793, 1.0
        %v4260 = vadd.f32 %v3795, 1.0
        %v4261 = vadd.f32 %v3797, 1.0
        %v4262 = vadd.f32 %v3799, 1.0
        %v4263 = vadd.f32 %v3801, 1.0
        %v4264 = vadd.f32 %v3803, 1.0
        %v4265 = vadd.f32 %v3805, 1.0
        %v4266 = vadd.f32 %v3807, 1.0
        %v4267 = vadd.f32 %v3809, 1.0
        %v4268 = vadd.f32 %v3811, 1.0
        %v4269 = vadd.f32 %v3813, 1.0
        %v4270 = vadd.f32 %v3815, 1.0
        %v4271 = vadd.f32 %v3817, 1.0
        %v4272 = vadd.f32 %v3819, 1.0
        %v4273 = vadd.f32 %v3821, 1.0
        %v4274 = vadd.f32 %v3823, 1.0
        %v4275 = vadd.f32 %v3825, 1.0
        %v4276 = vadd.f32 %v3827, 1.0
        %v4277 = vadd.f32 %v3829, 1.0
        %v4278 = vrcp.pop %v3830
        %v4279 = vmul.f32 1.0, %v4278
        %v4280 = vrcp.pop %v3831
        %v4281 = vmul.f32 1.0, %v4280
        %v4282 = vrcp.pop %v3832
        %v4283 = vmul.f32 1.0, %v4282
        %v4284 = vrcp.pop %v3833
        %v4285 = vmul.f32 1.0, %v4284
        %v4286 = vrcp.pop %v3834
        %v4287 = vmul.f32 1.0, %v4286
        %v4288 = vrcp.pop %v3835
        %v4289 = vmul.f32 1.0, %v4288
        %v4290 = vrcp.pop %v3836
        %v4291 = vmul.f32 1.0, %v4290
        %v4292 = vrcp.pop %v3837
        %v4293 = vmul.f32 1.0, %v4292
        %v4294 = vrcp.pop %v3838
        %v4295 = vmul.f32 1.0, %v4294
        %v4296 = vrcp.pop %v3839
        %v4297 = vmul.f32 1.0, %v4296
        %v4298 = vrcp.pop %v3840
        %v4299 = vmul.f32 1.0, %v4298
        %v4300 = vrcp.pop %v3841
        %v4301 = vmul.f32 1.0, %v4300
        %v4302 = vrcp.pop %v3842
        %v4303 = vmul.f32 1.0, %v4302
        %v4304 = vrcp.pop %v3843
        %v4305 = vmul.f32 1.0, %v4304
        %v4306 = vrcp.pop %v3844
        %v4307 = vmul.f32 1.0, %v4306
        %v4308 = vrcp.pop %v3845
        %v4309 = vmul.f32 1.0, %v4308
        %v4310 = vrcp.pop %v3846
        %v4311 = vmul.f32 1.0, %v4310
        %v4312 = vrcp.pop %v3847
        %v4313 = vmul.f32 1.0, %v4312
        %v4314 = vrcp.pop %v3848
        %v4315 = vmul.f32 1.0, %v4314
        %v4316 = vrcp.pop %v3849
        %v4317 = vmul.f32 1.0, %v4316
        %v4318 = vrcp.pop %v3850
        %v4319 = vmul.f32 1.0, %v4318
        %v4320 = vrcp.pop %v3851
        %v4321 = vmul.f32 1.0, %v4320
        %v4322 = vrcp.pop %v3852
        %v4323 = vmul.f32 1.0, %v4322
        %v4324 = vrcp.pop %v3853
        %v4325 = vmul.f32 1.0, %v4324
        %v4326 = vrcp.pop %v3854
        %v4327 = vmul.f32 1.0, %v4326
        %v4328 = vrcp.pop %v3855
        %v4329 = vmul.f32 1.0, %v4328
        %v4330 = vrcp.pop %v3856
        %v4331 = vmul.f32 1.0, %v4330
        %v4332 = vrcp.pop %v3857
        %v4333 = vmul.f32 1.0, %v4332
        %v4334 = vrcp.pop %v3858
        %v4335 = vmul.f32 1.0, %v4334
        %v4336 = vrcp.pop %v3859
        %v4337 = vmul.f32 1.0, %v4336
        %v4338 = vrcp.pop %v3860
        %v4339 = vmul.f32 1.0, %v4338
        %v4340 = vrcp.pop %v3861
        %v4341 = vmul.f32 1.0, %v4340
        %v4342 = vrcp.pop %v3862
        %v4343 = vmul.f32 1.0, %v4342
        %v4344 = vrcp.pop %v3863
        %v4345 = vmul.f32 1.0, %v4344
        %v4346 = vrcp.pop %v3864
        %v4347 = vmul.f32 1.0, %v4346
        %v4348 = vrcp.pop %v3865
        %v4349 = vmul.f32 1.0, %v4348
        %v4350 = vrcp.pop %v3866
        %v4351 = vmul.f32 1.0, %v4350
        %v4352 = vrcp.pop %v3867
        %v4353 = vmul.f32 1.0, %v4352
        %v4354 = vrcp.pop %v3868
        %v4355 = vmul.f32 1.0, %v4354
        %v4356 = vrcp.pop %v3869
        %v4357 = vmul.f32 1.0, %v4356
        %v4358 = vrcp.pop %v3870
        %v4359 = vmul.f32 1.0, %v4358
        %v4360 = vrcp.pop %v3871
        %v4361 = vmul.f32 1.0, %v4360
        %v4362 = vrcp.pop %v3872
        %v4363 = vmul.f32 1.0, %v4362
        %v4364 = vrcp.pop %v3873
        %v4365 = vmul.f32 1.0, %v4364
        %v4366 = vrcp.pop %v3874
        %v4367 = vmul.f32 1.0, %v4366
        %v4368 = vrcp.pop %v3875
        %v4369 = vmul.f32 1.0, %v4368
        %v4370 = vrcp.pop %v3876
        %v4371 = vmul.f32 1.0, %v4370
        %v4372 = vrcp.pop %v3877
        %v4373 = vmul.f32 1.0, %v4372
        %v4374 = vrcp.pop %v3878
        %v4375 = vmul.f32 1.0, %v4374
        %v4376 = vrcp.pop %v3879
        %v4377 = vmul.f32 1.0, %v4376
        %v4378 = vrcp.pop %v3880
        %v4379 = vmul.f32 1.0, %v4378
        %v4380 = vrcp.pop %v3881
        %v4381 = vmul.f32 1.0, %v4380
        %v4382 = vrcp.pop %v3882
        %v4383 = vmul.f32 1.0, %v4382
        %v4384 = vrcp.pop %v3883
        %v4385 = vmul.f32 1.0, %v4384
        %v4386 = vrcp.pop %v3884
        %v4387 = vmul.f32 1.0, %v4386
        %v4388 = vrcp.pop %v3885
        %v4389 = vmul.f32 1.0, %v4388
        %v4390 = vrcp.pop %v3886
        %v4391 = vmul.f32 1.0, %v4390
        %v4392 = vrcp.pop %v3887
        %v4393 = vmul.f32 1.0, %v4392
        %v4394 = vrcp.pop %v3888
        %v4395 = vmul.f32 1.0, %v4394
        %v4396 = vrcp.pop %v3889
        %v4397 = vmul.f32 1.0, %v4396
        %v4398 = vrcp.pop %v3890
        %v4399 = vmul.f32 1.0, %v4398
        %v4400 = vrcp.pop %v3891
        %v4401 = vmul.f32 1.0, %v4400
        %v4402 = vrcp.pop %v3892
        %v4403 = vmul.f32 1.0, %v4402
        %v4404 = vrcp.pop %v3893
        %v4405 = vmul.f32 1.0, %v4404
        %v4406 = vrcp.pop %v3894
        %v4407 = vmul.f32 1.0, %v4406
        %v4408 = vrcp.pop %v3895
        %v4409 = vmul.f32 1.0, %v4408
        %v4410 = vrcp.pop %v3896
        %v4411 = vmul.f32 1.0, %v4410
        %v4412 = vrcp.pop %v3897
        %v4413 = vmul.f32 1.0, %v4412
        %v4414 = vrcp.pop %v3898
        %v4415 = vmul.f32 1.0, %v4414
        %v4416 = vrcp.pop %v3899
        %v4417 = vmul.f32 1.0, %v4416
        %v4418 = vrcp.pop %v3900
        %v4419 = vmul.f32 1.0, %v4418
        %v4420 = vrcp.pop %v3901
        %v4421 = vmul.f32 1.0, %v4420
        %v4422 = vrcp.pop %v3902
        %v4423 = vmul.f32 1.0, %v4422
        %v4424 = vrcp.pop %v3903
        %v4425 = vmul.f32 1.0, %v4424
        %v4426 = vrcp.pop %v3904
        %v4427 = vmul.f32 1.0, %v4426
        %v4428 = vrcp.pop %v3905
        %v4429 = vmul.f32 1.0, %v4428
        %v4430 = vrcp.pop %v3906
        %v4431 = vmul.f32 1.0, %v4430
        %v4432 = vrcp.pop %v3907
        %v4433 = vmul.f32 1.0, %v4432
        %v4434 = vrcp.pop %v3908
        %v4435 = vmul.f32 1.0, %v4434
        %v4436 = vrcp.pop %v3909
        %v4437 = vmul.f32 1.0, %v4436
        %v4438 = vrcp.pop %v3910
        %v4439 = vmul.f32 1.0, %v4438
        %v4440 = vrcp.pop %v3911
        %v4441 = vmul.f32 1.0, %v4440
        %v4442 = vrcp.pop %v3912
        %v4443 = vmul.f32 1.0, %v4442
        %v4444 = vrcp.pop %v3913
        %v4445 = vmul.f32 1.0, %v4444
        %v4446 = vrcp.pop %v3914
        %v4447 = vmul.f32 1.0, %v4446
        %v4448 = vrcp.pop %v3915
        %v4449 = vmul.f32 1.0, %v4448
        %v4450 = vrcp.pop %v3916
        %v4451 = vmul.f32 1.0, %v4450
        %v4452 = vrcp.pop %v3917
        %v4453 = vmul.f32 1.0, %v4452
        %v4454 = vrcp.pop %v3918
        %v4455 = vmul.f32 1.0, %v4454
        %v4456 = vrcp.pop %v3919
        %v4457 = vmul.f32 1.0, %v4456
        %v4458 = vrcp.pop %v3920
        %v4459 = vmul.f32 1.0, %v4458
        %v4460 = vrcp.pop %v3921
        %v4461 = vmul.f32 1.0, %v4460
        %v4462 = vrcp.pop %v3922
        %v4463 = vmul.f32 1.0, %v4462
        %v4464 = vrcp.pop %v3923
        %v4465 = vmul.f32 1.0, %v4464
        %v4466 = vrcp.pop %v3924
        %v4467 = vmul.f32 1.0, %v4466
        %v4468 = vrcp.pop %v3925
        %v4469 = vmul.f32 1.0, %v4468
        %v4470 = vrcp.pop %v3926
        %v4471 = vmul.f32 1.0, %v4470
        %v4472 = vrcp.pop %v3927
        %v4473 = vmul.f32 1.0, %v4472
        %v4474 = vrcp.pop %v3928
        %v4475 = vmul.f32 1.0, %v4474
        %v4476 = vrcp.pop %v3929
        %v4477 = vmul.f32 1.0, %v4476
        %v4478 = vrcp.pop %v3930
        %v4479 = vmul.f32 1.0, %v4478
        %v4480 = vrcp.pop %v3931
        %v4481 = vmul.f32 1.0, %v4480
        %v4482 = vrcp.pop %v3932
        %v4483 = vmul.f32 1.0, %v4482
        %v4484 = vrcp.pop %v3933
        %v4485 = vmul.f32 1.0, %v4484
        %v4486 = vrcp.pop %v3934
        %v4487 = vmul.f32 1.0, %v4486
        %v4488 = vrcp.pop %v3935
        %v4489 = vmul.f32 1.0, %v4488
        %v4490 = vrcp.pop %v3936
        %v4491 = vmul.f32 1.0, %v4490
        %v4492 = vrcp.pop %v3937
        %v4493 = vmul.f32 1.0, %v4492
        %v4494 = vrcp.pop %v3938
        %v4495 = vmul.f32 1.0, %v4494
        %v4496 = vrcp.pop %v3939
        %v4497 = vmul.f32 1.0, %v4496
        %v4498 = vrcp.pop %v3940
        %v4499 = vmul.f32 1.0, %v4498
        %v4500 = vrcp.pop %v3941
        %v4501 = vmul.f32 1.0, %v4500
        %v4502 = vrcp.pop %v3942
        %v4503 = vmul.f32 1.0, %v4502
        %v4504 = vrcp.pop %v3943
        %v4505 = vmul.f32 1.0, %v4504
        %v4506 = vrcp.pop %v3944
        %v4507 = vmul.f32 1.0, %v4506
        %v4508 = vrcp.pop %v3945
        %v4509 = vmul.f32 1.0, %v4508
        %v4510 = vrcp.pop %v3946
        %v4511 = vmul.f32 1.0, %v4510
        %v4512 = vrcp.pop %v3947
        %v4513 = vmul.f32 1.0, %v4512
        %v4514 = vrcp.pop %v3948
        %v4515 = vmul.f32 1.0, %v4514
        %v4516 = vrcp.pop %v3949
        %v4517 = vmul.f32 1.0, %v4516
        %v4518 = vrcp.pop %v3950
        %v4519 = vmul.f32 1.0, %v4518
        %v4520 = vrcp.pop %v3951
        %v4521 = vmul.f32 1.0, %v4520
        %v4522 = vrcp.pop %v3952
        %v4523 = vmul.f32 1.0, %v4522
        %v4524 = vrcp.pop %v3953
        %v4525 = vmul.f32 1.0, %v4524
        %v4526 = vrcp.pop %v3954
        %v4527 = vmul.f32 1.0, %v4526
        %v4528 = vrcp.pop %v3955
        %v4529 = vmul.f32 1.0, %v4528
        %v4530 = vrcp.pop %v3956
        %v4531 = vmul.f32 1.0, %v4530
        %v4532 = vrcp.pop %v3957
        %v4533 = vmul.f32 1.0, %v4532
        %v4534 = vrcp.pop %v3958
        %v4535 = vmul.f32 1.0, %v4534
        %v4536 = vrcp.pop %v3959
        %v4537 = vmul.f32 1.0, %v4536
        %v4538 = vrcp.pop %v3960
        %v4539 = vmul.f32 1.0, %v4538
        %v4540 = vrcp.pop %v3961
        %v4541 = vmul.f32 1.0, %v4540
        %v4542 = vrcp.pop %v3962
        %v4543 = vmul.f32 1.0, %v4542
        %v4544 = vrcp.pop %v3963
        %v4545 = vmul.f32 1.0, %v4544
        %v4546 = vrcp.pop %v3964
        %v4547 = vmul.f32 1.0, %v4546
        %v4548 = vrcp.pop %v3965
        %v4549 = vmul.f32 1.0, %v4548
        %v4550 = vrcp.pop %v3966
        %v4551 = vmul.f32 1.0, %v4550
        %v4552 = vrcp.pop %v3967
        %v4553 = vmul.f32 1.0, %v4552
        %v4554 = vrcp.pop %v3968
        %v4555 = vmul.f32 1.0, %v4554
        %v4556 = vrcp.pop %v3969
        %v4557 = vmul.f32 1.0, %v4556
        %v4558 = vrcp.pop %v3970
        %v4559 = vmul.f32 1.0, %v4558
        %v4560 = vrcp.pop %v3971
        %v4561 = vmul.f32 1.0, %v4560
        %v4562 = vrcp.pop %v3972
        %v4563 = vmul.f32 1.0, %v4562
        %v4564 = vrcp.pop %v3973
        %v4565 = vmul.f32 1.0, %v4564
        %v4566 = vrcp.pop %v3974
        %v4567 = vmul.f32 1.0, %v4566
        %v4568 = vrcp.pop %v3975
        %v4569 = vmul.f32 1.0, %v4568
        %v4570 = vrcp.pop %v3976
        %v4571 = vmul.f32 1.0, %v4570
        %v4572 = vrcp.pop %v3977
        %v4573 = vmul.f32 1.0, %v4572
        %v4574 = vrcp.pop %v3978
        %v4575 = vmul.f32 1.0, %v4574
        %v4576 = vrcp.pop %v3979
        %v4577 = vmul.f32 1.0, %v4576
        %v4578 = vrcp.pop %v3980
        %v4579 = vmul.f32 1.0, %v4578
        %v4580 = vrcp.pop %v3981
        %v4581 = vmul.f32 1.0, %v4580
        %v4582 = vrcp.pop %v3982
        %v4583 = vmul.f32 1.0, %v4582
        %v4584 = vrcp.pop %v3983
        %v4585 = vmul.f32 1.0, %v4584
        %v4586 = vrcp.pop %v3984
        %v4587 = vmul.f32 1.0, %v4586
        %v4588 = vrcp.pop %v3985
        %v4589 = vmul.f32 1.0, %v4588
        %v4590 = vrcp.pop %v3986
        %v4591 = vmul.f32 1.0, %v4590
        %v4592 = vrcp.pop %v3987
        %v4593 = vmul.f32 1.0, %v4592
        %v4594 = vrcp.pop %v3988
        %v4595 = vmul.f32 1.0, %v4594
        %v4596 = vrcp.pop %v3989
        %v4597 = vmul.f32 1.0, %v4596
        %v4598 = vrcp.pop %v3990
        %v4599 = vmul.f32 1.0, %v4598
        %v4600 = vrcp.pop %v3991
        %v4601 = vmul.f32 1.0, %v4600
        %v4602 = vrcp.pop %v3992
        %v4603 = vmul.f32 1.0, %v4602
        %v4604 = vrcp.pop %v3993
        %v4605 = vmul.f32 1.0, %v4604
        %v4606 = vrcp.pop %v3994
        %v4607 = vmul.f32 1.0, %v4606
        %v4608 = vrcp.pop %v3995
        %v4609 = vmul.f32 1.0, %v4608
        %v4610 = vrcp.pop %v3996
        %v4611 = vmul.f32 1.0, %v4610
        %v4612 = vrcp.pop %v3997
        %v4613 = vmul.f32 1.0, %v4612
        %v4614 = vrcp.pop %v3998
        %v4615 = vmul.f32 1.0, %v4614
        %v4616 = vrcp.pop %v3999
        %v4617 = vmul.f32 1.0, %v4616
        %v4618 = vrcp.pop %v4000
        %v4619 = vmul.f32 1.0, %v4618
        %v4620 = vrcp.pop %v4001
        %v4621 = vmul.f32 1.0, %v4620
        %v4622 = vrcp.pop %v4002
        %v4623 = vmul.f32 1.0, %v4622
        %v4624 = vrcp.pop %v4003
        %v4625 = vmul.f32 1.0, %v4624
        %v4626 = vrcp.pop %v4004
        %v4627 = vmul.f32 1.0, %v4626
        %v4628 = vrcp.pop %v4005
        %v4629 = vmul.f32 1.0, %v4628
        %v4630 = vrcp.pop %v4006
        %v4631 = vmul.f32 1.0, %v4630
        %v4632 = vrcp.pop %v4007
        %v4633 = vmul.f32 1.0, %v4632
        %v4634 = vrcp.pop %v4008
        %v4635 = vmul.f32 1.0, %v4634
        %v4636 = vrcp.pop %v4009
        %v4637 = vmul.f32 1.0, %v4636
        %v4638 = vrcp.pop %v4010
        %v4639 = vmul.f32 1.0, %v4638
        %v4640 = vrcp.pop %v4011
        %v4641 = vmul.f32 1.0, %v4640
        %v4642 = vrcp.pop %v4012
        %v4643 = vmul.f32 1.0, %v4642
        %v4644 = vrcp.pop %v4013
        %v4645 = vmul.f32 1.0, %v4644
        %v4646 = vrcp.pop %v4014
        %v4647 = vmul.f32 1.0, %v4646
        %v4648 = vrcp.pop %v4015
        %v4649 = vmul.f32 1.0, %v4648
        %v4650 = vrcp.pop %v4016
        %v4651 = vmul.f32 1.0, %v4650
        %v4652 = vrcp.pop %v4017
        %v4653 = vmul.f32 1.0, %v4652
        %v4654 = vrcp.pop %v4018
        %v4655 = vmul.f32 1.0, %v4654
        %v4656 = vrcp.pop %v4019
        %v4657 = vmul.f32 1.0, %v4656
        %v4658 = vrcp.pop %v4020
        %v4659 = vmul.f32 1.0, %v4658
        %v4660 = vrcp.pop %v4021
        %v4661 = vmul.f32 1.0, %v4660
        %v4662 = vrcp.pop %v4022
        %v4663 = vmul.f32 1.0, %v4662
        %v4664 = vrcp.pop %v4023
        %v4665 = vmul.f32 1.0, %v4664
        %v4666 = vrcp.pop %v4024
        %v4667 = vmul.f32 1.0, %v4666
        %v4668 = vrcp.pop %v4025
        %v4669 = vmul.f32 1.0, %v4668
        %v4670 = vrcp.pop %v4026
        %v4671 = vmul.f32 1.0, %v4670
        %v4672 = vrcp.pop %v4027
        %v4673 = vmul.f32 1.0, %v4672
        %v4674 = vrcp.pop %v4028
        %v4675 = vmul.f32 1.0, %v4674
        %v4676 = vrcp.pop %v4029
        %v4677 = vmul.f32 1.0, %v4676
        %v4678 = vrcp.pop %v4030
        %v4679 = vmul.f32 1.0, %v4678
        %v4680 = vrcp.pop %v4031
        %v4681 = vmul.f32 1.0, %v4680
        %v4682 = vrcp.pop %v4032
        %v4683 = vmul.f32 1.0, %v4682
        %v4684 = vrcp.pop %v4033
        %v4685 = vmul.f32 1.0, %v4684
        %v4686 = vrcp.pop %v4034
        %v4687 = vmul.f32 1.0, %v4686
        %v4688 = vrcp.pop %v4035
        %v4689 = vmul.f32 1.0, %v4688
        %v4690 = vrcp.pop %v4036
        %v4691 = vmul.f32 1.0, %v4690
        %v4692 = vrcp.pop %v4037
        %v4693 = vmul.f32 1.0, %v4692
        %v4694 = vrcp.pop %v4038
        %v4695 = vmul.f32 1.0, %v4694
        %v4696 = vrcp.pop %v4039
        %v4697 = vmul.f32 1.0, %v4696
        %v4698 = vrcp.pop %v4040
        %v4699 = vmul.f32 1.0, %v4698
        %v4700 = vrcp.pop %v4041
        %v4701 = vmul.f32 1.0, %v4700
        %v4702 = vrcp.pop %v4042
        %v4703 = vmul.f32 1.0, %v4702
        %v4704 = vrcp.pop %v4043
        %v4705 = vmul.f32 1.0, %v4704
        %v4706 = vrcp.pop %v4044
        %v4707 = vmul.f32 1.0, %v4706
        %v4708 = vrcp.pop %v4045
        %v4709 = vmul.f32 1.0, %v4708
        %v4710 = vrcp.pop %v4046
        %v4711 = vmul.f32 1.0, %v4710
        %v4712 = vrcp.pop %v4047
        %v4713 = vmul.f32 1.0, %v4712
        %v4714 = vrcp.pop %v4048
        %v4715 = vmul.f32 1.0, %v4714
        %v4716 = vrcp.pop %v4049
        %v4717 = vmul.f32 1.0, %v4716
        %v4718 = vrcp.pop %v4050
        %v4719 = vmul.f32 1.0, %v4718
        %v4720 = vrcp.pop %v4051
        %v4721 = vmul.f32 1.0, %v4720
        %v4722 = vrcp.pop %v4052
        %v4723 = vmul.f32 1.0, %v4722
        %v4724 = vrcp.pop %v4053
        %v4725 = vmul.f32 1.0, %v4724
        %v4726 = vrcp.pop %v4054
        %v4727 = vmul.f32 1.0, %v4726
        %v4728 = vrcp.pop %v4055
        %v4729 = vmul.f32 1.0, %v4728
        %v4730 = vrcp.pop %v4056
        %v4731 = vmul.f32 1.0, %v4730
        %v4732 = vrcp.pop %v4057
        %v4733 = vmul.f32 1.0, %v4732
        %v4734 = vrcp.pop %v4058
        %v4735 = vmul.f32 1.0, %v4734
        %v4736 = vrcp.pop %v4059
        %v4737 = vmul.f32 1.0, %v4736
        %v4738 = vrcp.pop %v4060
        %v4739 = vmul.f32 1.0, %v4738
        %v4740 = vrcp.pop %v4061
        %v4741 = vmul.f32 1.0, %v4740
        %v4742 = vrcp.pop %v4062
        %v4743 = vmul.f32 1.0, %v4742
        %v4744 = vrcp.pop %v4063
        %v4745 = vmul.f32 1.0, %v4744
        %v4746 = vrcp.pop %v4064
        %v4747 = vmul.f32 1.0, %v4746
        %v4748 = vrcp.pop %v4065
        %v4749 = vmul.f32 1.0, %v4748
        %v4750 = vrcp.pop %v4066
        %v4751 = vmul.f32 1.0, %v4750
        %v4752 = vrcp.pop %v4067
        %v4753 = vmul.f32 1.0, %v4752
        %v4754 = vrcp.pop %v4068
        %v4755 = vmul.f32 1.0, %v4754
        %v4756 = vrcp.pop %v4069
        %v4757 = vmul.f32 1.0, %v4756
        %v4758 = vrcp.pop %v4070
        %v4759 = vmul.f32 1.0, %v4758
        %v4760 = vrcp.pop %v4071
        %v4761 = vmul.f32 1.0, %v4760
        %v4762 = vrcp.pop %v4072
        %v4763 = vmul.f32 1.0, %v4762
        %v4764 = vrcp.pop %v4073
        %v4765 = vmul.f32 1.0, %v4764
        %v4766 = vrcp.pop %v4074
        %v4767 = vmul.f32 1.0, %v4766
        %v4768 = vrcp.pop %v4075
        %v4769 = vmul.f32 1.0, %v4768
        %v4770 = vrcp.pop %v4076
        %v4771 = vmul.f32 1.0, %v4770
        %v4772 = vrcp.pop %v4077
        %v4773 = vmul.f32 1.0, %v4772
        %v4774 = vrcp.pop %v4078
        %v4775 = vmul.f32 1.0, %v4774
        %v4776 = vrcp.pop %v4079
        %v4777 = vmul.f32 1.0, %v4776
        %v4778 = vrcp.pop %v4080
        %v4779 = vmul.f32 1.0, %v4778
        %v4780 = vrcp.pop %v4081
        %v4781 = vmul.f32 1.0, %v4780
        %v4782 = vrcp.pop %v4082
        %v4783 = vmul.f32 1.0, %v4782
        %v4784 = vrcp.pop %v4083
        %v4785 = vmul.f32 1.0, %v4784
        %v4786 = vrcp.pop %v4084
        %v4787 = vmul.f32 1.0, %v4786
        %v4788 = vrcp.pop %v4085
        %v4789 = vmul.f32 1.0, %v4788
        %v4790 = vrcp.pop %v4086
        %v4791 = vmul.f32 1.0, %v4790
        %v4792 = vrcp.pop %v4087
        %v4793 = vmul.f32 1.0, %v4792
        %v4794 = vrcp.pop %v4088
        %v4795 = vmul.f32 1.0, %v4794
        %v4796 = vrcp.pop %v4089
        %v4797 = vmul.f32 1.0, %v4796
        %v4798 = vrcp.pop %v4090
        %v4799 = vmul.f32 1.0, %v4798
        %v4800 = vrcp.pop %v4091
        %v4801 = vmul.f32 1.0, %v4800
        %v4802 = vrcp.pop %v4092
        %v4803 = vmul.f32 1.0, %v4802
        %v4804 = vrcp.pop %v4093
        %v4805 = vmul.f32 1.0, %v4804
        %v4806 = vrcp.pop %v4094
        %v4807 = vmul.f32 1.0, %v4806
        %v4808 = vrcp.pop %v4095
        %v4809 = vmul.f32 1.0, %v4808
        %v4810 = vrcp.pop %v4096
        %v4811 = vmul.f32 1.0, %v4810
        %v4812 = vrcp.pop %v4097
        %v4813 = vmul.f32 1.0, %v4812
        %v4814 = vrcp.pop %v4098
        %v4815 = vmul.f32 1.0, %v4814
        %v4816 = vrcp.pop %v4099
        %v4817 = vmul.f32 1.0, %v4816
        %v4818 = vrcp.pop %v4100
        %v4819 = vmul.f32 1.0, %v4818
        %v4820 = vrcp.pop %v4101
        %v4821 = vmul.f32 1.0, %v4820
        %v4822 = vrcp.pop %v4102
        %v4823 = vmul.f32 1.0, %v4822
        %v4824 = vrcp.pop %v4103
        %v4825 = vmul.f32 1.0, %v4824
        %v4826 = vrcp.pop %v4104
        %v4827 = vmul.f32 1.0, %v4826
        %v4828 = vrcp.pop %v4105
        %v4829 = vmul.f32 1.0, %v4828
        %v4830 = vrcp.pop %v4106
        %v4831 = vmul.f32 1.0, %v4830
        %v4832 = vrcp.pop %v4107
        %v4833 = vmul.f32 1.0, %v4832
        %v4834 = vrcp.pop %v4108
        %v4835 = vmul.f32 1.0, %v4834
        %v4836 = vrcp.pop %v4109
        %v4837 = vmul.f32 1.0, %v4836
        %v4838 = vrcp.pop %v4110
        %v4839 = vmul.f32 1.0, %v4838
        %v4840 = vrcp.pop %v4111
        %v4841 = vmul.f32 1.0, %v4840
        %v4842 = vrcp.pop %v4112
        %v4843 = vmul.f32 1.0, %v4842
        %v4844 = vrcp.pop %v4113
        %v4845 = vmul.f32 1.0, %v4844
        %v4846 = vrcp.pop %v4114
        %v4847 = vmul.f32 1.0, %v4846
        %v4848 = vrcp.pop %v4115
        %v4849 = vmul.f32 1.0, %v4848
        %v4850 = vrcp.pop %v4116
        %v4851 = vmul.f32 1.0, %v4850
        %v4852 = vrcp.pop %v4117
        %v4853 = vmul.f32 1.0, %v4852
        %v4854 = vrcp.pop %v4118
        %v4855 = vmul.f32 1.0, %v4854
        %v4856 = vrcp.pop %v4119
        %v4857 = vmul.f32 1.0, %v4856
        %v4858 = vrcp.pop %v4120
        %v4859 = vmul.f32 1.0, %v4858
        %v4860 = vrcp.pop %v4121
        %v4861 = vmul.f32 1.0, %v4860
        %v4862 = vrcp.pop %v4122
        %v4863 = vmul.f32 1.0, %v4862
        %v4864 = vrcp.pop %v4123
        %v4865 = vmul.f32 1.0, %v4864
        %v4866 = vrcp.pop %v4124
        %v4867 = vmul.f32 1.0, %v4866
        %v4868 = vrcp.pop %v4125
        %v4869 = vmul.f32 1.0, %v4868
        %v4870 = vrcp.pop %v4126
        %v4871 = vmul.f32 1.0, %v4870
        %v4872 = vrcp.pop %v4127
        %v4873 = vmul.f32 1.0, %v4872
        %v4874 = vrcp.pop %v4128
        %v4875 = vmul.f32 1.0, %v4874
        %v4876 = vrcp.pop %v4129
        %v4877 = vmul.f32 1.0, %v4876
        %v4878 = vrcp.pop %v4130
        %v4879 = vmul.f32 1.0, %v4878
        %v4880 = vrcp.pop %v4131
        %v4881 = vmul.f32 1.0, %v4880
        %v4882 = vrcp.pop %v4132
        %v4883 = vmul.f32 1.0, %v4882
        %v4884 = vrcp.pop %v4133
        %v4885 = vmul.f32 1.0, %v4884
        %v4886 = vrcp.pop %v4134
        %v4887 = vmul.f32 1.0, %v4886
        %v4888 = vrcp.pop %v4135
        %v4889 = vmul.f32 1.0, %v4888
        %v4890 = vrcp.pop %v4136
        %v4891 = vmul.f32 1.0, %v4890
        %v4892 = vrcp.pop %v4137
        %v4893 = vmul.f32 1.0, %v4892
        %v4894 = vrcp.pop %v4138
        %v4895 = vmul.f32 1.0, %v4894
        %v4896 = vrcp.pop %v4139
        %v4897 = vmul.f32 1.0, %v4896
        %v4898 = vrcp.pop %v4140
        %v4899 = vmul.f32 1.0, %v4898
        %v4900 = vrcp.pop %v4141
        %v4901 = vmul.f32 1.0, %v4900
        %v4902 = vrcp.pop %v4142
        %v4903 = vmul.f32 1.0, %v4902
        %v4904 = vrcp.pop %v4143
        %v4905 = vmul.f32 1.0, %v4904
        %v4906 = vrcp.pop %v4144
        %v4907 = vmul.f32 1.0, %v4906
        %v4908 = vrcp.pop %v4145
        %v4909 = vmul.f32 1.0, %v4908
        %v4910 = vrcp.pop %v4146
        %v4911 = vmul.f32 1.0, %v4910
        %v4912 = vrcp.pop %v4147
        %v4913 = vmul.f32 1.0, %v4912
        %v4914 = vrcp.pop %v4148
        %v4915 = vmul.f32 1.0, %v4914
        %v4916 = vrcp.pop %v4149
        %v4917 = vmul.f32 1.0, %v4916
        %v4918 = vrcp.pop %v4150
        %v4919 = vmul.f32 1.0, %v4918
        %v4920 = vrcp.pop %v4151
        %v4921 = vmul.f32 1.0, %v4920
        %v4922 = vrcp.pop %v4152
        %v4923 = vmul.f32 1.0, %v4922
        %v4924 = vrcp.pop %v4153
        %v4925 = vmul.f32 1.0, %v4924
        %v4926 = vrcp.pop %v4154
        %v4927 = vmul.f32 1.0, %v4926
        %v4928 = vrcp.pop %v4155
        %v4929 = vmul.f32 1.0, %v4928
        %v4930 = vrcp.pop %v4156
        %v4931 = vmul.f32 1.0, %v4930
        %v4932 = vrcp.pop %v4157
        %v4933 = vmul.f32 1.0, %v4932
        %v4934 = vrcp.pop %v4158
        %v4935 = vmul.f32 1.0, %v4934
        %v4936 = vrcp.pop %v4159
        %v4937 = vmul.f32 1.0, %v4936
        %v4938 = vrcp.pop %v4160
        %v4939 = vmul.f32 1.0, %v4938
        %v4940 = vrcp.pop %v4161
        %v4941 = vmul.f32 1.0, %v4940
        %v4942 = vrcp.pop %v4162
        %v4943 = vmul.f32 1.0, %v4942
        %v4944 = vrcp.pop %v4163
        %v4945 = vmul.f32 1.0, %v4944
        %v4946 = vrcp.pop %v4164
        %v4947 = vmul.f32 1.0, %v4946
        %v4948 = vrcp.pop %v4165
        %v4949 = vmul.f32 1.0, %v4948
        %v4950 = vrcp.pop %v4166
        %v4951 = vmul.f32 1.0, %v4950
        %v4952 = vrcp.pop %v4167
        %v4953 = vmul.f32 1.0, %v4952
        %v4954 = vrcp.pop %v4168
        %v4955 = vmul.f32 1.0, %v4954
        %v4956 = vrcp.pop %v4169
        %v4957 = vmul.f32 1.0, %v4956
        %v4958 = vrcp.pop %v4170
        %v4959 = vmul.f32 1.0, %v4958
        %v4960 = vrcp.pop %v4171
        %v4961 = vmul.f32 1.0, %v4960
        %v4962 = vrcp.pop %v4172
        %v4963 = vmul.f32 1.0, %v4962
        %v4964 = vrcp.pop %v4173
        %v4965 = vmul.f32 1.0, %v4964
        %v4966 = vrcp.pop %v4174
        %v4967 = vmul.f32 1.0, %v4966
        %v4968 = vrcp.pop %v4175
        %v4969 = vmul.f32 1.0, %v4968
        %v4970 = vrcp.pop %v4176
        %v4971 = vmul.f32 1.0, %v4970
        %v4972 = vrcp.pop %v4177
        %v4973 = vmul.f32 1.0, %v4972
        %v4974 = vrcp.pop %v4178
        %v4975 = vmul.f32 1.0, %v4974
        %v4976 = vrcp.pop %v4179
        %v4977 = vmul.f32 1.0, %v4976
        %v4978 = vrcp.pop %v4180
        %v4979 = vmul.f32 1.0, %v4978
        %v4980 = vrcp.pop %v4181
        %v4981 = vmul.f32 1.0, %v4980
        %v4982 = vrcp.pop %v4182
        %v4983 = vmul.f32 1.0, %v4982
        %v4984 = vrcp.pop %v4183
        %v4985 = vmul.f32 1.0, %v4984
        %v4986 = vrcp.pop %v4184
        %v4987 = vmul.f32 1.0, %v4986
        %v4988 = vrcp.pop %v4185
        %v4989 = vmul.f32 1.0, %v4988
        %v4990 = vrcp.pop %v4186
        %v4991 = vmul.f32 1.0, %v4990
        %v4992 = vrcp.pop %v4187
        %v4993 = vmul.f32 1.0, %v4992
        %v4994 = vrcp.pop %v4188
        %v4995 = vmul.f32 1.0, %v4994
        %v4996 = vrcp.pop %v4189
        %v4997 = vmul.f32 1.0, %v4996
        %v4998 = vrcp.pop %v4190
        %v4999 = vmul.f32 1.0, %v4998
        %v5000 = vrcp.pop %v4191
        %v5001 = vmul.f32 1.0, %v5000
        %v5002 = vrcp.pop %v4192
        %v5003 = vmul.f32 1.0, %v5002
        %v5004 = vrcp.pop %v4193
        %v5005 = vmul.f32 1.0, %v5004
        %v5006 = vrcp.pop %v4194
        %v5007 = vmul.f32 1.0, %v5006
        %v5008 = vrcp.pop %v4195
        %v5009 = vmul.f32 1.0, %v5008
        %v5010 = vrcp.pop %v4196
        %v5011 = vmul.f32 1.0, %v5010
        %v5012 = vrcp.pop %v4197
        %v5013 = vmul.f32 1.0, %v5012
        %v5014 = vrcp.pop %v4198
        %v5015 = vmul.f32 1.0, %v5014
        %v5016 = vrcp.pop %v4199
        %v5017 = vmul.f32 1.0, %v5016
        %v5018 = vrcp.pop %v4200
        %v5019 = vmul.f32 1.0, %v5018
        %v5020 = vrcp.pop %v4201
        %v5021 = vmul.f32 1.0, %v5020
        %v5022 = vrcp.pop %v4202
        %v5023 = vmul.f32 1.0, %v5022
        %v5024 = vrcp.pop %v4203
        %v5025 = vmul.f32 1.0, %v5024
        %v5026 = vrcp.pop %v4204
        %v5027 = vmul.f32 1.0, %v5026
        %v5028 = vrcp.pop %v4205
        %v5029 = vmul.f32 1.0, %v5028
        %v5030 = vrcp.pop %v4206
        %v5031 = vmul.f32 1.0, %v5030
        %v5032 = vrcp.pop %v4207
        %v5033 = vmul.f32 1.0, %v5032
        %v5034 = vrcp.pop %v4208
        %v5035 = vmul.f32 1.0, %v5034
        %v5036 = vrcp.pop %v4209
        %v5037 = vmul.f32 1.0, %v5036
        %v5038 = vrcp.pop %v4210
        %v5039 = vmul.f32 1.0, %v5038
        %v5040 = vrcp.pop %v4211
        %v5041 = vmul.f32 1.0, %v5040
        %v5042 = vrcp.pop %v4212
        %v5043 = vmul.f32 1.0, %v5042
        %v5044 = vrcp.pop %v4213
        %v5045 = vmul.f32 1.0, %v5044
        %v5046 = vrcp.pop %v4214
        %v5047 = vmul.f32 1.0, %v5046
        %v5048 = vrcp.pop %v4215
        %v5049 = vmul.f32 1.0, %v5048
        %v5050 = vrcp.pop %v4216
        %v5051 = vmul.f32 1.0, %v5050
        %v5052 = vrcp.pop %v4217
        %v5053 = vmul.f32 1.0, %v5052
        %v5054 = vrcp.pop %v4218
        %v5055 = vmul.f32 1.0, %v5054
        %v5056 = vrcp.pop %v4219
        %v5057 = vmul.f32 1.0, %v5056
        %v5058 = vrcp.pop %v4220
        %v5059 = vmul.f32 1.0, %v5058
        %v5060 = vrcp.pop %v4221
        %v5061 = vmul.f32 1.0, %v5060
        %v5062 = vrcp.pop %v4222
        %v5063 = vmul.f32 1.0, %v5062
        %v5064 = vrcp.pop %v4223
        %v5065 = vmul.f32 1.0, %v5064
        %v5066 = vrcp.pop %v4224
        %v5067 = vmul.f32 1.0, %v5066
        %v5068 = vrcp.pop %v4225
        %v5069 = vmul.f32 1.0, %v5068
        %v5070 = vrcp.pop %v4226
        %v5071 = vmul.f32 1.0, %v5070
        %v5072 = vrcp.pop %v4227
        %v5073 = vmul.f32 1.0, %v5072
        %v5074 = vrcp.pop %v4228
        %v5075 = vmul.f32 1.0, %v5074
        %v5076 = vrcp.pop %v4229
        %v5077 = vmul.f32 1.0, %v5076
        %v5078 = vrcp.pop %v4230
        %v5079 = vmul.f32 1.0, %v5078
        %v5080 = vrcp.pop %v4231
        %v5081 = vmul.f32 1.0, %v5080
        %v5082 = vrcp.pop %v4232
        %v5083 = vmul.f32 1.0, %v5082
        %v5084 = vrcp.pop %v4233
        %v5085 = vmul.f32 1.0, %v5084
        %v5086 = vrcp.pop %v4234
        %v5087 = vmul.f32 1.0, %v5086
        %v5088 = vrcp.pop %v4235
        %v5089 = vmul.f32 1.0, %v5088
        %v5090 = vrcp.pop %v4236
        %v5091 = vmul.f32 1.0, %v5090
        %v5092 = vrcp.pop %v4237
        %v5093 = vmul.f32 1.0, %v5092
        %v5094 = vrcp.pop %v4238
        %v5095 = vmul.f32 1.0, %v5094
        %v5096 = vrcp.pop %v4239
        %v5097 = vmul.f32 1.0, %v5096
        %v5098 = vrcp.pop %v4240
        %v5099 = vmul.f32 1.0, %v5098
        %v5100 = vrcp.pop %v4241
        %v5101 = vmul.f32 1.0, %v5100
        %v5102 = vrcp.pop %v4242
        %v5103 = vmul.f32 1.0, %v5102
        %v5104 = vrcp.pop %v4243
        %v5105 = vmul.f32 1.0, %v5104
        %v5106 = vrcp.pop %v4244
        %v5107 = vmul.f32 1.0, %v5106
        %v5108 = vrcp.pop %v4245
        %v5109 = vmul.f32 1.0, %v5108
        %v5110 = vrcp.pop %v4246
        %v5111 = vmul.f32 1.0, %v5110
        %v5112 = vrcp.pop %v4247
        %v5113 = vmul.f32 1.0, %v5112
        %v5114 = vrcp.pop %v4248
        %v5115 = vmul.f32 1.0, %v5114
        %v5116 = vrcp.pop %v4249
        %v5117 = vmul.f32 1.0, %v5116
        %v5118 = vrcp.pop %v4250
        %v5119 = vmul.f32 1.0, %v5118
        %v5120 = vrcp.pop %v4251
        %v5121 = vmul.f32 1.0, %v5120
        %v5122 = vrcp.pop %v4252
        %v5123 = vmul.f32 1.0, %v5122
        %v5124 = vrcp.pop %v4253
        %v5125 = vmul.f32 1.0, %v5124
        %v5126 = vrcp.pop %v4254
        %v5127 = vmul.f32 1.0, %v5126
        %v5128 = vrcp.pop %v4255
        %v5129 = vmul.f32 1.0, %v5128
        %v5130 = vrcp.pop %v4256
        %v5131 = vmul.f32 1.0, %v5130
        %v5132 = vrcp.pop %v4257
        %v5133 = vmul.f32 1.0, %v5132
        %v5134 = vrcp.pop %v4258
        %v5135 = vmul.f32 1.0, %v5134
        %v5136 = vrcp.pop %v4259
        %v5137 = vmul.f32 1.0, %v5136
        %v5138 = vrcp.pop %v4260
        %v5139 = vmul.f32 1.0, %v5138
        %v5140 = vrcp.pop %v4261
        %v5141 = vmul.f32 1.0, %v5140
        %v5142 = vrcp.pop %v4262
        %v5143 = vmul.f32 1.0, %v5142
        %v5144 = vrcp.pop %v4263
        %v5145 = vmul.f32 1.0, %v5144
        %v5146 = vrcp.pop %v4264
        %v5147 = vmul.f32 1.0, %v5146
        %v5148 = vrcp.pop %v4265
        %v5149 = vmul.f32 1.0, %v5148
        %v5150 = vrcp.pop %v4266
        %v5151 = vmul.f32 1.0, %v5150
        %v5152 = vrcp.pop %v4267
        %v5153 = vmul.f32 1.0, %v5152
        %v5154 = vrcp.pop %v4268
        %v5155 = vmul.f32 1.0, %v5154
        %v5156 = vrcp.pop %v4269
        %v5157 = vmul.f32 1.0, %v5156
        %v5158 = vrcp.pop %v4270
        %v5159 = vmul.f32 1.0, %v5158
        %v5160 = vrcp.pop %v4271
        %v5161 = vmul.f32 1.0, %v5160
        %v5162 = vrcp.pop %v4272
        %v5163 = vmul.f32 1.0, %v5162
        %v5164 = vrcp.pop %v4273
        %v5165 = vmul.f32 1.0, %v5164
        %v5166 = vrcp.pop %v4274
        %v5167 = vmul.f32 1.0, %v5166
        %v5168 = vrcp.pop %v4275
        %v5169 = vmul.f32 1.0, %v5168
        %v5170 = vrcp.pop %v4276
        %v5171 = vmul.f32 1.0, %v5170
        %v5172 = vrcp.pop %v4277
        %v5173 = vmul.f32 1.0, %v5172
        %v5174 = vmul.f32 %v1170, %v4279
        %v5175 = vmul.f32 %v1172, %v4281
        %v5176 = vmul.f32 %v1363, %v4283
        %v5177 = vmul.f32 %v1365, %v4285
        %v5178 = vmul.f32 %v1556, %v4287
        %v5179 = vmul.f32 %v1558, %v4289
        %v5180 = vmul.f32 %v1749, %v4291
        %v5181 = vmul.f32 %v1751, %v4293
        %v5182 = vmul.f32 %v1942, %v4295
        %v5183 = vmul.f32 %v1944, %v4297
        %v5184 = vmul.f32 %v2135, %v4299
        %v5185 = vmul.f32 %v2137, %v4301
        %v5186 = vmul.f32 %v2328, %v4303
        %v5187 = vmul.f32 %v2330, %v4305
        %v5188 = vmul.f32 %v1174, %v4307
        %v5189 = vmul.f32 %v1176, %v4309
        %v5190 = vmul.f32 %v1367, %v4311
        %v5191 = vmul.f32 %v1369, %v4313
        %v5192 = vmul.f32 %v1560, %v4315
        %v5193 = vmul.f32 %v1562, %v4317
        %v5194 = vmul.f32 %v1753, %v4319
        %v5195 = vmul.f32 %v1755, %v4321
        %v5196 = vmul.f32 %v1946, %v4323
        %v5197 = vmul.f32 %v1948, %v4325
        %v5198 = vmul.f32 %v2139, %v4327
        %v5199 = vmul.f32 %v2141, %v4329
        %v5200 = vmul.f32 %v2332, %v4331
        %v5201 = vmul.f32 %v2334, %v4333
        %v5202 = vmul.f32 %v1180, %v4335
        %v5203 = vmul.f32 %v1182, %v4337
        %v5204 = vmul.f32 %v1373, %v4339
        %v5205 = vmul.f32 %v1375, %v4341
        %v5206 = vmul.f32 %v1566, %v4343
        %v5207 = vmul.f32 %v1568, %v4345
        %v5208 = vmul.f32 %v1759, %v4347
        %v5209 = vmul.f32 %v1761, %v4349
        %v5210 = vmul.f32 %v1952, %v4351
        %v5211 = vmul.f32 %v1954, %v4353
        %v5212 = vmul.f32 %v2145, %v4355
        %v5213 = vmul.f32 %v2147, %v4357
        %v5214 = vmul.f32 %v2338, %v4359
        %v5215 = vmul.f32 %v2340, %v4361
        %v5216 = vmul.f32 %v1184, %v4363
        %v5217 = vmul.f32 %v1186, %v4365
        %v5218 = vmul.f32 %v1377, %v4367
        %v5219 = vmul.f32 %v1379, %v4369
        %v5220 = vmul.f32 %v1570, %v4371
        %v5221 = vmul.f32 %v1572, %v4373
        %v5222 = vmul.f32 %v1763, %v4375
        %v5223 = vmul.f32 %v1765, %v4377
        %v5224 = vmul.f32 %v1956, %v4379
        %v5225 = vmul.f32 %v1958, %v4381
        %v5226 = vmul.f32 %v2149, %v4383
        %v5227 = vmul.f32 %v2151, %v4385
        %v5228 = vmul.f32 %v2342, %v4387
        %v5229 = vmul.f32 %v2344, %v4389
        %v5230 = vmul.f32 %v1190, %v4391
        %v5231 = vmul.f32 %v1192, %v4393
        %v5232 = vmul.f32 %v1383, %v4395
        %v5233 = vmul.f32 %v1385, %v4397
        %v5234 = vmul.f32 %v1576, %v4399
        %v5235 = vmul.f32 %v1578, %v4401
        %v5236 = vmul.f32 %v1769, %v4403
        %v5237 = vmul.f32 %v1771, %v4405
        %v5238 = vmul.f32 %v1962, %v4407
        %v5239 = vmul.f32 %v1964, %v4409
        %v5240 = vmul.f32 %v2155, %v4411
        %v5241 = vmul.f32 %v2157, %v4413
        %v5242 = vmul.f32 %v2348, %v4415
        %v5243 = vmul.f32 %v2350, %v4417
        %v5244 = vmul.f32 %v1194, %v4419
        %v5245 = vmul.f32 %v1196, %v4421
        %v5246 = vmul.f32 %v1387, %v4423
        %v5247 = vmul.f32 %v1389, %v4425
        %v5248 = vmul.f32 %v1580, %v4427
        %v5249 = vmul.f32 %v1582, %v4429
        %v5250 = vmul.f32 %v1773, %v4431
        %v5251 = vmul.f32 %v1775, %v4433
        %v5252 = vmul.f32 %v1966, %v4435
        %v5253 = vmul.f32 %v1968, %v4437
        %v5254 = vmul.f32 %v2159, %v4439
        %v5255 = vmul.f32 %v2161, %v4441
        %v5256 = vmul.f32 %v2352, %v4443
        %v5257 = vmul.f32 %v2354, %v4445
        %v5258 = vmul.f32 %v1200, %v4447
        %v5259 = vmul.f32 %v1202, %v4449
        %v5260 = vmul.f32 %v1393, %v4451
        %v5261 = vmul.f32 %v1395, %v4453
        %v5262 = vmul.f32 %v1586, %v4455
        %v5263 = vmul.f32 %v1588, %v4457
        %v5264 = vmul.f32 %v1779, %v4459
        %v5265 = vmul.f32 %v1781, %v4461
        %v5266 = vmul.f32 %v1972, %v4463
        %v5267 = vmul.f32 %v1974, %v4465
        %v5268 = vmul.f32 %v2165, %v4467
        %v5269 = vmul.f32 %v2167, %v4469
        %v5270 = vmul.f32 %v2358, %v4471
        %v5271 = vmul.f32 %v2360, %v4473
        %v5272 = vmul.f32 %v1204, %v4475
        %v5273 = vmul.f32 %v1206, %v4477
        %v5274 = vmul.f32 %v1397, %v4479
        %v5275 = vmul.f32 %v1399, %v4481
        %v5276 = vmul.f32 %v1590, %v4483
        %v5277 = vmul.f32 %v1592, %v4485
        %v5278 = vmul.f32 %v1783, %v4487
        %v5279 = vmul.f32 %v1785, %v4489
        %v5280 = vmul.f32 %v1976, %v4491
        %v5281 = vmul.f32 %v1978, %v4493
        %v5282 = vmul.f32 %v2169, %v4495
        %v5283 = vmul.f32 %v2171, %v4497
        %v5284 = vmul.f32 %v2362, %v4499
        %v5285 = vmul.f32 %v2364, %v4501
        %v5286 = vmul.f32 %v1210, %v4503
        %v5287 = vmul.f32 %v1212, %v4505
        %v5288 = vmul.f32 %v1403, %v4507
        %v5289 = vmul.f32 %v1405, %v4509
        %v5290 = vmul.f32 %v1596, %v4511
        %v5291 = vmul.f32 %v1598, %v4513
        %v5292 = vmul.f32 %v1789, %v4515
        %v5293 = vmul.f32 %v1791, %v4517
        %v5294 = vmul.f32 %v1982, %v4519
        %v5295 = vmul.f32 %v1984, %v4521
        %v5296 = vmul.f32 %v2175, %v4523
        %v5297 = vmul.f32 %v2177, %v4525
        %v5298 = vmul.f32 %v2368, %v4527
        %v5299 = vmul.f32 %v2370, %v4529
        %v5300 = vmul.f32 %v1214, %v4531
        %v5301 = vmul.f32 %v1216, %v4533
        %v5302 = vmul.f32 %v1407, %v4535
        %v5303 = vmul.f32 %v1409, %v4537
        %v5304 = vmul.f32 %v1600, %v4539
        %v5305 = vmul.f32 %v1602, %v4541
        %v5306 = vmul.f32 %v1793, %v4543
        %v5307 = vmul.f32 %v1795, %v4545
        %v5308 = vmul.f32 %v1986, %v4547
        %v5309 = vmul.f32 %v1988, %v4549
        %v5310 = vmul.f32 %v2179, %v4551
        %v5311 = vmul.f32 %v2181, %v4553
        %v5312 = vmul.f32 %v2372, %v4555
        %v5313 = vmul.f32 %v2374, %v4557
        %v5314 = vmul.f32 %v1220, %v4559
        %v5315 = vmul.f32 %v1222, %v4561
        %v5316 = vmul.f32 %v1413, %v4563
        %v5317 = vmul.f32 %v1415, %v4565
        %v5318 = vmul.f32 %v1606, %v4567
        %v5319 = vmul.f32 %v1608, %v4569
        %v5320 = vmul.f32 %v1799, %v4571
        %v5321 = vmul.f32 %v1801, %v4573
        %v5322 = vmul.f32 %v1992, %v4575
        %v5323 = vmul.f32 %v1994, %v4577
        %v5324 = vmul.f32 %v2185, %v4579
        %v5325 = vmul.f32 %v2187, %v4581
        %v5326 = vmul.f32 %v2378, %v4583
        %v5327 = vmul.f32 %v2380, %v4585
        %v5328 = vmul.f32 %v1224, %v4587
        %v5329 = vmul.f32 %v1226, %v4589
        %v5330 = vmul.f32 %v1417, %v4591
        %v5331 = vmul.f32 %v1419, %v4593
        %v5332 = vmul.f32 %v1610, %v4595
        %v5333 = vmul.f32 %v1612, %v4597
        %v5334 = vmul.f32 %v1803, %v4599
        %v5335 = vmul.f32 %v1805, %v4601
        %v5336 = vmul.f32 %v1996, %v4603
        %v5337 = vmul.f32 %v1998, %v4605
        %v5338 = vmul.f32 %v2189, %v4607
        %v5339 = vmul.f32 %v2191, %v4609
        %v5340 = vmul.f32 %v2382, %v4611
        %v5341 = vmul.f32 %v2384, %v4613
        %v5342 = vmul.f32 %v1230, %v4615
        %v5343 = vmul.f32 %v1232, %v4617
        %v5344 = vmul.f32 %v1423, %v4619
        %v5345 = vmul.f32 %v1425, %v4621
        %v5346 = vmul.f32 %v1616, %v4623
        %v5347 = vmul.f32 %v1618, %v4625
        %v5348 = vmul.f32 %v1809, %v4627
        %v5349 = vmul.f32 %v1811, %v4629
        %v5350 = vmul.f32 %v2002, %v4631
        %v5351 = vmul.f32 %v2004, %v4633
        %v5352 = vmul.f32 %v2195, %v4635
        %v5353 = vmul.f32 %v2197, %v4637
        %v5354 = vmul.f32 %v2388, %v4639
        %v5355 = vmul.f32 %v2390, %v4641
        %v5356 = vmul.f32 %v1234, %v4643
        %v5357 = vmul.f32 %v1236, %v4645
        %v5358 = vmul.f32 %v1427, %v4647
        %v5359 = vmul.f32 %v1429, %v4649
        %v5360 = vmul.f32 %v1620, %v4651
        %v5361 = vmul.f32 %v1622, %v4653
        %v5362 = vmul.f32 %v1813, %v4655
        %v5363 = vmul.f32 %v1815, %v4657
        %v5364 = vmul.f32 %v2006, %v4659
        %v5365 = vmul.f32 %v2008, %v4661
        %v5366 = vmul.f32 %v2199, %v4663
        %v5367 = vmul.f32 %v2201, %v4665
        %v5368 = vmul.f32 %v2392, %v4667
        %v5369 = vmul.f32 %v2394, %v4669
        %v5370 = vmul.f32 %v1240, %v4671
        %v5371 = vmul.f32 %v1242, %v4673
        %v5372 = vmul.f32 %v1433, %v4675
        %v5373 = vmul.f32 %v1435, %v4677
        %v5374 = vmul.f32 %v1626, %v4679
        %v5375 = vmul.f32 %v1628, %v4681
        %v5376 = vmul.f32 %v1819, %v4683
        %v5377 = vmul.f32 %v1821, %v4685
        %v5378 = vmul.f32 %v2012, %v4687
        %v5379 = vmul.f32 %v2014, %v4689
        %v5380 = vmul.f32 %v2205, %v4691
        %v5381 = vmul.f32 %v2207, %v4693
        %v5382 = vmul.f32 %v2398, %v4695
        %v5383 = vmul.f32 %v2400, %v4697
        %v5384 = vmul.f32 %v1244, %v4699
        %v5385 = vmul.f32 %v1246, %v4701
        %v5386 = vmul.f32 %v1437, %v4703
        %v5387 = vmul.f32 %v1439, %v4705
        %v5388 = vmul.f32 %v1630, %v4707
        %v5389 = vmul.f32 %v1632, %v4709
        %v5390 = vmul.f32 %v1823, %v4711
        %v5391 = vmul.f32 %v1825, %v4713
        %v5392 = vmul.f32 %v2016, %v4715
        %v5393 = vmul.f32 %v2018, %v4717
        %v5394 = vmul.f32 %v2209, %v4719
        %v5395 = vmul.f32 %v2211, %v4721
        %v5396 = vmul.f32 %v2402, %v4723
        %v5397 = vmul.f32 %v2404, %v4725
        %v5398 = vmul.f32 %v1250, %v4727
        %v5399 = vmul.f32 %v1252, %v4729
        %v5400 = vmul.f32 %v1443, %v4731
        %v5401 = vmul.f32 %v1445, %v4733
        %v5402 = vmul.f32 %v1636, %v4735
        %v5403 = vmul.f32 %v1638, %v4737
        %v5404 = vmul.f32 %v1829, %v4739
        %v5405 = vmul.f32 %v1831, %v4741
        %v5406 = vmul.f32 %v2022, %v4743
        %v5407 = vmul.f32 %v2024, %v4745
        %v5408 = vmul.f32 %v2215, %v4747
        %v5409 = vmul.f32 %v2217, %v4749
        %v5410 = vmul.f32 %v2408, %v4751
        %v5411 = vmul.f32 %v2410, %v4753
        %v5412 = vmul.f32 %v1254, %v4755
        %v5413 = vmul.f32 %v1256, %v4757
        %v5414 = vmul.f32 %v1447, %v4759
        %v5415 = vmul.f32 %v1449, %v4761
        %v5416 = vmul.f32 %v1640, %v4763
        %v5417 = vmul.f32 %v1642, %v4765
        %v5418 = vmul.f32 %v1833, %v4767
        %v5419 = vmul.f32 %v1835, %v4769
        %v5420 = vmul.f32 %v2026, %v4771
        %v5421 = vmul.f32 %v2028, %v4773
        %v5422 = vmul.f32 %v2219, %v4775
        %v5423 = vmul.f32 %v2221, %v4777
        %v5424 = vmul.f32 %v2412, %v4779
        %v5425 = vmul.f32 %v2414, %v4781
        %v5426 = vmul.f32 %v1260, %v4783
        %v5427 = vmul.f32 %v1262, %v4785
        %v5428 = vmul.f32 %v1453, %v4787
        %v5429 = vmul.f32 %v1455, %v4789
        %v5430 = vmul.f32 %v1646, %v4791
        %v5431 = vmul.f32 %v1648, %v4793
        %v5432 = vmul.f32 %v1839, %v4795
        %v5433 = vmul.f32 %v1841, %v4797
        %v5434 = vmul.f32 %v2032, %v4799
        %v5435 = vmul.f32 %v2034, %v4801
        %v5436 = vmul.f32 %v2225, %v4803
        %v5437 = vmul.f32 %v2227, %v4805
        %v5438 = vmul.f32 %v2418, %v4807
        %v5439 = vmul.f32 %v2420, %v4809
        %v5440 = vmul.f32 %v1264, %v4811
        %v5441 = vmul.f32 %v1266, %v4813
        %v5442 = vmul.f32 %v1457, %v4815
        %v5443 = vmul.f32 %v1459, %v4817
        %v5444 = vmul.f32 %v1650, %v4819
        %v5445 = vmul.f32 %v1652, %v4821
        %v5446 = vmul.f32 %v1843, %v4823
        %v5447 = vmul.f32 %v1845, %v4825
        %v5448 = vmul.f32 %v2036, %v4827
        %v5449 = vmul.f32 %v2038, %v4829
        %v5450 = vmul.f32 %v2229, %v4831
        %v5451 = vmul.f32 %v2231, %v4833
        %v5452 = vmul.f32 %v2422, %v4835
        %v5453 = vmul.f32 %v2424, %v4837
        %v5454 = vmul.f32 %v1270, %v4839
        %v5455 = vmul.f32 %v1272, %v4841
        %v5456 = vmul.f32 %v1463, %v4843
        %v5457 = vmul.f32 %v1465, %v4845
        %v5458 = vmul.f32 %v1656, %v4847
        %v5459 = vmul.f32 %v1658, %v4849
        %v5460 = vmul.f32 %v1849, %v4851
        %v5461 = vmul.f32 %v1851, %v4853
        %v5462 = vmul.f32 %v2042, %v4855
        %v5463 = vmul.f32 %v2044, %v4857
        %v5464 = vmul.f32 %v2235, %v4859
        %v5465 = vmul.f32 %v2237, %v4861
        %v5466 = vmul.f32 %v2428, %v4863
        %v5467 = vmul.f32 %v2430, %v4865
        %v5468 = vmul.f32 %v1274, %v4867
        %v5469 = vmul.f32 %v1276, %v4869
        %v5470 = vmul.f32 %v1467, %v4871
        %v5471 = vmul.f32 %v1469, %v4873
        %v5472 = vmul.f32 %v1660, %v4875
        %v5473 = vmul.f32 %v1662, %v4877
        %v5474 = vmul.f32 %v1853, %v4879
        %v5475 = vmul.f32 %v1855, %v4881
        %v5476 = vmul.f32 %v2046, %v4883
        %v5477 = vmul.f32 %v2048, %v4885
        %v5478 = vmul.f32 %v2239, %v4887
        %v5479 = vmul.f32 %v2241, %v4889
        %v5480 = vmul.f32 %v2432, %v4891
        %v5481 = vmul.f32 %v2434, %v4893
        %v5482 = vmul.f32 %v1280, %v4895
        %v5483 = vmul.f32 %v1282, %v4897
        %v5484 = vmul.f32 %v1473, %v4899
        %v5485 = vmul.f32 %v1475, %v4901
        %v5486 = vmul.f32 %v1666, %v4903
        %v5487 = vmul.f32 %v1668, %v4905
        %v5488 = vmul.f32 %v1859, %v4907
        %v5489 = vmul.f32 %v1861, %v4909
        %v5490 = vmul.f32 %v2052, %v4911
        %v5491 = vmul.f32 %v2054, %v4913
        %v5492 = vmul.f32 %v2245, %v4915
        %v5493 = vmul.f32 %v2247, %v4917
        %v5494 = vmul.f32 %v2438, %v4919
        %v5495 = vmul.f32 %v2440, %v4921
        %v5496 = vmul.f32 %v1284, %v4923
        %v5497 = vmul.f32 %v1286, %v4925
        %v5498 = vmul.f32 %v1477, %v4927
        %v5499 = vmul.f32 %v1479, %v4929
        %v5500 = vmul.f32 %v1670, %v4931
        %v5501 = vmul.f32 %v1672, %v4933
        %v5502 = vmul.f32 %v1863, %v4935
        %v5503 = vmul.f32 %v1865, %v4937
        %v5504 = vmul.f32 %v2056, %v4939
        %v5505 = vmul.f32 %v2058, %v4941
        %v5506 = vmul.f32 %v2249, %v4943
        %v5507 = vmul.f32 %v2251, %v4945
        %v5508 = vmul.f32 %v2442, %v4947
        %v5509 = vmul.f32 %v2444, %v4949
        %v5510 = vmul.f32 %v1290, %v4951
        %v5511 = vmul.f32 %v1292, %v4953
        %v5512 = vmul.f32 %v1483, %v4955
        %v5513 = vmul.f32 %v1485, %v4957
        %v5514 = vmul.f32 %v1676, %v4959
        %v5515 = vmul.f32 %v1678, %v4961
        %v5516 = vmul.f32 %v1869, %v4963
        %v5517 = vmul.f32 %v1871, %v4965
        %v5518 = vmul.f32 %v2062, %v4967
        %v5519 = vmul.f32 %v2064, %v4969
        %v5520 = vmul.f32 %v2255, %v4971
        %v5521 = vmul.f32 %v2257, %v4973
        %v5522 = vmul.f32 %v2448, %v4975
        %v5523 = vmul.f32 %v2450, %v4977
        %v5524 = vmul.f32 %v1294, %v4979
        %v5525 = vmul.f32 %v1296, %v4981
        %v5526 = vmul.f32 %v1487, %v4983
        %v5527 = vmul.f32 %v1489, %v4985
        %v5528 = vmul.f32 %v1680, %v4987
        %v5529 = vmul.f32 %v1682, %v4989
        %v5530 = vmul.f32 %v1873, %v4991
        %v5531 = vmul.f32 %v1875, %v4993
        %v5532 = vmul.f32 %v2066, %v4995
        %v5533 = vmul.f32 %v2068, %v4997
        %v5534 = vmul.f32 %v2259, %v4999
        %v5535 = vmul.f32 %v2261, %v5001
        %v5536 = vmul.f32 %v2452, %v5003
        %v5537 = vmul.f32 %v2454, %v5005
        %v5538 = vmul.f32 %v1300, %v5007
        %v5539 = vmul.f32 %v1302, %v5009
        %v5540 = vmul.f32 %v1493, %v5011
        %v5541 = vmul.f32 %v1495, %v5013
        %v5542 = vmul.f32 %v1686, %v5015
        %v5543 = vmul.f32 %v1688, %v5017
        %v5544 = vmul.f32 %v1879, %v5019
        %v5545 = vmul.f32 %v1881, %v5021
        %v5546 = vmul.f32 %v2072, %v5023
        %v5547 = vmul.f32 %v2074, %v5025
        %v5548 = vmul.f32 %v2265, %v5027
        %v5549 = vmul.f32 %v2267, %v5029
        %v5550 = vmul.f32 %v2458, %v5031
        %v5551 = vmul.f32 %v2460, %v5033
        %v5552 = vmul.f32 %v1304, %v5035
        %v5553 = vmul.f32 %v1306, %v5037
        %v5554 = vmul.f32 %v1497, %v5039
        %v5555 = vmul.f32 %v1499, %v5041
        %v5556 = vmul.f32 %v1690, %v5043
        %v5557 = vmul.f32 %v1692, %v5045
        %v5558 = vmul.f32 %v1883, %v5047
        %v5559 = vmul.f32 %v1885, %v5049
        %v5560 = vmul.f32 %v2076, %v5051
        %v5561 = vmul.f32 %v2078, %v5053
        %v5562 = vmul.f32 %v2269, %v5055
        %v5563 = vmul.f32 %v2271, %v5057
        %v5564 = vmul.f32 %v2462, %v5059
        %v5565 = vmul.f32 %v2464, %v5061
        %v5566 = vmul.f32 %v1310, %v5063
        %v5567 = vmul.f32 %v1312, %v5065
        %v5568 = vmul.f32 %v1503, %v5067
        %v5569 = vmul.f32 %v1505, %v5069
        %v5570 = vmul.f32 %v1696, %v5071
        %v5571 = vmul.f32 %v1698, %v5073
        %v5572 = vmul.f32 %v1889, %v5075
        %v5573 = vmul.f32 %v1891, %v5077
        %v5574 = vmul.f32 %v2082, %v5079
        %v5575 = vmul.f32 %v2084, %v5081
        %v5576 = vmul.f32 %v2275, %v5083
        %v5577 = vmul.f32 %v2277, %v5085
        %v5578 = vmul.f32 %v2468, %v5087
        %v5579 = vmul.f32 %v2470, %v5089
        %v5580 = vmul.f32 %v1314, %v5091
        %v5581 = vmul.f32 %v1316, %v5093
        %v5582 = vmul.f32 %v1507, %v5095
        %v5583 = vmul.f32 %v1509, %v5097
        %v5584 = vmul.f32 %v1700, %v5099
        %v5585 = vmul.f32 %v1702, %v5101
        %v5586 = vmul.f32 %v1893, %v5103
        %v5587 = vmul.f32 %v1895, %v5105
        %v5588 = vmul.f32 %v2086, %v5107
        %v5589 = vmul.f32 %v2088, %v5109
        %v5590 = vmul.f32 %v2279, %v5111
        %v5591 = vmul.f32 %v2281, %v5113
        %v5592 = vmul.f32 %v2472, %v5115
        %v5593 = vmul.f32 %v2474, %v5117
        %v5594 = vmul.f32 %v1320, %v5119
        %v5595 = vmul.f32 %v1322, %v5121
        %v5596 = vmul.f32 %v1513, %v5123
        %v5597 = vmul.f32 %v1515, %v5125
        %v5598 = vmul.f32 %v1706, %v5127
        %v5599 = vmul.f32 %v1708, %v5129
        %v5600 = vmul.f32 %v1899, %v5131
        %v5601 = vmul.f32 %v1901, %v5133
        %v5602 = vmul.f32 %v2092, %v5135
        %v5603 = vmul.f32 %v2094, %v5137
        %v5604 = vmul.f32 %v2285, %v5139
        %v5605 = vmul.f32 %v2287, %v5141
        %v5606 = vmul.f32 %v2478, %v5143
        %v5607 = vmul.f32 %v2480, %v5145
        %v5608 = vmul.f32 %v1324, %v5147
        %v5609 = vmul.f32 %v1326, %v5149
        %v5610 = vmul.f32 %v1517, %v5151
        %v5611 = vmul.f32 %v1519, %v5153
        %v5612 = vmul.f32 %v1710, %v5155
        %v5613 = vmul.f32 %v1712, %v5157
        %v5614 = vmul.f32 %v1903, %v5159
        %v5615 = vmul.f32 %v1905, %v5161
        %v5616 = vmul.f32 %v2096, %v5163
        %v5617 = vmul.f32 %v2098, %v5165
        %v5618 = vmul.f32 %v2289, %v5167
        %v5619 = vmul.f32 %v2291, %v5169
        %v5620 = vmul.f32 %v2482, %v5171
        %v5621 = vmul.f32 %v2484, %v5173
        %v5622 = vld [vmem:[#allocation2] sm:$0xff]
        %v5623 = vld [vmem:[#allocation2 + $0x8] sm:$0x3f]
        %v5624 = vadd.f32 %v5174, %v5188
        %v5625 = vadd.f32 %v5624, %v5202
        %v5626 = vadd.f32 %v5625, %v5216
        %v5627 = vadd.f32 %v5626, %v5230
        %v5628 = vadd.f32 %v5627, %v5244
        %v5629 = vadd.f32 %v5628, %v5258
        %v5630 = vadd.f32 %v5629, %v5272
        %v5631 = vadd.f32 %v5630, %v5286
        %v5632 = vadd.f32 %v5631, %v5300
        %v5633 = vadd.f32 %v5632, %v5314
        %v5634 = vadd.f32 %v5633, %v5328
        %v5635 = vadd.f32 %v5634, %v5342
        %v5636 = vadd.f32 %v5635, %v5356
        %v5637 = vadd.f32 %v5636, %v5370
        %v5638 = vadd.f32 %v5637, %v5384
        %v5639 = vadd.f32 %v5638, %v5398
        %v5640 = vadd.f32 %v5639, %v5412
        %v5641 = vadd.f32 %v5640, %v5426
        %v5642 = vadd.f32 %v5641, %v5440
        %v5643 = vadd.f32 %v5642, %v5454
        %v5644 = vadd.f32 %v5643, %v5468
        %v5645 = vadd.f32 %v5644, %v5482
        %v5646 = vadd.f32 %v5645, %v5496
        %v5647 = vadd.f32 %v5646, %v5510
        %v5648 = vadd.f32 %v5647, %v5524
        %v5649 = vadd.f32 %v5648, %v5538
        %v5650 = vadd.f32 %v5649, %v5552
        %v5651 = vadd.f32 %v5650, %v5566
        %v5652 = vadd.f32 %v5651, %v5580
        %v5653 = vadd.f32 %v5652, %v5594
        %v5654 = vadd.f32 %v5653, %v5608
        %v5655 = vrot.slane %v5654, 4
        %v5656 = vadd.f32 %v5654, %v5655
        %v5657 = vrot.slane %v5656, 2
        %v5658 = vadd.f32 %v5656, %v5657
        %v5659 = vrot.slane %v5658, 1
        %v5660 = vadd.f32 %v5658, %v5659
        %v5661 = vadd.f32 %v5175, %v5189
        %v5662 = vadd.f32 %v5661, %v5203
        %v5663 = vadd.f32 %v5662, %v5217
        %v5664 = vadd.f32 %v5663, %v5231
        %v5665 = vadd.f32 %v5664, %v5245
        %v5666 = vadd.f32 %v5665, %v5259
        %v5667 = vadd.f32 %v5666, %v5273
        %v5668 = vadd.f32 %v5667, %v5287
        %v5669 = vadd.f32 %v5668, %v5301
        %v5670 = vadd.f32 %v5669, %v5315
        %v5671 = vadd.f32 %v5670, %v5329
        %v5672 = vadd.f32 %v5671, %v5343
        %v5673 = vadd.f32 %v5672, %v5357
        %v5674 = vadd.f32 %v5673, %v5371
        %v5675 = vadd.f32 %v5674, %v5385
        %v5676 = vadd.f32 %v5675, %v5399
        %v5677 = vadd.f32 %v5676, %v5413
        %v5678 = vadd.f32 %v5677, %v5427
        %v5679 = vadd.f32 %v5678, %v5441
        %v5680 = vadd.f32 %v5679, %v5455
        %v5681 = vadd.f32 %v5680, %v5469
        %v5682 = vadd.f32 %v5681, %v5483
        %v5683 = vadd.f32 %v5682, %v5497
        %v5684 = vadd.f32 %v5683, %v5511
        %v5685 = vadd.f32 %v5684, %v5525
        %v5686 = vadd.f32 %v5685, %v5539
        %v5687 = vadd.f32 %v5686, %v5553
        %v5688 = vadd.f32 %v5687, %v5567
        %v5689 = vadd.f32 %v5688, %v5581
        %v5690 = vadd.f32 %v5689, %v5595
        %v5691 = vadd.f32 %v5690, %v5609
        %v5692 = vrot.slane %v5691, 4
        %v5693 = vadd.f32 %v5691, %v5692
        %v5694 = vrot.slane %v5693, 2
        %v5695 = vadd.f32 %v5693, %v5694
        %v5696 = vrot.slane %v5695, 1
        %v5697 = vadd.f32 %v5695, %v5696
        %v5698 = vadd.f32 %v5176, %v5190
        %v5699 = vadd.f32 %v5698, %v5204
        %v5700 = vadd.f32 %v5699, %v5218
        %v5701 = vadd.f32 %v5700, %v5232
        %v5702 = vadd.f32 %v5701, %v5246
        %v5703 = vadd.f32 %v5702, %v5260
        %v5704 = vadd.f32 %v5703, %v5274
        %v5705 = vadd.f32 %v5704, %v5288
        %v5706 = vadd.f32 %v5705, %v5302
        %v5707 = vadd.f32 %v5706, %v5316
        %v5708 = vadd.f32 %v5707, %v5330
        %v5709 = vadd.f32 %v5708, %v5344
        %v5710 = vadd.f32 %v5709, %v5358
        %v5711 = vadd.f32 %v5710, %v5372
        %v5712 = vadd.f32 %v5711, %v5386
        %v5713 = vadd.f32 %v5712, %v5400
        %v5714 = vadd.f32 %v5713, %v5414
        %v5715 = vadd.f32 %v5714, %v5428
        %v5716 = vadd.f32 %v5715, %v5442
        %v5717 = vadd.f32 %v5716, %v5456
        %v5718 = vadd.f32 %v5717, %v5470
        %v5719 = vadd.f32 %v5718, %v5484
        %v5720 = vadd.f32 %v5719, %v5498
        %v5721 = vadd.f32 %v5720, %v5512
        %v5722 = vadd.f32 %v5721, %v5526
        %v5723 = vadd.f32 %v5722, %v5540
        %v5724 = vadd.f32 %v5723, %v5554
        %v5725 = vadd.f32 %v5724, %v5568
        %v5726 = vadd.f32 %v5725, %v5582
        %v5727 = vadd.f32 %v5726, %v5596
        %v5728 = vadd.f32 %v5727, %v5610
        %v5729 = vrot.slane %v5728, 4
        %v5730 = vadd.f32 %v5728, %v5729
        %v5731 = vrot.slane %v5730, 2
        %v5732 = vadd.f32 %v5730, %v5731
        %v5733 = vrot.slane %v5732, 1
        %v5734 = vadd.f32 %v5732, %v5733
        %v5735 = vadd.f32 %v5177, %v5191
        %v5736 = vadd.f32 %v5735, %v5205
        %v5737 = vadd.f32 %v5736, %v5219
        %v5738 = vadd.f32 %v5737, %v5233
        %v5739 = vadd.f32 %v5738, %v5247
        %v5740 = vadd.f32 %v5739, %v5261
        %v5741 = vadd.f32 %v5740, %v5275
        %v5742 = vadd.f32 %v5741, %v5289
        %v5743 = vadd.f32 %v5742, %v5303
        %v5744 = vadd.f32 %v5743, %v5317
        %v5745 = vadd.f32 %v5744, %v5331
        %v5746 = vadd.f32 %v5745, %v5345
        %v5747 = vadd.f32 %v5746, %v5359
        %v5748 = vadd.f32 %v5747, %v5373
        %v5749 = vadd.f32 %v5748, %v5387
        %v5750 = vadd.f32 %v5749, %v5401
        %v5751 = vadd.f32 %v5750, %v5415
        %v5752 = vadd.f32 %v5751, %v5429
        %v5753 = vadd.f32 %v5752, %v5443
        %v5754 = vadd.f32 %v5753, %v5457
        %v5755 = vadd.f32 %v5754, %v5471
        %v5756 = vadd.f32 %v5755, %v5485
        %v5757 = vadd.f32 %v5756, %v5499
        %v5758 = vadd.f32 %v5757, %v5513
        %v5759 = vadd.f32 %v5758, %v5527
        %v5760 = vadd.f32 %v5759, %v5541
        %v5761 = vadd.f32 %v5760, %v5555
        %v5762 = vadd.f32 %v5761, %v5569
        %v5763 = vadd.f32 %v5762, %v5583
        %v5764 = vadd.f32 %v5763, %v5597
        %v5765 = vadd.f32 %v5764, %v5611
        %v5766 = vrot.slane %v5765, 4
        %v5767 = vadd.f32 %v5765, %v5766
        %v5768 = vrot.slane %v5767, 2
        %v5769 = vadd.f32 %v5767, %v5768
        %v5770 = vrot.slane %v5769, 1
        %v5771 = vadd.f32 %v5769, %v5770
        %v5772 = vadd.f32 %v5178, %v5192
        %v5773 = vadd.f32 %v5772, %v5206
        %v5774 = vadd.f32 %v5773, %v5220
        %v5775 = vadd.f32 %v5774, %v5234
        %v5776 = vadd.f32 %v5775, %v5248
        %v5777 = vadd.f32 %v5776, %v5262
        %v5778 = vadd.f32 %v5777, %v5276
        %v5779 = vadd.f32 %v5778, %v5290
        %v5780 = vadd.f32 %v5779, %v5304
        %v5781 = vadd.f32 %v5780, %v5318
        %v5782 = vadd.f32 %v5781, %v5332
        %v5783 = vadd.f32 %v5782, %v5346
        %v5784 = vadd.f32 %v5783, %v5360
        %v5785 = vadd.f32 %v5784, %v5374
        %v5786 = vadd.f32 %v5785, %v5388
        %v5787 = vadd.f32 %v5786, %v5402
        %v5788 = vadd.f32 %v5787, %v5416
        %v5789 = vadd.f32 %v5788, %v5430
        %v5790 = vadd.f32 %v5789, %v5444
        %v5791 = vadd.f32 %v5790, %v5458
        %v5792 = vadd.f32 %v5791, %v5472
        %v5793 = vadd.f32 %v5792, %v5486
        %v5794 = vadd.f32 %v5793, %v5500
        %v5795 = vadd.f32 %v5794, %v5514
        %v5796 = vadd.f32 %v5795, %v5528
        %v5797 = vadd.f32 %v5796, %v5542
        %v5798 = vadd.f32 %v5797, %v5556
        %v5799 = vadd.f32 %v5798, %v5570
        %v5800 = vadd.f32 %v5799, %v5584
        %v5801 = vadd.f32 %v5800, %v5598
        %v5802 = vadd.f32 %v5801, %v5612
        %v5803 = vrot.slane %v5802, 4
        %v5804 = vadd.f32 %v5802, %v5803
        %v5805 = vrot.slane %v5804, 2
        %v5806 = vadd.f32 %v5804, %v5805
        %v5807 = vrot.slane %v5806, 1
        %v5808 = vadd.f32 %v5806, %v5807
        %v5809 = vadd.f32 %v5179, %v5193
        %v5810 = vadd.f32 %v5809, %v5207
        %v5811 = vadd.f32 %v5810, %v5221
        %v5812 = vadd.f32 %v5811, %v5235
        %v5813 = vadd.f32 %v5812, %v5249
        %v5814 = vadd.f32 %v5813, %v5263
        %v5815 = vadd.f32 %v5814, %v5277
        %v5816 = vadd.f32 %v5815, %v5291
        %v5817 = vadd.f32 %v5816, %v5305
        %v5818 = vadd.f32 %v5817, %v5319
        %v5819 = vadd.f32 %v5818, %v5333
        %v5820 = vadd.f32 %v5819, %v5347
        %v5821 = vadd.f32 %v5820, %v5361
        %v5822 = vadd.f32 %v5821, %v5375
        %v5823 = vadd.f32 %v5822, %v5389
        %v5824 = vadd.f32 %v5823, %v5403
        %v5825 = vadd.f32 %v5824, %v5417
        %v5826 = vadd.f32 %v5825, %v5431
        %v5827 = vadd.f32 %v5826, %v5445
        %v5828 = vadd.f32 %v5827, %v5459
        %v5829 = vadd.f32 %v5828, %v5473
        %v5830 = vadd.f32 %v5829, %v5487
        %v5831 = vadd.f32 %v5830, %v5501
        %v5832 = vadd.f32 %v5831, %v5515
        %v5833 = vadd.f32 %v5832, %v5529
        %v5834 = vadd.f32 %v5833, %v5543
        %v5835 = vadd.f32 %v5834, %v5557
        %v5836 = vadd.f32 %v5835, %v5571
        %v5837 = vadd.f32 %v5836, %v5585
        %v5838 = vadd.f32 %v5837, %v5599
        %v5839 = vadd.f32 %v5838, %v5613
        %v5840 = vrot.slane %v5839, 4
        %v5841 = vadd.f32 %v5839, %v5840
        %v5842 = vrot.slane %v5841, 2
        %v5843 = vadd.f32 %v5841, %v5842
        %v5844 = vrot.slane %v5843, 1
        %v5845 = vadd.f32 %v5843, %v5844
        %v5846 = vadd.f32 %v5180, %v5194
        %v5847 = vadd.f32 %v5846, %v5208
        %v5848 = vadd.f32 %v5847, %v5222
        %v5849 = vadd.f32 %v5848, %v5236
        %v5850 = vadd.f32 %v5849, %v5250
        %v5851 = vadd.f32 %v5850, %v5264
        %v5852 = vadd.f32 %v5851, %v5278
        %v5853 = vadd.f32 %v5852, %v5292
        %v5854 = vadd.f32 %v5853, %v5306
        %v5855 = vadd.f32 %v5854, %v5320
        %v5856 = vadd.f32 %v5855, %v5334
        %v5857 = vadd.f32 %v5856, %v5348
        %v5858 = vadd.f32 %v5857, %v5362
        %v5859 = vadd.f32 %v5858, %v5376
        %v5860 = vadd.f32 %v5859, %v5390
        %v5861 = vadd.f32 %v5860, %v5404
        %v5862 = vadd.f32 %v5861, %v5418
        %v5863 = vadd.f32 %v5862, %v5432
        %v5864 = vadd.f32 %v5863, %v5446
        %v5865 = vadd.f32 %v5864, %v5460
        %v5866 = vadd.f32 %v5865, %v5474
        %v5867 = vadd.f32 %v5866, %v5488
        %v5868 = vadd.f32 %v5867, %v5502
        %v5869 = vadd.f32 %v5868, %v5516
        %v5870 = vadd.f32 %v5869, %v5530
        %v5871 = vadd.f32 %v5870, %v5544
        %v5872 = vadd.f32 %v5871, %v5558
        %v5873 = vadd.f32 %v5872, %v5572
        %v5874 = vadd.f32 %v5873, %v5586
        %v5875 = vadd.f32 %v5874, %v5600
        %v5876 = vadd.f32 %v5875, %v5614
        %v5877 = vrot.slane %v5876, 4
        %v5878 = vadd.f32 %v5876, %v5877
        %v5879 = vrot.slane %v5878, 2
        %v5880 = vadd.f32 %v5878, %v5879
        %v5881 = vrot.slane %v5880, 1
        %v5882 = vadd.f32 %v5880, %v5881
        %v5883 = vadd.f32 %v5181, %v5195
        %v5884 = vadd.f32 %v5883, %v5209
        %v5885 = vadd.f32 %v5884, %v5223
        %v5886 = vadd.f32 %v5885, %v5237
        %v5887 = vadd.f32 %v5886, %v5251
        %v5888 = vadd.f32 %v5887, %v5265
        %v5889 = vadd.f32 %v5888, %v5279
        %v5890 = vadd.f32 %v5889, %v5293
        %v5891 = vadd.f32 %v5890, %v5307
        %v5892 = vadd.f32 %v5891, %v5321
        %v5893 = vadd.f32 %v5892, %v5335
        %v5894 = vadd.f32 %v5893, %v5349
        %v5895 = vadd.f32 %v5894, %v5363
        %v5896 = vadd.f32 %v5895, %v5377
        %v5897 = vadd.f32 %v5896, %v5391
        %v5898 = vadd.f32 %v5897, %v5405
        %v5899 = vadd.f32 %v5898, %v5419
        %v5900 = vadd.f32 %v5899, %v5433
        %v5901 = vadd.f32 %v5900, %v5447
        %v5902 = vadd.f32 %v5901, %v5461
        %v5903 = vadd.f32 %v5902, %v5475
        %v5904 = vadd.f32 %v5903, %v5489
        %v5905 = vadd.f32 %v5904, %v5503
        %v5906 = vadd.f32 %v5905, %v5517
        %v5907 = vadd.f32 %v5906, %v5531
        %v5908 = vadd.f32 %v5907, %v5545
        %v5909 = vadd.f32 %v5908, %v5559
        %v5910 = vadd.f32 %v5909, %v5573
        %v5911 = vadd.f32 %v5910, %v5587
        %v5912 = vadd.f32 %v5911, %v5601
        %v5913 = vadd.f32 %v5912, %v5615
        %v5914 = vrot.slane %v5913, 4
        %v5915 = vadd.f32 %v5913, %v5914
        %v5916 = vrot.slane %v5915, 2
        %v5917 = vadd.f32 %v5915, %v5916
        %v5918 = vrot.slane %v5917, 1
        %v5919 = vadd.f32 %v5917, %v5918
        %v5920 = vadd.f32 %v5182, %v5196
        %v5921 = vadd.f32 %v5920, %v5210
        %v5922 = vadd.f32 %v5921, %v5224
        %v5923 = vadd.f32 %v5922, %v5238
        %v5924 = vadd.f32 %v5923, %v5252
        %v5925 = vadd.f32 %v5924, %v5266
        %v5926 = vadd.f32 %v5925, %v5280
        %v5927 = vadd.f32 %v5926, %v5294
        %v5928 = vadd.f32 %v5927, %v5308
        %v5929 = vadd.f32 %v5928, %v5322
        %v5930 = vadd.f32 %v5929, %v5336
        %v5931 = vadd.f32 %v5930, %v5350
        %v5932 = vadd.f32 %v5931, %v5364
        %v5933 = vadd.f32 %v5932, %v5378
        %v5934 = vadd.f32 %v5933, %v5392
        %v5935 = vadd.f32 %v5934, %v5406
        %v5936 = vadd.f32 %v5935, %v5420
        %v5937 = vadd.f32 %v5936, %v5434
        %v5938 = vadd.f32 %v5937, %v5448
        %v5939 = vadd.f32 %v5938, %v5462
        %v5940 = vadd.f32 %v5939, %v5476
        %v5941 = vadd.f32 %v5940, %v5490
        %v5942 = vadd.f32 %v5941, %v5504
        %v5943 = vadd.f32 %v5942, %v5518
        %v5944 = vadd.f32 %v5943, %v5532
        %v5945 = vadd.f32 %v5944, %v5546
        %v5946 = vadd.f32 %v5945, %v5560
        %v5947 = vadd.f32 %v5946, %v5574
        %v5948 = vadd.f32 %v5947, %v5588
        %v5949 = vadd.f32 %v5948, %v5602
        %v5950 = vadd.f32 %v5949, %v5616
        %v5951 = vrot.slane %v5950, 4
        %v5952 = vadd.f32 %v5950, %v5951
        %v5953 = vrot.slane %v5952, 2
        %v5954 = vadd.f32 %v5952, %v5953
        %v5955 = vrot.slane %v5954, 1
        %v5956 = vadd.f32 %v5954, %v5955
        %v5957 = vadd.f32 %v5183, %v5197
        %v5958 = vadd.f32 %v5957, %v5211
        %v5959 = vadd.f32 %v5958, %v5225
        %v5960 = vadd.f32 %v5959, %v5239
        %v5961 = vadd.f32 %v5960, %v5253
        %v5962 = vadd.f32 %v5961, %v5267
        %v5963 = vadd.f32 %v5962, %v5281
        %v5964 = vadd.f32 %v5963, %v5295
        %v5965 = vadd.f32 %v5964, %v5309
        %v5966 = vadd.f32 %v5965, %v5323
        %v5967 = vadd.f32 %v5966, %v5337
        %v5968 = vadd.f32 %v5967, %v5351
        %v5969 = vadd.f32 %v5968, %v5365
        %v5970 = vadd.f32 %v5969, %v5379
        %v5971 = vadd.f32 %v5970, %v5393
        %v5972 = vadd.f32 %v5971, %v5407
        %v5973 = vadd.f32 %v5972, %v5421
        %v5974 = vadd.f32 %v5973, %v5435
        %v5975 = vadd.f32 %v5974, %v5449
        %v5976 = vadd.f32 %v5975, %v5463
        %v5977 = vadd.f32 %v5976, %v5477
        %v5978 = vadd.f32 %v5977, %v5491
        %v5979 = vadd.f32 %v5978, %v5505
        %v5980 = vadd.f32 %v5979, %v5519
        %v5981 = vadd.f32 %v5980, %v5533
        %v5982 = vadd.f32 %v5981, %v5547
        %v5983 = vadd.f32 %v5982, %v5561
        %v5984 = vadd.f32 %v5983, %v5575
        %v5985 = vadd.f32 %v5984, %v5589
        %v5986 = vadd.f32 %v5985, %v5603
        %v5987 = vadd.f32 %v5986, %v5617
        %v5988 = vrot.slane %v5987, 4
        %v5989 = vadd.f32 %v5987, %v5988
        %v5990 = vrot.slane %v5989, 2
        %v5991 = vadd.f32 %v5989, %v5990
        %v5992 = vrot.slane %v5991, 1
        %v5993 = vadd.f32 %v5991, %v5992
        %v5994 = vadd.f32 %v5184, %v5198
        %v5995 = vadd.f32 %v5994, %v5212
        %v5996 = vadd.f32 %v5995, %v5226
        %v5997 = vadd.f32 %v5996, %v5240
        %v5998 = vadd.f32 %v5997, %v5254
        %v5999 = vadd.f32 %v5998, %v5268
        %v6000 = vadd.f32 %v5999, %v5282
        %v6001 = vadd.f32 %v6000, %v5296
        %v6002 = vadd.f32 %v6001, %v5310
        %v6003 = vadd.f32 %v6002, %v5324
        %v6004 = vadd.f32 %v6003, %v5338
        %v6005 = vadd.f32 %v6004, %v5352
        %v6006 = vadd.f32 %v6005, %v5366
        %v6007 = vadd.f32 %v6006, %v5380
        %v6008 = vadd.f32 %v6007, %v5394
        %v6009 = vadd.f32 %v6008, %v5408
        %v6010 = vadd.f32 %v6009, %v5422
        %v6011 = vadd.f32 %v6010, %v5436
        %v6012 = vadd.f32 %v6011, %v5450
        %v6013 = vadd.f32 %v6012, %v5464
        %v6014 = vadd.f32 %v6013, %v5478
        %v6015 = vadd.f32 %v6014, %v5492
        %v6016 = vadd.f32 %v6015, %v5506
        %v6017 = vadd.f32 %v6016, %v5520
        %v6018 = vadd.f32 %v6017, %v5534
        %v6019 = vadd.f32 %v6018, %v5548
        %v6020 = vadd.f32 %v6019, %v5562
        %v6021 = vadd.f32 %v6020, %v5576
        %v6022 = vadd.f32 %v6021, %v5590
        %v6023 = vadd.f32 %v6022, %v5604
        %v6024 = vadd.f32 %v6023, %v5618
        %v6025 = vrot.slane %v6024, 4
        %v6026 = vadd.f32 %v6024, %v6025
        %v6027 = vrot.slane %v6026, 2
        %v6028 = vadd.f32 %v6026, %v6027
        %v6029 = vrot.slane %v6028, 1
        %v6030 = vadd.f32 %v6028, %v6029
        %v6031 = vadd.f32 %v5185, %v5199
        %v6032 = vadd.f32 %v6031, %v5213
        %v6033 = vadd.f32 %v6032, %v5227
        %v6034 = vadd.f32 %v6033, %v5241
        %v6035 = vadd.f32 %v6034, %v5255
        %v6036 = vadd.f32 %v6035, %v5269
        %v6037 = vadd.f32 %v6036, %v5283
        %v6038 = vadd.f32 %v6037, %v5297
        %v6039 = vadd.f32 %v6038, %v5311
        %v6040 = vadd.f32 %v6039, %v5325
        %v6041 = vadd.f32 %v6040, %v5339
        %v6042 = vadd.f32 %v6041, %v5353
        %v6043 = vadd.f32 %v6042, %v5367
        %v6044 = vadd.f32 %v6043, %v5381
        %v6045 = vadd.f32 %v6044, %v5395
        %v6046 = vadd.f32 %v6045, %v5409
        %v6047 = vadd.f32 %v6046, %v5423
        %v6048 = vadd.f32 %v6047, %v5437
        %v6049 = vadd.f32 %v6048, %v5451
        %v6050 = vadd.f32 %v6049, %v5465
        %v6051 = vadd.f32 %v6050, %v5479
        %v6052 = vadd.f32 %v6051, %v5493
        %v6053 = vadd.f32 %v6052, %v5507
        %v6054 = vadd.f32 %v6053, %v5521
        %v6055 = vadd.f32 %v6054, %v5535
        %v6056 = vadd.f32 %v6055, %v5549
        %v6057 = vadd.f32 %v6056, %v5563
        %v6058 = vadd.f32 %v6057, %v5577
        %v6059 = vadd.f32 %v6058, %v5591
        %v6060 = vadd.f32 %v6059, %v5605
        %v6061 = vadd.f32 %v6060, %v5619
        %v6062 = vrot.slane %v6061, 4
        %v6063 = vadd.f32 %v6061, %v6062
        %v6064 = vrot.slane %v6063, 2
        %v6065 = vadd.f32 %v6063, %v6064
        %v6066 = vrot.slane %v6065, 1
        %v6067 = vadd.f32 %v6065, %v6066
        %v6068 = vadd.f32 %v5186, %v5200
        %v6069 = vadd.f32 %v6068, %v5214
        %v6070 = vadd.f32 %v6069, %v5228
        %v6071 = vadd.f32 %v6070, %v5242
        %v6072 = vadd.f32 %v6071, %v5256
        %v6073 = vadd.f32 %v6072, %v5270
        %v6074 = vadd.f32 %v6073, %v5284
        %v6075 = vadd.f32 %v6074, %v5298
        %v6076 = vadd.f32 %v6075, %v5312
        %v6077 = vadd.f32 %v6076, %v5326
        %v6078 = vadd.f32 %v6077, %v5340
        %v6079 = vadd.f32 %v6078, %v5354
        %v6080 = vadd.f32 %v6079, %v5368
        %v6081 = vadd.f32 %v6080, %v5382
        %v6082 = vadd.f32 %v6081, %v5396
        %v6083 = vadd.f32 %v6082, %v5410
        %v6084 = vadd.f32 %v6083, %v5424
        %v6085 = vadd.f32 %v6084, %v5438
        %v6086 = vadd.f32 %v6085, %v5452
        %v6087 = vadd.f32 %v6086, %v5466
        %v6088 = vadd.f32 %v6087, %v5480
        %v6089 = vadd.f32 %v6088, %v5494
        %v6090 = vadd.f32 %v6089, %v5508
        %v6091 = vadd.f32 %v6090, %v5522
        %v6092 = vadd.f32 %v6091, %v5536
        %v6093 = vadd.f32 %v6092, %v5550
        %v6094 = vadd.f32 %v6093, %v5564
        %v6095 = vadd.f32 %v6094, %v5578
        %v6096 = vadd.f32 %v6095, %v5592
        %v6097 = vadd.f32 %v6096, %v5606
        %v6098 = vadd.f32 %v6097, %v5620
        %v6099 = vrot.slane %v6098, 4
        %v6100 = vadd.f32 %v6098, %v6099
        %v6101 = vrot.slane %v6100, 2
        %v6102 = vadd.f32 %v6100, %v6101
        %v6103 = vrot.slane %v6102, 1
        %v6104 = vadd.f32 %v6102, %v6103
        %v6105 = vadd.f32 %v5187, %v5201
        %v6106 = vadd.f32 %v6105, %v5215
        %v6107 = vadd.f32 %v6106, %v5229
        %v6108 = vadd.f32 %v6107, %v5243
        %v6109 = vadd.f32 %v6108, %v5257
        %v6110 = vadd.f32 %v6109, %v5271
        %v6111 = vadd.f32 %v6110, %v5285
        %v6112 = vadd.f32 %v6111, %v5299
        %v6113 = vadd.f32 %v6112, %v5313
        %v6114 = vadd.f32 %v6113, %v5327
        %v6115 = vadd.f32 %v6114, %v5341
        %v6116 = vadd.f32 %v6115, %v5355
        %v6117 = vadd.f32 %v6116, %v5369
        %v6118 = vadd.f32 %v6117, %v5383
        %v6119 = vadd.f32 %v6118, %v5397
        %v6120 = vadd.f32 %v6119, %v5411
        %v6121 = vadd.f32 %v6120, %v5425
        %v6122 = vadd.f32 %v6121, %v5439
        %v6123 = vadd.f32 %v6122, %v5453
        %v6124 = vadd.f32 %v6123, %v5467
        %v6125 = vadd.f32 %v6124, %v5481
        %v6126 = vadd.f32 %v6125, %v5495
        %v6127 = vadd.f32 %v6126, %v5509
        %v6128 = vadd.f32 %v6127, %v5523
        %v6129 = vadd.f32 %v6128, %v5537
        %v6130 = vadd.f32 %v6129, %v5551
        %v6131 = vadd.f32 %v6130, %v5565
        %v6132 = vadd.f32 %v6131, %v5579
        %v6133 = vadd.f32 %v6132, %v5593
        %v6134 = vadd.f32 %v6133, %v5607
        %v6135 = vadd.f32 %v6134, %v5621
        %v6136 = vrot.slane %v6135, 4
        %v6137 = vadd.f32 %v6135, %v6136
        %v6138 = vrot.slane %v6137, 2
        %v6139 = vadd.f32 %v6137, %v6138
        %v6140 = vrot.slane %v6139, 1
        %v6141 = vadd.f32 %v6139, %v6140
        %v6156 = vcombine.low %v5660, %v5697
        %v6157 = vcombine.low %v5734, %v5771
        %v6158 = vcombine.low %v5808, %v5845
        %v6159 = vcombine.low %v5882, %v5919
        %v6161 = vunpack.c.l.s4 1966171168
        %v6162 = vunpack.c.0.s8 %v6161
        %v6163 = vlaneseq
        %v6164 = vshrl.u32 %v6163, 7
        %v6165 = vsub.s32 %v6162, %v6164
        %v6166 = vrot.slane %v6156, %v6165
        %v6168 = vunpack.c.l.s4 1966171168
        %v6169 = vunpack.c.0.s8 %v6168
        %v6170 = vlaneseq
        %v6171 = vshrl.u32 %v6170, 7
        %v6172 = vsub.s32 %v6169, %v6171
        %v6173 = vrot.slane %v6157, %v6172
        %v6175 = vunpack.c.l.s4 1966171168
        %v6176 = vunpack.c.0.s8 %v6175
        %v6177 = vlaneseq
        %v6178 = vshrl.u32 %v6177, 7
        %v6179 = vsub.s32 %v6176, %v6178
        %v6180 = vrot.slane %v6158, %v6179
        %v6182 = vunpack.c.l.s4 1966171168
        %v6183 = vunpack.c.0.s8 %v6182
        %v6184 = vlaneseq
        %v6185 = vshrl.u32 %v6184, 7
        %v6186 = vsub.s32 %v6183, %v6185
        %v6187 = vrot.slane %v6159, %v6186
        %v6188 = vcombine.low %v6166, %v6173
        %v6189 = vcombine.low %v6180, %v6187
        %v6191 = vunpack.c.l.s4 1966171168
        %v6192 = vunpack.c.0.s8 %v6191
        %v6193 = vlaneseq
        %v6194 = vshrl.u32 %v6193, 7
        %v6195 = vsub.s32 %v6192, %v6194
        %v6196 = vrot.slane %v6188, %v6195
        %v6198 = vunpack.c.l.s4 1966171168
        %v6199 = vunpack.c.0.s8 %v6198
        %v6200 = vlaneseq
        %v6201 = vshrl.u32 %v6200, 7
        %v6202 = vsub.s32 %v6199, %v6201
        %v6203 = vrot.slane %v6189, %v6202
        %v6204 = vcombine.low %v6196, %v6203
        %v6205 = vcombine.low %v5956, %v5993
        %v6206 = vcombine.low %v6030, %v6067
        %v6207 = vcombine.low %v6104, %v6141
        %v6209 = vunpack.c.l.s4 1966171168
        %v6210 = vunpack.c.0.s8 %v6209
        %v6211 = vlaneseq
        %v6212 = vshrl.u32 %v6211, 7
        %v6213 = vsub.s32 %v6210, %v6212
        %v6214 = vrot.slane %v6205, %v6213
        %v6216 = vunpack.c.l.s4 1966171168
        %v6217 = vunpack.c.0.s8 %v6216
        %v6218 = vlaneseq
        %v6219 = vshrl.u32 %v6218, 7
        %v6220 = vsub.s32 %v6217, %v6219
        %v6221 = vrot.slane %v6206, %v6220
        %v6223 = vunpack.c.l.s4 1966171168
        %v6224 = vunpack.c.0.s8 %v6223
        %v6225 = vlaneseq
        %v6226 = vshrl.u32 %v6225, 7
        %v6227 = vsub.s32 %v6224, %v6226
        %v6228 = vrot.slane %v6207, %v6227
        %v6229 = vcombine.low %v6214, %v6221
        %v6231 = vunpack.c.l.s4 1966171168
        %v6232 = vunpack.c.0.s8 %v6231
        %v6233 = vlaneseq
        %v6234 = vshrl.u32 %v6233, 7
        %v6235 = vsub.s32 %v6232, %v6234
        %v6236 = vrot.slane %v6229, %v6235
        %v6238 = vunpack.c.l.s4 1966171168
        %v6239 = vunpack.c.0.s8 %v6238
        %v6240 = vlaneseq
        %v6241 = vshrl.u32 %v6240, 7
        %v6242 = vsub.s32 %v6239, %v6241
        %v6243 = vrot.slane %v6228, %v6242
        %v6244 = vcombine.low %v6236, %v6243
        %v6247 = vadd.f32 %v5622, %v6204
        %v6248 = vadd.f32 %v5623, %v6244
        %6249 = vst [vmem:[#allocation2] sm:$0xff] %v6247
        %v6250 = vlaneseq
        %vm6251 = vcmp.ge.s32.totalorder %v6250, 0
        %vm6252 = vcmp.lt.s32.totalorder %v6250, 768
        %vm6253 = vmand %vm6251, %vm6252
        %6254 = vst.msk [vmem:[#allocation2 + $0x8] sm:$0x3f] %vm6253, %v6248
        // Predicated region
        $region49: #{cnn_model_forward.5} parent=43 // pred_check
          %p6255 = pneg %p292
        $region50: #{cnn_model_forward.5} parent=43 // pred_check_branch
          %6257 = sbr.rel (%p6255) target = $region52
        $region51: #{cnn_model_forward.5} parent=43 // pred_region
          %v6258 = vld [vmem:[#allocation2] sm:$0xff]
          %v6259 = vld [vmem:[#allocation2 + $0x8] sm:$0x3f]
          %v6260 = vmul.f32 %v6258, 0.00390625
          %v6261 = vmul.f32 %v6259, 0.00390625
          %v6264 = vlaneseq
          %v6265 = vshrl.u32 %v6264, 7
          %v6266 = vsub.s32 0, %v6265
          %v6267 = vrot.slane %v6260, %v6266
          %v6268 = vlaneseq
          %v6269 = vshrl.u32 %v6268, 7
          %v6270 = vsub.s32 1, %v6269
          %v6271 = vrot.slane %v6260, %v6270
          %v6272 = vlaneseq
          %v6273 = vshrl.u32 %v6272, 7
          %v6274 = vsub.s32 2, %v6273
          %v6275 = vrot.slane %v6260, %v6274
          %v6276 = vlaneseq
          %v6277 = vshrl.u32 %v6276, 7
          %v6278 = vsub.s32 3, %v6277
          %v6279 = vrot.slane %v6260, %v6278
          %v6280 = vlaneseq
          %v6281 = vshrl.u32 %v6280, 7
          %v6282 = vsub.s32 4, %v6281
          %v6283 = vrot.slane %v6260, %v6282
          %v6284 = vlaneseq
          %v6285 = vshrl.u32 %v6284, 7
          %v6286 = vsub.s32 5, %v6285
          %v6287 = vrot.slane %v6260, %v6286
          %v6288 = vlaneseq
          %v6289 = vshrl.u32 %v6288, 7
          %v6290 = vsub.s32 6, %v6289
          %v6291 = vrot.slane %v6260, %v6290
          %v6292 = vlaneseq
          %v6293 = vshrl.u32 %v6292, 7
          %v6294 = vsub.s32 7, %v6293
          %v6295 = vrot.slane %v6260, %v6294
          %v6296 = vlaneseq
          %v6297 = vshrl.u32 %v6296, 7
          %v6298 = vsub.s32 0, %v6297
          %v6299 = vrot.slane %v6261, %v6298
          %v6300 = vlaneseq
          %v6301 = vshrl.u32 %v6300, 7
          %v6302 = vsub.s32 1, %v6301
          %v6303 = vrot.slane %v6261, %v6302
          %v6304 = vlaneseq
          %v6305 = vshrl.u32 %v6304, 7
          %v6306 = vsub.s32 2, %v6305
          %v6307 = vrot.slane %v6261, %v6306
          %v6308 = vlaneseq
          %v6309 = vshrl.u32 %v6308, 7
          %v6310 = vsub.s32 3, %v6309
          %v6311 = vrot.slane %v6261, %v6310
          %v6312 = vlaneseq
          %v6313 = vshrl.u32 %v6312, 7
          %v6314 = vsub.s32 4, %v6313
          %v6315 = vrot.slane %v6261, %v6314
          %v6316 = vlaneseq
          %v6317 = vshrl.u32 %v6316, 7
          %v6318 = vsub.s32 5, %v6317
          %v6319 = vrot.slane %v6261, %v6318
          %v6334 = vpack.c.bf16 %v6267, %v6267
          %v6335 = vpack.c.bf16 %v6271, %v6271
          %v6336 = vpack.c.bf16 %v6275, %v6275
          %v6337 = vpack.c.bf16 %v6279, %v6279
          %v6338 = vpack.c.bf16 %v6283, %v6283
          %v6339 = vpack.c.bf16 %v6287, %v6287
          %v6340 = vpack.c.bf16 %v6291, %v6291
          %v6341 = vpack.c.bf16 %v6295, %v6295
          %v6342 = vpack.c.bf16 %v6299, %v6299
          %v6343 = vpack.c.bf16 %v6303, %v6303
          %v6344 = vpack.c.bf16 %v6307, %v6307
          %v6345 = vpack.c.bf16 %v6311, %v6311
          %v6346 = vpack.c.bf16 %v6315, %v6315
          %v6347 = vpack.c.bf16 %v6319, %v6319
          %v6348 = vld [vmem:[%s4] sm:$0xf]
          %v6349 = vld [vmem:[%s4 + $0x4] sm:$0xf]
          %v6350 = vld [vmem:[%s4 + $0x8] sm:$0xf]
          %v6351 = vld [vmem:[%s4 + $0xc] sm:$0xf]
          %v6352 = vld [vmem:[%s4 + $0x10] sm:$0xf]
          %v6353 = vld [vmem:[%s4 + $0x14] sm:$0xf]
          %v6354 = vld [vmem:[%s4 + $0x18] sm:$0xf]
          %v6355 = vld [vmem:[%s4 + $0x1c] sm:$0xf]
          %v6356 = vld [vmem:[%s4 + $0x20] sm:$0xf]
          %v6357 = vld [vmem:[%s4 + $0x24] sm:$0xf]
          %v6358 = vld [vmem:[%s4 + $0x28] sm:$0xf]
          %v6359 = vld [vmem:[%s4 + $0x2c] sm:$0xf]
          %v6360 = vld [vmem:[%s4 + $0x30] sm:$0xf]
          %v6361 = vld [vmem:[%s4 + $0x34] sm:$0xf]
          %v6362 = vld [vmem:[%s4 + $0x38] sm:$0xf]
          %v6363 = vld [vmem:[%s4 + $0x3c] sm:$0xf]
          %v6364 = vld [vmem:[%s4 + $0x40] sm:$0xf]
          %v6365 = vld [vmem:[%s4 + $0x44] sm:$0xf]
          %v6366 = vld [vmem:[%s4 + $0x48] sm:$0xf]
          %v6367 = vld [vmem:[%s4 + $0x4c] sm:$0xf]
          %v6368 = vld [vmem:[%s4 + $0x50] sm:$0xf]
          %v6369 = vld [vmem:[%s4 + $0x54] sm:$0xf]
          %v6370 = vld [vmem:[%s4 + $0x58] sm:$0xf]
          %v6371 = vld [vmem:[%s4 + $0x5c] sm:$0xf]
          %v6372 = vld [vmem:[%s4 + $0x60] sm:$0xf]
          %v6373 = vld [vmem:[%s4 + $0x64] sm:$0xf]
          %v6374 = vld [vmem:[%s4 + $0x68] sm:$0xf]
          %v6375 = vld [vmem:[%s4 + $0x6c] sm:$0xf]
          %v6376 = vld [vmem:[%s4 + $0x70] sm:$0xf]
          %v6377 = vld [vmem:[%s4 + $0x74] sm:$0xf]
          %v6378 = vld [vmem:[%s4 + $0x78] sm:$0xf]
          %v6379 = vld [vmem:[%s4 + $0x7c] sm:$0xf]
          %v6380 = vld [vmem:[%s4 + $0x80] sm:$0xf]
          %v6381 = vld [vmem:[%s4 + $0x84] sm:$0xf]
          %v6382 = vld [vmem:[%s4 + $0x88] sm:$0xf]
          %v6383 = vld [vmem:[%s4 + $0x8c] sm:$0xf]
          %v6384 = vld [vmem:[%s4 + $0x90] sm:$0xf]
          %v6385 = vld [vmem:[%s4 + $0x94] sm:$0xf]
          %v6386 = vld [vmem:[%s4 + $0x98] sm:$0xf]
          %v6387 = vld [vmem:[%s4 + $0x9c] sm:$0xf]
          %v6388 = vld [vmem:[%s4 + $0xa0] sm:$0xf]
          %v6389 = vld [vmem:[%s4 + $0xa4] sm:$0xf]
          %v6390 = vld [vmem:[%s4 + $0xa8] sm:$0xf]
          %v6391 = vld [vmem:[%s4 + $0xac] sm:$0xf]
          %v6392 = vld [vmem:[%s4 + $0xb0] sm:$0xf]
          %v6393 = vld [vmem:[%s4 + $0xb4] sm:$0xf]
          %v6394 = vld [vmem:[%s4 + $0xb8] sm:$0xf]
          %v6395 = vld [vmem:[%s4 + $0xbc] sm:$0xf]
          %v6396 = vld [vmem:[%s4 + $0xc0] sm:$0xf]
          %v6397 = vld [vmem:[%s4 + $0xc4] sm:$0xf]
          %v6398 = vld [vmem:[%s4 + $0xc8] sm:$0xf]
          %v6399 = vld [vmem:[%s4 + $0xcc] sm:$0xf]
          %v6400 = vld [vmem:[%s4 + $0xd0] sm:$0xf]
          %v6401 = vld [vmem:[%s4 + $0xd4] sm:$0xf]
          %v6402 = vld [vmem:[%s4 + $0xd8] sm:$0xf]
          %v6403 = vld [vmem:[%s4 + $0xdc] sm:$0xf]
          %v6404 = vld [vmem:[%s4 + $0xe0] sm:$0xf]
          %v6405 = vld [vmem:[%s4 + $0xe4] sm:$0xf]
          %v6406 = vld [vmem:[%s4 + $0xe8] sm:$0xf]
          %v6407 = vld [vmem:[%s4 + $0xec] sm:$0xf]
          %v6408 = vld [vmem:[%s4 + $0xf0] sm:$0xf]
          %v6409 = vld [vmem:[%s4 + $0xf4] sm:$0xf]
          %v6410 = vld [vmem:[%s4 + $0xf8] sm:$0xf]
          %v6411 = vld [vmem:[%s4 + $0xfc] sm:$0xf]
          %v6412 = vld [vmem:[%s4 + $0x100] sm:$0xf]
          %v6413 = vld [vmem:[%s4 + $0x104] sm:$0xf]
          %v6414 = vld [vmem:[%s4 + $0x108] sm:$0xf]
          %v6415 = vld [vmem:[%s4 + $0x10c] sm:$0xf]
          %v6416 = vld [vmem:[%s4 + $0x110] sm:$0xf]
          %v6417 = vld [vmem:[%s4 + $0x114] sm:$0xf]
          %v6418 = vld [vmem:[%s4 + $0x118] sm:$0xf]
          %v6419 = vld [vmem:[%s4 + $0x11c] sm:$0xf]
          %v6420 = vld [vmem:[%s4 + $0x120] sm:$0xf]
          %v6421 = vld [vmem:[%s4 + $0x124] sm:$0xf]
          %v6422 = vld [vmem:[%s4 + $0x128] sm:$0xf]
          %v6423 = vld [vmem:[%s4 + $0x12c] sm:$0xf]
          %v6424 = vld [vmem:[%s4 + $0x130] sm:$0xf]
          %v6425 = vld [vmem:[%s4 + $0x134] sm:$0xf]
          %v6426 = vld [vmem:[%s4 + $0x138] sm:$0xf]
          %v6427 = vld [vmem:[%s4 + $0x13c] sm:$0xf]
          %v6428 = vld [vmem:[%s4 + $0x140] sm:$0xf]
          %v6429 = vld [vmem:[%s4 + $0x144] sm:$0xf]
          %v6430 = vld [vmem:[%s4 + $0x148] sm:$0xf]
          %v6431 = vld [vmem:[%s4 + $0x14c] sm:$0xf]
          %v6432 = vld [vmem:[%s4 + $0x150] sm:$0xf]
          %v6433 = vld [vmem:[%s4 + $0x154] sm:$0xf]
          %v6434 = vld [vmem:[%s4 + $0x158] sm:$0xf]
          %v6435 = vld [vmem:[%s4 + $0x15c] sm:$0xf]
          %v6436 = vld [vmem:[%s4 + $0x160] sm:$0xf]
          %v6437 = vld [vmem:[%s4 + $0x164] sm:$0xf]
          %v6438 = vld [vmem:[%s4 + $0x168] sm:$0xf]
          %v6439 = vld [vmem:[%s4 + $0x16c] sm:$0xf]
          %v6440 = vld [vmem:[%s4 + $0x170] sm:$0xf]
          %v6441 = vld [vmem:[%s4 + $0x174] sm:$0xf]
          %v6442 = vld [vmem:[%s4 + $0x178] sm:$0xf]
          %v6443 = vld [vmem:[%s4 + $0x17c] sm:$0xf]
          %v6444 = vld [vmem:[%s4 + $0x180] sm:$0xf]
          %v6445 = vld [vmem:[%s4 + $0x184] sm:$0xf]
          %v6446 = vld [vmem:[%s4 + $0x188] sm:$0xf]
          %v6447 = vld [vmem:[%s4 + $0x18c] sm:$0xf]
          %v6448 = vld [vmem:[%s4 + $0x190] sm:$0xf]
          %v6449 = vld [vmem:[%s4 + $0x194] sm:$0xf]
          %v6450 = vld [vmem:[%s4 + $0x198] sm:$0xf]
          %v6451 = vld [vmem:[%s4 + $0x19c] sm:$0xf]
          %v6452 = vld [vmem:[%s4 + $0x1a0] sm:$0xf]
          %v6453 = vld [vmem:[%s4 + $0x1a4] sm:$0xf]
          %v6454 = vld [vmem:[%s4 + $0x1a8] sm:$0xf]
          %v6455 = vld [vmem:[%s4 + $0x1ac] sm:$0xf]
          %v6456 = vld [vmem:[%s4 + $0x1b0] sm:$0xf]
          %v6457 = vld [vmem:[%s4 + $0x1b4] sm:$0xf]
          %v6458 = vld [vmem:[%s4 + $0x1b8] sm:$0xf]
          %v6459 = vld [vmem:[%s4 + $0x1bc] sm:$0xf]
          %v6460 = vld [vmem:[%s4 + $0x1c0] sm:$0xf]
          %v6461 = vld [vmem:[%s4 + $0x1c4] sm:$0xf]
          %v6462 = vld [vmem:[%s4 + $0x1c8] sm:$0xf]
          %v6463 = vld [vmem:[%s4 + $0x1cc] sm:$0xf]
          %v6464 = vld [vmem:[%s4 + $0x1d0] sm:$0xf]
          %v6465 = vld [vmem:[%s4 + $0x1d4] sm:$0xf]
          %v6466 = vld [vmem:[%s4 + $0x1d8] sm:$0xf]
          %v6467 = vld [vmem:[%s4 + $0x1dc] sm:$0xf]
          %v6468 = vld [vmem:[%s4 + $0x1e0] sm:$0xf]
          %v6469 = vld [vmem:[%s4 + $0x1e4] sm:$0xf]
          %v6470 = vld [vmem:[%s4 + $0x1e8] sm:$0xf]
          %v6471 = vld [vmem:[%s4 + $0x1ec] sm:$0xf]
          %v6472 = vld [vmem:[%s4 + $0x1f0] sm:$0xf]
          %v6473 = vld [vmem:[%s4 + $0x1f4] sm:$0xf]
          %v6474 = vld [vmem:[%s4 + $0x1f8] sm:$0xf]
          %v6475 = vld [vmem:[%s4 + $0x1fc] sm:$0xf]
          %v6476 = vld [vmem:[%s4 + $0x200] sm:$0xf]
          %v6477 = vld [vmem:[%s4 + $0x204] sm:$0xf]
          %v6478 = vld [vmem:[%s4 + $0x208] sm:$0xf]
          %v6479 = vld [vmem:[%s4 + $0x20c] sm:$0xf]
          %v6480 = vld [vmem:[%s4 + $0x210] sm:$0xf]
          %v6481 = vld [vmem:[%s4 + $0x214] sm:$0xf]
          %v6482 = vld [vmem:[%s4 + $0x218] sm:$0xf]
          %v6483 = vld [vmem:[%s4 + $0x21c] sm:$0xf]
          %v6484 = vld [vmem:[%s4 + $0x220] sm:$0xf]
          %v6485 = vld [vmem:[%s4 + $0x224] sm:$0xf]
          %v6486 = vld [vmem:[%s4 + $0x228] sm:$0xf]
          %v6487 = vld [vmem:[%s4 + $0x22c] sm:$0xf]
          %v6488 = vld [vmem:[%s4 + $0x230] sm:$0xf]
          %v6489 = vld [vmem:[%s4 + $0x234] sm:$0xf]
          %v6490 = vld [vmem:[%s4 + $0x238] sm:$0xf]
          %v6491 = vld [vmem:[%s4 + $0x23c] sm:$0xf]
          %v6492 = vld [vmem:[%s4 + $0x240] sm:$0xf]
          %v6493 = vld [vmem:[%s4 + $0x244] sm:$0xf]
          %v6494 = vld [vmem:[%s4 + $0x248] sm:$0xf]
          %v6495 = vld [vmem:[%s4 + $0x24c] sm:$0xf]
          %v6496 = vld [vmem:[%s4 + $0x250] sm:$0xf]
          %v6497 = vld [vmem:[%s4 + $0x254] sm:$0xf]
          %v6498 = vld [vmem:[%s4 + $0x258] sm:$0xf]
          %v6499 = vld [vmem:[%s4 + $0x25c] sm:$0xf]
          %v6500 = vld [vmem:[%s4 + $0x260] sm:$0xf]
          %v6501 = vld [vmem:[%s4 + $0x264] sm:$0xf]
          %v6502 = vld [vmem:[%s4 + $0x268] sm:$0xf]
          %v6503 = vld [vmem:[%s4 + $0x26c] sm:$0xf]
          %v6504 = vld [vmem:[%s4 + $0x270] sm:$0xf]
          %v6505 = vld [vmem:[%s4 + $0x274] sm:$0xf]
          %v6506 = vld [vmem:[%s4 + $0x278] sm:$0xf]
          %v6507 = vld [vmem:[%s4 + $0x27c] sm:$0xf]
          %v6508 = vld [vmem:[%s4 + $0x280] sm:$0xf]
          %v6509 = vld [vmem:[%s4 + $0x284] sm:$0xf]
          %v6510 = vld [vmem:[%s4 + $0x288] sm:$0xf]
          %v6511 = vld [vmem:[%s4 + $0x28c] sm:$0xf]
          %v6512 = vld [vmem:[%s4 + $0x290] sm:$0xf]
          %v6513 = vld [vmem:[%s4 + $0x294] sm:$0xf]
          %v6514 = vld [vmem:[%s4 + $0x298] sm:$0xf]
          %v6515 = vld [vmem:[%s4 + $0x29c] sm:$0xf]
          %v6516 = vld [vmem:[%s4 + $0x2a0] sm:$0xf]
          %v6517 = vld [vmem:[%s4 + $0x2a4] sm:$0xf]
          %v6518 = vld [vmem:[%s4 + $0x2a8] sm:$0xf]
          %v6519 = vld [vmem:[%s4 + $0x2ac] sm:$0xf]
          %v6520 = vld [vmem:[%s4 + $0x2b0] sm:$0xf]
          %v6521 = vld [vmem:[%s4 + $0x2b4] sm:$0xf]
          %v6522 = vld [vmem:[%s4 + $0x2b8] sm:$0xf]
          %v6523 = vld [vmem:[%s4 + $0x2bc] sm:$0xf]
          %v6524 = vld [vmem:[%s4 + $0x2c0] sm:$0xf]
          %v6525 = vld [vmem:[%s4 + $0x2c4] sm:$0xf]
          %v6526 = vld [vmem:[%s4 + $0x2c8] sm:$0xf]
          %v6527 = vld [vmem:[%s4 + $0x2cc] sm:$0xf]
          %v6528 = vld [vmem:[%s4 + $0x2d0] sm:$0xf]
          %v6529 = vld [vmem:[%s4 + $0x2d4] sm:$0xf]
          %v6530 = vld [vmem:[%s4 + $0x2d8] sm:$0xf]
          %v6531 = vld [vmem:[%s4 + $0x2dc] sm:$0xf]
          %v6532 = vld [vmem:[%s4 + $0x2e0] sm:$0xf]
          %v6533 = vld [vmem:[%s4 + $0x2e4] sm:$0xf]
          %v6534 = vld [vmem:[%s4 + $0x2e8] sm:$0xf]
          %v6535 = vld [vmem:[%s4 + $0x2ec] sm:$0xf]
          %v6536 = vld [vmem:[%s4 + $0x2f0] sm:$0xf]
          %v6537 = vld [vmem:[%s4 + $0x2f4] sm:$0xf]
          %v6538 = vld [vmem:[%s4 + $0x2f8] sm:$0xf]
          %v6539 = vld [vmem:[%s4 + $0x2fc] sm:$0xf]
          %v6540 = vld [vmem:[%s4 + $0x300] sm:$0xf]
          %v6541 = vld [vmem:[%s4 + $0x304] sm:$0xf]
          %v6542 = vld [vmem:[%s4 + $0x308] sm:$0xf]
          %v6543 = vld [vmem:[%s4 + $0x30c] sm:$0xf]
          %v6544 = vld [vmem:[%s4 + $0x310] sm:$0xf]
          %v6545 = vld [vmem:[%s4 + $0x314] sm:$0xf]
          %v6546 = vld [vmem:[%s4 + $0x318] sm:$0xf]
          %v6547 = vld [vmem:[%s4 + $0x31c] sm:$0xf]
          %v6548 = vld [vmem:[%s4 + $0x320] sm:$0xf]
          %v6549 = vld [vmem:[%s4 + $0x324] sm:$0xf]
          %v6550 = vld [vmem:[%s4 + $0x328] sm:$0xf]
          %v6551 = vld [vmem:[%s4 + $0x32c] sm:$0xf]
          %v6552 = vld [vmem:[%s4 + $0x330] sm:$0xf]
          %v6553 = vld [vmem:[%s4 + $0x334] sm:$0xf]
          %v6554 = vld [vmem:[%s4 + $0x338] sm:$0xf]
          %v6555 = vld [vmem:[%s4 + $0x33c] sm:$0xf]
          %v6556 = vld [vmem:[%s4 + $0x340] sm:$0xf]
          %v6557 = vld [vmem:[%s4 + $0x344] sm:$0xf]
          %v6558 = vld [vmem:[%s4 + $0x348] sm:$0xf]
          %v6559 = vld [vmem:[%s4 + $0x34c] sm:$0xf]
          %v6560 = vld [vmem:[%s4 + $0x350] sm:$0xf]
          %v6561 = vld [vmem:[%s4 + $0x354] sm:$0xf]
          %v6562 = vld [vmem:[%s4 + $0x358] sm:$0xf]
          %v6563 = vld [vmem:[%s4 + $0x35c] sm:$0xf]
          %v6564 = vld [vmem:[%s4 + $0x360] sm:$0xf]
          %v6565 = vld [vmem:[%s4 + $0x364] sm:$0xf]
          %v6566 = vld [vmem:[%s4 + $0x368] sm:$0xf]
          %v6567 = vld [vmem:[%s4 + $0x36c] sm:$0xf]
          %v6568 = vld [vmem:[%s4 + $0x370] sm:$0xf]
          %v6569 = vld [vmem:[%s4 + $0x374] sm:$0xf]
          %v6570 = vld [vmem:[%s4 + $0x378] sm:$0xf]
          %v6571 = vld [vmem:[%s4 + $0x37c] sm:$0xf]
          %v6572 = vld [vmem:[%s5] sm:$0x1]
          %v6797 = vunpack.c.l.b16 %v6348
          %v6798 = vunpack.c.l.b16 %v6349
          %v6799 = vunpack.c.l.b16 %v6350
          %v6800 = vunpack.c.l.b16 %v6351
          %v6801 = vunpack.c.l.b16 %v6352
          %v6802 = vunpack.c.l.b16 %v6353
          %v6803 = vunpack.c.l.b16 %v6354
          %v6804 = vunpack.c.l.b16 %v6355
          %v6805 = vunpack.c.l.b16 %v6356
          %v6806 = vunpack.c.l.b16 %v6357
          %v6807 = vunpack.c.l.b16 %v6358
          %v6808 = vunpack.c.l.b16 %v6359
          %v6809 = vunpack.c.l.b16 %v6360
          %v6810 = vunpack.c.l.b16 %v6361
          %v6811 = vunpack.c.l.b16 %v6362
          %v6812 = vunpack.c.l.b16 %v6363
          %v6813 = vunpack.c.l.b16 %v6364
          %v6814 = vunpack.c.l.b16 %v6365
          %v6815 = vunpack.c.l.b16 %v6366
          %v6816 = vunpack.c.l.b16 %v6367
          %v6817 = vunpack.c.l.b16 %v6368
          %v6818 = vunpack.c.l.b16 %v6369
          %v6819 = vunpack.c.l.b16 %v6370
          %v6820 = vunpack.c.l.b16 %v6371
          %v6821 = vunpack.c.l.b16 %v6372
          %v6822 = vunpack.c.l.b16 %v6373
          %v6823 = vunpack.c.l.b16 %v6374
          %v6824 = vunpack.c.l.b16 %v6375
          %v6825 = vunpack.c.l.b16 %v6376
          %v6826 = vunpack.c.l.b16 %v6377
          %v6827 = vunpack.c.l.b16 %v6378
          %v6828 = vunpack.c.l.b16 %v6379
          %v6829 = vunpack.c.l.b16 %v6380
          %v6830 = vunpack.c.l.b16 %v6381
          %v6831 = vunpack.c.l.b16 %v6382
          %v6832 = vunpack.c.l.b16 %v6383
          %v6833 = vunpack.c.l.b16 %v6384
          %v6834 = vunpack.c.l.b16 %v6385
          %v6835 = vunpack.c.l.b16 %v6386
          %v6836 = vunpack.c.l.b16 %v6387
          %v6837 = vunpack.c.l.b16 %v6388
          %v6838 = vunpack.c.l.b16 %v6389
          %v6839 = vunpack.c.l.b16 %v6390
          %v6840 = vunpack.c.l.b16 %v6391
          %v6841 = vunpack.c.l.b16 %v6392
          %v6842 = vunpack.c.l.b16 %v6393
          %v6843 = vunpack.c.l.b16 %v6394
          %v6844 = vunpack.c.l.b16 %v6395
          %v6845 = vunpack.c.l.b16 %v6396
          %v6846 = vunpack.c.l.b16 %v6397
          %v6847 = vunpack.c.l.b16 %v6398
          %v6848 = vunpack.c.l.b16 %v6399
          %v6849 = vunpack.c.l.b16 %v6400
          %v6850 = vunpack.c.l.b16 %v6401
          %v6851 = vunpack.c.l.b16 %v6402
          %v6852 = vunpack.c.l.b16 %v6403
          %v6853 = vunpack.c.l.b16 %v6404
          %v6854 = vunpack.c.l.b16 %v6405
          %v6855 = vunpack.c.l.b16 %v6406
          %v6856 = vunpack.c.l.b16 %v6407
          %v6857 = vunpack.c.l.b16 %v6408
          %v6858 = vunpack.c.l.b16 %v6409
          %v6859 = vunpack.c.l.b16 %v6410
          %v6860 = vunpack.c.l.b16 %v6411
          %v6861 = vunpack.c.l.b16 %v6412
          %v6862 = vunpack.c.l.b16 %v6413
          %v6863 = vunpack.c.l.b16 %v6414
          %v6864 = vunpack.c.l.b16 %v6415
          %v6865 = vunpack.c.l.b16 %v6416
          %v6866 = vunpack.c.l.b16 %v6417
          %v6867 = vunpack.c.l.b16 %v6418
          %v6868 = vunpack.c.l.b16 %v6419
          %v6869 = vunpack.c.l.b16 %v6420
          %v6870 = vunpack.c.l.b16 %v6421
          %v6871 = vunpack.c.l.b16 %v6422
          %v6872 = vunpack.c.l.b16 %v6423
          %v6873 = vunpack.c.l.b16 %v6424
          %v6874 = vunpack.c.l.b16 %v6425
          %v6875 = vunpack.c.l.b16 %v6426
          %v6876 = vunpack.c.l.b16 %v6427
          %v6877 = vunpack.c.l.b16 %v6428
          %v6878 = vunpack.c.l.b16 %v6429
          %v6879 = vunpack.c.l.b16 %v6430
          %v6880 = vunpack.c.l.b16 %v6431
          %v6881 = vunpack.c.l.b16 %v6432
          %v6882 = vunpack.c.l.b16 %v6433
          %v6883 = vunpack.c.l.b16 %v6434
          %v6884 = vunpack.c.l.b16 %v6435
          %v6885 = vunpack.c.l.b16 %v6436
          %v6886 = vunpack.c.l.b16 %v6437
          %v6887 = vunpack.c.l.b16 %v6438
          %v6888 = vunpack.c.l.b16 %v6439
          %v6889 = vunpack.c.l.b16 %v6440
          %v6890 = vunpack.c.l.b16 %v6441
          %v6891 = vunpack.c.l.b16 %v6442
          %v6892 = vunpack.c.l.b16 %v6443
          %v6893 = vunpack.c.l.b16 %v6444
          %v6894 = vunpack.c.l.b16 %v6445
          %v6895 = vunpack.c.l.b16 %v6446
          %v6896 = vunpack.c.l.b16 %v6447
          %v6897 = vunpack.c.l.b16 %v6448
          %v6898 = vunpack.c.l.b16 %v6449
          %v6899 = vunpack.c.l.b16 %v6450
          %v6900 = vunpack.c.l.b16 %v6451
          %v6901 = vunpack.c.l.b16 %v6452
          %v6902 = vunpack.c.l.b16 %v6453
          %v6903 = vunpack.c.l.b16 %v6454
          %v6904 = vunpack.c.l.b16 %v6455
          %v6905 = vunpack.c.l.b16 %v6456
          %v6906 = vunpack.c.l.b16 %v6457
          %v6907 = vunpack.c.l.b16 %v6458
          %v6908 = vunpack.c.l.b16 %v6459
          %v6909 = vunpack.c.l.b16 %v6460
          %v6910 = vunpack.c.l.b16 %v6461
          %v6911 = vunpack.c.l.b16 %v6462
          %v6912 = vunpack.c.l.b16 %v6463
          %v6913 = vunpack.c.l.b16 %v6464
          %v6914 = vunpack.c.l.b16 %v6465
          %v6915 = vunpack.c.l.b16 %v6466
          %v6916 = vunpack.c.l.b16 %v6467
          %v6917 = vunpack.c.l.b16 %v6468
          %v6918 = vunpack.c.l.b16 %v6469
          %v6919 = vunpack.c.l.b16 %v6470
          %v6920 = vunpack.c.l.b16 %v6471
          %v6921 = vunpack.c.l.b16 %v6472
          %v6922 = vunpack.c.l.b16 %v6473
          %v6923 = vunpack.c.l.b16 %v6474
          %v6924 = vunpack.c.l.b16 %v6475
          %v6925 = vunpack.c.l.b16 %v6476
          %v6926 = vunpack.c.l.b16 %v6477
          %v6927 = vunpack.c.l.b16 %v6478
          %v6928 = vunpack.c.l.b16 %v6479
          %v6929 = vunpack.c.l.b16 %v6480
          %v6930 = vunpack.c.l.b16 %v6481
          %v6931 = vunpack.c.l.b16 %v6482
          %v6932 = vunpack.c.l.b16 %v6483
          %v6933 = vunpack.c.l.b16 %v6484
          %v6934 = vunpack.c.l.b16 %v6485
          %v6935 = vunpack.c.l.b16 %v6486
          %v6936 = vunpack.c.l.b16 %v6487
          %v6937 = vunpack.c.l.b16 %v6488
          %v6938 = vunpack.c.l.b16 %v6489
          %v6939 = vunpack.c.l.b16 %v6490
          %v6940 = vunpack.c.l.b16 %v6491
          %v6941 = vunpack.c.l.b16 %v6492
          %v6942 = vunpack.c.l.b16 %v6493
          %v6943 = vunpack.c.l.b16 %v6494
          %v6944 = vunpack.c.l.b16 %v6495
          %v6945 = vunpack.c.l.b16 %v6496
          %v6946 = vunpack.c.l.b16 %v6497
          %v6947 = vunpack.c.l.b16 %v6498
          %v6948 = vunpack.c.l.b16 %v6499
          %v6949 = vunpack.c.l.b16 %v6500
          %v6950 = vunpack.c.l.b16 %v6501
          %v6951 = vunpack.c.l.b16 %v6502
          %v6952 = vunpack.c.l.b16 %v6503
          %v6953 = vunpack.c.l.b16 %v6504
          %v6954 = vunpack.c.l.b16 %v6505
          %v6955 = vunpack.c.l.b16 %v6506
          %v6956 = vunpack.c.l.b16 %v6507
          %v6957 = vunpack.c.l.b16 %v6508
          %v6958 = vunpack.c.l.b16 %v6509
          %v6959 = vunpack.c.l.b16 %v6510
          %v6960 = vunpack.c.l.b16 %v6511
          %v6961 = vunpack.c.l.b16 %v6512
          %v6962 = vunpack.c.l.b16 %v6513
          %v6963 = vunpack.c.l.b16 %v6514
          %v6964 = vunpack.c.l.b16 %v6515
          %v6965 = vunpack.c.l.b16 %v6516
          %v6966 = vunpack.c.l.b16 %v6517
          %v6967 = vunpack.c.l.b16 %v6518
          %v6968 = vunpack.c.l.b16 %v6519
          %v6969 = vunpack.c.l.b16 %v6520
          %v6970 = vunpack.c.l.b16 %v6521
          %v6971 = vunpack.c.l.b16 %v6522
          %v6972 = vunpack.c.l.b16 %v6523
          %v6973 = vunpack.c.l.b16 %v6524
          %v6974 = vunpack.c.l.b16 %v6525
          %v6975 = vunpack.c.l.b16 %v6526
          %v6976 = vunpack.c.l.b16 %v6527
          %v6977 = vunpack.c.l.b16 %v6528
          %v6978 = vunpack.c.l.b16 %v6529
          %v6979 = vunpack.c.l.b16 %v6530
          %v6980 = vunpack.c.l.b16 %v6531
          %v6981 = vunpack.c.l.b16 %v6532
          %v6982 = vunpack.c.l.b16 %v6533
          %v6983 = vunpack.c.l.b16 %v6534
          %v6984 = vunpack.c.l.b16 %v6535
          %v6985 = vunpack.c.l.b16 %v6536
          %v6986 = vunpack.c.l.b16 %v6537
          %v6987 = vunpack.c.l.b16 %v6538
          %v6988 = vunpack.c.l.b16 %v6539
          %v6989 = vunpack.c.l.b16 %v6540
          %v6990 = vunpack.c.l.b16 %v6541
          %v6991 = vunpack.c.l.b16 %v6542
          %v6992 = vunpack.c.l.b16 %v6543
          %v6993 = vunpack.c.l.b16 %v6544
          %v6994 = vunpack.c.l.b16 %v6545
          %v6995 = vunpack.c.l.b16 %v6546
          %v6996 = vunpack.c.l.b16 %v6547
          %v6997 = vunpack.c.l.b16 %v6548
          %v6998 = vunpack.c.l.b16 %v6549
          %v6999 = vunpack.c.l.b16 %v6550
          %v7000 = vunpack.c.l.b16 %v6551
          %v7001 = vunpack.c.l.b16 %v6552
          %v7002 = vunpack.c.l.b16 %v6553
          %v7003 = vunpack.c.l.b16 %v6554
          %v7004 = vunpack.c.l.b16 %v6555
          %v7005 = vunpack.c.l.b16 %v6556
          %v7006 = vunpack.c.l.b16 %v6557
          %v7007 = vunpack.c.l.b16 %v6558
          %v7008 = vunpack.c.l.b16 %v6559
          %v7009 = vunpack.c.l.b16 %v6560
          %v7010 = vunpack.c.l.b16 %v6561
          %v7011 = vunpack.c.l.b16 %v6562
          %v7012 = vunpack.c.l.b16 %v6563
          %v7013 = vunpack.c.l.b16 %v6564
          %v7014 = vunpack.c.l.b16 %v6565
          %v7015 = vunpack.c.l.b16 %v6566
          %v7016 = vunpack.c.l.b16 %v6567
          %v7017 = vunpack.c.l.b16 %v6568
          %v7018 = vunpack.c.l.b16 %v6569
          %v7019 = vunpack.c.l.b16 %v6570
          %v7020 = vunpack.c.l.b16 %v6571
          %v7021 = vpack.c.b16 %v6798, %v6797
          %v7022 = vpack.c.b16 %v6800, %v6799
          %v7023 = vpack.c.b16 %v6802, %v6801
          %v7024 = vpack.c.b16 %v6804, %v6803
          %v7025 = vpack.c.b16 %v6806, %v6805
          %v7026 = vpack.c.b16 %v6808, %v6807
          %v7027 = vpack.c.b16 %v6810, %v6809
          %v7028 = vpack.c.b16 %v6812, %v6811
          %v7029 = vpack.c.b16 %v6814, %v6813
          %v7030 = vpack.c.b16 %v6816, %v6815
          %v7031 = vpack.c.b16 %v6818, %v6817
          %v7032 = vpack.c.b16 %v6820, %v6819
          %v7033 = vpack.c.b16 %v6822, %v6821
          %v7034 = vpack.c.b16 %v6824, %v6823
          %v7035 = vpack.c.b16 %v6826, %v6825
          %v7036 = vpack.c.b16 %v6828, %v6827
          %v7037 = vpack.c.b16 %v6830, %v6829
          %v7038 = vpack.c.b16 %v6832, %v6831
          %v7039 = vpack.c.b16 %v6834, %v6833
          %v7040 = vpack.c.b16 %v6836, %v6835
          %v7041 = vpack.c.b16 %v6838, %v6837
          %v7042 = vpack.c.b16 %v6840, %v6839
          %v7043 = vpack.c.b16 %v6842, %v6841
          %v7044 = vpack.c.b16 %v6844, %v6843
          %v7045 = vpack.c.b16 %v6846, %v6845
          %v7046 = vpack.c.b16 %v6848, %v6847
          %v7047 = vpack.c.b16 %v6850, %v6849
          %v7048 = vpack.c.b16 %v6852, %v6851
          %v7049 = vpack.c.b16 %v6854, %v6853
          %v7050 = vpack.c.b16 %v6856, %v6855
          %v7051 = vpack.c.b16 %v6858, %v6857
          %v7052 = vpack.c.b16 %v6860, %v6859
          %v7053 = vpack.c.b16 %v6862, %v6861
          %v7054 = vpack.c.b16 %v6864, %v6863
          %v7055 = vpack.c.b16 %v6866, %v6865
          %v7056 = vpack.c.b16 %v6868, %v6867
          %v7057 = vpack.c.b16 %v6870, %v6869
          %v7058 = vpack.c.b16 %v6872, %v6871
          %v7059 = vpack.c.b16 %v6874, %v6873
          %v7060 = vpack.c.b16 %v6876, %v6875
          %v7061 = vpack.c.b16 %v6878, %v6877
          %v7062 = vpack.c.b16 %v6880, %v6879
          %v7063 = vpack.c.b16 %v6882, %v6881
          %v7064 = vpack.c.b16 %v6884, %v6883
          %v7065 = vpack.c.b16 %v6886, %v6885
          %v7066 = vpack.c.b16 %v6888, %v6887
          %v7067 = vpack.c.b16 %v6890, %v6889
          %v7068 = vpack.c.b16 %v6892, %v6891
          %v7069 = vpack.c.b16 %v6894, %v6893
          %v7070 = vpack.c.b16 %v6896, %v6895
          %v7071 = vpack.c.b16 %v6898, %v6897
          %v7072 = vpack.c.b16 %v6900, %v6899
          %v7073 = vpack.c.b16 %v6902, %v6901
          %v7074 = vpack.c.b16 %v6904, %v6903
          %v7075 = vpack.c.b16 %v6906, %v6905
          %v7076 = vpack.c.b16 %v6908, %v6907
          %v7077 = vpack.c.b16 %v6910, %v6909
          %v7078 = vpack.c.b16 %v6912, %v6911
          %v7079 = vpack.c.b16 %v6914, %v6913
          %v7080 = vpack.c.b16 %v6916, %v6915
          %v7081 = vpack.c.b16 %v6918, %v6917
          %v7082 = vpack.c.b16 %v6920, %v6919
          %v7083 = vpack.c.b16 %v6922, %v6921
          %v7084 = vpack.c.b16 %v6924, %v6923
          %v7085 = vpack.c.b16 %v6926, %v6925
          %v7086 = vpack.c.b16 %v6928, %v6927
          %v7087 = vpack.c.b16 %v6930, %v6929
          %v7088 = vpack.c.b16 %v6932, %v6931
          %v7089 = vpack.c.b16 %v6934, %v6933
          %v7090 = vpack.c.b16 %v6936, %v6935
          %v7091 = vpack.c.b16 %v6938, %v6937
          %v7092 = vpack.c.b16 %v6940, %v6939
          %v7093 = vpack.c.b16 %v6942, %v6941
          %v7094 = vpack.c.b16 %v6944, %v6943
          %v7095 = vpack.c.b16 %v6946, %v6945
          %v7096 = vpack.c.b16 %v6948, %v6947
          %v7097 = vpack.c.b16 %v6950, %v6949
          %v7098 = vpack.c.b16 %v6952, %v6951
          %v7099 = vpack.c.b16 %v6954, %v6953
          %v7100 = vpack.c.b16 %v6956, %v6955
          %v7101 = vpack.c.b16 %v6958, %v6957
          %v7102 = vpack.c.b16 %v6960, %v6959
          %v7103 = vpack.c.b16 %v6962, %v6961
          %v7104 = vpack.c.b16 %v6964, %v6963
          %v7105 = vpack.c.b16 %v6966, %v6965
          %v7106 = vpack.c.b16 %v6968, %v6967
          %v7107 = vpack.c.b16 %v6970, %v6969
          %v7108 = vpack.c.b16 %v6972, %v6971
          %v7109 = vpack.c.b16 %v6974, %v6973
          %v7110 = vpack.c.b16 %v6976, %v6975
          %v7111 = vpack.c.b16 %v6978, %v6977
          %v7112 = vpack.c.b16 %v6980, %v6979
          %v7113 = vpack.c.b16 %v6982, %v6981
          %v7114 = vpack.c.b16 %v6984, %v6983
          %v7115 = vpack.c.b16 %v6986, %v6985
          %v7116 = vpack.c.b16 %v6988, %v6987
          %v7117 = vpack.c.b16 %v6990, %v6989
          %v7118 = vpack.c.b16 %v6992, %v6991
          %v7119 = vpack.c.b16 %v6994, %v6993
          %v7120 = vpack.c.b16 %v6996, %v6995
          %v7121 = vpack.c.b16 %v6998, %v6997
          %v7122 = vpack.c.b16 %v7000, %v6999
          %v7123 = vpack.c.b16 %v7002, %v7001
          %v7124 = vpack.c.b16 %v7004, %v7003
          %v7125 = vpack.c.b16 %v7006, %v7005
          %v7126 = vpack.c.b16 %v7008, %v7007
          %v7127 = vpack.c.b16 %v7010, %v7009
          %v7128 = vpack.c.b16 %v7012, %v7011
          %v7129 = vpack.c.b16 %v7014, %v7013
          %v7130 = vpack.c.b16 %v7016, %v7015
          %v7131 = vpack.c.b16 %v7018, %v7017
          %v7132 = vpack.c.b16 %v7020, %v7019
          %7245 = vmatprep.subr.bf16.mxu0 0
          %7246 = vmatpush1.bf16.msra.mxu0 %v7021
          %7247 = vmatprep.subr.bf16.mxu0 0
          %7248 = vmatpush1.bf16.msra.mxu0 %v7022
          %7249 = vmatprep.subr.bf16.mxu0 0
          %7250 = vmatpush1.bf16.msra.mxu0 %v7023
          %7251 = vmatprep.subr.bf16.mxu0 0
          %7252 = vmatpush1.bf16.msra.mxu0 %v7024
          %7253 = vmatprep.subr.bf16.mxu0 0
          %7254 = vmatpush1.bf16.msra.mxu0 %v7025
          %7255 = vmatprep.subr.bf16.mxu0 0
          %7256 = vmatpush1.bf16.msra.mxu0 %v7026
          %7257 = vmatprep.subr.bf16.mxu0 0
          %7258 = vmatpush1.bf16.msra.mxu0 %v7027
          %7259 = vmatprep.subr.bf16.mxu0 0
          %7260 = vmatpush1.bf16.msra.mxu0 %v7028
          %7261 = vmatprep.subr.bf16.mxu0 0
          %7262 = vmatpush1.bf16.msra.mxu0 %v7029
          %7263 = vmatprep.subr.bf16.mxu0 0
          %7264 = vmatpush1.bf16.msra.mxu0 %v7030
          %7265 = vmatprep.subr.bf16.mxu0 0
          %7266 = vmatpush1.bf16.msra.mxu0 %v7031
          %7267 = vmatprep.subr.bf16.mxu0 0
          %7268 = vmatpush1.bf16.msra.mxu0 %v7032
          %7269 = vmatprep.subr.bf16.mxu0 0
          %7270 = vmatpush1.bf16.msra.mxu0 %v7033
          %7271 = vmatprep.subr.bf16.mxu0 0
          %7272 = vmatpush1.bf16.msra.mxu0 %v7034
          %7273 = vmatprep.subr.bf16.mxu0 0
          %7274 = vmatpush1.bf16.msra.mxu0 %v7035
          %7275 = vmatprep.subr.bf16.mxu0 0
          %7276 = vmatpush1.bf16.msra.mxu0 %v7036
          %7277 = vmatprep.mubr.bf16.mxu0 %v6335
          %7278 = vmatmul.mubr.bf16.gmra.mrb[0].mxu0 %v6334
          %v7279 = vpop.f32.mrb[0].mxu0
          %v7280 = vadd.f32 %v6572, %v7279
          %v7281 = vpop.f32.mrb[0].mxu0
          %v7282 = vpop.f32.mrb[0].mxu0
          %v7283 = vpop.f32.mrb[0].mxu0
          %7284 = vdwg.mxu0
          %7285 = vmatprep.subr.bf16.mxu0 0
          %7286 = vmatpush1.bf16.msra.mxu0 %v7037
          %7287 = vmatprep.subr.bf16.mxu0 0
          %7288 = vmatpush1.bf16.msra.mxu0 %v7038
          %7289 = vmatprep.subr.bf16.mxu0 0
          %7290 = vmatpush1.bf16.msra.mxu0 %v7039
          %7291 = vmatprep.subr.bf16.mxu0 0
          %7292 = vmatpush1.bf16.msra.mxu0 %v7040
          %7293 = vmatprep.subr.bf16.mxu0 0
          %7294 = vmatpush1.bf16.msra.mxu0 %v7041
          %7295 = vmatprep.subr.bf16.mxu0 0
          %7296 = vmatpush1.bf16.msra.mxu0 %v7042
          %7297 = vmatprep.subr.bf16.mxu0 0
          %7298 = vmatpush1.bf16.msra.mxu0 %v7043
          %7299 = vmatprep.subr.bf16.mxu0 0
          %7300 = vmatpush1.bf16.msra.mxu0 %v7044
          %7301 = vmatprep.subr.bf16.mxu0 0
          %7302 = vmatpush1.bf16.msra.mxu0 %v7045
          %7303 = vmatprep.subr.bf16.mxu0 0
          %7304 = vmatpush1.bf16.msra.mxu0 %v7046
          %7305 = vmatprep.subr.bf16.mxu0 0
          %7306 = vmatpush1.bf16.msra.mxu0 %v7047
          %7307 = vmatprep.subr.bf16.mxu0 0
          %7308 = vmatpush1.bf16.msra.mxu0 %v7048
          %7309 = vmatprep.subr.bf16.mxu0 0
          %7310 = vmatpush1.bf16.msra.mxu0 %v7049
          %7311 = vmatprep.subr.bf16.mxu0 0
          %7312 = vmatpush1.bf16.msra.mxu0 %v7050
          %7313 = vmatprep.subr.bf16.mxu0 0
          %7314 = vmatpush1.bf16.msra.mxu0 %v7051
          %7315 = vmatprep.subr.bf16.mxu0 0
          %7316 = vmatpush1.bf16.msra.mxu0 %v7052
          %7317 = vmatprep.mubr.bf16.mxu0 %v6337
          %7318 = vmatmul.mubr.bf16.gmra.mrb[0].mxu0 %v6336
          %v7319 = vpop.f32.mrb[0].mxu0
          %v7320 = vadd.f32 %v7280, %v7319
          %v7321 = vpop.f32.mrb[0].mxu0
          %v7322 = vpop.f32.mrb[0].mxu0
          %v7323 = vpop.f32.mrb[0].mxu0
          %7324 = vdwg.mxu0
          %7325 = vmatprep.subr.bf16.mxu0 0
          %7326 = vmatpush1.bf16.msra.mxu0 %v7053
          %7327 = vmatprep.subr.bf16.mxu0 0
          %7328 = vmatpush1.bf16.msra.mxu0 %v7054
          %7329 = vmatprep.subr.bf16.mxu0 0
          %7330 = vmatpush1.bf16.msra.mxu0 %v7055
          %7331 = vmatprep.subr.bf16.mxu0 0
          %7332 = vmatpush1.bf16.msra.mxu0 %v7056
          %7333 = vmatprep.subr.bf16.mxu0 0
          %7334 = vmatpush1.bf16.msra.mxu0 %v7057
          %7335 = vmatprep.subr.bf16.mxu0 0
          %7336 = vmatpush1.bf16.msra.mxu0 %v7058
          %7337 = vmatprep.subr.bf16.mxu0 0
          %7338 = vmatpush1.bf16.msra.mxu0 %v7059
          %7339 = vmatprep.subr.bf16.mxu0 0
          %7340 = vmatpush1.bf16.msra.mxu0 %v7060
          %7341 = vmatprep.subr.bf16.mxu0 0
          %7342 = vmatpush1.bf16.msra.mxu0 %v7061
          %7343 = vmatprep.subr.bf16.mxu0 0
          %7344 = vmatpush1.bf16.msra.mxu0 %v7062
          %7345 = vmatprep.subr.bf16.mxu0 0
          %7346 = vmatpush1.bf16.msra.mxu0 %v7063
          %7347 = vmatprep.subr.bf16.mxu0 0
          %7348 = vmatpush1.bf16.msra.mxu0 %v7064
          %7349 = vmatprep.subr.bf16.mxu0 0
          %7350 = vmatpush1.bf16.msra.mxu0 %v7065
          %7351 = vmatprep.subr.bf16.mxu0 0
          %7352 = vmatpush1.bf16.msra.mxu0 %v7066
          %7353 = vmatprep.subr.bf16.mxu0 0
          %7354 = vmatpush1.bf16.msra.mxu0 %v7067
          %7355 = vmatprep.subr.bf16.mxu0 0
          %7356 = vmatpush1.bf16.msra.mxu0 %v7068
          %7357 = vmatprep.mubr.bf16.mxu0 %v6339
          %7358 = vmatmul.mubr.bf16.gmra.mrb[0].mxu0 %v6338
          %v7359 = vpop.f32.mrb[0].mxu0
          %v7360 = vadd.f32 %v7320, %v7359
          %v7361 = vpop.f32.mrb[0].mxu0
          %v7362 = vpop.f32.mrb[0].mxu0
          %v7363 = vpop.f32.mrb[0].mxu0
          %7364 = vdwg.mxu0
          %7365 = vmatprep.subr.bf16.mxu0 0
          %7366 = vmatpush1.bf16.msra.mxu0 %v7069
          %7367 = vmatprep.subr.bf16.mxu0 0
          %7368 = vmatpush1.bf16.msra.mxu0 %v7070
          %7369 = vmatprep.subr.bf16.mxu0 0
          %7370 = vmatpush1.bf16.msra.mxu0 %v7071
          %7371 = vmatprep.subr.bf16.mxu0 0
          %7372 = vmatpush1.bf16.msra.mxu0 %v7072
          %7373 = vmatprep.subr.bf16.mxu0 0
          %7374 = vmatpush1.bf16.msra.mxu0 %v7073
          %7375 = vmatprep.subr.bf16.mxu0 0
          %7376 = vmatpush1.bf16.msra.mxu0 %v7074
          %7377 = vmatprep.subr.bf16.mxu0 0
          %7378 = vmatpush1.bf16.msra.mxu0 %v7075
          %7379 = vmatprep.subr.bf16.mxu0 0
          %7380 = vmatpush1.bf16.msra.mxu0 %v7076
          %7381 = vmatprep.subr.bf16.mxu0 0
          %7382 = vmatpush1.bf16.msra.mxu0 %v7077
          %7383 = vmatprep.subr.bf16.mxu0 0
          %7384 = vmatpush1.bf16.msra.mxu0 %v7078
          %7385 = vmatprep.subr.bf16.mxu0 0
          %7386 = vmatpush1.bf16.msra.mxu0 %v7079
          %7387 = vmatprep.subr.bf16.mxu0 0
          %7388 = vmatpush1.bf16.msra.mxu0 %v7080
          %7389 = vmatprep.subr.bf16.mxu0 0
          %7390 = vmatpush1.bf16.msra.mxu0 %v7081
          %7391 = vmatprep.subr.bf16.mxu0 0
          %7392 = vmatpush1.bf16.msra.mxu0 %v7082
          %7393 = vmatprep.subr.bf16.mxu0 0
          %7394 = vmatpush1.bf16.msra.mxu0 %v7083
          %7395 = vmatprep.subr.bf16.mxu0 0
          %7396 = vmatpush1.bf16.msra.mxu0 %v7084
          %7397 = vmatprep.mubr.bf16.mxu0 %v6341
          %7398 = vmatmul.mubr.bf16.gmra.mrb[0].mxu0 %v6340
          %v7399 = vpop.f32.mrb[0].mxu0
          %v7400 = vadd.f32 %v7360, %v7399
          %v7401 = vpop.f32.mrb[0].mxu0
          %v7402 = vpop.f32.mrb[0].mxu0
          %v7403 = vpop.f32.mrb[0].mxu0
          %7404 = vdwg.mxu0
          %7405 = vmatprep.subr.bf16.mxu0 0
          %7406 = vmatpush1.bf16.msra.mxu0 %v7085
          %7407 = vmatprep.subr.bf16.mxu0 0
          %7408 = vmatpush1.bf16.msra.mxu0 %v7086
          %7409 = vmatprep.subr.bf16.mxu0 0
          %7410 = vmatpush1.bf16.msra.mxu0 %v7087
          %7411 = vmatprep.subr.bf16.mxu0 0
          %7412 = vmatpush1.bf16.msra.mxu0 %v7088
          %7413 = vmatprep.subr.bf16.mxu0 0
          %7414 = vmatpush1.bf16.msra.mxu0 %v7089
          %7415 = vmatprep.subr.bf16.mxu0 0
          %7416 = vmatpush1.bf16.msra.mxu0 %v7090
          %7417 = vmatprep.subr.bf16.mxu0 0
          %7418 = vmatpush1.bf16.msra.mxu0 %v7091
          %7419 = vmatprep.subr.bf16.mxu0 0
          %7420 = vmatpush1.bf16.msra.mxu0 %v7092
          %7421 = vmatprep.subr.bf16.mxu0 0
          %7422 = vmatpush1.bf16.msra.mxu0 %v7093
          %7423 = vmatprep.subr.bf16.mxu0 0
          %7424 = vmatpush1.bf16.msra.mxu0 %v7094
          %7425 = vmatprep.subr.bf16.mxu0 0
          %7426 = vmatpush1.bf16.msra.mxu0 %v7095
          %7427 = vmatprep.subr.bf16.mxu0 0
          %7428 = vmatpush1.bf16.msra.mxu0 %v7096
          %7429 = vmatprep.subr.bf16.mxu0 0
          %7430 = vmatpush1.bf16.msra.mxu0 %v7097
          %7431 = vmatprep.subr.bf16.mxu0 0
          %7432 = vmatpush1.bf16.msra.mxu0 %v7098
          %7433 = vmatprep.subr.bf16.mxu0 0
          %7434 = vmatpush1.bf16.msra.mxu0 %v7099
          %7435 = vmatprep.subr.bf16.mxu0 0
          %7436 = vmatpush1.bf16.msra.mxu0 %v7100
          %7437 = vmatprep.mubr.bf16.mxu0 %v6343
          %7438 = vmatmul.mubr.bf16.gmra.mrb[0].mxu0 %v6342
          %v7439 = vpop.f32.mrb[0].mxu0
          %v7440 = vadd.f32 %v7400, %v7439
          %v7441 = vpop.f32.mrb[0].mxu0
          %v7442 = vpop.f32.mrb[0].mxu0
          %v7443 = vpop.f32.mrb[0].mxu0
          %7444 = vdwg.mxu0
          %7445 = vmatprep.subr.bf16.mxu0 0
          %7446 = vmatpush1.bf16.msra.mxu0 %v7101
          %7447 = vmatprep.subr.bf16.mxu0 0
          %7448 = vmatpush1.bf16.msra.mxu0 %v7102
          %7449 = vmatprep.subr.bf16.mxu0 0
          %7450 = vmatpush1.bf16.msra.mxu0 %v7103
          %7451 = vmatprep.subr.bf16.mxu0 0
          %7452 = vmatpush1.bf16.msra.mxu0 %v7104
          %7453 = vmatprep.subr.bf16.mxu0 0
          %7454 = vmatpush1.bf16.msra.mxu0 %v7105
          %7455 = vmatprep.subr.bf16.mxu0 0
          %7456 = vmatpush1.bf16.msra.mxu0 %v7106
          %7457 = vmatprep.subr.bf16.mxu0 0
          %7458 = vmatpush1.bf16.msra.mxu0 %v7107
          %7459 = vmatprep.subr.bf16.mxu0 0
          %7460 = vmatpush1.bf16.msra.mxu0 %v7108
          %7461 = vmatprep.subr.bf16.mxu0 0
          %7462 = vmatpush1.bf16.msra.mxu0 %v7109
          %7463 = vmatprep.subr.bf16.mxu0 0
          %7464 = vmatpush1.bf16.msra.mxu0 %v7110
          %7465 = vmatprep.subr.bf16.mxu0 0
          %7466 = vmatpush1.bf16.msra.mxu0 %v7111
          %7467 = vmatprep.subr.bf16.mxu0 0
          %7468 = vmatpush1.bf16.msra.mxu0 %v7112
          %7469 = vmatprep.subr.bf16.mxu0 0
          %7470 = vmatpush1.bf16.msra.mxu0 %v7113
          %7471 = vmatprep.subr.bf16.mxu0 0
          %7472 = vmatpush1.bf16.msra.mxu0 %v7114
          %7473 = vmatprep.subr.bf16.mxu0 0
          %7474 = vmatpush1.bf16.msra.mxu0 %v7115
          %7475 = vmatprep.subr.bf16.mxu0 0
          %7476 = vmatpush1.bf16.msra.mxu0 %v7116
          %7477 = vmatprep.mubr.bf16.mxu0 %v6345
          %7478 = vmatmul.mubr.bf16.gmra.mrb[0].mxu0 %v6344
          %v7479 = vpop.f32.mrb[0].mxu0
          %v7480 = vadd.f32 %v7440, %v7479
          %v7481 = vpop.f32.mrb[0].mxu0
          %v7482 = vpop.f32.mrb[0].mxu0
          %v7483 = vpop.f32.mrb[0].mxu0
          %7484 = vdwg.mxu0
          %7485 = vmatprep.subr.bf16.mxu0 0
          %7486 = vmatpush1.bf16.msra.mxu0 %v7117
          %7487 = vmatprep.subr.bf16.mxu0 0
          %7488 = vmatpush1.bf16.msra.mxu0 %v7118
          %7489 = vmatprep.subr.bf16.mxu0 0
          %7490 = vmatpush1.bf16.msra.mxu0 %v7119
          %7491 = vmatprep.subr.bf16.mxu0 0
          %7492 = vmatpush1.bf16.msra.mxu0 %v7120
          %7493 = vmatprep.subr.bf16.mxu0 0
          %7494 = vmatpush1.bf16.msra.mxu0 %v7121
          %7495 = vmatprep.subr.bf16.mxu0 0
          %7496 = vmatpush1.bf16.msra.mxu0 %v7122
          %7497 = vmatprep.subr.bf16.mxu0 0
          %7498 = vmatpush1.bf16.msra.mxu0 %v7123
          %7499 = vmatprep.subr.bf16.mxu0 0
          %7500 = vmatpush1.bf16.msra.mxu0 %v7124
          %7501 = vmatprep.subr.bf16.mxu0 0
          %7502 = vmatpush1.bf16.msra.mxu0 %v7125
          %7503 = vmatprep.subr.bf16.mxu0 0
          %7504 = vmatpush1.bf16.msra.mxu0 %v7126
          %7505 = vmatprep.subr.bf16.mxu0 0
          %7506 = vmatpush1.bf16.msra.mxu0 %v7127
          %7507 = vmatprep.subr.bf16.mxu0 0
          %7508 = vmatpush1.bf16.msra.mxu0 %v7128
          %7509 = vmatprep.subr.bf16.mxu0 0
          %7510 = vmatpush1.bf16.msra.mxu0 %v7129
          %7511 = vmatprep.subr.bf16.mxu0 0
          %7512 = vmatpush1.bf16.msra.mxu0 %v7130
          %7513 = vmatprep.subr.bf16.mxu0 0
          %7514 = vmatpush1.bf16.msra.mxu0 %v7131
          %7515 = vmatprep.subr.bf16.mxu0 0
          %7516 = vmatpush1.bf16.msra.mxu0 %v7132
          %7517 = vmatprep.mubr.bf16.mxu0 %v6347
          %7518 = vmatmul.mubr.bf16.gmra.mrb[0].mxu0 %v6346
          %v7519 = vpop.f32.mrb[0].mxu0
          %v7520 = vadd.f32 %v7480, %v7519
          %v7521 = vpop.f32.mrb[0].mxu0
          %v7522 = vpop.f32.mrb[0].mxu0
          %v7523 = vpop.f32.mrb[0].mxu0
          %7524 = vdwg.mxu0
          %v7525 = vxor.u32 %v7520, 2147483648
          %v7526 = vmul.f32 %v7525, 1.442695
          %v7527 = vpow.pop %v7526
          %v7528 = vadd.f32 %v7527, 1.0
          %v7529 = vrcp.pop %v7528
          %v7530 = vmul.f32 1.0, %v7529
          %7531 = vst [vmem:[%s277] sm:$0x1] %v7530
        $region52: #{cnn_model_forward.5} parent=43 // pred_fallthru
          _
        %s7532 = sand.u32 %s178, 1
        %s7533 = scalar_lea.sflag [#allocation4], %s7532
        %s7534 = sand.u32 %s178, 1
        %s7535 = scalar_lea.vmem [#allocation3], %s7534
        // Predicated region
        $region53: #{cnn_model_forward.5} parent=43 // pred_check
          %p7536 = pneg %p188
        $region54: #{cnn_model_forward.5} parent=43 // pred_check_branch
          %7538 = sbr.rel (%p7536) target = $region56
        $region55: #{cnn_model_forward.5} parent=43 // pred_region
          %s7540 = ssub.s32 16, 16
          %7541 = vsyncadd %s7533, %s7540
          %s7542 = smul.addr %s24, 16
          %s7543 = scalar_lea.hbm %s6, %s7542
          %s7545 = sshll.u32 %s7535, 4
          %s7546 = int_to_ptr.vmem [resolvable:$true] %s7545
          %7548 = dma.vmem_to_hbm [thread:$0]  %s7546, 16, %s7543, %s7533
        $region56: #{cnn_model_forward.5} parent=43 // pred_fallthru
          _
      $region44: #{cnn_model_forward.5} parent=5 // pred_fallthru
        _
      %p7549 = scmp.le.s32.totalorder 2, %s15
      // Predicated region
      $region57: #{cnn_model_forward.5} parent=5 // pred_check
        %p7550 = pneg %p7549
      $region58: #{cnn_model_forward.5} parent=5 // pred_check_branch
        %7552 = sbr.rel (%p7550) target = $region60
      $region59: #{cnn_model_forward.5} parent=5 // pred_region
        %s7553 = ssub.s32 %s15, 2
        // Predicated region
        $region61: #{cnn_model_forward.5} parent=59 // pred_check
          %p7554 = pneg %p194
        $region62: #{cnn_model_forward.5} parent=59 // pred_check_branch
          %7556 = sbr.rel (%p7554) target = $region64
        $region63: #{cnn_model_forward.5} parent=59 // pred_region
          %s7557 = sand.u32 %s179, 1
          %s7558 = scalar_lea.sflag [#allocation4], %s7557
          %s7559 = sand.u32 %s179, 1
          %s7560 = scalar_lea.vmem [#allocation3], %s7559
          %7561 = dma.done %s7558, 16
        $region64: #{cnn_model_forward.5} parent=59 // pred_fallthru
          _
      $region60: #{cnn_model_forward.5} parent=5 // pred_fallthru
        _
    $region6: #{cnn_model_forward.5} parent=1 // loop_footer
      %s19 = sadd.s32 1, %s15
    $region7: #{cnn_model_forward.5} parent=1 // loop_footer_branch
      %14 = sbr.rel target = $region3
    $region8: #{cnn_model_forward.5} parent=1 // loop_exit
      _
    %7562 = vsyncpa [#allocation4], 1
    %s7563 = scalar_lea.sflag [#allocation4], 1
    %7564 = vsyncpa %s7563, 1

</llo_original>
